<compile_context>
chip_gen: v5e
topology: v5e:2x2
jax: 0.10.0
libtpu: 0.0.40
codegen_flags: <defaults>
</compile_context>

<pallas_src>
import jax
import jax.numpy as jnp
from jax import lax
from jax.experimental import pallas as pl
from jax.experimental.pallas import tpu as pltpu

KH = 5            # conv / pool kernel height
POOL_STRIDE = 4   # pool stride along H
BN_EPS = 1e-5
NUM_CLASSES = 6


# ----------------------------------------------------------------------------
# Fused Pallas kernel (closure over the static layer geometry)
# ----------------------------------------------------------------------------
def _build_fused_kernel(n_rows, batch, width, h_in, cins, couts, hcs, hps,
                        num_classes):
    """Fused conv1..conv3 (+BN+ReLU+pool) + classifier.

    Ref order (positional):
      x,                                   # (N*H, 1) bf16, row = (w*B+b)*H + h
      [w_l, scale_l, shift_l  for l],      # dense (KH*Cin, Cout) bf16 + f32 BN
      wcl, bcl,                            # classifier (W*H3, C3, S) bf16, (1,S)
      o_ref,                               # (B, num_classes) f32 logits
      [cols_l, y_l, z_l       for l]       # VMEM scratch per block
    """
    nb = len(cins)
    h3 = hps[-1]
    f32 = jnp.float32
    bf16 = jnp.bfloat16

    def kernel(*refs):
        it = iter(refs)
        x_ref = next(it)
        blk_refs = [tuple(next(it) for _ in range(3)) for _ in range(nb)]
        wcl_ref = next(it)
        bcl_ref = next(it)
        o_ref = next(it)
        scr_refs = [tuple(next(it) for _ in range(3)) for _ in range(nb)]

        zprev_ref, hprev = x_ref, h_in
        for l in range(nb):
            cin, cout, hc, hp = cins[l], couts[l], hcs[l], hps[l]
            w_ref, sc_ref, sh_ref = blk_refs[l]
            cols_ref, y_ref, z_ref = scr_refs[l]

            # ---- im2col: KH shifted views -> lane-offset columns (bf16) ----
            for nn in range(n_rows):
                src, dst = nn * hprev, nn * hc
                for k in range(KH):
                    cols_ref[dst:dst + hc, k * cin:(k + 1) * cin] = (
                        zprev_ref[src + k:src + k + hc, :])

            # ---- one merged-K MXU matmul (bf16 x bf16 -> f32) + BN + ReLU ----
            y = jnp.dot(cols_ref[...], w_ref[...], preferred_element_type=f32)
            y_ref[...] = jnp.maximum(y * sc_ref[...] + sh_ref[...], 0.0)

            # ---- max-pool (kernel KH, stride 4) along H, f32 on the VPU ----
            for nn in range(n_rows):
                base = nn * hc
                if hp == 1:
                    p = y_ref[base:base + 1, :]
                    for t in range(1, KH):
                        p = jnp.maximum(p, y_ref[base + t:base + t + 1, :])
                else:
                    p = y_ref[pl.ds(base, hp, stride=POOL_STRIDE), :]
                    for t in range(1, KH):
                        p = jnp.maximum(
                            p, y_ref[pl.ds(base + t, hp, stride=POOL_STRIDE), :])
                z_ref[nn * hp:(nn + 1) * hp, :] = p.astype(bf16)

            zprev_ref, hprev = z_ref, hp

        # ---- classifier: per (w, h3) position one dense (B,C3)x(C3,S) dot ----
        acc = jnp.zeros((batch, num_classes), f32)
        for ww in range(width):
            for hh in range(h3):
                if h3 == 1:
                    zsl = zprev_ref[ww * batch:(ww + 1) * batch, :]
                else:
                    zsl = zprev_ref[pl.ds(ww * batch * h3 + hh, batch, stride=h3), :]
                acc = acc + jnp.dot(zsl, wcl_ref[ww * h3 + hh],
                                    preferred_element_type=f32)
        o_ref[...] = acc + bcl_ref[...]

    return kernel


# ----------------------------------------------------------------------------
# One-time parameter packing (kept OUT of the per-call path)
# ----------------------------------------------------------------------------
def fold_params(raw, h, w):
    """Fold BN into scale/shift, pack conv weights as dense (KH*Cin, Cout)
    bf16, and rearrange the classifier for the kernel's (w, h, c) layout."""
    f32 = jnp.float32
    blocks_out = []
    h_cur = h
    for blk in raw["blocks"]:
        cout, cin = blk["w"].shape[0], blk["w"].shape[1]
        w2 = jnp.transpose(blk["w"][:, :, :, 0], (2, 1, 0)).reshape(KH * cin, cout)
        scale = blk["gamma"] / jnp.sqrt(blk["var"] + BN_EPS)
        shift = blk["beta"] + (blk["b"] - blk["mean"]) * scale
        blocks_out.append(dict(
            w=w2.astype(jnp.bfloat16),
            scale=scale[None, :].astype(f32),
            shift=shift[None, :].astype(f32)))
        hc = h_cur - KH + 1
        h_cur = (hc - KH) // POOL_STRIDE + 1

    c_last, h3 = raw["blocks"][-1]["w"].shape[0], h_cur
    s = raw["wc"].shape[0]
    assert raw["wc"].shape[1] == c_last * h3 * w, "classifier dims mismatch"
    # PyTorch flatten(1) order is (c, h, w); kernel activation order is (w, h, c)
    wc_r = raw["wc"].reshape(s, c_last, h3, w)
    wcl = jnp.transpose(wc_r, (3, 2, 1, 0)).reshape(w * h3, c_last, s)
    return dict(blocks=blocks_out,
                wcl=wcl.astype(jnp.bfloat16),
                bcl=raw["bc"][None, :].astype(f32))


# ----------------------------------------------------------------------------
# Jitted wrapper: input layout fold + the single pallas_call
# ----------------------------------------------------------------------------
def har_forward(params, x):
    b, cin0, h, w = x.shape
    assert cin0 == 1, "HARModel expects a single input channel"
    n = b * w
    blocks = params["blocks"]
    nb = len(blocks)

    # static geometry (resolved at trace time)
    cins = [blk["w"].shape[0] // KH for blk in blocks]
    couts = [blk["w"].shape[1] for blk in blocks]
    hcs, hps = [], []
    h_cur = h
    for _ in range(nb):
        hc = h_cur - KH + 1
        hp = (hc - KH) // POOL_STRIDE + 1
        hcs.append(hc)
        hps.append(hp)
        h_cur = hp
    assert cins[0] == 1 and all(cins[l] == couts[l - 1] for l in range(1, nb))
    num_classes = params["bcl"].shape[1]
    assert params["wcl"].shape == (w * hps[-1], couts[-1], num_classes)

    # (B, 1, H, W) -> (N*H, 1) with row index (w*B + b)*H + h; bf16 MXU operand
    x_fold = jnp.transpose(x[:, 0, :, :], (2, 0, 1)).reshape(n * h, 1)
    x_fold = x_fold.astype(jnp.bfloat16)

    operands = [x_fold]
    for blk in blocks:
        operands += [blk["w"], blk["scale"], blk["shift"]]
    operands += [params["wcl"], params["bcl"]]

    scratch_shapes = []
    for l in range(nb):
        scratch_shapes += [
            pltpu.VMEM((n * hcs[l], KH * cins[l]), jnp.bfloat16),  # im2col
            pltpu.VMEM((n * hcs[l], couts[l]), jnp.float32),       # conv+BN+ReLU
            pltpu.VMEM((n * hps[l], couts[l]), jnp.bfloat16),      # pooled
        ]

    out = pl.pallas_call(
        _build_fused_kernel(n, b, w, h, cins, couts, hcs, hps, num_classes),
        out_shape=jax.ShapeDtypeStruct((b, num_classes), jnp.float32),
        in_specs=[pl.BlockSpec(memory_space=pltpu.MemorySpace.VMEM)
                  for _ in operands],
        out_specs=pl.BlockSpec(memory_space=pltpu.MemorySpace.VMEM),
        scratch_shapes=scratch_shapes,
        compiler_params=pltpu.CompilerParams(
            vmem_limit_bytes=32 * 1024 * 1024),
    )(*operands)
    return out


# ----------------------------------------------------------------------------
# Parameters (deterministic, synthetic) and pure-JAX reference
# ----------------------------------------------------------------------------
def make_raw_params(key, dims):
    blocks = []
    cins = [1] + list(dims[:2])
    for cin, cout in zip(cins, dims[:3]):
        key, k1, k2, k3, k4, k5, k6 = jax.random.split(key, 7)
        blocks.append(dict(
            w=jax.random.normal(k1, (cout, cin, KH, 1), jnp.float32)
              / jnp.sqrt(float(cin * KH)),
            b=0.1 * jax.random.normal(k2, (cout,), jnp.float32),
            gamma=jax.random.uniform(k3, (cout,), jnp.float32, 0.5, 1.5),
            beta=0.1 * jax.random.normal(k4, (cout,), jnp.float32),
            mean=0.1 * jax.random.normal(k5, (cout,), jnp.float32),
            var=jax.random.uniform(k6, (cout,), jnp.float32, 0.5, 1.5),
        ))
    key, k1, k2 = jax.random.split(key, 3)
    wc = jax.random.normal(k1, (NUM_CLASSES, dims[3]), jnp.float32) \
        / jnp.sqrt(float(dims[3]))
    bc = 0.1 * jax.random.normal(k2, (NUM_CLASSES,), jnp.float32)
    return dict(blocks=blocks, wc=wc, bc=bc)


def reference_forward(raw, x):
    z = x
    for blk in raw["blocks"]:
        z = lax.conv_general_dilated(
            z, blk["w"], window_strides=(1, 1), padding="VALID",
            dimension_numbers=("NCHW", "OIHW", "NCHW"))
        z = z + blk["b"][None, :, None, None]
        z = (z - blk["mean"][None, :, None, None]) / jnp.sqrt(
            blk["var"][None, :, None, None] + BN_EPS)
        z = z * blk["gamma"][None, :, None, None] + blk["beta"][None, :, None, None]
        z = jnp.maximum(z, 0.0)
        z = lax.reduce_window(z, -jnp.inf, lax.max,
                              (1, 1, KH, 1), (1, 1, POOL_STRIDE, 1), "VALID")
    feat = z.reshape(z.shape[0], -1)
    return feat @ raw["wc"].T + raw["bc"]


# ----------------------------------------------------------------------------
if __name__ == "__main__":
    dims = [32, 64, 128, 256]      # small-dims instance of HARModel(dims=...)
    B, CIN, H, W = 2, 1, 169, 2    # conv3 output (B,128,1,2) -> flatten=256=dims[3]

    key = jax.random.PRNGKey(0)
    key, kx = jax.random.split(key)
    x = jax.random.normal(kx, (B, CIN, H, W), jnp.float32)

    raw = make_raw_params(key, dims)
    params = fold_params(raw, H, W)          # one-time packing (not per call)

    fwd = jax.jit(har_forward)
    out = jax.block_until_ready(fwd(params, x))
    ref = reference_forward(raw, x)

    assert out.shape == (B, NUM_CLASSES), out.shape
    # bf16 MXU operands vs. f32 reference: allow ~5% of the logit scale.
    err = float(jnp.max(jnp.abs(out - ref))
                / jnp.maximum(1.0, jnp.max(jnp.abs(ref))))
    assert err < 5e-2, (err, out, ref)
    print("KERNEL_OK")
</pallas_src>

<mosaic_0001>
module attributes {stable_mosaic.version = 11 : i64} {
  func.func @kernel(%arg0: memref<676x1xbf16, #tpu.memory_space<vmem>>, %arg1: memref<5x32xbf16, #tpu.memory_space<vmem>>, %arg2: memref<1x32xf32, #tpu.memory_space<vmem>>, %arg3: memref<1x32xf32, #tpu.memory_space<vmem>>, %arg4: memref<160x64xbf16, #tpu.memory_space<vmem>>, %arg5: memref<1x64xf32, #tpu.memory_space<vmem>>, %arg6: memref<1x64xf32, #tpu.memory_space<vmem>>, %arg7: memref<320x128xbf16, #tpu.memory_space<vmem>>, %arg8: memref<1x128xf32, #tpu.memory_space<vmem>>, %arg9: memref<1x128xf32, #tpu.memory_space<vmem>>, %arg10: memref<2x128x6xbf16, #tpu.memory_space<vmem>>, %arg11: memref<1x6xf32, #tpu.memory_space<vmem>>, %arg12: memref<2x6xf32, #tpu.memory_space<vmem>>, %arg13: memref<660x5xbf16, #tpu.memory_space<vmem>>, %arg14: memref<660x32xf32, #tpu.memory_space<vmem>>, %arg15: memref<164x32xbf16, #tpu.memory_space<vmem>>, %arg16: memref<148x160xbf16, #tpu.memory_space<vmem>>, %arg17: memref<148x64xf32, #tpu.memory_space<vmem>>, %arg18: memref<36x64xbf16, #tpu.memory_space<vmem>>, %arg19: memref<20x320xbf16, #tpu.memory_space<vmem>>, %arg20: memref<20x128xf32, #tpu.memory_space<vmem>>, %arg21: memref<4x128xbf16, #tpu.memory_space<vmem>>) attributes {dimension_semantics = [], scalar_prefetch = 0 : i64, scratch_operands = 9 : i64, tpu.core_type = #tpu.core_type<tc>} {
    %c0 = arith.constant 0 : index
    %c0_0 = arith.constant 0 : index
    %0 = vector.load %arg0[%c0, %c0_0] : memref<676x1xbf16, #tpu.memory_space<vmem>>, vector<165x1xbf16>
    %c0_1 = arith.constant 0 : index
    %c0_2 = arith.constant 0 : index
    %1 = vector.load %arg13[%c0_1, %c0_2] : memref<660x5xbf16, #tpu.memory_space<vmem>>, vector<165x1xbf16>
    tpu.vector_store %arg13[%c0_1, %c0_2], %0 {strides = array<i32>} : memref<660x5xbf16, #tpu.memory_space<vmem>>, vector<165x1xbf16>,
    %c1 = arith.constant 1 : index
    %c0_3 = arith.constant 0 : index
    %2 = vector.load %arg0[%c1, %c0_3] : memref<676x1xbf16, #tpu.memory_space<vmem>>, vector<165x1xbf16>
    %c0_4 = arith.constant 0 : index
    %c1_5 = arith.constant 1 : index
    %3 = vector.load %arg13[%c0_4, %c1_5] : memref<660x5xbf16, #tpu.memory_space<vmem>>, vector<165x1xbf16>
    tpu.vector_store %arg13[%c0_4, %c1_5], %2 {strides = array<i32>} : memref<660x5xbf16, #tpu.memory_space<vmem>>, vector<165x1xbf16>,
    %c2 = arith.constant 2 : index
    %c0_6 = arith.constant 0 : index
    %4 = vector.load %arg0[%c2, %c0_6] : memref<676x1xbf16, #tpu.memory_space<vmem>>, vector<165x1xbf16>
    %c0_7 = arith.constant 0 : index
    %c2_8 = arith.constant 2 : index
    %5 = vector.load %arg13[%c0_7, %c2_8] : memref<660x5xbf16, #tpu.memory_space<vmem>>, vector<165x1xbf16>
    tpu.vector_store %arg13[%c0_7, %c2_8], %4 {strides = array<i32>} : memref<660x5xbf16, #tpu.memory_space<vmem>>, vector<165x1xbf16>,
    %c3 = arith.constant 3 : index
    %c0_9 = arith.constant 0 : index
    %6 = vector.load %arg0[%c3, %c0_9] : memref<676x1xbf16, #tpu.memory_space<vmem>>, vector<165x1xbf16>
    %c0_10 = arith.constant 0 : index
    %c3_11 = arith.constant 3 : index
    %7 = vector.load %arg13[%c0_10, %c3_11] : memref<660x5xbf16, #tpu.memory_space<vmem>>, vector<165x1xbf16>
    tpu.vector_store %arg13[%c0_10, %c3_11], %6 {strides = array<i32>} : memref<660x5xbf16, #tpu.memory_space<vmem>>, vector<165x1xbf16>,
    %c4 = arith.constant 4 : index
    %c0_12 = arith.constant 0 : index
    %8 = vector.load %arg0[%c4, %c0_12] : memref<676x1xbf16, #tpu.memory_space<vmem>>, vector<165x1xbf16>
    %c0_13 = arith.constant 0 : index
    %c4_14 = arith.constant 4 : index
    %9 = vector.load %arg13[%c0_13, %c4_14] : memref<660x5xbf16, #tpu.memory_space<vmem>>, vector<165x1xbf16>
    tpu.vector_store %arg13[%c0_13, %c4_14], %8 {strides = array<i32>} : memref<660x5xbf16, #tpu.memory_space<vmem>>, vector<165x1xbf16>,
    %c169 = arith.constant 169 : index
    %c0_15 = arith.constant 0 : index
    %10 = vector.load %arg0[%c169, %c0_15] : memref<676x1xbf16, #tpu.memory_space<vmem>>, vector<165x1xbf16>
    %c165 = arith.constant 165 : index
    %c0_16 = arith.constant 0 : index
    %11 = vector.load %arg13[%c165, %c0_16] : memref<660x5xbf16, #tpu.memory_space<vmem>>, vector<165x1xbf16>
    tpu.vector_store %arg13[%c165, %c0_16], %10 {strides = array<i32>} : memref<660x5xbf16, #tpu.memory_space<vmem>>, vector<165x1xbf16>,
    %c170 = arith.constant 170 : index
    %c0_17 = arith.constant 0 : index
    %12 = vector.load %arg0[%c170, %c0_17] : memref<676x1xbf16, #tpu.memory_space<vmem>>, vector<165x1xbf16>
    %c165_18 = arith.constant 165 : index
    %c1_19 = arith.constant 1 : index
    %13 = vector.load %arg13[%c165_18, %c1_19] : memref<660x5xbf16, #tpu.memory_space<vmem>>, vector<165x1xbf16>
    tpu.vector_store %arg13[%c165_18, %c1_19], %12 {strides = array<i32>} : memref<660x5xbf16, #tpu.memory_space<vmem>>, vector<165x1xbf16>,
    %c171 = arith.constant 171 : index
    %c0_20 = arith.constant 0 : index
    %14 = vector.load %arg0[%c171, %c0_20] : memref<676x1xbf16, #tpu.memory_space<vmem>>, vector<165x1xbf16>
    %c165_21 = arith.constant 165 : index
    %c2_22 = arith.constant 2 : index
    %15 = vector.load %arg13[%c165_21, %c2_22] : memref<660x5xbf16, #tpu.memory_space<vmem>>, vector<165x1xbf16>
    tpu.vector_store %arg13[%c165_21, %c2_22], %14 {strides = array<i32>} : memref<660x5xbf16, #tpu.memory_space<vmem>>, vector<165x1xbf16>,
    %c172 = arith.constant 172 : index
    %c0_23 = arith.constant 0 : index
    %16 = vector.load %arg0[%c172, %c0_23] : memref<676x1xbf16, #tpu.memory_space<vmem>>, vector<165x1xbf16>
    %c165_24 = arith.constant 165 : index
    %c3_25 = arith.constant 3 : index
    %17 = vector.load %arg13[%c165_24, %c3_25] : memref<660x5xbf16, #tpu.memory_space<vmem>>, vector<165x1xbf16>
    tpu.vector_store %arg13[%c165_24, %c3_25], %16 {strides = array<i32>} : memref<660x5xbf16, #tpu.memory_space<vmem>>, vector<165x1xbf16>,
    %c173 = arith.constant 173 : index
    %c0_26 = arith.constant 0 : index
    %18 = vector.load %arg0[%c173, %c0_26] : memref<676x1xbf16, #tpu.memory_space<vmem>>, vector<165x1xbf16>
    %c165_27 = arith.constant 165 : index
    %c4_28 = arith.constant 4 : index
    %19 = vector.load %arg13[%c165_27, %c4_28] : memref<660x5xbf16, #tpu.memory_space<vmem>>, vector<165x1xbf16>
    tpu.vector_store %arg13[%c165_27, %c4_28], %18 {strides = array<i32>} : memref<660x5xbf16, #tpu.memory_space<vmem>>, vector<165x1xbf16>,
    %c338 = arith.constant 338 : index
    %c0_29 = arith.constant 0 : index
    %20 = vector.load %arg0[%c338, %c0_29] : memref<676x1xbf16, #tpu.memory_space<vmem>>, vector<165x1xbf16>
    %c330 = arith.constant 330 : index
    %c0_30 = arith.constant 0 : index
    %21 = vector.load %arg13[%c330, %c0_30] : memref<660x5xbf16, #tpu.memory_space<vmem>>, vector<165x1xbf16>
    tpu.vector_store %arg13[%c330, %c0_30], %20 {strides = array<i32>} : memref<660x5xbf16, #tpu.memory_space<vmem>>, vector<165x1xbf16>,
    %c339 = arith.constant 339 : index
    %c0_31 = arith.constant 0 : index
    %22 = vector.load %arg0[%c339, %c0_31] : memref<676x1xbf16, #tpu.memory_space<vmem>>, vector<165x1xbf16>
    %c330_32 = arith.constant 330 : index
    %c1_33 = arith.constant 1 : index
    %23 = vector.load %arg13[%c330_32, %c1_33] : memref<660x5xbf16, #tpu.memory_space<vmem>>, vector<165x1xbf16>
    tpu.vector_store %arg13[%c330_32, %c1_33], %22 {strides = array<i32>} : memref<660x5xbf16, #tpu.memory_space<vmem>>, vector<165x1xbf16>,
    %c340 = arith.constant 340 : index
    %c0_34 = arith.constant 0 : index
    %24 = vector.load %arg0[%c340, %c0_34] : memref<676x1xbf16, #tpu.memory_space<vmem>>, vector<165x1xbf16>
    %c330_35 = arith.constant 330 : index
    %c2_36 = arith.constant 2 : index
    %25 = vector.load %arg13[%c330_35, %c2_36] : memref<660x5xbf16, #tpu.memory_space<vmem>>, vector<165x1xbf16>
    tpu.vector_store %arg13[%c330_35, %c2_36], %24 {strides = array<i32>} : memref<660x5xbf16, #tpu.memory_space<vmem>>, vector<165x1xbf16>,
    %c341 = arith.constant 341 : index
    %c0_37 = arith.constant 0 : index
    %26 = vector.load %arg0[%c341, %c0_37] : memref<676x1xbf16, #tpu.memory_space<vmem>>, vector<165x1xbf16>
    %c330_38 = arith.constant 330 : index
    %c3_39 = arith.constant 3 : index
    %27 = vector.load %arg13[%c330_38, %c3_39] : memref<660x5xbf16, #tpu.memory_space<vmem>>, vector<165x1xbf16>
    tpu.vector_store %arg13[%c330_38, %c3_39], %26 {strides = array<i32>} : memref<660x5xbf16, #tpu.memory_space<vmem>>, vector<165x1xbf16>,
    %c342 = arith.constant 342 : index
    %c0_40 = arith.constant 0 : index
    %28 = vector.load %arg0[%c342, %c0_40] : memref<676x1xbf16, #tpu.memory_space<vmem>>, vector<165x1xbf16>
    %c330_41 = arith.constant 330 : index
    %c4_42 = arith.constant 4 : index
    %29 = vector.load %arg13[%c330_41, %c4_42] : memref<660x5xbf16, #tpu.memory_space<vmem>>, vector<165x1xbf16>
    tpu.vector_store %arg13[%c330_41, %c4_42], %28 {strides = array<i32>} : memref<660x5xbf16, #tpu.memory_space<vmem>>, vector<165x1xbf16>,
    %c507 = arith.constant 507 : index
    %c0_43 = arith.constant 0 : index
    %30 = vector.load %arg0[%c507, %c0_43] : memref<676x1xbf16, #tpu.memory_space<vmem>>, vector<165x1xbf16>
    %c495 = arith.constant 495 : index
    %c0_44 = arith.constant 0 : index
    %31 = vector.load %arg13[%c495, %c0_44] : memref<660x5xbf16, #tpu.memory_space<vmem>>, vector<165x1xbf16>
    tpu.vector_store %arg13[%c495, %c0_44], %30 {strides = array<i32>} : memref<660x5xbf16, #tpu.memory_space<vmem>>, vector<165x1xbf16>,
    %c508 = arith.constant 508 : index
    %c0_45 = arith.constant 0 : index
    %32 = vector.load %arg0[%c508, %c0_45] : memref<676x1xbf16, #tpu.memory_space<vmem>>, vector<165x1xbf16>
    %c495_46 = arith.constant 495 : index
    %c1_47 = arith.constant 1 : index
    %33 = vector.load %arg13[%c495_46, %c1_47] : memref<660x5xbf16, #tpu.memory_space<vmem>>, vector<165x1xbf16>
    tpu.vector_store %arg13[%c495_46, %c1_47], %32 {strides = array<i32>} : memref<660x5xbf16, #tpu.memory_space<vmem>>, vector<165x1xbf16>,
    %c509 = arith.constant 509 : index
    %c0_48 = arith.constant 0 : index
    %34 = vector.load %arg0[%c509, %c0_48] : memref<676x1xbf16, #tpu.memory_space<vmem>>, vector<165x1xbf16>
    %c495_49 = arith.constant 495 : index
    %c2_50 = arith.constant 2 : index
    %35 = vector.load %arg13[%c495_49, %c2_50] : memref<660x5xbf16, #tpu.memory_space<vmem>>, vector<165x1xbf16>
    tpu.vector_store %arg13[%c495_49, %c2_50], %34 {strides = array<i32>} : memref<660x5xbf16, #tpu.memory_space<vmem>>, vector<165x1xbf16>,
    %c510 = arith.constant 510 : index
    %c0_51 = arith.constant 0 : index
    %36 = vector.load %arg0[%c510, %c0_51] : memref<676x1xbf16, #tpu.memory_space<vmem>>, vector<165x1xbf16>
    %c495_52 = arith.constant 495 : index
    %c3_53 = arith.constant 3 : index
    %37 = vector.load %arg13[%c495_52, %c3_53] : memref<660x5xbf16, #tpu.memory_space<vmem>>, vector<165x1xbf16>
    tpu.vector_store %arg13[%c495_52, %c3_53], %36 {strides = array<i32>} : memref<660x5xbf16, #tpu.memory_space<vmem>>, vector<165x1xbf16>,
    %c511 = arith.constant 511 : index
    %c0_54 = arith.constant 0 : index
    %38 = vector.load %arg0[%c511, %c0_54] : memref<676x1xbf16, #tpu.memory_space<vmem>>, vector<165x1xbf16>
    %c495_55 = arith.constant 495 : index
    %c4_56 = arith.constant 4 : index
    %39 = vector.load %arg13[%c495_55, %c4_56] : memref<660x5xbf16, #tpu.memory_space<vmem>>, vector<165x1xbf16>
    tpu.vector_store %arg13[%c495_55, %c4_56], %38 {strides = array<i32>} : memref<660x5xbf16, #tpu.memory_space<vmem>>, vector<165x1xbf16>,
    %c0_57 = arith.constant 0 : index
    %c0_58 = arith.constant 0 : index
    %40 = vector.load %arg13[%c0_57, %c0_58] : memref<660x5xbf16, #tpu.memory_space<vmem>>, vector<660x5xbf16>
    %c0_59 = arith.constant 0 : index
    %c0_60 = arith.constant 0 : index
    %41 = vector.load %arg1[%c0_59, %c0_60] : memref<5x32xbf16, #tpu.memory_space<vmem>>, vector<5x32xbf16>
    %cst = arith.constant dense<0.000000e+00> : vector<660x32xf32>
    %42 = tpu.matmul %40, %41, %cst {dimension_numbers = #tpu.dot_dimension_numbers<[1], [0], [0], [1], [0, 0, 1, 1], [], []>} : vector<660x5xbf16>, vector<5x32xbf16>, vector<660x32xf32> -> vector<660x32xf32>
    %c0_61 = arith.constant 0 : index
    %c0_62 = arith.constant 0 : index
    %43 = vector.load %arg2[%c0_61, %c0_62] : memref<1x32xf32, #tpu.memory_space<vmem>>, vector<1x32xf32>
    %44 = vector.broadcast %43 : vector<1x32xf32> to vector<660x32xf32>
    %45 = arith.mulf %42, %44 : vector<660x32xf32>
    %c0_63 = arith.constant 0 : index
    %c0_64 = arith.constant 0 : index
    %46 = vector.load %arg3[%c0_63, %c0_64] : memref<1x32xf32, #tpu.memory_space<vmem>>, vector<1x32xf32>
    %47 = vector.broadcast %46 : vector<1x32xf32> to vector<660x32xf32>
    %48 = arith.addf %45, %47 : vector<660x32xf32>
    %cst_65 = arith.constant 0.000000e+00 : f32
    %49 = vector.broadcast %cst_65 : f32 to vector<660x32xf32>
    %50 = arith.maximumf %48, %49 : vector<660x32xf32>
    %c0_66 = arith.constant 0 : index
    %c0_67 = arith.constant 0 : index
    %51 = vector.load %arg14[%c0_66, %c0_67] : memref<660x32xf32, #tpu.memory_space<vmem>>, vector<660x32xf32>
    tpu.vector_store %arg14[%c0_66, %c0_67], %50 {strides = array<i32>} : memref<660x32xf32, #tpu.memory_space<vmem>>, vector<660x32xf32>,
    %c0_68 = arith.constant 0 : index
    %c0_69 = arith.constant 0 : index
    %52 = tpu.strided_load %arg14[%c0_68, %c0_69] {strides = array<i32: 4, 1>} : memref<660x32xf32, #tpu.memory_space<vmem>>, vector<41x32xf32>
    %c1_70 = arith.constant 1 : index
    %c0_71 = arith.constant 0 : index
    %53 = tpu.strided_load %arg14[%c1_70, %c0_71] {strides = array<i32: 4, 1>} : memref<660x32xf32, #tpu.memory_space<vmem>>, vector<41x32xf32>
    %54 = arith.maximumf %52, %53 : vector<41x32xf32>
    %c2_72 = arith.constant 2 : index
    %c0_73 = arith.constant 0 : index
    %55 = tpu.strided_load %arg14[%c2_72, %c0_73] {strides = array<i32: 4, 1>} : memref<660x32xf32, #tpu.memory_space<vmem>>, vector<41x32xf32>
    %56 = arith.maximumf %54, %55 : vector<41x32xf32>
    %c3_74 = arith.constant 3 : index
    %c0_75 = arith.constant 0 : index
    %57 = tpu.strided_load %arg14[%c3_74, %c0_75] {strides = array<i32: 4, 1>} : memref<660x32xf32, #tpu.memory_space<vmem>>, vector<41x32xf32>
    %58 = arith.maximumf %56, %57 : vector<41x32xf32>
    %c4_76 = arith.constant 4 : index
    %c0_77 = arith.constant 0 : index
    %59 = tpu.strided_load %arg14[%c4_76, %c0_77] {strides = array<i32: 4, 1>} : memref<660x32xf32, #tpu.memory_space<vmem>>, vector<41x32xf32>
    %60 = arith.maximumf %58, %59 : vector<41x32xf32>
    %61 = arith.truncf %60 : vector<41x32xf32> to vector<41x32xbf16>
    %c0_78 = arith.constant 0 : index
    %c0_79 = arith.constant 0 : index
    %62 = vector.load %arg15[%c0_78, %c0_79] : memref<164x32xbf16, #tpu.memory_space<vmem>>, vector<41x32xbf16>
    tpu.vector_store %arg15[%c0_78, %c0_79], %61 {strides = array<i32>} : memref<164x32xbf16, #tpu.memory_space<vmem>>, vector<41x32xbf16>,
    %c165_80 = arith.constant 165 : index
    %c0_81 = arith.constant 0 : index
    %63 = tpu.strided_load %arg14[%c165_80, %c0_81] {strides = array<i32: 4, 1>} : memref<660x32xf32, #tpu.memory_space<vmem>>, vector<41x32xf32>
    %c166 = arith.constant 166 : index
    %c0_82 = arith.constant 0 : index
    %64 = tpu.strided_load %arg14[%c166, %c0_82] {strides = array<i32: 4, 1>} : memref<660x32xf32, #tpu.memory_space<vmem>>, vector<41x32xf32>
    %65 = arith.maximumf %63, %64 : vector<41x32xf32>
    %c167 = arith.constant 167 : index
    %c0_83 = arith.constant 0 : index
    %66 = tpu.strided_load %arg14[%c167, %c0_83] {strides = array<i32: 4, 1>} : memref<660x32xf32, #tpu.memory_space<vmem>>, vector<41x32xf32>
    %67 = arith.maximumf %65, %66 : vector<41x32xf32>
    %c168 = arith.constant 168 : index
    %c0_84 = arith.constant 0 : index
    %68 = tpu.strided_load %arg14[%c168, %c0_84] {strides = array<i32: 4, 1>} : memref<660x32xf32, #tpu.memory_space<vmem>>, vector<41x32xf32>
    %69 = arith.maximumf %67, %68 : vector<41x32xf32>
    %c169_85 = arith.constant 169 : index
    %c0_86 = arith.constant 0 : index
    %70 = tpu.strided_load %arg14[%c169_85, %c0_86] {strides = array<i32: 4, 1>} : memref<660x32xf32, #tpu.memory_space<vmem>>, vector<41x32xf32>
    %71 = arith.maximumf %69, %70 : vector<41x32xf32>
    %72 = arith.truncf %71 : vector<41x32xf32> to vector<41x32xbf16>
    %c41 = arith.constant 41 : index
    %c0_87 = arith.constant 0 : index
    %73 = vector.load %arg15[%c41, %c0_87] : memref<164x32xbf16, #tpu.memory_space<vmem>>, vector<41x32xbf16>
    tpu.vector_store %arg15[%c41, %c0_87], %72 {strides = array<i32>} : memref<164x32xbf16, #tpu.memory_space<vmem>>, vector<41x32xbf16>,
    %c330_88 = arith.constant 330 : index
    %c0_89 = arith.constant 0 : index
    %74 = tpu.strided_load %arg14[%c330_88, %c0_89] {strides = array<i32: 4, 1>} : memref<660x32xf32, #tpu.memory_space<vmem>>, vector<41x32xf32>
    %c331 = arith.constant 331 : index
    %c0_90 = arith.constant 0 : index
    %75 = tpu.strided_load %arg14[%c331, %c0_90] {strides = array<i32: 4, 1>} : memref<660x32xf32, #tpu.memory_space<vmem>>, vector<41x32xf32>
    %76 = arith.maximumf %74, %75 : vector<41x32xf32>
    %c332 = arith.constant 332 : index
    %c0_91 = arith.constant 0 : index
    %77 = tpu.strided_load %arg14[%c332, %c0_91] {strides = array<i32: 4, 1>} : memref<660x32xf32, #tpu.memory_space<vmem>>, vector<41x32xf32>
    %78 = arith.maximumf %76, %77 : vector<41x32xf32>
    %c333 = arith.constant 333 : index
    %c0_92 = arith.constant 0 : index
    %79 = tpu.strided_load %arg14[%c333, %c0_92] {strides = array<i32: 4, 1>} : memref<660x32xf32, #tpu.memory_space<vmem>>, vector<41x32xf32>
    %80 = arith.maximumf %78, %79 : vector<41x32xf32>
    %c334 = arith.constant 334 : index
    %c0_93 = arith.constant 0 : index
    %81 = tpu.strided_load %arg14[%c334, %c0_93] {strides = array<i32: 4, 1>} : memref<660x32xf32, #tpu.memory_space<vmem>>, vector<41x32xf32>
    %82 = arith.maximumf %80, %81 : vector<41x32xf32>
    %83 = arith.truncf %82 : vector<41x32xf32> to vector<41x32xbf16>
    %c82 = arith.constant 82 : index
    %c0_94 = arith.constant 0 : index
    %84 = vector.load %arg15[%c82, %c0_94] : memref<164x32xbf16, #tpu.memory_space<vmem>>, vector<41x32xbf16>
    tpu.vector_store %arg15[%c82, %c0_94], %83 {strides = array<i32>} : memref<164x32xbf16, #tpu.memory_space<vmem>>, vector<41x32xbf16>,
    %c495_95 = arith.constant 495 : index
    %c0_96 = arith.constant 0 : index
    %85 = tpu.strided_load %arg14[%c495_95, %c0_96] {strides = array<i32: 4, 1>} : memref<660x32xf32, #tpu.memory_space<vmem>>, vector<41x32xf32>
    %c496 = arith.constant 496 : index
    %c0_97 = arith.constant 0 : index
    %86 = tpu.strided_load %arg14[%c496, %c0_97] {strides = array<i32: 4, 1>} : memref<660x32xf32, #tpu.memory_space<vmem>>, vector<41x32xf32>
    %87 = arith.maximumf %85, %86 : vector<41x32xf32>
    %c497 = arith.constant 497 : index
    %c0_98 = arith.constant 0 : index
    %88 = tpu.strided_load %arg14[%c497, %c0_98] {strides = array<i32: 4, 1>} : memref<660x32xf32, #tpu.memory_space<vmem>>, vector<41x32xf32>
    %89 = arith.maximumf %87, %88 : vector<41x32xf32>
    %c498 = arith.constant 498 : index
    %c0_99 = arith.constant 0 : index
    %90 = tpu.strided_load %arg14[%c498, %c0_99] {strides = array<i32: 4, 1>} : memref<660x32xf32, #tpu.memory_space<vmem>>, vector<41x32xf32>
    %91 = arith.maximumf %89, %90 : vector<41x32xf32>
    %c499 = arith.constant 499 : index
    %c0_100 = arith.constant 0 : index
    %92 = tpu.strided_load %arg14[%c499, %c0_100] {strides = array<i32: 4, 1>} : memref<660x32xf32, #tpu.memory_space<vmem>>, vector<41x32xf32>
    %93 = arith.maximumf %91, %92 : vector<41x32xf32>
    %94 = arith.truncf %93 : vector<41x32xf32> to vector<41x32xbf16>
    %c123 = arith.constant 123 : index
    %c0_101 = arith.constant 0 : index
    %95 = vector.load %arg15[%c123, %c0_101] : memref<164x32xbf16, #tpu.memory_space<vmem>>, vector<41x32xbf16>
    tpu.vector_store %arg15[%c123, %c0_101], %94 {strides = array<i32>} : memref<164x32xbf16, #tpu.memory_space<vmem>>, vector<41x32xbf16>,
    %c0_102 = arith.constant 0 : index
    %c0_103 = arith.constant 0 : index
    %96 = vector.load %arg15[%c0_102, %c0_103] : memref<164x32xbf16, #tpu.memory_space<vmem>>, vector<37x32xbf16>
    %c0_104 = arith.constant 0 : index
    %c0_105 = arith.constant 0 : index
    %97 = vector.load %arg16[%c0_104, %c0_105] : memref<148x160xbf16, #tpu.memory_space<vmem>>, vector<37x32xbf16>
    tpu.vector_store %arg16[%c0_104, %c0_105], %96 {strides = array<i32>} : memref<148x160xbf16, #tpu.memory_space<vmem>>, vector<37x32xbf16>,
    %c1_106 = arith.constant 1 : index
    %c0_107 = arith.constant 0 : index
    %98 = vector.load %arg15[%c1_106, %c0_107] : memref<164x32xbf16, #tpu.memory_space<vmem>>, vector<37x32xbf16>
    %c0_108 = arith.constant 0 : index
    %c32 = arith.constant 32 : index
    %99 = vector.load %arg16[%c0_108, %c32] : memref<148x160xbf16, #tpu.memory_space<vmem>>, vector<37x32xbf16>
    tpu.vector_store %arg16[%c0_108, %c32], %98 {strides = array<i32>} : memref<148x160xbf16, #tpu.memory_space<vmem>>, vector<37x32xbf16>,
    %c2_109 = arith.constant 2 : index
    %c0_110 = arith.constant 0 : index
    %100 = vector.load %arg15[%c2_109, %c0_110] : memref<164x32xbf16, #tpu.memory_space<vmem>>, vector<37x32xbf16>
    %c0_111 = arith.constant 0 : index
    %c64 = arith.constant 64 : index
    %101 = vector.load %arg16[%c0_111, %c64] : memref<148x160xbf16, #tpu.memory_space<vmem>>, vector<37x32xbf16>
    tpu.vector_store %arg16[%c0_111, %c64], %100 {strides = array<i32>} : memref<148x160xbf16, #tpu.memory_space<vmem>>, vector<37x32xbf16>,
    %c3_112 = arith.constant 3 : index
    %c0_113 = arith.constant 0 : index
    %102 = vector.load %arg15[%c3_112, %c0_113] : memref<164x32xbf16, #tpu.memory_space<vmem>>, vector<37x32xbf16>
    %c0_114 = arith.constant 0 : index
    %c96 = arith.constant 96 : index
    %103 = vector.load %arg16[%c0_114, %c96] : memref<148x160xbf16, #tpu.memory_space<vmem>>, vector<37x32xbf16>
    tpu.vector_store %arg16[%c0_114, %c96], %102 {strides = array<i32>} : memref<148x160xbf16, #tpu.memory_space<vmem>>, vector<37x32xbf16>,
    %c4_115 = arith.constant 4 : index
    %c0_116 = arith.constant 0 : index
    %104 = vector.load %arg15[%c4_115, %c0_116] : memref<164x32xbf16, #tpu.memory_space<vmem>>, vector<37x32xbf16>
    %c0_117 = arith.constant 0 : index
    %c128 = arith.constant 128 : index
    %105 = vector.load %arg16[%c0_117, %c128] : memref<148x160xbf16, #tpu.memory_space<vmem>>, vector<37x32xbf16>
    tpu.vector_store %arg16[%c0_117, %c128], %104 {strides = array<i32>} : memref<148x160xbf16, #tpu.memory_space<vmem>>, vector<37x32xbf16>,
    %c41_118 = arith.constant 41 : index
    %c0_119 = arith.constant 0 : index
    %106 = vector.load %arg15[%c41_118, %c0_119] : memref<164x32xbf16, #tpu.memory_space<vmem>>, vector<37x32xbf16>
    %c37 = arith.constant 37 : index
    %c0_120 = arith.constant 0 : index
    %107 = vector.load %arg16[%c37, %c0_120] : memref<148x160xbf16, #tpu.memory_space<vmem>>, vector<37x32xbf16>
    tpu.vector_store %arg16[%c37, %c0_120], %106 {strides = array<i32>} : memref<148x160xbf16, #tpu.memory_space<vmem>>, vector<37x32xbf16>,
    %c42 = arith.constant 42 : index
    %c0_121 = arith.constant 0 : index
    %108 = vector.load %arg15[%c42, %c0_121] : memref<164x32xbf16, #tpu.memory_space<vmem>>, vector<37x32xbf16>
    %c37_122 = arith.constant 37 : index
    %c32_123 = arith.constant 32 : index
    %109 = vector.load %arg16[%c37_122, %c32_123] : memref<148x160xbf16, #tpu.memory_space<vmem>>, vector<37x32xbf16>
    tpu.vector_store %arg16[%c37_122, %c32_123], %108 {strides = array<i32>} : memref<148x160xbf16, #tpu.memory_space<vmem>>, vector<37x32xbf16>,
    %c43 = arith.constant 43 : index
    %c0_124 = arith.constant 0 : index
    %110 = vector.load %arg15[%c43, %c0_124] : memref<164x32xbf16, #tpu.memory_space<vmem>>, vector<37x32xbf16>
    %c37_125 = arith.constant 37 : index
    %c64_126 = arith.constant 64 : index
    %111 = vector.load %arg16[%c37_125, %c64_126] : memref<148x160xbf16, #tpu.memory_space<vmem>>, vector<37x32xbf16>
    tpu.vector_store %arg16[%c37_125, %c64_126], %110 {strides = array<i32>} : memref<148x160xbf16, #tpu.memory_space<vmem>>, vector<37x32xbf16>,
    %c44 = arith.constant 44 : index
    %c0_127 = arith.constant 0 : index
    %112 = vector.load %arg15[%c44, %c0_127] : memref<164x32xbf16, #tpu.memory_space<vmem>>, vector<37x32xbf16>
    %c37_128 = arith.constant 37 : index
    %c96_129 = arith.constant 96 : index
    %113 = vector.load %arg16[%c37_128, %c96_129] : memref<148x160xbf16, #tpu.memory_space<vmem>>, vector<37x32xbf16>
    tpu.vector_store %arg16[%c37_128, %c96_129], %112 {strides = array<i32>} : memref<148x160xbf16, #tpu.memory_space<vmem>>, vector<37x32xbf16>,
    %c45 = arith.constant 45 : index
    %c0_130 = arith.constant 0 : index
    %114 = vector.load %arg15[%c45, %c0_130] : memref<164x32xbf16, #tpu.memory_space<vmem>>, vector<37x32xbf16>
    %c37_131 = arith.constant 37 : index
    %c128_132 = arith.constant 128 : index
    %115 = vector.load %arg16[%c37_131, %c128_132] : memref<148x160xbf16, #tpu.memory_space<vmem>>, vector<37x32xbf16>
    tpu.vector_store %arg16[%c37_131, %c128_132], %114 {strides = array<i32>} : memref<148x160xbf16, #tpu.memory_space<vmem>>, vector<37x32xbf16>,
    %c82_133 = arith.constant 82 : index
    %c0_134 = arith.constant 0 : index
    %116 = vector.load %arg15[%c82_133, %c0_134] : memref<164x32xbf16, #tpu.memory_space<vmem>>, vector<37x32xbf16>
    %c74 = arith.constant 74 : index
    %c0_135 = arith.constant 0 : index
    %117 = vector.load %arg16[%c74, %c0_135] : memref<148x160xbf16, #tpu.memory_space<vmem>>, vector<37x32xbf16>
    tpu.vector_store %arg16[%c74, %c0_135], %116 {strides = array<i32>} : memref<148x160xbf16, #tpu.memory_space<vmem>>, vector<37x32xbf16>,
    %c83 = arith.constant 83 : index
    %c0_136 = arith.constant 0 : index
    %118 = vector.load %arg15[%c83, %c0_136] : memref<164x32xbf16, #tpu.memory_space<vmem>>, vector<37x32xbf16>
    %c74_137 = arith.constant 74 : index
    %c32_138 = arith.constant 32 : index
    %119 = vector.load %arg16[%c74_137, %c32_138] : memref<148x160xbf16, #tpu.memory_space<vmem>>, vector<37x32xbf16>
    tpu.vector_store %arg16[%c74_137, %c32_138], %118 {strides = array<i32>} : memref<148x160xbf16, #tpu.memory_space<vmem>>, vector<37x32xbf16>,
    %c84 = arith.constant 84 : index
    %c0_139 = arith.constant 0 : index
    %120 = vector.load %arg15[%c84, %c0_139] : memref<164x32xbf16, #tpu.memory_space<vmem>>, vector<37x32xbf16>
    %c74_140 = arith.constant 74 : index
    %c64_141 = arith.constant 64 : index
    %121 = vector.load %arg16[%c74_140, %c64_141] : memref<148x160xbf16, #tpu.memory_space<vmem>>, vector<37x32xbf16>
    tpu.vector_store %arg16[%c74_140, %c64_141], %120 {strides = array<i32>} : memref<148x160xbf16, #tpu.memory_space<vmem>>, vector<37x32xbf16>,
    %c85 = arith.constant 85 : index
    %c0_142 = arith.constant 0 : index
    %122 = vector.load %arg15[%c85, %c0_142] : memref<164x32xbf16, #tpu.memory_space<vmem>>, vector<37x32xbf16>
    %c74_143 = arith.constant 74 : index
    %c96_144 = arith.constant 96 : index
    %123 = vector.load %arg16[%c74_143, %c96_144] : memref<148x160xbf16, #tpu.memory_space<vmem>>, vector<37x32xbf16>
    tpu.vector_store %arg16[%c74_143, %c96_144], %122 {strides = array<i32>} : memref<148x160xbf16, #tpu.memory_space<vmem>>, vector<37x32xbf16>,
    %c86 = arith.constant 86 : index
    %c0_145 = arith.constant 0 : index
    %124 = vector.load %arg15[%c86, %c0_145] : memref<164x32xbf16, #tpu.memory_space<vmem>>, vector<37x32xbf16>
    %c74_146 = arith.constant 74 : index
    %c128_147 = arith.constant 128 : index
    %125 = vector.load %arg16[%c74_146, %c128_147] : memref<148x160xbf16, #tpu.memory_space<vmem>>, vector<37x32xbf16>
    tpu.vector_store %arg16[%c74_146, %c128_147], %124 {strides = array<i32>} : memref<148x160xbf16, #tpu.memory_space<vmem>>, vector<37x32xbf16>,
    %c123_148 = arith.constant 123 : index
    %c0_149 = arith.constant 0 : index
    %126 = vector.load %arg15[%c123_148, %c0_149] : memref<164x32xbf16, #tpu.memory_space<vmem>>, vector<37x32xbf16>
    %c111 = arith.constant 111 : index
    %c0_150 = arith.constant 0 : index
    %127 = vector.load %arg16[%c111, %c0_150] : memref<148x160xbf16, #tpu.memory_space<vmem>>, vector<37x32xbf16>
    tpu.vector_store %arg16[%c111, %c0_150], %126 {strides = array<i32>} : memref<148x160xbf16, #tpu.memory_space<vmem>>, vector<37x32xbf16>,
    %c124 = arith.constant 124 : index
    %c0_151 = arith.constant 0 : index
    %128 = vector.load %arg15[%c124, %c0_151] : memref<164x32xbf16, #tpu.memory_space<vmem>>, vector<37x32xbf16>
    %c111_152 = arith.constant 111 : index
    %c32_153 = arith.constant 32 : index
    %129 = vector.load %arg16[%c111_152, %c32_153] : memref<148x160xbf16, #tpu.memory_space<vmem>>, vector<37x32xbf16>
    tpu.vector_store %arg16[%c111_152, %c32_153], %128 {strides = array<i32>} : memref<148x160xbf16, #tpu.memory_space<vmem>>, vector<37x32xbf16>,
    %c125 = arith.constant 125 : index
    %c0_154 = arith.constant 0 : index
    %130 = vector.load %arg15[%c125, %c0_154] : memref<164x32xbf16, #tpu.memory_space<vmem>>, vector<37x32xbf16>
    %c111_155 = arith.constant 111 : index
    %c64_156 = arith.constant 64 : index
    %131 = vector.load %arg16[%c111_155, %c64_156] : memref<148x160xbf16, #tpu.memory_space<vmem>>, vector<37x32xbf16>
    tpu.vector_store %arg16[%c111_155, %c64_156], %130 {strides = array<i32>} : memref<148x160xbf16, #tpu.memory_space<vmem>>, vector<37x32xbf16>,
    %c126 = arith.constant 126 : index
    %c0_157 = arith.constant 0 : index
    %132 = vector.load %arg15[%c126, %c0_157] : memref<164x32xbf16, #tpu.memory_space<vmem>>, vector<37x32xbf16>
    %c111_158 = arith.constant 111 : index
    %c96_159 = arith.constant 96 : index
    %133 = vector.load %arg16[%c111_158, %c96_159] : memref<148x160xbf16, #tpu.memory_space<vmem>>, vector<37x32xbf16>
    tpu.vector_store %arg16[%c111_158, %c96_159], %132 {strides = array<i32>} : memref<148x160xbf16, #tpu.memory_space<vmem>>, vector<37x32xbf16>,
    %c127 = arith.constant 127 : index
    %c0_160 = arith.constant 0 : index
    %134 = vector.load %arg15[%c127, %c0_160] : memref<164x32xbf16, #tpu.memory_space<vmem>>, vector<37x32xbf16>
    %c111_161 = arith.constant 111 : index
    %c128_162 = arith.constant 128 : index
    %135 = vector.load %arg16[%c111_161, %c128_162] : memref<148x160xbf16, #tpu.memory_space<vmem>>, vector<37x32xbf16>
    tpu.vector_store %arg16[%c111_161, %c128_162], %134 {strides = array<i32>} : memref<148x160xbf16, #tpu.memory_space<vmem>>, vector<37x32xbf16>,
    %c0_163 = arith.constant 0 : index
    %c0_164 = arith.constant 0 : index
    %136 = vector.load %arg16[%c0_163, %c0_164] : memref<148x160xbf16, #tpu.memory_space<vmem>>, vector<148x160xbf16>
    %c0_165 = arith.constant 0 : index
    %c0_166 = arith.constant 0 : index
    %137 = vector.load %arg4[%c0_165, %c0_166] : memref<160x64xbf16, #tpu.memory_space<vmem>>, vector<160x64xbf16>
    %cst_167 = arith.constant dense<0.000000e+00> : vector<148x64xf32>
    %138 = tpu.matmul %136, %137, %cst_167 {dimension_numbers = #tpu.dot_dimension_numbers<[1], [0], [0], [1], [0, 0, 1, 1], [], []>} : vector<148x160xbf16>, vector<160x64xbf16>, vector<148x64xf32> -> vector<148x64xf32>
    %c0_168 = arith.constant 0 : index
    %c0_169 = arith.constant 0 : index
    %139 = vector.load %arg5[%c0_168, %c0_169] : memref<1x64xf32, #tpu.memory_space<vmem>>, vector<1x64xf32>
    %140 = vector.broadcast %139 : vector<1x64xf32> to vector<148x64xf32>
    %141 = arith.mulf %138, %140 : vector<148x64xf32>
    %c0_170 = arith.constant 0 : index
    %c0_171 = arith.constant 0 : index
    %142 = vector.load %arg6[%c0_170, %c0_171] : memref<1x64xf32, #tpu.memory_space<vmem>>, vector<1x64xf32>
    %143 = vector.broadcast %142 : vector<1x64xf32> to vector<148x64xf32>
    %144 = arith.addf %141, %143 : vector<148x64xf32>
    %cst_172 = arith.constant 0.000000e+00 : f32
    %145 = vector.broadcast %cst_172 : f32 to vector<148x64xf32>
    %146 = arith.maximumf %144, %145 : vector<148x64xf32>
    %c0_173 = arith.constant 0 : index
    %c0_174 = arith.constant 0 : index
    %147 = vector.load %arg17[%c0_173, %c0_174] : memref<148x64xf32, #tpu.memory_space<vmem>>, vector<148x64xf32>
    tpu.vector_store %arg17[%c0_173, %c0_174], %146 {strides = array<i32>} : memref<148x64xf32, #tpu.memory_space<vmem>>, vector<148x64xf32>,
    %c0_175 = arith.constant 0 : index
    %c0_176 = arith.constant 0 : index
    %148 = tpu.strided_load %arg17[%c0_175, %c0_176] {strides = array<i32: 4, 1>} : memref<148x64xf32, #tpu.memory_space<vmem>>, vector<9x64xf32>
    %c1_177 = arith.constant 1 : index
    %c0_178 = arith.constant 0 : index
    %149 = tpu.strided_load %arg17[%c1_177, %c0_178] {strides = array<i32: 4, 1>} : memref<148x64xf32, #tpu.memory_space<vmem>>, vector<9x64xf32>
    %150 = arith.maximumf %148, %149 : vector<9x64xf32>
    %c2_179 = arith.constant 2 : index
    %c0_180 = arith.constant 0 : index
    %151 = tpu.strided_load %arg17[%c2_179, %c0_180] {strides = array<i32: 4, 1>} : memref<148x64xf32, #tpu.memory_space<vmem>>, vector<9x64xf32>
    %152 = arith.maximumf %150, %151 : vector<9x64xf32>
    %c3_181 = arith.constant 3 : index
    %c0_182 = arith.constant 0 : index
    %153 = tpu.strided_load %arg17[%c3_181, %c0_182] {strides = array<i32: 4, 1>} : memref<148x64xf32, #tpu.memory_space<vmem>>, vector<9x64xf32>
    %154 = arith.maximumf %152, %153 : vector<9x64xf32>
    %c4_183 = arith.constant 4 : index
    %c0_184 = arith.constant 0 : index
    %155 = tpu.strided_load %arg17[%c4_183, %c0_184] {strides = array<i32: 4, 1>} : memref<148x64xf32, #tpu.memory_space<vmem>>, vector<9x64xf32>
    %156 = arith.maximumf %154, %155 : vector<9x64xf32>
    %157 = arith.truncf %156 : vector<9x64xf32> to vector<9x64xbf16>
    %c0_185 = arith.constant 0 : index
    %c0_186 = arith.constant 0 : index
    %158 = vector.load %arg18[%c0_185, %c0_186] : memref<36x64xbf16, #tpu.memory_space<vmem>>, vector<9x64xbf16>
    tpu.vector_store %arg18[%c0_185, %c0_186], %157 {strides = array<i32>} : memref<36x64xbf16, #tpu.memory_space<vmem>>, vector<9x64xbf16>,
    %c37_187 = arith.constant 37 : index
    %c0_188 = arith.constant 0 : index
    %159 = tpu.strided_load %arg17[%c37_187, %c0_188] {strides = array<i32: 4, 1>} : memref<148x64xf32, #tpu.memory_space<vmem>>, vector<9x64xf32>
    %c38 = arith.constant 38 : index
    %c0_189 = arith.constant 0 : index
    %160 = tpu.strided_load %arg17[%c38, %c0_189] {strides = array<i32: 4, 1>} : memref<148x64xf32, #tpu.memory_space<vmem>>, vector<9x64xf32>
    %161 = arith.maximumf %159, %160 : vector<9x64xf32>
    %c39 = arith.constant 39 : index
    %c0_190 = arith.constant 0 : index
    %162 = tpu.strided_load %arg17[%c39, %c0_190] {strides = array<i32: 4, 1>} : memref<148x64xf32, #tpu.memory_space<vmem>>, vector<9x64xf32>
    %163 = arith.maximumf %161, %162 : vector<9x64xf32>
    %c40 = arith.constant 40 : index
    %c0_191 = arith.constant 0 : index
    %164 = tpu.strided_load %arg17[%c40, %c0_191] {strides = array<i32: 4, 1>} : memref<148x64xf32, #tpu.memory_space<vmem>>, vector<9x64xf32>
    %165 = arith.maximumf %163, %164 : vector<9x64xf32>
    %c41_192 = arith.constant 41 : index
    %c0_193 = arith.constant 0 : index
    %166 = tpu.strided_load %arg17[%c41_192, %c0_193] {strides = array<i32: 4, 1>} : memref<148x64xf32, #tpu.memory_space<vmem>>, vector<9x64xf32>
    %167 = arith.maximumf %165, %166 : vector<9x64xf32>
    %168 = arith.truncf %167 : vector<9x64xf32> to vector<9x64xbf16>
    %c9 = arith.constant 9 : index
    %c0_194 = arith.constant 0 : index
    %169 = vector.load %arg18[%c9, %c0_194] : memref<36x64xbf16, #tpu.memory_space<vmem>>, vector<9x64xbf16>
    tpu.vector_store %arg18[%c9, %c0_194], %168 {strides = array<i32>} : memref<36x64xbf16, #tpu.memory_space<vmem>>, vector<9x64xbf16>,
    %c74_195 = arith.constant 74 : index
    %c0_196 = arith.constant 0 : index
    %170 = tpu.strided_load %arg17[%c74_195, %c0_196] {strides = array<i32: 4, 1>} : memref<148x64xf32, #tpu.memory_space<vmem>>, vector<9x64xf32>
    %c75 = arith.constant 75 : index
    %c0_197 = arith.constant 0 : index
    %171 = tpu.strided_load %arg17[%c75, %c0_197] {strides = array<i32: 4, 1>} : memref<148x64xf32, #tpu.memory_space<vmem>>, vector<9x64xf32>
    %172 = arith.maximumf %170, %171 : vector<9x64xf32>
    %c76 = arith.constant 76 : index
    %c0_198 = arith.constant 0 : index
    %173 = tpu.strided_load %arg17[%c76, %c0_198] {strides = array<i32: 4, 1>} : memref<148x64xf32, #tpu.memory_space<vmem>>, vector<9x64xf32>
    %174 = arith.maximumf %172, %173 : vector<9x64xf32>
    %c77 = arith.constant 77 : index
    %c0_199 = arith.constant 0 : index
    %175 = tpu.strided_load %arg17[%c77, %c0_199] {strides = array<i32: 4, 1>} : memref<148x64xf32, #tpu.memory_space<vmem>>, vector<9x64xf32>
    %176 = arith.maximumf %174, %175 : vector<9x64xf32>
    %c78 = arith.constant 78 : index
    %c0_200 = arith.constant 0 : index
    %177 = tpu.strided_load %arg17[%c78, %c0_200] {strides = array<i32: 4, 1>} : memref<148x64xf32, #tpu.memory_space<vmem>>, vector<9x64xf32>
    %178 = arith.maximumf %176, %177 : vector<9x64xf32>
    %179 = arith.truncf %178 : vector<9x64xf32> to vector<9x64xbf16>
    %c18 = arith.constant 18 : index
    %c0_201 = arith.constant 0 : index
    %180 = vector.load %arg18[%c18, %c0_201] : memref<36x64xbf16, #tpu.memory_space<vmem>>, vector<9x64xbf16>
    tpu.vector_store %arg18[%c18, %c0_201], %179 {strides = array<i32>} : memref<36x64xbf16, #tpu.memory_space<vmem>>, vector<9x64xbf16>,
    %c111_202 = arith.constant 111 : index
    %c0_203 = arith.constant 0 : index
    %181 = tpu.strided_load %arg17[%c111_202, %c0_203] {strides = array<i32: 4, 1>} : memref<148x64xf32, #tpu.memory_space<vmem>>, vector<9x64xf32>
    %c112 = arith.constant 112 : index
    %c0_204 = arith.constant 0 : index
    %182 = tpu.strided_load %arg17[%c112, %c0_204] {strides = array<i32: 4, 1>} : memref<148x64xf32, #tpu.memory_space<vmem>>, vector<9x64xf32>
    %183 = arith.maximumf %181, %182 : vector<9x64xf32>
    %c113 = arith.constant 113 : index
    %c0_205 = arith.constant 0 : index
    %184 = tpu.strided_load %arg17[%c113, %c0_205] {strides = array<i32: 4, 1>} : memref<148x64xf32, #tpu.memory_space<vmem>>, vector<9x64xf32>
    %185 = arith.maximumf %183, %184 : vector<9x64xf32>
    %c114 = arith.constant 114 : index
    %c0_206 = arith.constant 0 : index
    %186 = tpu.strided_load %arg17[%c114, %c0_206] {strides = array<i32: 4, 1>} : memref<148x64xf32, #tpu.memory_space<vmem>>, vector<9x64xf32>
    %187 = arith.maximumf %185, %186 : vector<9x64xf32>
    %c115 = arith.constant 115 : index
    %c0_207 = arith.constant 0 : index
    %188 = tpu.strided_load %arg17[%c115, %c0_207] {strides = array<i32: 4, 1>} : memref<148x64xf32, #tpu.memory_space<vmem>>, vector<9x64xf32>
    %189 = arith.maximumf %187, %188 : vector<9x64xf32>
    %190 = arith.truncf %189 : vector<9x64xf32> to vector<9x64xbf16>
    %c27 = arith.constant 27 : index
    %c0_208 = arith.constant 0 : index
    %191 = vector.load %arg18[%c27, %c0_208] : memref<36x64xbf16, #tpu.memory_space<vmem>>, vector<9x64xbf16>
    tpu.vector_store %arg18[%c27, %c0_208], %190 {strides = array<i32>} : memref<36x64xbf16, #tpu.memory_space<vmem>>, vector<9x64xbf16>,
    %c0_209 = arith.constant 0 : index
    %c0_210 = arith.constant 0 : index
    %192 = vector.load %arg18[%c0_209, %c0_210] : memref<36x64xbf16, #tpu.memory_space<vmem>>, vector<5x64xbf16>
    %c0_211 = arith.constant 0 : index
    %c0_212 = arith.constant 0 : index
    %193 = vector.load %arg19[%c0_211, %c0_212] : memref<20x320xbf16, #tpu.memory_space<vmem>>, vector<5x64xbf16>
    tpu.vector_store %arg19[%c0_211, %c0_212], %192 {strides = array<i32>} : memref<20x320xbf16, #tpu.memory_space<vmem>>, vector<5x64xbf16>,
    %c1_213 = arith.constant 1 : index
    %c0_214 = arith.constant 0 : index
    %194 = vector.load %arg18[%c1_213, %c0_214] : memref<36x64xbf16, #tpu.memory_space<vmem>>, vector<5x64xbf16>
    %c0_215 = arith.constant 0 : index
    %c64_216 = arith.constant 64 : index
    %195 = vector.load %arg19[%c0_215, %c64_216] : memref<20x320xbf16, #tpu.memory_space<vmem>>, vector<5x64xbf16>
    tpu.vector_store %arg19[%c0_215, %c64_216], %194 {strides = array<i32>} : memref<20x320xbf16, #tpu.memory_space<vmem>>, vector<5x64xbf16>,
    %c2_217 = arith.constant 2 : index
    %c0_218 = arith.constant 0 : index
    %196 = vector.load %arg18[%c2_217, %c0_218] : memref<36x64xbf16, #tpu.memory_space<vmem>>, vector<5x64xbf16>
    %c0_219 = arith.constant 0 : index
    %c128_220 = arith.constant 128 : index
    %197 = vector.load %arg19[%c0_219, %c128_220] : memref<20x320xbf16, #tpu.memory_space<vmem>>, vector<5x64xbf16>
    tpu.vector_store %arg19[%c0_219, %c128_220], %196 {strides = array<i32>} : memref<20x320xbf16, #tpu.memory_space<vmem>>, vector<5x64xbf16>,
    %c3_221 = arith.constant 3 : index
    %c0_222 = arith.constant 0 : index
    %198 = vector.load %arg18[%c3_221, %c0_222] : memref<36x64xbf16, #tpu.memory_space<vmem>>, vector<5x64xbf16>
    %c0_223 = arith.constant 0 : index
    %c192 = arith.constant 192 : index
    %199 = vector.load %arg19[%c0_223, %c192] : memref<20x320xbf16, #tpu.memory_space<vmem>>, vector<5x64xbf16>
    tpu.vector_store %arg19[%c0_223, %c192], %198 {strides = array<i32>} : memref<20x320xbf16, #tpu.memory_space<vmem>>, vector<5x64xbf16>,
    %c4_224 = arith.constant 4 : index
    %c0_225 = arith.constant 0 : index
    %200 = vector.load %arg18[%c4_224, %c0_225] : memref<36x64xbf16, #tpu.memory_space<vmem>>, vector<5x64xbf16>
    %c0_226 = arith.constant 0 : index
    %c256 = arith.constant 256 : index
    %201 = vector.load %arg19[%c0_226, %c256] : memref<20x320xbf16, #tpu.memory_space<vmem>>, vector<5x64xbf16>
    tpu.vector_store %arg19[%c0_226, %c256], %200 {strides = array<i32>} : memref<20x320xbf16, #tpu.memory_space<vmem>>, vector<5x64xbf16>,
    %c9_227 = arith.constant 9 : index
    %c0_228 = arith.constant 0 : index
    %202 = vector.load %arg18[%c9_227, %c0_228] : memref<36x64xbf16, #tpu.memory_space<vmem>>, vector<5x64xbf16>
    %c5 = arith.constant 5 : index
    %c0_229 = arith.constant 0 : index
    %203 = vector.load %arg19[%c5, %c0_229] : memref<20x320xbf16, #tpu.memory_space<vmem>>, vector<5x64xbf16>
    tpu.vector_store %arg19[%c5, %c0_229], %202 {strides = array<i32>} : memref<20x320xbf16, #tpu.memory_space<vmem>>, vector<5x64xbf16>,
    %c10 = arith.constant 10 : index
    %c0_230 = arith.constant 0 : index
    %204 = vector.load %arg18[%c10, %c0_230] : memref<36x64xbf16, #tpu.memory_space<vmem>>, vector<5x64xbf16>
    %c5_231 = arith.constant 5 : index
    %c64_232 = arith.constant 64 : index
    %205 = vector.load %arg19[%c5_231, %c64_232] : memref<20x320xbf16, #tpu.memory_space<vmem>>, vector<5x64xbf16>
    tpu.vector_store %arg19[%c5_231, %c64_232], %204 {strides = array<i32>} : memref<20x320xbf16, #tpu.memory_space<vmem>>, vector<5x64xbf16>,
    %c11 = arith.constant 11 : index
    %c0_233 = arith.constant 0 : index
    %206 = vector.load %arg18[%c11, %c0_233] : memref<36x64xbf16, #tpu.memory_space<vmem>>, vector<5x64xbf16>
    %c5_234 = arith.constant 5 : index
    %c128_235 = arith.constant 128 : index
    %207 = vector.load %arg19[%c5_234, %c128_235] : memref<20x320xbf16, #tpu.memory_space<vmem>>, vector<5x64xbf16>
    tpu.vector_store %arg19[%c5_234, %c128_235], %206 {strides = array<i32>} : memref<20x320xbf16, #tpu.memory_space<vmem>>, vector<5x64xbf16>,
    %c12 = arith.constant 12 : index
    %c0_236 = arith.constant 0 : index
    %208 = vector.load %arg18[%c12, %c0_236] : memref<36x64xbf16, #tpu.memory_space<vmem>>, vector<5x64xbf16>
    %c5_237 = arith.constant 5 : index
    %c192_238 = arith.constant 192 : index
    %209 = vector.load %arg19[%c5_237, %c192_238] : memref<20x320xbf16, #tpu.memory_space<vmem>>, vector<5x64xbf16>
    tpu.vector_store %arg19[%c5_237, %c192_238], %208 {strides = array<i32>} : memref<20x320xbf16, #tpu.memory_space<vmem>>, vector<5x64xbf16>,
    %c13 = arith.constant 13 : index
    %c0_239 = arith.constant 0 : index
    %210 = vector.load %arg18[%c13, %c0_239] : memref<36x64xbf16, #tpu.memory_space<vmem>>, vector<5x64xbf16>
    %c5_240 = arith.constant 5 : index
    %c256_241 = arith.constant 256 : index
    %211 = vector.load %arg19[%c5_240, %c256_241] : memref<20x320xbf16, #tpu.memory_space<vmem>>, vector<5x64xbf16>
    tpu.vector_store %arg19[%c5_240, %c256_241], %210 {strides = array<i32>} : memref<20x320xbf16, #tpu.memory_space<vmem>>, vector<5x64xbf16>,
    %c18_242 = arith.constant 18 : index
    %c0_243 = arith.constant 0 : index
    %212 = vector.load %arg18[%c18_242, %c0_243] : memref<36x64xbf16, #tpu.memory_space<vmem>>, vector<5x64xbf16>
    %c10_244 = arith.constant 10 : index
    %c0_245 = arith.constant 0 : index
    %213 = vector.load %arg19[%c10_244, %c0_245] : memref<20x320xbf16, #tpu.memory_space<vmem>>, vector<5x64xbf16>
    tpu.vector_store %arg19[%c10_244, %c0_245], %212 {strides = array<i32>} : memref<20x320xbf16, #tpu.memory_space<vmem>>, vector<5x64xbf16>,
    %c19 = arith.constant 19 : index
    %c0_246 = arith.constant 0 : index
    %214 = vector.load %arg18[%c19, %c0_246] : memref<36x64xbf16, #tpu.memory_space<vmem>>, vector<5x64xbf16>
    %c10_247 = arith.constant 10 : index
    %c64_248 = arith.constant 64 : index
    %215 = vector.load %arg19[%c10_247, %c64_248] : memref<20x320xbf16, #tpu.memory_space<vmem>>, vector<5x64xbf16>
    tpu.vector_store %arg19[%c10_247, %c64_248], %214 {strides = array<i32>} : memref<20x320xbf16, #tpu.memory_space<vmem>>, vector<5x64xbf16>,
    %c20 = arith.constant 20 : index
    %c0_249 = arith.constant 0 : index
    %216 = vector.load %arg18[%c20, %c0_249] : memref<36x64xbf16, #tpu.memory_space<vmem>>, vector<5x64xbf16>
    %c10_250 = arith.constant 10 : index
    %c128_251 = arith.constant 128 : index
    %217 = vector.load %arg19[%c10_250, %c128_251] : memref<20x320xbf16, #tpu.memory_space<vmem>>, vector<5x64xbf16>
    tpu.vector_store %arg19[%c10_250, %c128_251], %216 {strides = array<i32>} : memref<20x320xbf16, #tpu.memory_space<vmem>>, vector<5x64xbf16>,
    %c21 = arith.constant 21 : index
    %c0_252 = arith.constant 0 : index
    %218 = vector.load %arg18[%c21, %c0_252] : memref<36x64xbf16, #tpu.memory_space<vmem>>, vector<5x64xbf16>
    %c10_253 = arith.constant 10 : index
    %c192_254 = arith.constant 192 : index
    %219 = vector.load %arg19[%c10_253, %c192_254] : memref<20x320xbf16, #tpu.memory_space<vmem>>, vector<5x64xbf16>
    tpu.vector_store %arg19[%c10_253, %c192_254], %218 {strides = array<i32>} : memref<20x320xbf16, #tpu.memory_space<vmem>>, vector<5x64xbf16>,
    %c22 = arith.constant 22 : index
    %c0_255 = arith.constant 0 : index
    %220 = vector.load %arg18[%c22, %c0_255] : memref<36x64xbf16, #tpu.memory_space<vmem>>, vector<5x64xbf16>
    %c10_256 = arith.constant 10 : index
    %c256_257 = arith.constant 256 : index
    %221 = vector.load %arg19[%c10_256, %c256_257] : memref<20x320xbf16, #tpu.memory_space<vmem>>, vector<5x64xbf16>
    tpu.vector_store %arg19[%c10_256, %c256_257], %220 {strides = array<i32>} : memref<20x320xbf16, #tpu.memory_space<vmem>>, vector<5x64xbf16>,
    %c27_258 = arith.constant 27 : index
    %c0_259 = arith.constant 0 : index
    %222 = vector.load %arg18[%c27_258, %c0_259] : memref<36x64xbf16, #tpu.memory_space<vmem>>, vector<5x64xbf16>
    %c15 = arith.constant 15 : index
    %c0_260 = arith.constant 0 : index
    %223 = vector.load %arg19[%c15, %c0_260] : memref<20x320xbf16, #tpu.memory_space<vmem>>, vector<5x64xbf16>
    tpu.vector_store %arg19[%c15, %c0_260], %222 {strides = array<i32>} : memref<20x320xbf16, #tpu.memory_space<vmem>>, vector<5x64xbf16>,
    %c28 = arith.constant 28 : index
    %c0_261 = arith.constant 0 : index
    %224 = vector.load %arg18[%c28, %c0_261] : memref<36x64xbf16, #tpu.memory_space<vmem>>, vector<5x64xbf16>
    %c15_262 = arith.constant 15 : index
    %c64_263 = arith.constant 64 : index
    %225 = vector.load %arg19[%c15_262, %c64_263] : memref<20x320xbf16, #tpu.memory_space<vmem>>, vector<5x64xbf16>
    tpu.vector_store %arg19[%c15_262, %c64_263], %224 {strides = array<i32>} : memref<20x320xbf16, #tpu.memory_space<vmem>>, vector<5x64xbf16>,
    %c29 = arith.constant 29 : index
    %c0_264 = arith.constant 0 : index
    %226 = vector.load %arg18[%c29, %c0_264] : memref<36x64xbf16, #tpu.memory_space<vmem>>, vector<5x64xbf16>
    %c15_265 = arith.constant 15 : index
    %c128_266 = arith.constant 128 : index
    %227 = vector.load %arg19[%c15_265, %c128_266] : memref<20x320xbf16, #tpu.memory_space<vmem>>, vector<5x64xbf16>
    tpu.vector_store %arg19[%c15_265, %c128_266], %226 {strides = array<i32>} : memref<20x320xbf16, #tpu.memory_space<vmem>>, vector<5x64xbf16>,
    %c30 = arith.constant 30 : index
    %c0_267 = arith.constant 0 : index
    %228 = vector.load %arg18[%c30, %c0_267] : memref<36x64xbf16, #tpu.memory_space<vmem>>, vector<5x64xbf16>
    %c15_268 = arith.constant 15 : index
    %c192_269 = arith.constant 192 : index
    %229 = vector.load %arg19[%c15_268, %c192_269] : memref<20x320xbf16, #tpu.memory_space<vmem>>, vector<5x64xbf16>
    tpu.vector_store %arg19[%c15_268, %c192_269], %228 {strides = array<i32>} : memref<20x320xbf16, #tpu.memory_space<vmem>>, vector<5x64xbf16>,
    %c31 = arith.constant 31 : index
    %c0_270 = arith.constant 0 : index
    %230 = vector.load %arg18[%c31, %c0_270] : memref<36x64xbf16, #tpu.memory_space<vmem>>, vector<5x64xbf16>
    %c15_271 = arith.constant 15 : index
    %c256_272 = arith.constant 256 : index
    %231 = vector.load %arg19[%c15_271, %c256_272] : memref<20x320xbf16, #tpu.memory_space<vmem>>, vector<5x64xbf16>
    tpu.vector_store %arg19[%c15_271, %c256_272], %230 {strides = array<i32>} : memref<20x320xbf16, #tpu.memory_space<vmem>>, vector<5x64xbf16>,
    %c0_273 = arith.constant 0 : index
    %c0_274 = arith.constant 0 : index
    %232 = vector.load %arg19[%c0_273, %c0_274] : memref<20x320xbf16, #tpu.memory_space<vmem>>, vector<20x320xbf16>
    %c0_275 = arith.constant 0 : index
    %c0_276 = arith.constant 0 : index
    %233 = vector.load %arg7[%c0_275, %c0_276] : memref<320x128xbf16, #tpu.memory_space<vmem>>, vector<320x128xbf16>
    %cst_277 = arith.constant dense<0.000000e+00> : vector<20x128xf32>
    %234 = tpu.matmul %232, %233, %cst_277 {dimension_numbers = #tpu.dot_dimension_numbers<[1], [0], [0], [1], [0, 0, 1, 1], [], []>} : vector<20x320xbf16>, vector<320x128xbf16>, vector<20x128xf32> -> vector<20x128xf32>
    %c0_278 = arith.constant 0 : index
    %c0_279 = arith.constant 0 : index
    %235 = vector.load %arg8[%c0_278, %c0_279] : memref<1x128xf32, #tpu.memory_space<vmem>>, vector<1x128xf32>
    %236 = vector.broadcast %235 : vector<1x128xf32> to vector<20x128xf32>
    %237 = arith.mulf %234, %236 : vector<20x128xf32>
    %c0_280 = arith.constant 0 : index
    %c0_281 = arith.constant 0 : index
    %238 = vector.load %arg9[%c0_280, %c0_281] : memref<1x128xf32, #tpu.memory_space<vmem>>, vector<1x128xf32>
    %239 = vector.broadcast %238 : vector<1x128xf32> to vector<20x128xf32>
    %240 = arith.addf %237, %239 : vector<20x128xf32>
    %cst_282 = arith.constant 0.000000e+00 : f32
    %241 = vector.broadcast %cst_282 : f32 to vector<20x128xf32>
    %242 = arith.maximumf %240, %241 : vector<20x128xf32>
    %c0_283 = arith.constant 0 : index
    %c0_284 = arith.constant 0 : index
    %243 = vector.load %arg20[%c0_283, %c0_284] : memref<20x128xf32, #tpu.memory_space<vmem>>, vector<20x128xf32>
    tpu.vector_store %arg20[%c0_283, %c0_284], %242 {strides = array<i32>} : memref<20x128xf32, #tpu.memory_space<vmem>>, vector<20x128xf32>,
    %c0_285 = arith.constant 0 : index
    %c0_286 = arith.constant 0 : index
    %244 = vector.load %arg20[%c0_285, %c0_286] : memref<20x128xf32, #tpu.memory_space<vmem>>, vector<1x128xf32>
    %c1_287 = arith.constant 1 : index
    %c0_288 = arith.constant 0 : index
    %245 = vector.load %arg20[%c1_287, %c0_288] : memref<20x128xf32, #tpu.memory_space<vmem>>, vector<1x128xf32>
    %246 = arith.maximumf %244, %245 : vector<1x128xf32>
    %c2_289 = arith.constant 2 : index
    %c0_290 = arith.constant 0 : index
    %247 = vector.load %arg20[%c2_289, %c0_290] : memref<20x128xf32, #tpu.memory_space<vmem>>, vector<1x128xf32>
    %248 = arith.maximumf %246, %247 : vector<1x128xf32>
    %c3_291 = arith.constant 3 : index
    %c0_292 = arith.constant 0 : index
    %249 = vector.load %arg20[%c3_291, %c0_292] : memref<20x128xf32, #tpu.memory_space<vmem>>, vector<1x128xf32>
    %250 = arith.maximumf %248, %249 : vector<1x128xf32>
    %c4_293 = arith.constant 4 : index
    %c0_294 = arith.constant 0 : index
    %251 = vector.load %arg20[%c4_293, %c0_294] : memref<20x128xf32, #tpu.memory_space<vmem>>, vector<1x128xf32>
    %252 = arith.maximumf %250, %251 : vector<1x128xf32>
    %253 = arith.truncf %252 : vector<1x128xf32> to vector<1x128xbf16>
    %c0_295 = arith.constant 0 : index
    %c0_296 = arith.constant 0 : index
    %254 = vector.load %arg21[%c0_295, %c0_296] : memref<4x128xbf16, #tpu.memory_space<vmem>>, vector<1x128xbf16>
    tpu.vector_store %arg21[%c0_295, %c0_296], %253 {strides = array<i32>} : memref<4x128xbf16, #tpu.memory_space<vmem>>, vector<1x128xbf16>,
    %c5_297 = arith.constant 5 : index
    %c0_298 = arith.constant 0 : index
    %255 = vector.load %arg20[%c5_297, %c0_298] : memref<20x128xf32, #tpu.memory_space<vmem>>, vector<1x128xf32>
    %c6 = arith.constant 6 : index
    %c0_299 = arith.constant 0 : index
    %256 = vector.load %arg20[%c6, %c0_299] : memref<20x128xf32, #tpu.memory_space<vmem>>, vector<1x128xf32>
    %257 = arith.maximumf %255, %256 : vector<1x128xf32>
    %c7 = arith.constant 7 : index
    %c0_300 = arith.constant 0 : index
    %258 = vector.load %arg20[%c7, %c0_300] : memref<20x128xf32, #tpu.memory_space<vmem>>, vector<1x128xf32>
    %259 = arith.maximumf %257, %258 : vector<1x128xf32>
    %c8 = arith.constant 8 : index
    %c0_301 = arith.constant 0 : index
    %260 = vector.load %arg20[%c8, %c0_301] : memref<20x128xf32, #tpu.memory_space<vmem>>, vector<1x128xf32>
    %261 = arith.maximumf %259, %260 : vector<1x128xf32>
    %c9_302 = arith.constant 9 : index
    %c0_303 = arith.constant 0 : index
    %262 = vector.load %arg20[%c9_302, %c0_303] : memref<20x128xf32, #tpu.memory_space<vmem>>, vector<1x128xf32>
    %263 = arith.maximumf %261, %262 : vector<1x128xf32>
    %264 = arith.truncf %263 : vector<1x128xf32> to vector<1x128xbf16>
    %c1_304 = arith.constant 1 : index
    %c0_305 = arith.constant 0 : index
    %265 = vector.load %arg21[%c1_304, %c0_305] : memref<4x128xbf16, #tpu.memory_space<vmem>>, vector<1x128xbf16>
    tpu.vector_store %arg21[%c1_304, %c0_305], %264 {strides = array<i32>} : memref<4x128xbf16, #tpu.memory_space<vmem>>, vector<1x128xbf16>,
    %c10_306 = arith.constant 10 : index
    %c0_307 = arith.constant 0 : index
    %266 = vector.load %arg20[%c10_306, %c0_307] : memref<20x128xf32, #tpu.memory_space<vmem>>, vector<1x128xf32>
    %c11_308 = arith.constant 11 : index
    %c0_309 = arith.constant 0 : index
    %267 = vector.load %arg20[%c11_308, %c0_309] : memref<20x128xf32, #tpu.memory_space<vmem>>, vector<1x128xf32>
    %268 = arith.maximumf %266, %267 : vector<1x128xf32>
    %c12_310 = arith.constant 12 : index
    %c0_311 = arith.constant 0 : index
    %269 = vector.load %arg20[%c12_310, %c0_311] : memref<20x128xf32, #tpu.memory_space<vmem>>, vector<1x128xf32>
    %270 = arith.maximumf %268, %269 : vector<1x128xf32>
    %c13_312 = arith.constant 13 : index
    %c0_313 = arith.constant 0 : index
    %271 = vector.load %arg20[%c13_312, %c0_313] : memref<20x128xf32, #tpu.memory_space<vmem>>, vector<1x128xf32>
    %272 = arith.maximumf %270, %271 : vector<1x128xf32>
    %c14 = arith.constant 14 : index
    %c0_314 = arith.constant 0 : index
    %273 = vector.load %arg20[%c14, %c0_314] : memref<20x128xf32, #tpu.memory_space<vmem>>, vector<1x128xf32>
    %274 = arith.maximumf %272, %273 : vector<1x128xf32>
    %275 = arith.truncf %274 : vector<1x128xf32> to vector<1x128xbf16>
    %c2_315 = arith.constant 2 : index
    %c0_316 = arith.constant 0 : index
    %276 = vector.load %arg21[%c2_315, %c0_316] : memref<4x128xbf16, #tpu.memory_space<vmem>>, vector<1x128xbf16>
    tpu.vector_store %arg21[%c2_315, %c0_316], %275 {strides = array<i32>} : memref<4x128xbf16, #tpu.memory_space<vmem>>, vector<1x128xbf16>,
    %c15_317 = arith.constant 15 : index
    %c0_318 = arith.constant 0 : index
    %277 = vector.load %arg20[%c15_317, %c0_318] : memref<20x128xf32, #tpu.memory_space<vmem>>, vector<1x128xf32>
    %c16 = arith.constant 16 : index
    %c0_319 = arith.constant 0 : index
    %278 = vector.load %arg20[%c16, %c0_319] : memref<20x128xf32, #tpu.memory_space<vmem>>, vector<1x128xf32>
    %279 = arith.maximumf %277, %278 : vector<1x128xf32>
    %c17 = arith.constant 17 : index
    %c0_320 = arith.constant 0 : index
    %280 = vector.load %arg20[%c17, %c0_320] : memref<20x128xf32, #tpu.memory_space<vmem>>, vector<1x128xf32>
    %281 = arith.maximumf %279, %280 : vector<1x128xf32>
    %c18_321 = arith.constant 18 : index
    %c0_322 = arith.constant 0 : index
    %282 = vector.load %arg20[%c18_321, %c0_322] : memref<20x128xf32, #tpu.memory_space<vmem>>, vector<1x128xf32>
    %283 = arith.maximumf %281, %282 : vector<1x128xf32>
    %c19_323 = arith.constant 19 : index
    %c0_324 = arith.constant 0 : index
    %284 = vector.load %arg20[%c19_323, %c0_324] : memref<20x128xf32, #tpu.memory_space<vmem>>, vector<1x128xf32>
    %285 = arith.maximumf %283, %284 : vector<1x128xf32>
    %286 = arith.truncf %285 : vector<1x128xf32> to vector<1x128xbf16>
    %c3_325 = arith.constant 3 : index
    %c0_326 = arith.constant 0 : index
    %287 = vector.load %arg21[%c3_325, %c0_326] : memref<4x128xbf16, #tpu.memory_space<vmem>>, vector<1x128xbf16>
    tpu.vector_store %arg21[%c3_325, %c0_326], %286 {strides = array<i32>} : memref<4x128xbf16, #tpu.memory_space<vmem>>, vector<1x128xbf16>,
    %cst_327 = arith.constant 0.000000e+00 : f32
    %288 = vector.broadcast %cst_327 : f32 to vector<2x6xf32>
    %c0_328 = arith.constant 0 : index
    %c0_329 = arith.constant 0 : index
    %289 = vector.load %arg21[%c0_328, %c0_329] : memref<4x128xbf16, #tpu.memory_space<vmem>>, vector<2x128xbf16>
    %c0_330 = arith.constant 0 : index
    %c0_331 = arith.constant 0 : index
    %c0_332 = arith.constant 0 : index
    %290 = vector.load %arg10[%c0_330, %c0_331, %c0_332] : memref<2x128x6xbf16, #tpu.memory_space<vmem>>, vector<1x128x6xbf16>
    %291 = vector.shape_cast %290 : vector<1x128x6xbf16> to vector<128x6xbf16>
    %cst_333 = arith.constant dense<0.000000e+00> : vector<2x6xf32>
    %292 = tpu.matmul %289, %291, %cst_333 {dimension_numbers = #tpu.dot_dimension_numbers<[1], [0], [0], [1], [0, 0, 1, 1], [], []>} : vector<2x128xbf16>, vector<128x6xbf16>, vector<2x6xf32> -> vector<2x6xf32>
    %293 = arith.addf %288, %292 : vector<2x6xf32>
    %c2_334 = arith.constant 2 : index
    %c0_335 = arith.constant 0 : index
    %294 = vector.load %arg21[%c2_334, %c0_335] : memref<4x128xbf16, #tpu.memory_space<vmem>>, vector<2x128xbf16>
    %c1_336 = arith.constant 1 : index
    %c0_337 = arith.constant 0 : index
    %c0_338 = arith.constant 0 : index
    %295 = vector.load %arg10[%c1_336, %c0_337, %c0_338] : memref<2x128x6xbf16, #tpu.memory_space<vmem>>, vector<1x128x6xbf16>
    %296 = vector.shape_cast %295 : vector<1x128x6xbf16> to vector<128x6xbf16>
    %cst_339 = arith.constant dense<0.000000e+00> : vector<2x6xf32>
    %297 = tpu.matmul %294, %296, %cst_339 {dimension_numbers = #tpu.dot_dimension_numbers<[1], [0], [0], [1], [0, 0, 1, 1], [], []>} : vector<2x128xbf16>, vector<128x6xbf16>, vector<2x6xf32> -> vector<2x6xf32>
    %298 = arith.addf %293, %297 : vector<2x6xf32>
    %c0_340 = arith.constant 0 : index
    %c0_341 = arith.constant 0 : index
    %299 = vector.load %arg11[%c0_340, %c0_341] : memref<1x6xf32, #tpu.memory_space<vmem>>, vector<1x6xf32>
    %300 = vector.broadcast %299 : vector<1x6xf32> to vector<2x6xf32>
    %301 = arith.addf %298, %300 : vector<2x6xf32>
    %c0_342 = arith.constant 0 : index
    %c0_343 = arith.constant 0 : index
    %302 = vector.load %arg12[%c0_342, %c0_343] : memref<2x6xf32, #tpu.memory_space<vmem>>, vector<2x6xf32>
    tpu.vector_store %arg12[%c0_342, %c0_343], %301 {strides = array<i32>} : memref<2x6xf32, #tpu.memory_space<vmem>>, vector<2x6xf32>,
    return
  }
}

</mosaic_0001>

<llo_original>
// kernel: har_forward.1
$region0: #{har_forward.1}
  #allocation0 [shape = 'u32[]', space=smem, size = 0x4, offset = 0x4, fixed_abs, tag = 'smem constant byte address 0x4 - core index']
  #allocation1 [shape = 'u32[72,128]{1,0:T(1,128)}', space=vmem, size = 0x9000, scoped, tag = 'internal scratch']
  #allocation2 [shape = 'bf16[660,5]{1,0:T(8,128)(2,1)}', space=vmem, size = 0x29800, scoped, tag = 'scratch operand']
  #allocation3 [shape = 'f32[660,32]{1,0:T(8,128)}', space=vmem, size = 0x53000, scoped, tag = 'scratch operand']
  #allocation4 [shape = 'bf16[164,32]{1,0:T(8,128)(2,1)}', space=vmem, size = 0xa800, scoped, tag = 'scratch operand']
  #allocation5 [shape = 'bf16[148,160]{1,0:T(8,128)(2,1)}', space=vmem, size = 0x13000, scoped, tag = 'scratch operand']
  #allocation6 [shape = 'f32[148,64]{1,0:T(8,128)}', space=vmem, size = 0x13000, scoped, tag = 'scratch operand']
  #allocation7 [shape = 'bf16[36,64]{1,0:T(8,128)(2,1)}', space=vmem, size = 0x2800, scoped, tag = 'scratch operand']
  #allocation8 [shape = 'bf16[20,320]{1,0:T(8,128)(2,1)}', space=vmem, size = 0x4800, scoped, tag = 'scratch operand']
  #allocation9 [shape = 'f32[20,128]{1,0:T(8,128)}', space=vmem, size = 0x3000, scoped, tag = 'scratch operand']
  #allocation10 [shape = 'bf16[4,128]{1,0:T(4,128)(2,1)}', space=vmem, size = 0x400, scoped, tag = 'scratch operand']
  %s0 = inlined_call_operand.vmem [shape: bf16[676,1], index: 0, kind: input, shape index: {}]
  %s1 = inlined_call_operand.vmem [shape: bf16[5,32], index: 1, kind: input, shape index: {}]
  %s2 = inlined_call_operand.vmem [shape: f32[1,32], index: 2, kind: input, shape index: {}]
  %s3 = inlined_call_operand.vmem [shape: f32[1,32], index: 3, kind: input, shape index: {}]
  %s4 = inlined_call_operand.vmem [shape: bf16[160,64], index: 4, kind: input, shape index: {}]
  %s5 = inlined_call_operand.vmem [shape: f32[1,64], index: 5, kind: input, shape index: {}]
  %s6 = inlined_call_operand.vmem [shape: f32[1,64], index: 6, kind: input, shape index: {}]
  %s7 = inlined_call_operand.vmem [shape: bf16[320,128], index: 7, kind: input, shape index: {}]
  %s8 = inlined_call_operand.vmem [shape: f32[1,128], index: 8, kind: input, shape index: {}]
  %s9 = inlined_call_operand.vmem [shape: f32[1,128], index: 9, kind: input, shape index: {}]
  %s10 = inlined_call_operand.vmem [shape: bf16[2,128,6], index: 10, kind: input, shape index: {}]
  %s11 = inlined_call_operand.vmem [shape: f32[1,6], index: 11, kind: input, shape index: {}]
  %s12 = inlined_call_operand.hbm [shape: f32[2,6], index: 12, kind: output, shape index: {}]
  %s13 = sld [smem:[#allocation0]]
  $region58: #{har_forward.1} parent=0
    _
  %s15 = ssub.s32 1, %s13
  %s16 = scalar_select 0, %s15, %s13
  $region1: #{har_forward.1} parent=0
    #allocation11 [shape = 'u8[1024]{0}', space=vmem, size = 0x400, scoped, tag = 'output window, operand 0, single buffered']
    #allocation12 [shape = 's32[1]{0}', space=sflag, size = 0x4, scoped, tag = 'scoped memory for har_forward.1']
    %17 = vsyncpa [#allocation12], 0
    // Predicated region
    $region2: #{har_forward.1} parent=1 // pred_check
      _
    $region3: #{har_forward.1} parent=1 // pred_check_branch
      %19 = sbr.rel (0) target = $region5
    $region4: #{har_forward.1} parent=1 // pred_region
      _
    $region5: #{har_forward.1} parent=1 // pred_fallthru
      _
    // Predicated region
    $region6: #{har_forward.1} parent=1 // pred_check
      _
    $region7: #{har_forward.1} parent=1 // pred_check_branch
      %21 = sbr.rel (0) target = $region9
    $region8: #{har_forward.1} parent=1 // pred_region
      _
    $region9: #{har_forward.1} parent=1 // pred_fallthru
      _
    // Predicated region
    $region10: #{har_forward.1} parent=1 // pred_check
      _
    $region11: #{har_forward.1} parent=1 // pred_check_branch
      %23 = sbr.rel (0) target = $region13
    $region12: #{har_forward.1} parent=1 // pred_region
      _
    $region13: #{har_forward.1} parent=1 // pred_fallthru
      _
    // Predicated region
    $region14: #{har_forward.1} parent=1 // pred_check
      _
    $region15: #{har_forward.1} parent=1 // pred_check_branch
      %25 = sbr.rel (0) target = $region17
    $region16: #{har_forward.1} parent=1 // pred_region
      _
    $region17: #{har_forward.1} parent=1 // pred_fallthru
      _
    // Predicated region
    $region18: #{har_forward.1} parent=1 // pred_check
      _
    $region19: #{har_forward.1} parent=1 // pred_check_branch
      %27 = sbr.rel (0) target = $region21
    $region20: #{har_forward.1} parent=1 // pred_region
      _
    $region21: #{har_forward.1} parent=1 // pred_fallthru
      _
    // Predicated region
    $region22: #{har_forward.1} parent=1 // pred_check
      _
    $region23: #{har_forward.1} parent=1 // pred_check_branch
      %29 = sbr.rel (0) target = $region25
    $region24: #{har_forward.1} parent=1 // pred_region
      _
    $region25: #{har_forward.1} parent=1 // pred_fallthru
      _
    // Predicated region
    $region26: #{har_forward.1} parent=1 // pred_check
      _
    $region27: #{har_forward.1} parent=1 // pred_check_branch
      %31 = sbr.rel (0) target = $region29
    $region28: #{har_forward.1} parent=1 // pred_region
      _
    $region29: #{har_forward.1} parent=1 // pred_fallthru
      _
    // Predicated region
    $region30: #{har_forward.1} parent=1 // pred_check
      _
    $region31: #{har_forward.1} parent=1 // pred_check_branch
      %33 = sbr.rel (0) target = $region33
    $region32: #{har_forward.1} parent=1 // pred_region
      _
    $region33: #{har_forward.1} parent=1 // pred_fallthru
      _
    // Predicated region
    $region34: #{har_forward.1} parent=1 // pred_check
      _
    $region35: #{har_forward.1} parent=1 // pred_check_branch
      %35 = sbr.rel (0) target = $region37
    $region36: #{har_forward.1} parent=1 // pred_region
      _
    $region37: #{har_forward.1} parent=1 // pred_fallthru
      _
    // Predicated region
    $region38: #{har_forward.1} parent=1 // pred_check
      _
    $region39: #{har_forward.1} parent=1 // pred_check_branch
      %37 = sbr.rel (0) target = $region41
    $region40: #{har_forward.1} parent=1 // pred_region
      _
    $region41: #{har_forward.1} parent=1 // pred_fallthru
      _
    // Predicated region
    $region42: #{har_forward.1} parent=1 // pred_check
      _
    $region43: #{har_forward.1} parent=1 // pred_check_branch
      %39 = sbr.rel (0) target = $region45
    $region44: #{har_forward.1} parent=1 // pred_region
      _
    $region45: #{har_forward.1} parent=1 // pred_fallthru
      _
    // Predicated region
    $region46: #{har_forward.1} parent=1 // pred_check
      _
    $region47: #{har_forward.1} parent=1 // pred_check_branch
      %41 = sbr.rel (0) target = $region49
    $region48: #{har_forward.1} parent=1 // pred_region
      _
    $region49: #{har_forward.1} parent=1 // pred_fallthru
      _
    %v43 = vld [vmem:[%s0] sm:$0xf]
    %v44 = vld [vmem:[%s0 + $0x4] sm:$0xf]
    %v45 = vld [vmem:[%s0 + $0x8] sm:$0xf]
    %v46 = vld [vmem:[%s0 + $0xc] sm:$0xf]
    %v47 = vld [vmem:[%s0 + $0x10] sm:$0xf]
    %v48 = vld [vmem:[%s0 + $0x14] sm:$0xf]
    %v49 = vld [vmem:[%s0 + $0x18] sm:$0xf]
    %v50 = vld [vmem:[%s0 + $0x1c] sm:$0xf]
    %v51 = vld [vmem:[%s0 + $0x20] sm:$0xf]
    %v52 = vld [vmem:[%s0 + $0x24] sm:$0xf]
    %v53 = vld [vmem:[%s0 + $0x28] sm:$0xf]
    %v54 = vld [vmem:[%s0 + $0x2c] sm:$0xf]
    %v55 = vld [vmem:[%s0 + $0x30] sm:$0xf]
    %v56 = vld [vmem:[%s0 + $0x34] sm:$0xf]
    %v57 = vld [vmem:[%s0 + $0x38] sm:$0xf]
    %v58 = vld [vmem:[%s0 + $0x3c] sm:$0xf]
    %v59 = vld [vmem:[%s0 + $0x40] sm:$0xf]
    %v60 = vld [vmem:[%s0 + $0x44] sm:$0xf]
    %v61 = vld [vmem:[%s0 + $0x48] sm:$0xf]
    %v62 = vld [vmem:[%s0 + $0x4c] sm:$0xf]
    %v63 = vld [vmem:[%s0 + $0x50] sm:$0x7]
    %vm64 = vcmask 3072
    %65 = vst.msk [vmem:[#allocation2] sm:$0xf] %vm64, %v43
    %66 = vst.msk [vmem:[#allocation2 + $0x4] sm:$0xf] %vm64, %v44
    %67 = vst.msk [vmem:[#allocation2 + $0x8] sm:$0xf] %vm64, %v45
    %68 = vst.msk [vmem:[#allocation2 + $0xc] sm:$0xf] %vm64, %v46
    %69 = vst.msk [vmem:[#allocation2 + $0x10] sm:$0xf] %vm64, %v47
    %70 = vst.msk [vmem:[#allocation2 + $0x14] sm:$0xf] %vm64, %v48
    %71 = vst.msk [vmem:[#allocation2 + $0x18] sm:$0xf] %vm64, %v49
    %72 = vst.msk [vmem:[#allocation2 + $0x1c] sm:$0xf] %vm64, %v50
    %73 = vst.msk [vmem:[#allocation2 + $0x20] sm:$0xf] %vm64, %v51
    %74 = vst.msk [vmem:[#allocation2 + $0x24] sm:$0xf] %vm64, %v52
    %75 = vst.msk [vmem:[#allocation2 + $0x28] sm:$0xf] %vm64, %v53
    %76 = vst.msk [vmem:[#allocation2 + $0x2c] sm:$0xf] %vm64, %v54
    %77 = vst.msk [vmem:[#allocation2 + $0x30] sm:$0xf] %vm64, %v55
    %78 = vst.msk [vmem:[#allocation2 + $0x34] sm:$0xf] %vm64, %v56
    %79 = vst.msk [vmem:[#allocation2 + $0x38] sm:$0xf] %vm64, %v57
    %80 = vst.msk [vmem:[#allocation2 + $0x3c] sm:$0xf] %vm64, %v58
    %81 = vst.msk [vmem:[#allocation2 + $0x40] sm:$0xf] %vm64, %v59
    %82 = vst.msk [vmem:[#allocation2 + $0x44] sm:$0xf] %vm64, %v60
    %83 = vst.msk [vmem:[#allocation2 + $0x48] sm:$0xf] %vm64, %v61
    %84 = vst.msk [vmem:[#allocation2 + $0x4c] sm:$0xf] %vm64, %v62
    %vm85 = vcmask 2048
    %vm86 = vsmask.f32 2304
    %vm87 = vmand %vm85, %vm86
    %v88 = vld [vmem:[#allocation2 + $0x50] sm:$0x7]
    %v89 = vsel %vm87, %v63, %v88
    %90 = vst [vmem:[#allocation2 + $0x50] sm:$0x7] %v89
    %v91 = vld [vmem:[%s0] sm:$0xf]
    %v92 = vld [vmem:[%s0 + $0x4] sm:$0xf]
    %v93 = vld [vmem:[%s0 + $0x8] sm:$0xf]
    %v94 = vld [vmem:[%s0 + $0xc] sm:$0xf]
    %v95 = vld [vmem:[%s0 + $0x10] sm:$0xf]
    %v96 = vld [vmem:[%s0 + $0x14] sm:$0xf]
    %v97 = vld [vmem:[%s0 + $0x18] sm:$0xf]
    %v98 = vld [vmem:[%s0 + $0x1c] sm:$0xf]
    %v99 = vld [vmem:[%s0 + $0x20] sm:$0xf]
    %v100 = vld [vmem:[%s0 + $0x24] sm:$0xf]
    %v101 = vld [vmem:[%s0 + $0x28] sm:$0xf]
    %v102 = vld [vmem:[%s0 + $0x2c] sm:$0xf]
    %v103 = vld [vmem:[%s0 + $0x30] sm:$0xf]
    %v104 = vld [vmem:[%s0 + $0x34] sm:$0xf]
    %v105 = vld [vmem:[%s0 + $0x38] sm:$0xf]
    %v106 = vld [vmem:[%s0 + $0x3c] sm:$0xf]
    %v107 = vld [vmem:[%s0 + $0x40] sm:$0xf]
    %v108 = vld [vmem:[%s0 + $0x44] sm:$0xf]
    %v109 = vld [vmem:[%s0 + $0x48] sm:$0xf]
    %v110 = vld [vmem:[%s0 + $0x4c] sm:$0xf]
    %v111 = vld [vmem:[%s0 + $0x50] sm:$0x7]
    %vm112 = vsmask.f32 3328
    %vm113 = vsmask.f32 7440
    %vm114 = vmor %vm112, %vm113
    %v116 = vshrl.u32 %v91, 16
    %v118 = vrot.slane %v116, 4
    %v119 = vshll.u32 %v91, 16
    %v121 = vrot.slane %v119, 5
    %v122 = vor.u32 %v118, %v121
    %v123 = vrot.slane %v122, 4
    %v125 = vshll.u32 %v92, 16
    %v127 = vrot.slane %v125, 5
    %v128 = vsel %vm114, %v123, %v127
    %v129 = vshrl.u32 %v92, 16
    %v131 = vrot.slane %v129, 4
    %v132 = vor.u32 %v131, %v127
    %v133 = vrot.slane %v132, 4
    %v135 = vshll.u32 %v93, 16
    %v137 = vrot.slane %v135, 5
    %v138 = vsel %vm114, %v133, %v137
    %v139 = vshrl.u32 %v93, 16
    %v141 = vrot.slane %v139, 4
    %v142 = vor.u32 %v141, %v137
    %v143 = vrot.slane %v142, 4
    %v145 = vshll.u32 %v94, 16
    %v147 = vrot.slane %v145, 5
    %v148 = vsel %vm114, %v143, %v147
    %v149 = vshrl.u32 %v94, 16
    %v151 = vrot.slane %v149, 4
    %v152 = vor.u32 %v151, %v147
    %v153 = vrot.slane %v152, 4
    %v155 = vshll.u32 %v95, 16
    %v157 = vrot.slane %v155, 5
    %v158 = vsel %vm114, %v153, %v157
    %v159 = vshrl.u32 %v95, 16
    %v161 = vrot.slane %v159, 4
    %v162 = vor.u32 %v161, %v157
    %v163 = vrot.slane %v162, 4
    %v165 = vshll.u32 %v96, 16
    %v167 = vrot.slane %v165, 5
    %v168 = vsel %vm114, %v163, %v167
    %v169 = vshrl.u32 %v96, 16
    %v171 = vrot.slane %v169, 4
    %v172 = vor.u32 %v171, %v167
    %v173 = vrot.slane %v172, 4
    %v175 = vshll.u32 %v97, 16
    %v177 = vrot.slane %v175, 5
    %v178 = vsel %vm114, %v173, %v177
    %v179 = vshrl.u32 %v97, 16
    %v181 = vrot.slane %v179, 4
    %v182 = vor.u32 %v181, %v177
    %v183 = vrot.slane %v182, 4
    %v185 = vshll.u32 %v98, 16
    %v187 = vrot.slane %v185, 5
    %v188 = vsel %vm114, %v183, %v187
    %v189 = vshrl.u32 %v98, 16
    %v191 = vrot.slane %v189, 4
    %v192 = vor.u32 %v191, %v187
    %v193 = vrot.slane %v192, 4
    %v195 = vshll.u32 %v99, 16
    %v197 = vrot.slane %v195, 5
    %v198 = vsel %vm114, %v193, %v197
    %v199 = vshrl.u32 %v99, 16
    %v201 = vrot.slane %v199, 4
    %v202 = vor.u32 %v201, %v197
    %v203 = vrot.slane %v202, 4
    %v205 = vshll.u32 %v100, 16
    %v207 = vrot.slane %v205, 5
    %v208 = vsel %vm114, %v203, %v207
    %v209 = vshrl.u32 %v100, 16
    %v211 = vrot.slane %v209, 4
    %v212 = vor.u32 %v211, %v207
    %v213 = vrot.slane %v212, 4
    %v215 = vshll.u32 %v101, 16
    %v217 = vrot.slane %v215, 5
    %v218 = vsel %vm114, %v213, %v217
    %v219 = vshrl.u32 %v101, 16
    %v221 = vrot.slane %v219, 4
    %v222 = vor.u32 %v221, %v217
    %v223 = vrot.slane %v222, 4
    %v225 = vshll.u32 %v102, 16
    %v227 = vrot.slane %v225, 5
    %v228 = vsel %vm114, %v223, %v227
    %v229 = vshrl.u32 %v102, 16
    %v231 = vrot.slane %v229, 4
    %v232 = vor.u32 %v231, %v227
    %v233 = vrot.slane %v232, 4
    %v235 = vshll.u32 %v103, 16
    %v237 = vrot.slane %v235, 5
    %v238 = vsel %vm114, %v233, %v237
    %v239 = vshrl.u32 %v103, 16
    %v241 = vrot.slane %v239, 4
    %v242 = vor.u32 %v241, %v237
    %v243 = vrot.slane %v242, 4
    %v245 = vshll.u32 %v104, 16
    %v247 = vrot.slane %v245, 5
    %v248 = vsel %vm114, %v243, %v247
    %v249 = vshrl.u32 %v104, 16
    %v251 = vrot.slane %v249, 4
    %v252 = vor.u32 %v251, %v247
    %v253 = vrot.slane %v252, 4
    %v255 = vshll.u32 %v105, 16
    %v257 = vrot.slane %v255, 5
    %v258 = vsel %vm114, %v253, %v257
    %v259 = vshrl.u32 %v105, 16
    %v261 = vrot.slane %v259, 4
    %v262 = vor.u32 %v261, %v257
    %v263 = vrot.slane %v262, 4
    %v265 = vshll.u32 %v106, 16
    %v267 = vrot.slane %v265, 5
    %v268 = vsel %vm114, %v263, %v267
    %v269 = vshrl.u32 %v106, 16
    %v271 = vrot.slane %v269, 4
    %v272 = vor.u32 %v271, %v267
    %v273 = vrot.slane %v272, 4
    %v275 = vshll.u32 %v107, 16
    %v277 = vrot.slane %v275, 5
    %v278 = vsel %vm114, %v273, %v277
    %v279 = vshrl.u32 %v107, 16
    %v281 = vrot.slane %v279, 4
    %v282 = vor.u32 %v281, %v277
    %v283 = vrot.slane %v282, 4
    %v285 = vshll.u32 %v108, 16
    %v287 = vrot.slane %v285, 5
    %v288 = vsel %vm114, %v283, %v287
    %v289 = vshrl.u32 %v108, 16
    %v291 = vrot.slane %v289, 4
    %v292 = vor.u32 %v291, %v287
    %v293 = vrot.slane %v292, 4
    %v295 = vshll.u32 %v109, 16
    %v297 = vrot.slane %v295, 5
    %v298 = vsel %vm114, %v293, %v297
    %v299 = vshrl.u32 %v109, 16
    %v301 = vrot.slane %v299, 4
    %v302 = vor.u32 %v301, %v297
    %v303 = vrot.slane %v302, 4
    %v305 = vshll.u32 %v110, 16
    %v307 = vrot.slane %v305, 5
    %v308 = vsel %vm114, %v303, %v307
    %v309 = vshrl.u32 %v110, 16
    %v311 = vrot.slane %v309, 4
    %v312 = vor.u32 %v311, %v307
    %v313 = vrot.slane %v312, 4
    %v315 = vshll.u32 %v111, 16
    %v317 = vrot.slane %v315, 5
    %v318 = vsel %vm114, %v313, %v317
    %v319 = vshrl.u32 %v111, 16
    %v321 = vrot.slane %v319, 4
    %v322 = vor.u32 %v321, %v317
    %v323 = vrot.slane %v322, 4
    %324 = vrot.lane.b32.xlu0 %v128, 1
    %v325 = vpop.permute.xlu0 %324
    %326 = vrot.lane.b32.xlu0 %v138, 1
    %v327 = vpop.permute.xlu0 %326
    %328 = vrot.lane.b32.xlu0 %v148, 1
    %v329 = vpop.permute.xlu0 %328
    %330 = vrot.lane.b32.xlu0 %v158, 1
    %v331 = vpop.permute.xlu0 %330
    %332 = vrot.lane.b32.xlu0 %v168, 1
    %v333 = vpop.permute.xlu0 %332
    %334 = vrot.lane.b32.xlu0 %v178, 1
    %v335 = vpop.permute.xlu0 %334
    %336 = vrot.lane.b32.xlu0 %v188, 1
    %v337 = vpop.permute.xlu0 %336
    %338 = vrot.lane.b32.xlu0 %v198, 1
    %v339 = vpop.permute.xlu0 %338
    %340 = vrot.lane.b32.xlu0 %v208, 1
    %v341 = vpop.permute.xlu0 %340
    %342 = vrot.lane.b32.xlu0 %v218, 1
    %v343 = vpop.permute.xlu0 %342
    %344 = vrot.lane.b32.xlu0 %v228, 1
    %v345 = vpop.permute.xlu0 %344
    %346 = vrot.lane.b32.xlu0 %v238, 1
    %v347 = vpop.permute.xlu0 %346
    %348 = vrot.lane.b32.xlu0 %v248, 1
    %v349 = vpop.permute.xlu0 %348
    %350 = vrot.lane.b32.xlu0 %v258, 1
    %v351 = vpop.permute.xlu0 %350
    %352 = vrot.lane.b32.xlu0 %v268, 1
    %v353 = vpop.permute.xlu0 %352
    %354 = vrot.lane.b32.xlu0 %v278, 1
    %v355 = vpop.permute.xlu0 %354
    %356 = vrot.lane.b32.xlu0 %v288, 1
    %v357 = vpop.permute.xlu0 %356
    %358 = vrot.lane.b32.xlu0 %v298, 1
    %v359 = vpop.permute.xlu0 %358
    %360 = vrot.lane.b32.xlu0 %v308, 1
    %v361 = vpop.permute.xlu0 %360
    %362 = vrot.lane.b32.xlu0 %v318, 1
    %v363 = vpop.permute.xlu0 %362
    %364 = vrot.lane.b32.xlu0 %v323, 1
    %v365 = vpop.permute.xlu0 %364
    %vm387 = vcmask 11272
    %388 = vst.msk [vmem:[#allocation2] sm:$0xf] %vm387, %v325
    %389 = vst.msk [vmem:[#allocation2 + $0x4] sm:$0xf] %vm387, %v327
    %390 = vst.msk [vmem:[#allocation2 + $0x8] sm:$0xf] %vm387, %v329
    %391 = vst.msk [vmem:[#allocation2 + $0xc] sm:$0xf] %vm387, %v331
    %392 = vst.msk [vmem:[#allocation2 + $0x10] sm:$0xf] %vm387, %v333
    %393 = vst.msk [vmem:[#allocation2 + $0x14] sm:$0xf] %vm387, %v335
    %394 = vst.msk [vmem:[#allocation2 + $0x18] sm:$0xf] %vm387, %v337
    %395 = vst.msk [vmem:[#allocation2 + $0x1c] sm:$0xf] %vm387, %v339
    %396 = vst.msk [vmem:[#allocation2 + $0x20] sm:$0xf] %vm387, %v341
    %397 = vst.msk [vmem:[#allocation2 + $0x24] sm:$0xf] %vm387, %v343
    %398 = vst.msk [vmem:[#allocation2 + $0x28] sm:$0xf] %vm387, %v345
    %399 = vst.msk [vmem:[#allocation2 + $0x2c] sm:$0xf] %vm387, %v347
    %400 = vst.msk [vmem:[#allocation2 + $0x30] sm:$0xf] %vm387, %v349
    %401 = vst.msk [vmem:[#allocation2 + $0x34] sm:$0xf] %vm387, %v351
    %402 = vst.msk [vmem:[#allocation2 + $0x38] sm:$0xf] %vm387, %v353
    %403 = vst.msk [vmem:[#allocation2 + $0x3c] sm:$0xf] %vm387, %v355
    %404 = vst.msk [vmem:[#allocation2 + $0x40] sm:$0xf] %vm387, %v357
    %405 = vst.msk [vmem:[#allocation2 + $0x44] sm:$0xf] %vm387, %v359
    %406 = vst.msk [vmem:[#allocation2 + $0x48] sm:$0xf] %vm387, %v361
    %407 = vst.msk [vmem:[#allocation2 + $0x4c] sm:$0xf] %vm387, %v363
    %vm408 = vcmask 10248
    %vm409 = vmand %vm408, %vm86
    %v410 = vld [vmem:[#allocation2 + $0x50] sm:$0x7]
    %v411 = vsel %vm409, %v365, %v410
    %412 = vst [vmem:[#allocation2 + $0x50] sm:$0x7] %v411
    %v413 = vld [vmem:[%s0] sm:$0xe]
    %v414 = vld [vmem:[%s0 + $0x4] sm:$0xf]
    %v415 = vld [vmem:[%s0 + $0x8] sm:$0xf]
    %v416 = vld [vmem:[%s0 + $0xc] sm:$0xf]
    %v417 = vld [vmem:[%s0 + $0x10] sm:$0xf]
    %v418 = vld [vmem:[%s0 + $0x14] sm:$0xf]
    %v419 = vld [vmem:[%s0 + $0x18] sm:$0xf]
    %v420 = vld [vmem:[%s0 + $0x1c] sm:$0xf]
    %v421 = vld [vmem:[%s0 + $0x20] sm:$0xf]
    %v422 = vld [vmem:[%s0 + $0x24] sm:$0xf]
    %v423 = vld [vmem:[%s0 + $0x28] sm:$0xf]
    %v424 = vld [vmem:[%s0 + $0x2c] sm:$0xf]
    %v425 = vld [vmem:[%s0 + $0x30] sm:$0xf]
    %v426 = vld [vmem:[%s0 + $0x34] sm:$0xf]
    %v427 = vld [vmem:[%s0 + $0x38] sm:$0xf]
    %v428 = vld [vmem:[%s0 + $0x3c] sm:$0xf]
    %v429 = vld [vmem:[%s0 + $0x40] sm:$0xf]
    %v430 = vld [vmem:[%s0 + $0x44] sm:$0xf]
    %v431 = vld [vmem:[%s0 + $0x48] sm:$0xf]
    %v432 = vld [vmem:[%s0 + $0x4c] sm:$0xf]
    %v433 = vld [vmem:[%s0 + $0x50] sm:$0xf]
    %vm455 = vcmask 1042432
    %vm456 = vcmask 1046532
    %vm457 = vmor %vm455, %vm456
    %v458 = vrot.slane %v413, 5
    %v459 = vrot.slane %v458, 4
    %v460 = vrot.slane %v414, 5
    %v461 = vsel %vm457, %v459, %v460
    %v462 = vrot.slane %v460, 4
    %v463 = vrot.slane %v415, 5
    %v464 = vsel %vm457, %v462, %v463
    %v465 = vrot.slane %v463, 4
    %v466 = vrot.slane %v416, 5
    %v467 = vsel %vm457, %v465, %v466
    %v468 = vrot.slane %v466, 4
    %v469 = vrot.slane %v417, 5
    %v470 = vsel %vm457, %v468, %v469
    %v471 = vrot.slane %v469, 4
    %v472 = vrot.slane %v418, 5
    %v473 = vsel %vm457, %v471, %v472
    %v474 = vrot.slane %v472, 4
    %v475 = vrot.slane %v419, 5
    %v476 = vsel %vm457, %v474, %v475
    %v477 = vrot.slane %v475, 4
    %v478 = vrot.slane %v420, 5
    %v479 = vsel %vm457, %v477, %v478
    %v480 = vrot.slane %v478, 4
    %v481 = vrot.slane %v421, 5
    %v482 = vsel %vm457, %v480, %v481
    %v483 = vrot.slane %v481, 4
    %v484 = vrot.slane %v422, 5
    %v485 = vsel %vm457, %v483, %v484
    %v486 = vrot.slane %v484, 4
    %v487 = vrot.slane %v423, 5
    %v488 = vsel %vm457, %v486, %v487
    %v489 = vrot.slane %v487, 4
    %v490 = vrot.slane %v424, 5
    %v491 = vsel %vm457, %v489, %v490
    %v492 = vrot.slane %v490, 4
    %v493 = vrot.slane %v425, 5
    %v494 = vsel %vm457, %v492, %v493
    %v495 = vrot.slane %v493, 4
    %v496 = vrot.slane %v426, 5
    %v497 = vsel %vm457, %v495, %v496
    %v498 = vrot.slane %v496, 4
    %v499 = vrot.slane %v427, 5
    %v500 = vsel %vm457, %v498, %v499
    %v501 = vrot.slane %v499, 4
    %v502 = vrot.slane %v428, 5
    %v503 = vsel %vm457, %v501, %v502
    %v504 = vrot.slane %v502, 4
    %v505 = vrot.slane %v429, 5
    %v506 = vsel %vm457, %v504, %v505
    %v507 = vrot.slane %v505, 4
    %v508 = vrot.slane %v430, 5
    %v509 = vsel %vm457, %v507, %v508
    %v510 = vrot.slane %v508, 4
    %v511 = vrot.slane %v431, 5
    %v512 = vsel %vm457, %v510, %v511
    %v513 = vrot.slane %v511, 4
    %v514 = vrot.slane %v432, 5
    %v515 = vsel %vm457, %v513, %v514
    %v516 = vrot.slane %v514, 4
    %v517 = vrot.slane %v433, 5
    %v518 = vsel %vm457, %v516, %v517
    %v519 = vrot.slane %v517, 4
    %520 = vrot.lane.b32.xlu0 %v461, 2
    %v521 = vpop.permute.xlu0 %520
    %522 = vrot.lane.b32.xlu0 %v464, 2
    %v523 = vpop.permute.xlu0 %522
    %524 = vrot.lane.b32.xlu0 %v467, 2
    %v525 = vpop.permute.xlu0 %524
    %526 = vrot.lane.b32.xlu0 %v470, 2
    %v527 = vpop.permute.xlu0 %526
    %528 = vrot.lane.b32.xlu0 %v473, 2
    %v529 = vpop.permute.xlu0 %528
    %530 = vrot.lane.b32.xlu0 %v476, 2
    %v531 = vpop.permute.xlu0 %530
    %532 = vrot.lane.b32.xlu0 %v479, 2
    %v533 = vpop.permute.xlu0 %532
    %534 = vrot.lane.b32.xlu0 %v482, 2
    %v535 = vpop.permute.xlu0 %534
    %536 = vrot.lane.b32.xlu0 %v485, 2
    %v537 = vpop.permute.xlu0 %536
    %538 = vrot.lane.b32.xlu0 %v488, 2
    %v539 = vpop.permute.xlu0 %538
    %540 = vrot.lane.b32.xlu0 %v491, 2
    %v541 = vpop.permute.xlu0 %540
    %542 = vrot.lane.b32.xlu0 %v494, 2
    %v543 = vpop.permute.xlu0 %542
    %544 = vrot.lane.b32.xlu0 %v497, 2
    %v545 = vpop.permute.xlu0 %544
    %546 = vrot.lane.b32.xlu0 %v500, 2
    %v547 = vpop.permute.xlu0 %546
    %548 = vrot.lane.b32.xlu0 %v503, 2
    %v549 = vpop.permute.xlu0 %548
    %550 = vrot.lane.b32.xlu0 %v506, 2
    %v551 = vpop.permute.xlu0 %550
    %552 = vrot.lane.b32.xlu0 %v509, 2
    %v553 = vpop.permute.xlu0 %552
    %554 = vrot.lane.b32.xlu0 %v512, 2
    %v555 = vpop.permute.xlu0 %554
    %556 = vrot.lane.b32.xlu0 %v515, 2
    %v557 = vpop.permute.xlu0 %556
    %558 = vrot.lane.b32.xlu0 %v518, 2
    %v559 = vpop.permute.xlu0 %558
    %560 = vrot.lane.b32.xlu0 %v519, 2
    %v561 = vpop.permute.xlu0 %560
    %vm583 = vcmask 19472
    %584 = vst.msk [vmem:[#allocation2] sm:$0xf] %vm583, %v521
    %585 = vst.msk [vmem:[#allocation2 + $0x4] sm:$0xf] %vm583, %v523
    %586 = vst.msk [vmem:[#allocation2 + $0x8] sm:$0xf] %vm583, %v525
    %587 = vst.msk [vmem:[#allocation2 + $0xc] sm:$0xf] %vm583, %v527
    %588 = vst.msk [vmem:[#allocation2 + $0x10] sm:$0xf] %vm583, %v529
    %589 = vst.msk [vmem:[#allocation2 + $0x14] sm:$0xf] %vm583, %v531
    %590 = vst.msk [vmem:[#allocation2 + $0x18] sm:$0xf] %vm583, %v533
    %591 = vst.msk [vmem:[#allocation2 + $0x1c] sm:$0xf] %vm583, %v535
    %592 = vst.msk [vmem:[#allocation2 + $0x20] sm:$0xf] %vm583, %v537
    %593 = vst.msk [vmem:[#allocation2 + $0x24] sm:$0xf] %vm583, %v539
    %594 = vst.msk [vmem:[#allocation2 + $0x28] sm:$0xf] %vm583, %v541
    %595 = vst.msk [vmem:[#allocation2 + $0x2c] sm:$0xf] %vm583, %v543
    %596 = vst.msk [vmem:[#allocation2 + $0x30] sm:$0xf] %vm583, %v545
    %597 = vst.msk [vmem:[#allocation2 + $0x34] sm:$0xf] %vm583, %v547
    %598 = vst.msk [vmem:[#allocation2 + $0x38] sm:$0xf] %vm583, %v549
    %599 = vst.msk [vmem:[#allocation2 + $0x3c] sm:$0xf] %vm583, %v551
    %600 = vst.msk [vmem:[#allocation2 + $0x40] sm:$0xf] %vm583, %v553
    %601 = vst.msk [vmem:[#allocation2 + $0x44] sm:$0xf] %vm583, %v555
    %602 = vst.msk [vmem:[#allocation2 + $0x48] sm:$0xf] %vm583, %v557
    %603 = vst.msk [vmem:[#allocation2 + $0x4c] sm:$0xf] %vm583, %v559
    %vm604 = vcmask 18448
    %vm605 = vmand %vm604, %vm86
    %v606 = vld [vmem:[#allocation2 + $0x50] sm:$0x7]
    %v607 = vsel %vm605, %v561, %v606
    %608 = vst [vmem:[#allocation2 + $0x50] sm:$0x7] %v607
    %v609 = vld [vmem:[%s0] sm:$0xe]
    %v610 = vld [vmem:[%s0 + $0x4] sm:$0xf]
    %v611 = vld [vmem:[%s0 + $0x8] sm:$0xf]
    %v612 = vld [vmem:[%s0 + $0xc] sm:$0xf]
    %v613 = vld [vmem:[%s0 + $0x10] sm:$0xf]
    %v614 = vld [vmem:[%s0 + $0x14] sm:$0xf]
    %v615 = vld [vmem:[%s0 + $0x18] sm:$0xf]
    %v616 = vld [vmem:[%s0 + $0x1c] sm:$0xf]
    %v617 = vld [vmem:[%s0 + $0x20] sm:$0xf]
    %v618 = vld [vmem:[%s0 + $0x24] sm:$0xf]
    %v619 = vld [vmem:[%s0 + $0x28] sm:$0xf]
    %v620 = vld [vmem:[%s0 + $0x2c] sm:$0xf]
    %v621 = vld [vmem:[%s0 + $0x30] sm:$0xf]
    %v622 = vld [vmem:[%s0 + $0x34] sm:$0xf]
    %v623 = vld [vmem:[%s0 + $0x38] sm:$0xf]
    %v624 = vld [vmem:[%s0 + $0x3c] sm:$0xf]
    %v625 = vld [vmem:[%s0 + $0x40] sm:$0xf]
    %v626 = vld [vmem:[%s0 + $0x44] sm:$0xf]
    %v627 = vld [vmem:[%s0 + $0x48] sm:$0xf]
    %v628 = vld [vmem:[%s0 + $0x4c] sm:$0xf]
    %v629 = vld [vmem:[%s0 + $0x50] sm:$0xf]
    %vm630 = vsmask.f32 6416
    %vm631 = vmor %vm86, %vm630
    %v633 = vshrl.u32 %v609, 16
    %v635 = vrot.slane %v633, 5
    %v636 = vshll.u32 %v609, 16
    %v638 = vrot.slane %v636, 6
    %v639 = vor.u32 %v635, %v638
    %v640 = vrot.slane %v639, 4
    %v642 = vshrl.u32 %v610, 16
    %v644 = vrot.slane %v642, 5
    %v645 = vshll.u32 %v610, 16
    %v647 = vrot.slane %v645, 6
    %v648 = vor.u32 %v644, %v647
    %v649 = vsel %vm631, %v640, %v648
    %v650 = vrot.slane %v648, 4
    %v652 = vshrl.u32 %v611, 16
    %v654 = vrot.slane %v652, 5
    %v655 = vshll.u32 %v611, 16
    %v657 = vrot.slane %v655, 6
    %v658 = vor.u32 %v654, %v657
    %v659 = vsel %vm631, %v650, %v658
    %v660 = vrot.slane %v658, 4
    %v662 = vshrl.u32 %v612, 16
    %v664 = vrot.slane %v662, 5
    %v665 = vshll.u32 %v612, 16
    %v667 = vrot.slane %v665, 6
    %v668 = vor.u32 %v664, %v667
    %v669 = vsel %vm631, %v660, %v668
    %v670 = vrot.slane %v668, 4
    %v672 = vshrl.u32 %v613, 16
    %v674 = vrot.slane %v672, 5
    %v675 = vshll.u32 %v613, 16
    %v677 = vrot.slane %v675, 6
    %v678 = vor.u32 %v674, %v677
    %v679 = vsel %vm631, %v670, %v678
    %v680 = vrot.slane %v678, 4
    %v682 = vshrl.u32 %v614, 16
    %v684 = vrot.slane %v682, 5
    %v685 = vshll.u32 %v614, 16
    %v687 = vrot.slane %v685, 6
    %v688 = vor.u32 %v684, %v687
    %v689 = vsel %vm631, %v680, %v688
    %v690 = vrot.slane %v688, 4
    %v692 = vshrl.u32 %v615, 16
    %v694 = vrot.slane %v692, 5
    %v695 = vshll.u32 %v615, 16
    %v697 = vrot.slane %v695, 6
    %v698 = vor.u32 %v694, %v697
    %v699 = vsel %vm631, %v690, %v698
    %v700 = vrot.slane %v698, 4
    %v702 = vshrl.u32 %v616, 16
    %v704 = vrot.slane %v702, 5
    %v705 = vshll.u32 %v616, 16
    %v707 = vrot.slane %v705, 6
    %v708 = vor.u32 %v704, %v707
    %v709 = vsel %vm631, %v700, %v708
    %v710 = vrot.slane %v708, 4
    %v712 = vshrl.u32 %v617, 16
    %v714 = vrot.slane %v712, 5
    %v715 = vshll.u32 %v617, 16
    %v717 = vrot.slane %v715, 6
    %v718 = vor.u32 %v714, %v717
    %v719 = vsel %vm631, %v710, %v718
    %v720 = vrot.slane %v718, 4
    %v722 = vshrl.u32 %v618, 16
    %v724 = vrot.slane %v722, 5
    %v725 = vshll.u32 %v618, 16
    %v727 = vrot.slane %v725, 6
    %v728 = vor.u32 %v724, %v727
    %v729 = vsel %vm631, %v720, %v728
    %v730 = vrot.slane %v728, 4
    %v732 = vshrl.u32 %v619, 16
    %v734 = vrot.slane %v732, 5
    %v735 = vshll.u32 %v619, 16
    %v737 = vrot.slane %v735, 6
    %v738 = vor.u32 %v734, %v737
    %v739 = vsel %vm631, %v730, %v738
    %v740 = vrot.slane %v738, 4
    %v742 = vshrl.u32 %v620, 16
    %v744 = vrot.slane %v742, 5
    %v745 = vshll.u32 %v620, 16
    %v747 = vrot.slane %v745, 6
    %v748 = vor.u32 %v744, %v747
    %v749 = vsel %vm631, %v740, %v748
    %v750 = vrot.slane %v748, 4
    %v752 = vshrl.u32 %v621, 16
    %v754 = vrot.slane %v752, 5
    %v755 = vshll.u32 %v621, 16
    %v757 = vrot.slane %v755, 6
    %v758 = vor.u32 %v754, %v757
    %v759 = vsel %vm631, %v750, %v758
    %v760 = vrot.slane %v758, 4
    %v762 = vshrl.u32 %v622, 16
    %v764 = vrot.slane %v762, 5
    %v765 = vshll.u32 %v622, 16
    %v767 = vrot.slane %v765, 6
    %v768 = vor.u32 %v764, %v767
    %v769 = vsel %vm631, %v760, %v768
    %v770 = vrot.slane %v768, 4
    %v772 = vshrl.u32 %v623, 16
    %v774 = vrot.slane %v772, 5
    %v775 = vshll.u32 %v623, 16
    %v777 = vrot.slane %v775, 6
    %v778 = vor.u32 %v774, %v777
    %v779 = vsel %vm631, %v770, %v778
    %v780 = vrot.slane %v778, 4
    %v782 = vshrl.u32 %v624, 16
    %v784 = vrot.slane %v782, 5
    %v785 = vshll.u32 %v624, 16
    %v787 = vrot.slane %v785, 6
    %v788 = vor.u32 %v784, %v787
    %v789 = vsel %vm631, %v780, %v788
    %v790 = vrot.slane %v788, 4
    %v792 = vshrl.u32 %v625, 16
    %v794 = vrot.slane %v792, 5
    %v795 = vshll.u32 %v625, 16
    %v797 = vrot.slane %v795, 6
    %v798 = vor.u32 %v794, %v797
    %v799 = vsel %vm631, %v790, %v798
    %v800 = vrot.slane %v798, 4
    %v802 = vshrl.u32 %v626, 16
    %v804 = vrot.slane %v802, 5
    %v805 = vshll.u32 %v626, 16
    %v807 = vrot.slane %v805, 6
    %v808 = vor.u32 %v804, %v807
    %v809 = vsel %vm631, %v800, %v808
    %v810 = vrot.slane %v808, 4
    %v812 = vshrl.u32 %v627, 16
    %v814 = vrot.slane %v812, 5
    %v815 = vshll.u32 %v627, 16
    %v817 = vrot.slane %v815, 6
    %v818 = vor.u32 %v814, %v817
    %v819 = vsel %vm631, %v810, %v818
    %v820 = vrot.slane %v818, 4
    %v822 = vshrl.u32 %v628, 16
    %v824 = vrot.slane %v822, 5
    %v825 = vshll.u32 %v628, 16
    %v827 = vrot.slane %v825, 6
    %v828 = vor.u32 %v824, %v827
    %v829 = vsel %vm631, %v820, %v828
    %v830 = vrot.slane %v828, 4
    %v832 = vshrl.u32 %v629, 16
    %v834 = vrot.slane %v832, 5
    %v835 = vshll.u32 %v629, 16
    %v837 = vrot.slane %v835, 6
    %v838 = vor.u32 %v834, %v837
    %v839 = vsel %vm631, %v830, %v838
    %v840 = vrot.slane %v838, 4
    %841 = vrot.lane.b32.xlu0 %v649, 3
    %v842 = vpop.permute.xlu0 %841
    %843 = vrot.lane.b32.xlu0 %v659, 3
    %v844 = vpop.permute.xlu0 %843
    %845 = vrot.lane.b32.xlu0 %v669, 3
    %v846 = vpop.permute.xlu0 %845
    %847 = vrot.lane.b32.xlu0 %v679, 3
    %v848 = vpop.permute.xlu0 %847
    %849 = vrot.lane.b32.xlu0 %v689, 3
    %v850 = vpop.permute.xlu0 %849
    %851 = vrot.lane.b32.xlu0 %v699, 3
    %v852 = vpop.permute.xlu0 %851
    %853 = vrot.lane.b32.xlu0 %v709, 3
    %v854 = vpop.permute.xlu0 %853
    %855 = vrot.lane.b32.xlu0 %v719, 3
    %v856 = vpop.permute.xlu0 %855
    %857 = vrot.lane.b32.xlu0 %v729, 3
    %v858 = vpop.permute.xlu0 %857
    %859 = vrot.lane.b32.xlu0 %v739, 3
    %v860 = vpop.permute.xlu0 %859
    %861 = vrot.lane.b32.xlu0 %v749, 3
    %v862 = vpop.permute.xlu0 %861
    %863 = vrot.lane.b32.xlu0 %v759, 3
    %v864 = vpop.permute.xlu0 %863
    %865 = vrot.lane.b32.xlu0 %v769, 3
    %v866 = vpop.permute.xlu0 %865
    %867 = vrot.lane.b32.xlu0 %v779, 3
    %v868 = vpop.permute.xlu0 %867
    %869 = vrot.lane.b32.xlu0 %v789, 3
    %v870 = vpop.permute.xlu0 %869
    %871 = vrot.lane.b32.xlu0 %v799, 3
    %v872 = vpop.permute.xlu0 %871
    %873 = vrot.lane.b32.xlu0 %v809, 3
    %v874 = vpop.permute.xlu0 %873
    %875 = vrot.lane.b32.xlu0 %v819, 3
    %v876 = vpop.permute.xlu0 %875
    %877 = vrot.lane.b32.xlu0 %v829, 3
    %v878 = vpop.permute.xlu0 %877
    %879 = vrot.lane.b32.xlu0 %v839, 3
    %v880 = vpop.permute.xlu0 %879
    %881 = vrot.lane.b32.xlu0 %v840, 3
    %v882 = vpop.permute.xlu0 %881
    %vm904 = vcmask 27672
    %905 = vst.msk [vmem:[#allocation2] sm:$0xf] %vm904, %v842
    %906 = vst.msk [vmem:[#allocation2 + $0x4] sm:$0xf] %vm904, %v844
    %907 = vst.msk [vmem:[#allocation2 + $0x8] sm:$0xf] %vm904, %v846
    %908 = vst.msk [vmem:[#allocation2 + $0xc] sm:$0xf] %vm904, %v848
    %909 = vst.msk [vmem:[#allocation2 + $0x10] sm:$0xf] %vm904, %v850
    %910 = vst.msk [vmem:[#allocation2 + $0x14] sm:$0xf] %vm904, %v852
    %911 = vst.msk [vmem:[#allocation2 + $0x18] sm:$0xf] %vm904, %v854
    %912 = vst.msk [vmem:[#allocation2 + $0x1c] sm:$0xf] %vm904, %v856
    %913 = vst.msk [vmem:[#allocation2 + $0x20] sm:$0xf] %vm904, %v858
    %914 = vst.msk [vmem:[#allocation2 + $0x24] sm:$0xf] %vm904, %v860
    %915 = vst.msk [vmem:[#allocation2 + $0x28] sm:$0xf] %vm904, %v862
    %916 = vst.msk [vmem:[#allocation2 + $0x2c] sm:$0xf] %vm904, %v864
    %917 = vst.msk [vmem:[#allocation2 + $0x30] sm:$0xf] %vm904, %v866
    %918 = vst.msk [vmem:[#allocation2 + $0x34] sm:$0xf] %vm904, %v868
    %919 = vst.msk [vmem:[#allocation2 + $0x38] sm:$0xf] %vm904, %v870
    %920 = vst.msk [vmem:[#allocation2 + $0x3c] sm:$0xf] %vm904, %v872
    %921 = vst.msk [vmem:[#allocation2 + $0x40] sm:$0xf] %vm904, %v874
    %922 = vst.msk [vmem:[#allocation2 + $0x44] sm:$0xf] %vm904, %v876
    %923 = vst.msk [vmem:[#allocation2 + $0x48] sm:$0xf] %vm904, %v878
    %924 = vst.msk [vmem:[#allocation2 + $0x4c] sm:$0xf] %vm904, %v880
    %vm925 = vcmask 26648
    %vm926 = vmand %vm925, %vm86
    %v927 = vld [vmem:[#allocation2 + $0x50] sm:$0x7]
    %v928 = vsel %vm926, %v882, %v927
    %929 = vst [vmem:[#allocation2 + $0x50] sm:$0x7] %v928
    %v930 = vld [vmem:[%s0] sm:$0xc]
    %v931 = vld [vmem:[%s0 + $0x4] sm:$0xf]
    %v932 = vld [vmem:[%s0 + $0x8] sm:$0xf]
    %v933 = vld [vmem:[%s0 + $0xc] sm:$0xf]
    %v934 = vld [vmem:[%s0 + $0x10] sm:$0xf]
    %v935 = vld [vmem:[%s0 + $0x14] sm:$0xf]
    %v936 = vld [vmem:[%s0 + $0x18] sm:$0xf]
    %v937 = vld [vmem:[%s0 + $0x1c] sm:$0xf]
    %v938 = vld [vmem:[%s0 + $0x20] sm:$0xf]
    %v939 = vld [vmem:[%s0 + $0x24] sm:$0xf]
    %v940 = vld [vmem:[%s0 + $0x28] sm:$0xf]
    %v941 = vld [vmem:[%s0 + $0x2c] sm:$0xf]
    %v942 = vld [vmem:[%s0 + $0x30] sm:$0xf]
    %v943 = vld [vmem:[%s0 + $0x34] sm:$0xf]
    %v944 = vld [vmem:[%s0 + $0x38] sm:$0xf]
    %v945 = vld [vmem:[%s0 + $0x3c] sm:$0xf]
    %v946 = vld [vmem:[%s0 + $0x40] sm:$0xf]
    %v947 = vld [vmem:[%s0 + $0x44] sm:$0xf]
    %v948 = vld [vmem:[%s0 + $0x48] sm:$0xf]
    %v949 = vld [vmem:[%s0 + $0x4c] sm:$0xf]
    %v950 = vld [vmem:[%s0 + $0x50] sm:$0xf]
    %v951 = vld [vmem:[%s0 + $0x54] sm:$0x1]
    %vm974 = vcmask 1041408
    %vm975 = vcmask 1045508
    %vm976 = vmor %vm974, %vm975
    %v977 = vrot.slane %v930, 6
    %v978 = vrot.slane %v977, 4
    %v979 = vrot.slane %v931, 6
    %v980 = vsel %vm976, %v978, %v979
    %v981 = vrot.slane %v979, 4
    %v982 = vrot.slane %v932, 6
    %v983 = vsel %vm976, %v981, %v982
    %v984 = vrot.slane %v982, 4
    %v985 = vrot.slane %v933, 6
    %v986 = vsel %vm976, %v984, %v985
    %v987 = vrot.slane %v985, 4
    %v988 = vrot.slane %v934, 6
    %v989 = vsel %vm976, %v987, %v988
    %v990 = vrot.slane %v988, 4
    %v991 = vrot.slane %v935, 6
    %v992 = vsel %vm976, %v990, %v991
    %v993 = vrot.slane %v991, 4
    %v994 = vrot.slane %v936, 6
    %v995 = vsel %vm976, %v993, %v994
    %v996 = vrot.slane %v994, 4
    %v997 = vrot.slane %v937, 6
    %v998 = vsel %vm976, %v996, %v997
    %v999 = vrot.slane %v997, 4
    %v1000 = vrot.slane %v938, 6
    %v1001 = vsel %vm976, %v999, %v1000
    %v1002 = vrot.slane %v1000, 4
    %v1003 = vrot.slane %v939, 6
    %v1004 = vsel %vm976, %v1002, %v1003
    %v1005 = vrot.slane %v1003, 4
    %v1006 = vrot.slane %v940, 6
    %v1007 = vsel %vm976, %v1005, %v1006
    %v1008 = vrot.slane %v1006, 4
    %v1009 = vrot.slane %v941, 6
    %v1010 = vsel %vm976, %v1008, %v1009
    %v1011 = vrot.slane %v1009, 4
    %v1012 = vrot.slane %v942, 6
    %v1013 = vsel %vm976, %v1011, %v1012
    %v1014 = vrot.slane %v1012, 4
    %v1015 = vrot.slane %v943, 6
    %v1016 = vsel %vm976, %v1014, %v1015
    %v1017 = vrot.slane %v1015, 4
    %v1018 = vrot.slane %v944, 6
    %v1019 = vsel %vm976, %v1017, %v1018
    %v1020 = vrot.slane %v1018, 4
    %v1021 = vrot.slane %v945, 6
    %v1022 = vsel %vm976, %v1020, %v1021
    %v1023 = vrot.slane %v1021, 4
    %v1024 = vrot.slane %v946, 6
    %v1025 = vsel %vm976, %v1023, %v1024
    %v1026 = vrot.slane %v1024, 4
    %v1027 = vrot.slane %v947, 6
    %v1028 = vsel %vm976, %v1026, %v1027
    %v1029 = vrot.slane %v1027, 4
    %v1030 = vrot.slane %v948, 6
    %v1031 = vsel %vm976, %v1029, %v1030
    %v1032 = vrot.slane %v1030, 4
    %v1033 = vrot.slane %v949, 6
    %v1034 = vsel %vm976, %v1032, %v1033
    %v1035 = vrot.slane %v1033, 4
    %v1036 = vrot.slane %v950, 6
    %v1037 = vsel %vm976, %v1035, %v1036
    %v1038 = vrot.slane %v1036, 4
    %v1039 = vrot.slane %v951, 6
    %v1040 = vsel %vm976, %v1038, %v1039
    %1041 = vrot.lane.b32.xlu0 %v980, 4
    %v1042 = vpop.permute.xlu0 %1041
    %1043 = vrot.lane.b32.xlu0 %v983, 4
    %v1044 = vpop.permute.xlu0 %1043
    %1045 = vrot.lane.b32.xlu0 %v986, 4
    %v1046 = vpop.permute.xlu0 %1045
    %1047 = vrot.lane.b32.xlu0 %v989, 4
    %v1048 = vpop.permute.xlu0 %1047
    %1049 = vrot.lane.b32.xlu0 %v992, 4
    %v1050 = vpop.permute.xlu0 %1049
    %1051 = vrot.lane.b32.xlu0 %v995, 4
    %v1052 = vpop.permute.xlu0 %1051
    %1053 = vrot.lane.b32.xlu0 %v998, 4
    %v1054 = vpop.permute.xlu0 %1053
    %1055 = vrot.lane.b32.xlu0 %v1001, 4
    %v1056 = vpop.permute.xlu0 %1055
    %1057 = vrot.lane.b32.xlu0 %v1004, 4
    %v1058 = vpop.permute.xlu0 %1057
    %1059 = vrot.lane.b32.xlu0 %v1007, 4
    %v1060 = vpop.permute.xlu0 %1059
    %1061 = vrot.lane.b32.xlu0 %v1010, 4
    %v1062 = vpop.permute.xlu0 %1061
    %1063 = vrot.lane.b32.xlu0 %v1013, 4
    %v1064 = vpop.permute.xlu0 %1063
    %1065 = vrot.lane.b32.xlu0 %v1016, 4
    %v1066 = vpop.permute.xlu0 %1065
    %1067 = vrot.lane.b32.xlu0 %v1019, 4
    %v1068 = vpop.permute.xlu0 %1067
    %1069 = vrot.lane.b32.xlu0 %v1022, 4
    %v1070 = vpop.permute.xlu0 %1069
    %1071 = vrot.lane.b32.xlu0 %v1025, 4
    %v1072 = vpop.permute.xlu0 %1071
    %1073 = vrot.lane.b32.xlu0 %v1028, 4
    %v1074 = vpop.permute.xlu0 %1073
    %1075 = vrot.lane.b32.xlu0 %v1031, 4
    %v1076 = vpop.permute.xlu0 %1075
    %1077 = vrot.lane.b32.xlu0 %v1034, 4
    %v1078 = vpop.permute.xlu0 %1077
    %1079 = vrot.lane.b32.xlu0 %v1037, 4
    %v1080 = vpop.permute.xlu0 %1079
    %1081 = vrot.lane.b32.xlu0 %v1040, 4
    %v1082 = vpop.permute.xlu0 %1081
    %vm1104 = vcmask 35872
    %1105 = vst.msk [vmem:[#allocation2] sm:$0xf] %vm1104, %v1042
    %1106 = vst.msk [vmem:[#allocation2 + $0x4] sm:$0xf] %vm1104, %v1044
    %1107 = vst.msk [vmem:[#allocation2 + $0x8] sm:$0xf] %vm1104, %v1046
    %1108 = vst.msk [vmem:[#allocation2 + $0xc] sm:$0xf] %vm1104, %v1048
    %1109 = vst.msk [vmem:[#allocation2 + $0x10] sm:$0xf] %vm1104, %v1050
    %1110 = vst.msk [vmem:[#allocation2 + $0x14] sm:$0xf] %vm1104, %v1052
    %1111 = vst.msk [vmem:[#allocation2 + $0x18] sm:$0xf] %vm1104, %v1054
    %1112 = vst.msk [vmem:[#allocation2 + $0x1c] sm:$0xf] %vm1104, %v1056
    %1113 = vst.msk [vmem:[#allocation2 + $0x20] sm:$0xf] %vm1104, %v1058
    %1114 = vst.msk [vmem:[#allocation2 + $0x24] sm:$0xf] %vm1104, %v1060
    %1115 = vst.msk [vmem:[#allocation2 + $0x28] sm:$0xf] %vm1104, %v1062
    %1116 = vst.msk [vmem:[#allocation2 + $0x2c] sm:$0xf] %vm1104, %v1064
    %1117 = vst.msk [vmem:[#allocation2 + $0x30] sm:$0xf] %vm1104, %v1066
    %1118 = vst.msk [vmem:[#allocation2 + $0x34] sm:$0xf] %vm1104, %v1068
    %1119 = vst.msk [vmem:[#allocation2 + $0x38] sm:$0xf] %vm1104, %v1070
    %1120 = vst.msk [vmem:[#allocation2 + $0x3c] sm:$0xf] %vm1104, %v1072
    %1121 = vst.msk [vmem:[#allocation2 + $0x40] sm:$0xf] %vm1104, %v1074
    %1122 = vst.msk [vmem:[#allocation2 + $0x44] sm:$0xf] %vm1104, %v1076
    %1123 = vst.msk [vmem:[#allocation2 + $0x48] sm:$0xf] %vm1104, %v1078
    %1124 = vst.msk [vmem:[#allocation2 + $0x4c] sm:$0xf] %vm1104, %v1080
    %vm1125 = vcmask 34848
    %vm1126 = vmand %vm1125, %vm86
    %v1127 = vld [vmem:[#allocation2 + $0x50] sm:$0x7]
    %v1128 = vsel %vm1126, %v1082, %v1127
    %1129 = vst [vmem:[#allocation2 + $0x50] sm:$0x7] %v1128
    %v1130 = vld [vmem:[%s0 + $0x54] sm:$0xf]
    %v1131 = vld [vmem:[%s0 + $0x58] sm:$0xf]
    %v1132 = vld [vmem:[%s0 + $0x5c] sm:$0xf]
    %v1133 = vld [vmem:[%s0 + $0x60] sm:$0xf]
    %v1134 = vld [vmem:[%s0 + $0x64] sm:$0xf]
    %v1135 = vld [vmem:[%s0 + $0x68] sm:$0xf]
    %v1136 = vld [vmem:[%s0 + $0x6c] sm:$0xf]
    %v1137 = vld [vmem:[%s0 + $0x70] sm:$0xf]
    %v1138 = vld [vmem:[%s0 + $0x74] sm:$0xf]
    %v1139 = vld [vmem:[%s0 + $0x78] sm:$0xf]
    %v1140 = vld [vmem:[%s0 + $0x7c] sm:$0xf]
    %v1141 = vld [vmem:[%s0 + $0x80] sm:$0xf]
    %v1142 = vld [vmem:[%s0 + $0x84] sm:$0xf]
    %v1143 = vld [vmem:[%s0 + $0x88] sm:$0xf]
    %v1144 = vld [vmem:[%s0 + $0x8c] sm:$0xf]
    %v1145 = vld [vmem:[%s0 + $0x90] sm:$0xf]
    %v1146 = vld [vmem:[%s0 + $0x94] sm:$0xf]
    %v1147 = vld [vmem:[%s0 + $0x98] sm:$0xf]
    %v1148 = vld [vmem:[%s0 + $0x9c] sm:$0xf]
    %v1149 = vld [vmem:[%s0 + $0xa0] sm:$0xf]
    %v1150 = vld [vmem:[%s0 + $0xa4] sm:$0x7]
    %v1172 = vrot.slane %v1130, 6
    %v1173 = vrot.slane %v1172, 4
    %v1174 = vrot.slane %v1131, 6
    %v1175 = vsel %vm976, %v1173, %v1174
    %v1176 = vrot.slane %v1174, 4
    %v1177 = vrot.slane %v1132, 6
    %v1178 = vsel %vm976, %v1176, %v1177
    %v1179 = vrot.slane %v1177, 4
    %v1180 = vrot.slane %v1133, 6
    %v1181 = vsel %vm976, %v1179, %v1180
    %v1182 = vrot.slane %v1180, 4
    %v1183 = vrot.slane %v1134, 6
    %v1184 = vsel %vm976, %v1182, %v1183
    %v1185 = vrot.slane %v1183, 4
    %v1186 = vrot.slane %v1135, 6
    %v1187 = vsel %vm976, %v1185, %v1186
    %v1188 = vrot.slane %v1186, 4
    %v1189 = vrot.slane %v1136, 6
    %v1190 = vsel %vm976, %v1188, %v1189
    %v1191 = vrot.slane %v1189, 4
    %v1192 = vrot.slane %v1137, 6
    %v1193 = vsel %vm976, %v1191, %v1192
    %v1194 = vrot.slane %v1192, 4
    %v1195 = vrot.slane %v1138, 6
    %v1196 = vsel %vm976, %v1194, %v1195
    %v1197 = vrot.slane %v1195, 4
    %v1198 = vrot.slane %v1139, 6
    %v1199 = vsel %vm976, %v1197, %v1198
    %v1200 = vrot.slane %v1198, 4
    %v1201 = vrot.slane %v1140, 6
    %v1202 = vsel %vm976, %v1200, %v1201
    %v1203 = vrot.slane %v1201, 4
    %v1204 = vrot.slane %v1141, 6
    %v1205 = vsel %vm976, %v1203, %v1204
    %v1206 = vrot.slane %v1204, 4
    %v1207 = vrot.slane %v1142, 6
    %v1208 = vsel %vm976, %v1206, %v1207
    %v1209 = vrot.slane %v1207, 4
    %v1210 = vrot.slane %v1143, 6
    %v1211 = vsel %vm976, %v1209, %v1210
    %v1212 = vrot.slane %v1210, 4
    %v1213 = vrot.slane %v1144, 6
    %v1214 = vsel %vm976, %v1212, %v1213
    %v1215 = vrot.slane %v1213, 4
    %v1216 = vrot.slane %v1145, 6
    %v1217 = vsel %vm976, %v1215, %v1216
    %v1218 = vrot.slane %v1216, 4
    %v1219 = vrot.slane %v1146, 6
    %v1220 = vsel %vm976, %v1218, %v1219
    %v1221 = vrot.slane %v1219, 4
    %v1222 = vrot.slane %v1147, 6
    %v1223 = vsel %vm976, %v1221, %v1222
    %v1224 = vrot.slane %v1222, 4
    %v1225 = vrot.slane %v1148, 6
    %v1226 = vsel %vm976, %v1224, %v1225
    %v1227 = vrot.slane %v1225, 4
    %v1228 = vrot.slane %v1149, 6
    %v1229 = vsel %vm976, %v1227, %v1228
    %v1230 = vrot.slane %v1228, 4
    %v1231 = vrot.slane %v1150, 6
    %v1232 = vsel %vm976, %v1230, %v1231
    %v1233 = vrot.slane %v1231, 4
    %vm1256 = vcmask 3074
    %vm1257 = vsmask.f32 7946
    %vm1258 = vmand %vm1256, %vm1257
    %v1259 = vld [vmem:[#allocation2 + $0x50] sm:$0xc]
    %v1260 = vsel %vm1258, %v1172, %v1259
    %1261 = vst [vmem:[#allocation2 + $0x50] sm:$0xc] %v1260
    %1262 = vst.msk [vmem:[#allocation2 + $0x54] sm:$0xf] %vm64, %v1175
    %1263 = vst.msk [vmem:[#allocation2 + $0x58] sm:$0xf] %vm64, %v1178
    %1264 = vst.msk [vmem:[#allocation2 + $0x5c] sm:$0xf] %vm64, %v1181
    %1265 = vst.msk [vmem:[#allocation2 + $0x60] sm:$0xf] %vm64, %v1184
    %1266 = vst.msk [vmem:[#allocation2 + $0x64] sm:$0xf] %vm64, %v1187
    %1267 = vst.msk [vmem:[#allocation2 + $0x68] sm:$0xf] %vm64, %v1190
    %1268 = vst.msk [vmem:[#allocation2 + $0x6c] sm:$0xf] %vm64, %v1193
    %1269 = vst.msk [vmem:[#allocation2 + $0x70] sm:$0xf] %vm64, %v1196
    %1270 = vst.msk [vmem:[#allocation2 + $0x74] sm:$0xf] %vm64, %v1199
    %1271 = vst.msk [vmem:[#allocation2 + $0x78] sm:$0xf] %vm64, %v1202
    %1272 = vst.msk [vmem:[#allocation2 + $0x7c] sm:$0xf] %vm64, %v1205
    %1273 = vst.msk [vmem:[#allocation2 + $0x80] sm:$0xf] %vm64, %v1208
    %1274 = vst.msk [vmem:[#allocation2 + $0x84] sm:$0xf] %vm64, %v1211
    %1275 = vst.msk [vmem:[#allocation2 + $0x88] sm:$0xf] %vm64, %v1214
    %1276 = vst.msk [vmem:[#allocation2 + $0x8c] sm:$0xf] %vm64, %v1217
    %1277 = vst.msk [vmem:[#allocation2 + $0x90] sm:$0xf] %vm64, %v1220
    %1278 = vst.msk [vmem:[#allocation2 + $0x94] sm:$0xf] %vm64, %v1223
    %1279 = vst.msk [vmem:[#allocation2 + $0x98] sm:$0xf] %vm64, %v1226
    %1280 = vst.msk [vmem:[#allocation2 + $0x9c] sm:$0xf] %vm64, %v1229
    %1281 = vst.msk [vmem:[#allocation2 + $0xa0] sm:$0xf] %vm64, %v1232
    %vm1282 = vcmask 0
    %1283 = vst.msk [vmem:[#allocation2 + $0xa4] sm:$0x1] %vm1282, %v1233
    %v1284 = vld [vmem:[%s0 + $0x54] sm:$0xe]
    %v1285 = vld [vmem:[%s0 + $0x58] sm:$0xf]
    %v1286 = vld [vmem:[%s0 + $0x5c] sm:$0xf]
    %v1287 = vld [vmem:[%s0 + $0x60] sm:$0xf]
    %v1288 = vld [vmem:[%s0 + $0x64] sm:$0xf]
    %v1289 = vld [vmem:[%s0 + $0x68] sm:$0xf]
    %v1290 = vld [vmem:[%s0 + $0x6c] sm:$0xf]
    %v1291 = vld [vmem:[%s0 + $0x70] sm:$0xf]
    %v1292 = vld [vmem:[%s0 + $0x74] sm:$0xf]
    %v1293 = vld [vmem:[%s0 + $0x78] sm:$0xf]
    %v1294 = vld [vmem:[%s0 + $0x7c] sm:$0xf]
    %v1295 = vld [vmem:[%s0 + $0x80] sm:$0xf]
    %v1296 = vld [vmem:[%s0 + $0x84] sm:$0xf]
    %v1297 = vld [vmem:[%s0 + $0x88] sm:$0xf]
    %v1298 = vld [vmem:[%s0 + $0x8c] sm:$0xf]
    %v1299 = vld [vmem:[%s0 + $0x90] sm:$0xf]
    %v1300 = vld [vmem:[%s0 + $0x94] sm:$0xf]
    %v1301 = vld [vmem:[%s0 + $0x98] sm:$0xf]
    %v1302 = vld [vmem:[%s0 + $0x9c] sm:$0xf]
    %v1303 = vld [vmem:[%s0 + $0xa0] sm:$0xf]
    %v1304 = vld [vmem:[%s0 + $0xa4] sm:$0xf]
    %vm1305 = vsmask.f32 1280
    %vm1306 = vsmask.f32 5392
    %vm1307 = vmor %vm1305, %vm1306
    %v1309 = vshrl.u32 %v1284, 16
    %v1311 = vrot.slane %v1309, 6
    %v1312 = vshll.u32 %v1284, 16
    %v1314 = vrot.slane %v1312, 7
    %v1315 = vor.u32 %v1311, %v1314
    %v1316 = vrot.slane %v1315, 4
    %v1318 = vshrl.u32 %v1285, 16
    %v1320 = vrot.slane %v1318, 6
    %v1321 = vshll.u32 %v1285, 16
    %v1323 = vrot.slane %v1321, 7
    %v1324 = vor.u32 %v1320, %v1323
    %v1325 = vsel %vm1307, %v1316, %v1324
    %v1326 = vrot.slane %v1324, 4
    %v1328 = vshrl.u32 %v1286, 16
    %v1330 = vrot.slane %v1328, 6
    %v1331 = vshll.u32 %v1286, 16
    %v1333 = vrot.slane %v1331, 7
    %v1334 = vor.u32 %v1330, %v1333
    %v1335 = vsel %vm1307, %v1326, %v1334
    %v1336 = vrot.slane %v1334, 4
    %v1338 = vshrl.u32 %v1287, 16
    %v1340 = vrot.slane %v1338, 6
    %v1341 = vshll.u32 %v1287, 16
    %v1343 = vrot.slane %v1341, 7
    %v1344 = vor.u32 %v1340, %v1343
    %v1345 = vsel %vm1307, %v1336, %v1344
    %v1346 = vrot.slane %v1344, 4
    %v1348 = vshrl.u32 %v1288, 16
    %v1350 = vrot.slane %v1348, 6
    %v1351 = vshll.u32 %v1288, 16
    %v1353 = vrot.slane %v1351, 7
    %v1354 = vor.u32 %v1350, %v1353
    %v1355 = vsel %vm1307, %v1346, %v1354
    %v1356 = vrot.slane %v1354, 4
    %v1358 = vshrl.u32 %v1289, 16
    %v1360 = vrot.slane %v1358, 6
    %v1361 = vshll.u32 %v1289, 16
    %v1363 = vrot.slane %v1361, 7
    %v1364 = vor.u32 %v1360, %v1363
    %v1365 = vsel %vm1307, %v1356, %v1364
    %v1366 = vrot.slane %v1364, 4
    %v1368 = vshrl.u32 %v1290, 16
    %v1370 = vrot.slane %v1368, 6
    %v1371 = vshll.u32 %v1290, 16
    %v1373 = vrot.slane %v1371, 7
    %v1374 = vor.u32 %v1370, %v1373
    %v1375 = vsel %vm1307, %v1366, %v1374
    %v1376 = vrot.slane %v1374, 4
    %v1378 = vshrl.u32 %v1291, 16
    %v1380 = vrot.slane %v1378, 6
    %v1381 = vshll.u32 %v1291, 16
    %v1383 = vrot.slane %v1381, 7
    %v1384 = vor.u32 %v1380, %v1383
    %v1385 = vsel %vm1307, %v1376, %v1384
    %v1386 = vrot.slane %v1384, 4
    %v1388 = vshrl.u32 %v1292, 16
    %v1390 = vrot.slane %v1388, 6
    %v1391 = vshll.u32 %v1292, 16
    %v1393 = vrot.slane %v1391, 7
    %v1394 = vor.u32 %v1390, %v1393
    %v1395 = vsel %vm1307, %v1386, %v1394
    %v1396 = vrot.slane %v1394, 4
    %v1398 = vshrl.u32 %v1293, 16
    %v1400 = vrot.slane %v1398, 6
    %v1401 = vshll.u32 %v1293, 16
    %v1403 = vrot.slane %v1401, 7
    %v1404 = vor.u32 %v1400, %v1403
    %v1405 = vsel %vm1307, %v1396, %v1404
    %v1406 = vrot.slane %v1404, 4
    %v1408 = vshrl.u32 %v1294, 16
    %v1410 = vrot.slane %v1408, 6
    %v1411 = vshll.u32 %v1294, 16
    %v1413 = vrot.slane %v1411, 7
    %v1414 = vor.u32 %v1410, %v1413
    %v1415 = vsel %vm1307, %v1406, %v1414
    %v1416 = vrot.slane %v1414, 4
    %v1418 = vshrl.u32 %v1295, 16
    %v1420 = vrot.slane %v1418, 6
    %v1421 = vshll.u32 %v1295, 16
    %v1423 = vrot.slane %v1421, 7
    %v1424 = vor.u32 %v1420, %v1423
    %v1425 = vsel %vm1307, %v1416, %v1424
    %v1426 = vrot.slane %v1424, 4
    %v1428 = vshrl.u32 %v1296, 16
    %v1430 = vrot.slane %v1428, 6
    %v1431 = vshll.u32 %v1296, 16
    %v1433 = vrot.slane %v1431, 7
    %v1434 = vor.u32 %v1430, %v1433
    %v1435 = vsel %vm1307, %v1426, %v1434
    %v1436 = vrot.slane %v1434, 4
    %v1438 = vshrl.u32 %v1297, 16
    %v1440 = vrot.slane %v1438, 6
    %v1441 = vshll.u32 %v1297, 16
    %v1443 = vrot.slane %v1441, 7
    %v1444 = vor.u32 %v1440, %v1443
    %v1445 = vsel %vm1307, %v1436, %v1444
    %v1446 = vrot.slane %v1444, 4
    %v1448 = vshrl.u32 %v1298, 16
    %v1450 = vrot.slane %v1448, 6
    %v1451 = vshll.u32 %v1298, 16
    %v1453 = vrot.slane %v1451, 7
    %v1454 = vor.u32 %v1450, %v1453
    %v1455 = vsel %vm1307, %v1446, %v1454
    %v1456 = vrot.slane %v1454, 4
    %v1458 = vshrl.u32 %v1299, 16
    %v1460 = vrot.slane %v1458, 6
    %v1461 = vshll.u32 %v1299, 16
    %v1463 = vrot.slane %v1461, 7
    %v1464 = vor.u32 %v1460, %v1463
    %v1465 = vsel %vm1307, %v1456, %v1464
    %v1466 = vrot.slane %v1464, 4
    %v1468 = vshrl.u32 %v1300, 16
    %v1470 = vrot.slane %v1468, 6
    %v1471 = vshll.u32 %v1300, 16
    %v1473 = vrot.slane %v1471, 7
    %v1474 = vor.u32 %v1470, %v1473
    %v1475 = vsel %vm1307, %v1466, %v1474
    %v1476 = vrot.slane %v1474, 4
    %v1478 = vshrl.u32 %v1301, 16
    %v1480 = vrot.slane %v1478, 6
    %v1481 = vshll.u32 %v1301, 16
    %v1483 = vrot.slane %v1481, 7
    %v1484 = vor.u32 %v1480, %v1483
    %v1485 = vsel %vm1307, %v1476, %v1484
    %v1486 = vrot.slane %v1484, 4
    %v1488 = vshrl.u32 %v1302, 16
    %v1490 = vrot.slane %v1488, 6
    %v1491 = vshll.u32 %v1302, 16
    %v1493 = vrot.slane %v1491, 7
    %v1494 = vor.u32 %v1490, %v1493
    %v1495 = vsel %vm1307, %v1486, %v1494
    %v1496 = vrot.slane %v1494, 4
    %v1498 = vshrl.u32 %v1303, 16
    %v1500 = vrot.slane %v1498, 6
    %v1501 = vshll.u32 %v1303, 16
    %v1503 = vrot.slane %v1501, 7
    %v1504 = vor.u32 %v1500, %v1503
    %v1505 = vsel %vm1307, %v1496, %v1504
    %v1506 = vrot.slane %v1504, 4
    %v1508 = vshrl.u32 %v1304, 16
    %v1510 = vrot.slane %v1508, 6
    %v1511 = vshll.u32 %v1304, 16
    %v1513 = vrot.slane %v1511, 7
    %v1514 = vor.u32 %v1510, %v1513
    %v1515 = vsel %vm1307, %v1506, %v1514
    %v1516 = vrot.slane %v1514, 4
    %1517 = vrot.lane.b32.xlu0 %v1315, 1
    %v1518 = vpop.permute.xlu0 %1517
    %1519 = vrot.lane.b32.xlu0 %v1325, 1
    %v1520 = vpop.permute.xlu0 %1519
    %1521 = vrot.lane.b32.xlu0 %v1335, 1
    %v1522 = vpop.permute.xlu0 %1521
    %1523 = vrot.lane.b32.xlu0 %v1345, 1
    %v1524 = vpop.permute.xlu0 %1523
    %1525 = vrot.lane.b32.xlu0 %v1355, 1
    %v1526 = vpop.permute.xlu0 %1525
    %1527 = vrot.lane.b32.xlu0 %v1365, 1
    %v1528 = vpop.permute.xlu0 %1527
    %1529 = vrot.lane.b32.xlu0 %v1375, 1
    %v1530 = vpop.permute.xlu0 %1529
    %1531 = vrot.lane.b32.xlu0 %v1385, 1
    %v1532 = vpop.permute.xlu0 %1531
    %1533 = vrot.lane.b32.xlu0 %v1395, 1
    %v1534 = vpop.permute.xlu0 %1533
    %1535 = vrot.lane.b32.xlu0 %v1405, 1
    %v1536 = vpop.permute.xlu0 %1535
    %1537 = vrot.lane.b32.xlu0 %v1415, 1
    %v1538 = vpop.permute.xlu0 %1537
    %1539 = vrot.lane.b32.xlu0 %v1425, 1
    %v1540 = vpop.permute.xlu0 %1539
    %1541 = vrot.lane.b32.xlu0 %v1435, 1
    %v1542 = vpop.permute.xlu0 %1541
    %1543 = vrot.lane.b32.xlu0 %v1445, 1
    %v1544 = vpop.permute.xlu0 %1543
    %1545 = vrot.lane.b32.xlu0 %v1455, 1
    %v1546 = vpop.permute.xlu0 %1545
    %1547 = vrot.lane.b32.xlu0 %v1465, 1
    %v1548 = vpop.permute.xlu0 %1547
    %1549 = vrot.lane.b32.xlu0 %v1475, 1
    %v1550 = vpop.permute.xlu0 %1549
    %1551 = vrot.lane.b32.xlu0 %v1485, 1
    %v1552 = vpop.permute.xlu0 %1551
    %1553 = vrot.lane.b32.xlu0 %v1495, 1
    %v1554 = vpop.permute.xlu0 %1553
    %1555 = vrot.lane.b32.xlu0 %v1505, 1
    %v1556 = vpop.permute.xlu0 %1555
    %1557 = vrot.lane.b32.xlu0 %v1515, 1
    %v1558 = vpop.permute.xlu0 %1557
    %1559 = vrot.lane.b32.xlu0 %v1516, 1
    %v1560 = vpop.permute.xlu0 %1559
    %vm1583 = vcmask 11274
    %vm1584 = vmand %vm1583, %vm1257
    %v1585 = vld [vmem:[#allocation2 + $0x50] sm:$0xc]
    %v1586 = vsel %vm1584, %v1518, %v1585
    %1587 = vst [vmem:[#allocation2 + $0x50] sm:$0xc] %v1586
    %1588 = vst.msk [vmem:[#allocation2 + $0x54] sm:$0xf] %vm387, %v1520
    %1589 = vst.msk [vmem:[#allocation2 + $0x58] sm:$0xf] %vm387, %v1522
    %1590 = vst.msk [vmem:[#allocation2 + $0x5c] sm:$0xf] %vm387, %v1524
    %1591 = vst.msk [vmem:[#allocation2 + $0x60] sm:$0xf] %vm387, %v1526
    %1592 = vst.msk [vmem:[#allocation2 + $0x64] sm:$0xf] %vm387, %v1528
    %1593 = vst.msk [vmem:[#allocation2 + $0x68] sm:$0xf] %vm387, %v1530
    %1594 = vst.msk [vmem:[#allocation2 + $0x6c] sm:$0xf] %vm387, %v1532
    %1595 = vst.msk [vmem:[#allocation2 + $0x70] sm:$0xf] %vm387, %v1534
    %1596 = vst.msk [vmem:[#allocation2 + $0x74] sm:$0xf] %vm387, %v1536
    %1597 = vst.msk [vmem:[#allocation2 + $0x78] sm:$0xf] %vm387, %v1538
    %1598 = vst.msk [vmem:[#allocation2 + $0x7c] sm:$0xf] %vm387, %v1540
    %1599 = vst.msk [vmem:[#allocation2 + $0x80] sm:$0xf] %vm387, %v1542
    %1600 = vst.msk [vmem:[#allocation2 + $0x84] sm:$0xf] %vm387, %v1544
    %1601 = vst.msk [vmem:[#allocation2 + $0x88] sm:$0xf] %vm387, %v1546
    %1602 = vst.msk [vmem:[#allocation2 + $0x8c] sm:$0xf] %vm387, %v1548
    %1603 = vst.msk [vmem:[#allocation2 + $0x90] sm:$0xf] %vm387, %v1550
    %1604 = vst.msk [vmem:[#allocation2 + $0x94] sm:$0xf] %vm387, %v1552
    %1605 = vst.msk [vmem:[#allocation2 + $0x98] sm:$0xf] %vm387, %v1554
    %1606 = vst.msk [vmem:[#allocation2 + $0x9c] sm:$0xf] %vm387, %v1556
    %1607 = vst.msk [vmem:[#allocation2 + $0xa0] sm:$0xf] %vm387, %v1558
    %vm1608 = vcmask 8200
    %1609 = vst.msk [vmem:[#allocation2 + $0xa4] sm:$0x1] %vm1608, %v1560
    %v1610 = vld [vmem:[%s0 + $0x54] sm:$0xe]
    %v1611 = vld [vmem:[%s0 + $0x58] sm:$0xf]
    %v1612 = vld [vmem:[%s0 + $0x5c] sm:$0xf]
    %v1613 = vld [vmem:[%s0 + $0x60] sm:$0xf]
    %v1614 = vld [vmem:[%s0 + $0x64] sm:$0xf]
    %v1615 = vld [vmem:[%s0 + $0x68] sm:$0xf]
    %v1616 = vld [vmem:[%s0 + $0x6c] sm:$0xf]
    %v1617 = vld [vmem:[%s0 + $0x70] sm:$0xf]
    %v1618 = vld [vmem:[%s0 + $0x74] sm:$0xf]
    %v1619 = vld [vmem:[%s0 + $0x78] sm:$0xf]
    %v1620 = vld [vmem:[%s0 + $0x7c] sm:$0xf]
    %v1621 = vld [vmem:[%s0 + $0x80] sm:$0xf]
    %v1622 = vld [vmem:[%s0 + $0x84] sm:$0xf]
    %v1623 = vld [vmem:[%s0 + $0x88] sm:$0xf]
    %v1624 = vld [vmem:[%s0 + $0x8c] sm:$0xf]
    %v1625 = vld [vmem:[%s0 + $0x90] sm:$0xf]
    %v1626 = vld [vmem:[%s0 + $0x94] sm:$0xf]
    %v1627 = vld [vmem:[%s0 + $0x98] sm:$0xf]
    %v1628 = vld [vmem:[%s0 + $0x9c] sm:$0xf]
    %v1629 = vld [vmem:[%s0 + $0xa0] sm:$0xf]
    %v1630 = vld [vmem:[%s0 + $0xa4] sm:$0xf]
    %vm1652 = vcmask 1040384
    %vm1653 = vcmask 1044484
    %vm1654 = vmor %vm1652, %vm1653
    %v1655 = vrot.slane %v1610, 7
    %v1656 = vrot.slane %v1655, 4
    %v1657 = vrot.slane %v1611, 7
    %v1658 = vsel %vm1654, %v1656, %v1657
    %v1659 = vrot.slane %v1657, 4
    %v1660 = vrot.slane %v1612, 7
    %v1661 = vsel %vm1654, %v1659, %v1660
    %v1662 = vrot.slane %v1660, 4
    %v1663 = vrot.slane %v1613, 7
    %v1664 = vsel %vm1654, %v1662, %v1663
    %v1665 = vrot.slane %v1663, 4
    %v1666 = vrot.slane %v1614, 7
    %v1667 = vsel %vm1654, %v1665, %v1666
    %v1668 = vrot.slane %v1666, 4
    %v1669 = vrot.slane %v1615, 7
    %v1670 = vsel %vm1654, %v1668, %v1669
    %v1671 = vrot.slane %v1669, 4
    %v1672 = vrot.slane %v1616, 7
    %v1673 = vsel %vm1654, %v1671, %v1672
    %v1674 = vrot.slane %v1672, 4
    %v1675 = vrot.slane %v1617, 7
    %v1676 = vsel %vm1654, %v1674, %v1675
    %v1677 = vrot.slane %v1675, 4
    %v1678 = vrot.slane %v1618, 7
    %v1679 = vsel %vm1654, %v1677, %v1678
    %v1680 = vrot.slane %v1678, 4
    %v1681 = vrot.slane %v1619, 7
    %v1682 = vsel %vm1654, %v1680, %v1681
    %v1683 = vrot.slane %v1681, 4
    %v1684 = vrot.slane %v1620, 7
    %v1685 = vsel %vm1654, %v1683, %v1684
    %v1686 = vrot.slane %v1684, 4
    %v1687 = vrot.slane %v1621, 7
    %v1688 = vsel %vm1654, %v1686, %v1687
    %v1689 = vrot.slane %v1687, 4
    %v1690 = vrot.slane %v1622, 7
    %v1691 = vsel %vm1654, %v1689, %v1690
    %v1692 = vrot.slane %v1690, 4
    %v1693 = vrot.slane %v1623, 7
    %v1694 = vsel %vm1654, %v1692, %v1693
    %v1695 = vrot.slane %v1693, 4
    %v1696 = vrot.slane %v1624, 7
    %v1697 = vsel %vm1654, %v1695, %v1696
    %v1698 = vrot.slane %v1696, 4
    %v1699 = vrot.slane %v1625, 7
    %v1700 = vsel %vm1654, %v1698, %v1699
    %v1701 = vrot.slane %v1699, 4
    %v1702 = vrot.slane %v1626, 7
    %v1703 = vsel %vm1654, %v1701, %v1702
    %v1704 = vrot.slane %v1702, 4
    %v1705 = vrot.slane %v1627, 7
    %v1706 = vsel %vm1654, %v1704, %v1705
    %v1707 = vrot.slane %v1705, 4
    %v1708 = vrot.slane %v1628, 7
    %v1709 = vsel %vm1654, %v1707, %v1708
    %v1710 = vrot.slane %v1708, 4
    %v1711 = vrot.slane %v1629, 7
    %v1712 = vsel %vm1654, %v1710, %v1711
    %v1713 = vrot.slane %v1711, 4
    %v1714 = vrot.slane %v1630, 7
    %v1715 = vsel %vm1654, %v1713, %v1714
    %v1716 = vrot.slane %v1714, 4
    %1717 = vrot.lane.b32.xlu0 %v1655, 2
    %v1718 = vpop.permute.xlu0 %1717
    %1719 = vrot.lane.b32.xlu0 %v1658, 2
    %v1720 = vpop.permute.xlu0 %1719
    %1721 = vrot.lane.b32.xlu0 %v1661, 2
    %v1722 = vpop.permute.xlu0 %1721
    %1723 = vrot.lane.b32.xlu0 %v1664, 2
    %v1724 = vpop.permute.xlu0 %1723
    %1725 = vrot.lane.b32.xlu0 %v1667, 2
    %v1726 = vpop.permute.xlu0 %1725
    %1727 = vrot.lane.b32.xlu0 %v1670, 2
    %v1728 = vpop.permute.xlu0 %1727
    %1729 = vrot.lane.b32.xlu0 %v1673, 2
    %v1730 = vpop.permute.xlu0 %1729
    %1731 = vrot.lane.b32.xlu0 %v1676, 2
    %v1732 = vpop.permute.xlu0 %1731
    %1733 = vrot.lane.b32.xlu0 %v1679, 2
    %v1734 = vpop.permute.xlu0 %1733
    %1735 = vrot.lane.b32.xlu0 %v1682, 2
    %v1736 = vpop.permute.xlu0 %1735
    %1737 = vrot.lane.b32.xlu0 %v1685, 2
    %v1738 = vpop.permute.xlu0 %1737
    %1739 = vrot.lane.b32.xlu0 %v1688, 2
    %v1740 = vpop.permute.xlu0 %1739
    %1741 = vrot.lane.b32.xlu0 %v1691, 2
    %v1742 = vpop.permute.xlu0 %1741
    %1743 = vrot.lane.b32.xlu0 %v1694, 2
    %v1744 = vpop.permute.xlu0 %1743
    %1745 = vrot.lane.b32.xlu0 %v1697, 2
    %v1746 = vpop.permute.xlu0 %1745
    %1747 = vrot.lane.b32.xlu0 %v1700, 2
    %v1748 = vpop.permute.xlu0 %1747
    %1749 = vrot.lane.b32.xlu0 %v1703, 2
    %v1750 = vpop.permute.xlu0 %1749
    %1751 = vrot.lane.b32.xlu0 %v1706, 2
    %v1752 = vpop.permute.xlu0 %1751
    %1753 = vrot.lane.b32.xlu0 %v1709, 2
    %v1754 = vpop.permute.xlu0 %1753
    %1755 = vrot.lane.b32.xlu0 %v1712, 2
    %v1756 = vpop.permute.xlu0 %1755
    %1757 = vrot.lane.b32.xlu0 %v1715, 2
    %v1758 = vpop.permute.xlu0 %1757
    %1759 = vrot.lane.b32.xlu0 %v1716, 2
    %v1760 = vpop.permute.xlu0 %1759
    %vm1783 = vcmask 19474
    %vm1784 = vmand %vm1783, %vm1257
    %v1785 = vld [vmem:[#allocation2 + $0x50] sm:$0xc]
    %v1786 = vsel %vm1784, %v1718, %v1785
    %1787 = vst [vmem:[#allocation2 + $0x50] sm:$0xc] %v1786
    %1788 = vst.msk [vmem:[#allocation2 + $0x54] sm:$0xf] %vm583, %v1720
    %1789 = vst.msk [vmem:[#allocation2 + $0x58] sm:$0xf] %vm583, %v1722
    %1790 = vst.msk [vmem:[#allocation2 + $0x5c] sm:$0xf] %vm583, %v1724
    %1791 = vst.msk [vmem:[#allocation2 + $0x60] sm:$0xf] %vm583, %v1726
    %1792 = vst.msk [vmem:[#allocation2 + $0x64] sm:$0xf] %vm583, %v1728
    %1793 = vst.msk [vmem:[#allocation2 + $0x68] sm:$0xf] %vm583, %v1730
    %1794 = vst.msk [vmem:[#allocation2 + $0x6c] sm:$0xf] %vm583, %v1732
    %1795 = vst.msk [vmem:[#allocation2 + $0x70] sm:$0xf] %vm583, %v1734
    %1796 = vst.msk [vmem:[#allocation2 + $0x74] sm:$0xf] %vm583, %v1736
    %1797 = vst.msk [vmem:[#allocation2 + $0x78] sm:$0xf] %vm583, %v1738
    %1798 = vst.msk [vmem:[#allocation2 + $0x7c] sm:$0xf] %vm583, %v1740
    %1799 = vst.msk [vmem:[#allocation2 + $0x80] sm:$0xf] %vm583, %v1742
    %1800 = vst.msk [vmem:[#allocation2 + $0x84] sm:$0xf] %vm583, %v1744
    %1801 = vst.msk [vmem:[#allocation2 + $0x88] sm:$0xf] %vm583, %v1746
    %1802 = vst.msk [vmem:[#allocation2 + $0x8c] sm:$0xf] %vm583, %v1748
    %1803 = vst.msk [vmem:[#allocation2 + $0x90] sm:$0xf] %vm583, %v1750
    %1804 = vst.msk [vmem:[#allocation2 + $0x94] sm:$0xf] %vm583, %v1752
    %1805 = vst.msk [vmem:[#allocation2 + $0x98] sm:$0xf] %vm583, %v1754
    %1806 = vst.msk [vmem:[#allocation2 + $0x9c] sm:$0xf] %vm583, %v1756
    %1807 = vst.msk [vmem:[#allocation2 + $0xa0] sm:$0xf] %vm583, %v1758
    %vm1808 = vcmask 16400
    %1809 = vst.msk [vmem:[#allocation2 + $0xa4] sm:$0x1] %vm1808, %v1760
    %v1810 = vld [vmem:[%s0 + $0x54] sm:$0xc]
    %v1811 = vld [vmem:[%s0 + $0x58] sm:$0xf]
    %v1812 = vld [vmem:[%s0 + $0x5c] sm:$0xf]
    %v1813 = vld [vmem:[%s0 + $0x60] sm:$0xf]
    %v1814 = vld [vmem:[%s0 + $0x64] sm:$0xf]
    %v1815 = vld [vmem:[%s0 + $0x68] sm:$0xf]
    %v1816 = vld [vmem:[%s0 + $0x6c] sm:$0xf]
    %v1817 = vld [vmem:[%s0 + $0x70] sm:$0xf]
    %v1818 = vld [vmem:[%s0 + $0x74] sm:$0xf]
    %v1819 = vld [vmem:[%s0 + $0x78] sm:$0xf]
    %v1820 = vld [vmem:[%s0 + $0x7c] sm:$0xf]
    %v1821 = vld [vmem:[%s0 + $0x80] sm:$0xf]
    %v1822 = vld [vmem:[%s0 + $0x84] sm:$0xf]
    %v1823 = vld [vmem:[%s0 + $0x88] sm:$0xf]
    %v1824 = vld [vmem:[%s0 + $0x8c] sm:$0xf]
    %v1825 = vld [vmem:[%s0 + $0x90] sm:$0xf]
    %v1826 = vld [vmem:[%s0 + $0x94] sm:$0xf]
    %v1827 = vld [vmem:[%s0 + $0x98] sm:$0xf]
    %v1828 = vld [vmem:[%s0 + $0x9c] sm:$0xf]
    %v1829 = vld [vmem:[%s0 + $0xa0] sm:$0xf]
    %v1830 = vld [vmem:[%s0 + $0xa4] sm:$0xf]
    %v1831 = vld [vmem:[%s0 + $0xa8] sm:$0x1]
    %vm1832 = vsmask.f32 256
    %vm1833 = vsmask.f32 4368
    %vm1834 = vmor %vm1832, %vm1833
    %v1836 = vshrl.u32 %v1810, 16
    %v1838 = vrot.slane %v1836, 7
    %v1839 = vshll.u32 %v1810, 16
    %v1841 = vor.u32 %v1838, %v1839
    %v1842 = vrot.slane %v1838, 4
    %v1844 = vshrl.u32 %v1811, 16
    %v1846 = vrot.slane %v1844, 7
    %v1847 = vshll.u32 %v1811, 16
    %v1849 = vor.u32 %v1846, %v1847
    %v1850 = vsel %vm1834, %v1842, %v1849
    %v1851 = vrot.slane %v1846, 4
    %v1853 = vshrl.u32 %v1812, 16
    %v1855 = vrot.slane %v1853, 7
    %v1856 = vshll.u32 %v1812, 16
    %v1858 = vor.u32 %v1855, %v1856
    %v1859 = vsel %vm1834, %v1851, %v1858
    %v1860 = vrot.slane %v1855, 4
    %v1862 = vshrl.u32 %v1813, 16
    %v1864 = vrot.slane %v1862, 7
    %v1865 = vshll.u32 %v1813, 16
    %v1867 = vor.u32 %v1864, %v1865
    %v1868 = vsel %vm1834, %v1860, %v1867
    %v1869 = vrot.slane %v1864, 4
    %v1871 = vshrl.u32 %v1814, 16
    %v1873 = vrot.slane %v1871, 7
    %v1874 = vshll.u32 %v1814, 16
    %v1876 = vor.u32 %v1873, %v1874
    %v1877 = vsel %vm1834, %v1869, %v1876
    %v1878 = vrot.slane %v1873, 4
    %v1880 = vshrl.u32 %v1815, 16
    %v1882 = vrot.slane %v1880, 7
    %v1883 = vshll.u32 %v1815, 16
    %v1885 = vor.u32 %v1882, %v1883
    %v1886 = vsel %vm1834, %v1878, %v1885
    %v1887 = vrot.slane %v1882, 4
    %v1889 = vshrl.u32 %v1816, 16
    %v1891 = vrot.slane %v1889, 7
    %v1892 = vshll.u32 %v1816, 16
    %v1894 = vor.u32 %v1891, %v1892
    %v1895 = vsel %vm1834, %v1887, %v1894
    %v1896 = vrot.slane %v1891, 4
    %v1898 = vshrl.u32 %v1817, 16
    %v1900 = vrot.slane %v1898, 7
    %v1901 = vshll.u32 %v1817, 16
    %v1903 = vor.u32 %v1900, %v1901
    %v1904 = vsel %vm1834, %v1896, %v1903
    %v1905 = vrot.slane %v1900, 4
    %v1907 = vshrl.u32 %v1818, 16
    %v1909 = vrot.slane %v1907, 7
    %v1910 = vshll.u32 %v1818, 16
    %v1912 = vor.u32 %v1909, %v1910
    %v1913 = vsel %vm1834, %v1905, %v1912
    %v1914 = vrot.slane %v1909, 4
    %v1916 = vshrl.u32 %v1819, 16
    %v1918 = vrot.slane %v1916, 7
    %v1919 = vshll.u32 %v1819, 16
    %v1921 = vor.u32 %v1918, %v1919
    %v1922 = vsel %vm1834, %v1914, %v1921
    %v1923 = vrot.slane %v1918, 4
    %v1925 = vshrl.u32 %v1820, 16
    %v1927 = vrot.slane %v1925, 7
    %v1928 = vshll.u32 %v1820, 16
    %v1930 = vor.u32 %v1927, %v1928
    %v1931 = vsel %vm1834, %v1923, %v1930
    %v1932 = vrot.slane %v1927, 4
    %v1934 = vshrl.u32 %v1821, 16
    %v1936 = vrot.slane %v1934, 7
    %v1937 = vshll.u32 %v1821, 16
    %v1939 = vor.u32 %v1936, %v1937
    %v1940 = vsel %vm1834, %v1932, %v1939
    %v1941 = vrot.slane %v1936, 4
    %v1943 = vshrl.u32 %v1822, 16
    %v1945 = vrot.slane %v1943, 7
    %v1946 = vshll.u32 %v1822, 16
    %v1948 = vor.u32 %v1945, %v1946
    %v1949 = vsel %vm1834, %v1941, %v1948
    %v1950 = vrot.slane %v1945, 4
    %v1952 = vshrl.u32 %v1823, 16
    %v1954 = vrot.slane %v1952, 7
    %v1955 = vshll.u32 %v1823, 16
    %v1957 = vor.u32 %v1954, %v1955
    %v1958 = vsel %vm1834, %v1950, %v1957
    %v1959 = vrot.slane %v1954, 4
    %v1961 = vshrl.u32 %v1824, 16
    %v1963 = vrot.slane %v1961, 7
    %v1964 = vshll.u32 %v1824, 16
    %v1966 = vor.u32 %v1963, %v1964
    %v1967 = vsel %vm1834, %v1959, %v1966
    %v1968 = vrot.slane %v1963, 4
    %v1970 = vshrl.u32 %v1825, 16
    %v1972 = vrot.slane %v1970, 7
    %v1973 = vshll.u32 %v1825, 16
    %v1975 = vor.u32 %v1972, %v1973
    %v1976 = vsel %vm1834, %v1968, %v1975
    %v1977 = vrot.slane %v1972, 4
    %v1979 = vshrl.u32 %v1826, 16
    %v1981 = vrot.slane %v1979, 7
    %v1982 = vshll.u32 %v1826, 16
    %v1984 = vor.u32 %v1981, %v1982
    %v1985 = vsel %vm1834, %v1977, %v1984
    %v1986 = vrot.slane %v1981, 4
    %v1988 = vshrl.u32 %v1827, 16
    %v1990 = vrot.slane %v1988, 7
    %v1991 = vshll.u32 %v1827, 16
    %v1993 = vor.u32 %v1990, %v1991
    %v1994 = vsel %vm1834, %v1986, %v1993
    %v1995 = vrot.slane %v1990, 4
    %v1997 = vshrl.u32 %v1828, 16
    %v1999 = vrot.slane %v1997, 7
    %v2000 = vshll.u32 %v1828, 16
    %v2002 = vor.u32 %v1999, %v2000
    %v2003 = vsel %vm1834, %v1995, %v2002
    %v2004 = vrot.slane %v1999, 4
    %v2006 = vshrl.u32 %v1829, 16
    %v2008 = vrot.slane %v2006, 7
    %v2009 = vshll.u32 %v1829, 16
    %v2011 = vor.u32 %v2008, %v2009
    %v2012 = vsel %vm1834, %v2004, %v2011
    %v2013 = vrot.slane %v2008, 4
    %v2015 = vshrl.u32 %v1830, 16
    %v2017 = vrot.slane %v2015, 7
    %v2018 = vshll.u32 %v1830, 16
    %v2020 = vor.u32 %v2017, %v2018
    %v2021 = vsel %vm1834, %v2013, %v2020
    %v2022 = vrot.slane %v2017, 4
    %v2024 = vshll.u32 %v1831, 16
    %v2026 = vsel %vm1834, %v2022, %v2024
    %2027 = vrot.lane.b32.xlu0 %v1841, 3
    %v2028 = vpop.permute.xlu0 %2027
    %2029 = vrot.lane.b32.xlu0 %v1850, 3
    %v2030 = vpop.permute.xlu0 %2029
    %2031 = vrot.lane.b32.xlu0 %v1859, 3
    %v2032 = vpop.permute.xlu0 %2031
    %2033 = vrot.lane.b32.xlu0 %v1868, 3
    %v2034 = vpop.permute.xlu0 %2033
    %2035 = vrot.lane.b32.xlu0 %v1877, 3
    %v2036 = vpop.permute.xlu0 %2035
    %2037 = vrot.lane.b32.xlu0 %v1886, 3
    %v2038 = vpop.permute.xlu0 %2037
    %2039 = vrot.lane.b32.xlu0 %v1895, 3
    %v2040 = vpop.permute.xlu0 %2039
    %2041 = vrot.lane.b32.xlu0 %v1904, 3
    %v2042 = vpop.permute.xlu0 %2041
    %2043 = vrot.lane.b32.xlu0 %v1913, 3
    %v2044 = vpop.permute.xlu0 %2043
    %2045 = vrot.lane.b32.xlu0 %v1922, 3
    %v2046 = vpop.permute.xlu0 %2045
    %2047 = vrot.lane.b32.xlu0 %v1931, 3
    %v2048 = vpop.permute.xlu0 %2047
    %2049 = vrot.lane.b32.xlu0 %v1940, 3
    %v2050 = vpop.permute.xlu0 %2049
    %2051 = vrot.lane.b32.xlu0 %v1949, 3
    %v2052 = vpop.permute.xlu0 %2051
    %2053 = vrot.lane.b32.xlu0 %v1958, 3
    %v2054 = vpop.permute.xlu0 %2053
    %2055 = vrot.lane.b32.xlu0 %v1967, 3
    %v2056 = vpop.permute.xlu0 %2055
    %2057 = vrot.lane.b32.xlu0 %v1976, 3
    %v2058 = vpop.permute.xlu0 %2057
    %2059 = vrot.lane.b32.xlu0 %v1985, 3
    %v2060 = vpop.permute.xlu0 %2059
    %2061 = vrot.lane.b32.xlu0 %v1994, 3
    %v2062 = vpop.permute.xlu0 %2061
    %2063 = vrot.lane.b32.xlu0 %v2003, 3
    %v2064 = vpop.permute.xlu0 %2063
    %2065 = vrot.lane.b32.xlu0 %v2012, 3
    %v2066 = vpop.permute.xlu0 %2065
    %2067 = vrot.lane.b32.xlu0 %v2021, 3
    %v2068 = vpop.permute.xlu0 %2067
    %2069 = vrot.lane.b32.xlu0 %v2026, 3
    %v2070 = vpop.permute.xlu0 %2069
    %vm2093 = vcmask 27674
    %vm2094 = vmand %vm2093, %vm1257
    %v2095 = vld [vmem:[#allocation2 + $0x50] sm:$0xc]
    %v2096 = vsel %vm2094, %v2028, %v2095
    %2097 = vst [vmem:[#allocation2 + $0x50] sm:$0xc] %v2096
    %2098 = vst.msk [vmem:[#allocation2 + $0x54] sm:$0xf] %vm904, %v2030
    %2099 = vst.msk [vmem:[#allocation2 + $0x58] sm:$0xf] %vm904, %v2032
    %2100 = vst.msk [vmem:[#allocation2 + $0x5c] sm:$0xf] %vm904, %v2034
    %2101 = vst.msk [vmem:[#allocation2 + $0x60] sm:$0xf] %vm904, %v2036
    %2102 = vst.msk [vmem:[#allocation2 + $0x64] sm:$0xf] %vm904, %v2038
    %2103 = vst.msk [vmem:[#allocation2 + $0x68] sm:$0xf] %vm904, %v2040
    %2104 = vst.msk [vmem:[#allocation2 + $0x6c] sm:$0xf] %vm904, %v2042
    %2105 = vst.msk [vmem:[#allocation2 + $0x70] sm:$0xf] %vm904, %v2044
    %2106 = vst.msk [vmem:[#allocation2 + $0x74] sm:$0xf] %vm904, %v2046
    %2107 = vst.msk [vmem:[#allocation2 + $0x78] sm:$0xf] %vm904, %v2048
    %2108 = vst.msk [vmem:[#allocation2 + $0x7c] sm:$0xf] %vm904, %v2050
    %2109 = vst.msk [vmem:[#allocation2 + $0x80] sm:$0xf] %vm904, %v2052
    %2110 = vst.msk [vmem:[#allocation2 + $0x84] sm:$0xf] %vm904, %v2054
    %2111 = vst.msk [vmem:[#allocation2 + $0x88] sm:$0xf] %vm904, %v2056
    %2112 = vst.msk [vmem:[#allocation2 + $0x8c] sm:$0xf] %vm904, %v2058
    %2113 = vst.msk [vmem:[#allocation2 + $0x90] sm:$0xf] %vm904, %v2060
    %2114 = vst.msk [vmem:[#allocation2 + $0x94] sm:$0xf] %vm904, %v2062
    %2115 = vst.msk [vmem:[#allocation2 + $0x98] sm:$0xf] %vm904, %v2064
    %2116 = vst.msk [vmem:[#allocation2 + $0x9c] sm:$0xf] %vm904, %v2066
    %2117 = vst.msk [vmem:[#allocation2 + $0xa0] sm:$0xf] %vm904, %v2068
    %vm2118 = vcmask 24600
    %2119 = vst.msk [vmem:[#allocation2 + $0xa4] sm:$0x1] %vm2118, %v2070
    %v2120 = vld [vmem:[%s0 + $0x54] sm:$0xc]
    %v2121 = vld [vmem:[%s0 + $0x58] sm:$0xf]
    %v2122 = vld [vmem:[%s0 + $0x5c] sm:$0xf]
    %v2123 = vld [vmem:[%s0 + $0x60] sm:$0xf]
    %v2124 = vld [vmem:[%s0 + $0x64] sm:$0xf]
    %v2125 = vld [vmem:[%s0 + $0x68] sm:$0xf]
    %v2126 = vld [vmem:[%s0 + $0x6c] sm:$0xf]
    %v2127 = vld [vmem:[%s0 + $0x70] sm:$0xf]
    %v2128 = vld [vmem:[%s0 + $0x74] sm:$0xf]
    %v2129 = vld [vmem:[%s0 + $0x78] sm:$0xf]
    %v2130 = vld [vmem:[%s0 + $0x7c] sm:$0xf]
    %v2131 = vld [vmem:[%s0 + $0x80] sm:$0xf]
    %v2132 = vld [vmem:[%s0 + $0x84] sm:$0xf]
    %v2133 = vld [vmem:[%s0 + $0x88] sm:$0xf]
    %v2134 = vld [vmem:[%s0 + $0x8c] sm:$0xf]
    %v2135 = vld [vmem:[%s0 + $0x90] sm:$0xf]
    %v2136 = vld [vmem:[%s0 + $0x94] sm:$0xf]
    %v2137 = vld [vmem:[%s0 + $0x98] sm:$0xf]
    %v2138 = vld [vmem:[%s0 + $0x9c] sm:$0xf]
    %v2139 = vld [vmem:[%s0 + $0xa0] sm:$0xf]
    %v2140 = vld [vmem:[%s0 + $0xa4] sm:$0xf]
    %v2141 = vld [vmem:[%s0 + $0xa8] sm:$0x1]
    %2164 = vrot.lane.b32.xlu0 %v2120, 4
    %v2165 = vpop.permute.xlu0 %2164
    %2166 = vrot.lane.b32.xlu0 %v2121, 4
    %v2167 = vpop.permute.xlu0 %2166
    %2168 = vrot.lane.b32.xlu0 %v2122, 4
    %v2169 = vpop.permute.xlu0 %2168
    %2170 = vrot.lane.b32.xlu0 %v2123, 4
    %v2171 = vpop.permute.xlu0 %2170
    %2172 = vrot.lane.b32.xlu0 %v2124, 4
    %v2173 = vpop.permute.xlu0 %2172
    %2174 = vrot.lane.b32.xlu0 %v2125, 4
    %v2175 = vpop.permute.xlu0 %2174
    %2176 = vrot.lane.b32.xlu0 %v2126, 4
    %v2177 = vpop.permute.xlu0 %2176
    %2178 = vrot.lane.b32.xlu0 %v2127, 4
    %v2179 = vpop.permute.xlu0 %2178
    %2180 = vrot.lane.b32.xlu0 %v2128, 4
    %v2181 = vpop.permute.xlu0 %2180
    %2182 = vrot.lane.b32.xlu0 %v2129, 4
    %v2183 = vpop.permute.xlu0 %2182
    %2184 = vrot.lane.b32.xlu0 %v2130, 4
    %v2185 = vpop.permute.xlu0 %2184
    %2186 = vrot.lane.b32.xlu0 %v2131, 4
    %v2187 = vpop.permute.xlu0 %2186
    %2188 = vrot.lane.b32.xlu0 %v2132, 4
    %v2189 = vpop.permute.xlu0 %2188
    %2190 = vrot.lane.b32.xlu0 %v2133, 4
    %v2191 = vpop.permute.xlu0 %2190
    %2192 = vrot.lane.b32.xlu0 %v2134, 4
    %v2193 = vpop.permute.xlu0 %2192
    %2194 = vrot.lane.b32.xlu0 %v2135, 4
    %v2195 = vpop.permute.xlu0 %2194
    %2196 = vrot.lane.b32.xlu0 %v2136, 4
    %v2197 = vpop.permute.xlu0 %2196
    %2198 = vrot.lane.b32.xlu0 %v2137, 4
    %v2199 = vpop.permute.xlu0 %2198
    %2200 = vrot.lane.b32.xlu0 %v2138, 4
    %v2201 = vpop.permute.xlu0 %2200
    %2202 = vrot.lane.b32.xlu0 %v2139, 4
    %v2203 = vpop.permute.xlu0 %2202
    %2204 = vrot.lane.b32.xlu0 %v2140, 4
    %v2205 = vpop.permute.xlu0 %2204
    %2206 = vrot.lane.b32.xlu0 %v2141, 4
    %v2207 = vpop.permute.xlu0 %2206
    %vm2230 = vcmask 35874
    %vm2231 = vmand %vm2230, %vm1257
    %v2232 = vld [vmem:[#allocation2 + $0x50] sm:$0xc]
    %v2233 = vsel %vm2231, %v2165, %v2232
    %2234 = vst [vmem:[#allocation2 + $0x50] sm:$0xc] %v2233
    %2235 = vst.msk [vmem:[#allocation2 + $0x54] sm:$0xf] %vm1104, %v2167
    %2236 = vst.msk [vmem:[#allocation2 + $0x58] sm:$0xf] %vm1104, %v2169
    %2237 = vst.msk [vmem:[#allocation2 + $0x5c] sm:$0xf] %vm1104, %v2171
    %2238 = vst.msk [vmem:[#allocation2 + $0x60] sm:$0xf] %vm1104, %v2173
    %2239 = vst.msk [vmem:[#allocation2 + $0x64] sm:$0xf] %vm1104, %v2175
    %2240 = vst.msk [vmem:[#allocation2 + $0x68] sm:$0xf] %vm1104, %v2177
    %2241 = vst.msk [vmem:[#allocation2 + $0x6c] sm:$0xf] %vm1104, %v2179
    %2242 = vst.msk [vmem:[#allocation2 + $0x70] sm:$0xf] %vm1104, %v2181
    %2243 = vst.msk [vmem:[#allocation2 + $0x74] sm:$0xf] %vm1104, %v2183
    %2244 = vst.msk [vmem:[#allocation2 + $0x78] sm:$0xf] %vm1104, %v2185
    %2245 = vst.msk [vmem:[#allocation2 + $0x7c] sm:$0xf] %vm1104, %v2187
    %2246 = vst.msk [vmem:[#allocation2 + $0x80] sm:$0xf] %vm1104, %v2189
    %2247 = vst.msk [vmem:[#allocation2 + $0x84] sm:$0xf] %vm1104, %v2191
    %2248 = vst.msk [vmem:[#allocation2 + $0x88] sm:$0xf] %vm1104, %v2193
    %2249 = vst.msk [vmem:[#allocation2 + $0x8c] sm:$0xf] %vm1104, %v2195
    %2250 = vst.msk [vmem:[#allocation2 + $0x90] sm:$0xf] %vm1104, %v2197
    %2251 = vst.msk [vmem:[#allocation2 + $0x94] sm:$0xf] %vm1104, %v2199
    %2252 = vst.msk [vmem:[#allocation2 + $0x98] sm:$0xf] %vm1104, %v2201
    %2253 = vst.msk [vmem:[#allocation2 + $0x9c] sm:$0xf] %vm1104, %v2203
    %2254 = vst.msk [vmem:[#allocation2 + $0xa0] sm:$0xf] %vm1104, %v2205
    %vm2255 = vcmask 32800
    %2256 = vst.msk [vmem:[#allocation2 + $0xa4] sm:$0x1] %vm2255, %v2207
    %v2257 = vld [vmem:[%s0 + $0xa8] sm:$0xe]
    %v2258 = vld [vmem:[%s0 + $0xac] sm:$0xf]
    %v2259 = vld [vmem:[%s0 + $0xb0] sm:$0xf]
    %v2260 = vld [vmem:[%s0 + $0xb4] sm:$0xf]
    %v2261 = vld [vmem:[%s0 + $0xb8] sm:$0xf]
    %v2262 = vld [vmem:[%s0 + $0xbc] sm:$0xf]
    %v2263 = vld [vmem:[%s0 + $0xc0] sm:$0xf]
    %v2264 = vld [vmem:[%s0 + $0xc4] sm:$0xf]
    %v2265 = vld [vmem:[%s0 + $0xc8] sm:$0xf]
    %v2266 = vld [vmem:[%s0 + $0xcc] sm:$0xf]
    %v2267 = vld [vmem:[%s0 + $0xd0] sm:$0xf]
    %v2268 = vld [vmem:[%s0 + $0xd4] sm:$0xf]
    %v2269 = vld [vmem:[%s0 + $0xd8] sm:$0xf]
    %v2270 = vld [vmem:[%s0 + $0xdc] sm:$0xf]
    %v2271 = vld [vmem:[%s0 + $0xe0] sm:$0xf]
    %v2272 = vld [vmem:[%s0 + $0xe4] sm:$0xf]
    %v2273 = vld [vmem:[%s0 + $0xe8] sm:$0xf]
    %v2274 = vld [vmem:[%s0 + $0xec] sm:$0xf]
    %v2275 = vld [vmem:[%s0 + $0xf0] sm:$0xf]
    %v2276 = vld [vmem:[%s0 + $0xf4] sm:$0xf]
    %v2277 = vld [vmem:[%s0 + $0xf8] sm:$0xf]
    %vm2278 = vcmask 3073
    %2279 = vst.msk [vmem:[#allocation2 + $0xa4] sm:$0xe] %vm2278, %v2257
    %2280 = vst.msk [vmem:[#allocation2 + $0xa8] sm:$0xf] %vm64, %v2258
    %2281 = vst.msk [vmem:[#allocation2 + $0xac] sm:$0xf] %vm64, %v2259
    %2282 = vst.msk [vmem:[#allocation2 + $0xb0] sm:$0xf] %vm64, %v2260
    %2283 = vst.msk [vmem:[#allocation2 + $0xb4] sm:$0xf] %vm64, %v2261
    %2284 = vst.msk [vmem:[#allocation2 + $0xb8] sm:$0xf] %vm64, %v2262
    %2285 = vst.msk [vmem:[#allocation2 + $0xbc] sm:$0xf] %vm64, %v2263
    %2286 = vst.msk [vmem:[#allocation2 + $0xc0] sm:$0xf] %vm64, %v2264
    %2287 = vst.msk [vmem:[#allocation2 + $0xc4] sm:$0xf] %vm64, %v2265
    %2288 = vst.msk [vmem:[#allocation2 + $0xc8] sm:$0xf] %vm64, %v2266
    %2289 = vst.msk [vmem:[#allocation2 + $0xcc] sm:$0xf] %vm64, %v2267
    %2290 = vst.msk [vmem:[#allocation2 + $0xd0] sm:$0xf] %vm64, %v2268
    %2291 = vst.msk [vmem:[#allocation2 + $0xd4] sm:$0xf] %vm64, %v2269
    %2292 = vst.msk [vmem:[#allocation2 + $0xd8] sm:$0xf] %vm64, %v2270
    %2293 = vst.msk [vmem:[#allocation2 + $0xdc] sm:$0xf] %vm64, %v2271
    %2294 = vst.msk [vmem:[#allocation2 + $0xe0] sm:$0xf] %vm64, %v2272
    %2295 = vst.msk [vmem:[#allocation2 + $0xe4] sm:$0xf] %vm64, %v2273
    %2296 = vst.msk [vmem:[#allocation2 + $0xe8] sm:$0xf] %vm64, %v2274
    %2297 = vst.msk [vmem:[#allocation2 + $0xec] sm:$0xf] %vm64, %v2275
    %2298 = vst.msk [vmem:[#allocation2 + $0xf0] sm:$0xf] %vm64, %v2276
    %vm2299 = vcmask 3072
    %vm2300 = vmand %vm2299, %vm112
    %v2301 = vld [vmem:[#allocation2 + $0xf4] sm:$0xf]
    %v2302 = vsel %vm2300, %v2277, %v2301
    %2303 = vst [vmem:[#allocation2 + $0xf4] sm:$0xf] %v2302
    %v2304 = vld [vmem:[%s0 + $0xa8] sm:$0xe]
    %v2305 = vld [vmem:[%s0 + $0xac] sm:$0xf]
    %v2306 = vld [vmem:[%s0 + $0xb0] sm:$0xf]
    %v2307 = vld [vmem:[%s0 + $0xb4] sm:$0xf]
    %v2308 = vld [vmem:[%s0 + $0xb8] sm:$0xf]
    %v2309 = vld [vmem:[%s0 + $0xbc] sm:$0xf]
    %v2310 = vld [vmem:[%s0 + $0xc0] sm:$0xf]
    %v2311 = vld [vmem:[%s0 + $0xc4] sm:$0xf]
    %v2312 = vld [vmem:[%s0 + $0xc8] sm:$0xf]
    %v2313 = vld [vmem:[%s0 + $0xcc] sm:$0xf]
    %v2314 = vld [vmem:[%s0 + $0xd0] sm:$0xf]
    %v2315 = vld [vmem:[%s0 + $0xd4] sm:$0xf]
    %v2316 = vld [vmem:[%s0 + $0xd8] sm:$0xf]
    %v2317 = vld [vmem:[%s0 + $0xdc] sm:$0xf]
    %v2318 = vld [vmem:[%s0 + $0xe0] sm:$0xf]
    %v2319 = vld [vmem:[%s0 + $0xe4] sm:$0xf]
    %v2320 = vld [vmem:[%s0 + $0xe8] sm:$0xf]
    %v2321 = vld [vmem:[%s0 + $0xec] sm:$0xf]
    %v2322 = vld [vmem:[%s0 + $0xf0] sm:$0xf]
    %v2323 = vld [vmem:[%s0 + $0xf4] sm:$0xf]
    %v2324 = vld [vmem:[%s0 + $0xf8] sm:$0xf]
    %v2326 = vshrl.u32 %v2304, 16
    %v2328 = vrot.slane %v2326, 4
    %v2329 = vshll.u32 %v2304, 16
    %v2331 = vrot.slane %v2329, 5
    %v2332 = vor.u32 %v2328, %v2331
    %v2333 = vrot.slane %v2332, 4
    %v2335 = vshll.u32 %v2305, 16
    %v2337 = vrot.slane %v2335, 5
    %v2338 = vsel %vm114, %v2333, %v2337
    %v2339 = vshrl.u32 %v2305, 16
    %v2341 = vrot.slane %v2339, 4
    %v2342 = vor.u32 %v2341, %v2337
    %v2343 = vrot.slane %v2342, 4
    %v2345 = vshll.u32 %v2306, 16
    %v2347 = vrot.slane %v2345, 5
    %v2348 = vsel %vm114, %v2343, %v2347
    %v2349 = vshrl.u32 %v2306, 16
    %v2351 = vrot.slane %v2349, 4
    %v2352 = vor.u32 %v2351, %v2347
    %v2353 = vrot.slane %v2352, 4
    %v2355 = vshll.u32 %v2307, 16
    %v2357 = vrot.slane %v2355, 5
    %v2358 = vsel %vm114, %v2353, %v2357
    %v2359 = vshrl.u32 %v2307, 16
    %v2361 = vrot.slane %v2359, 4
    %v2362 = vor.u32 %v2361, %v2357
    %v2363 = vrot.slane %v2362, 4
    %v2365 = vshll.u32 %v2308, 16
    %v2367 = vrot.slane %v2365, 5
    %v2368 = vsel %vm114, %v2363, %v2367
    %v2369 = vshrl.u32 %v2308, 16
    %v2371 = vrot.slane %v2369, 4
    %v2372 = vor.u32 %v2371, %v2367
    %v2373 = vrot.slane %v2372, 4
    %v2375 = vshll.u32 %v2309, 16
    %v2377 = vrot.slane %v2375, 5
    %v2378 = vsel %vm114, %v2373, %v2377
    %v2379 = vshrl.u32 %v2309, 16
    %v2381 = vrot.slane %v2379, 4
    %v2382 = vor.u32 %v2381, %v2377
    %v2383 = vrot.slane %v2382, 4
    %v2385 = vshll.u32 %v2310, 16
    %v2387 = vrot.slane %v2385, 5
    %v2388 = vsel %vm114, %v2383, %v2387
    %v2389 = vshrl.u32 %v2310, 16
    %v2391 = vrot.slane %v2389, 4
    %v2392 = vor.u32 %v2391, %v2387
    %v2393 = vrot.slane %v2392, 4
    %v2395 = vshll.u32 %v2311, 16
    %v2397 = vrot.slane %v2395, 5
    %v2398 = vsel %vm114, %v2393, %v2397
    %v2399 = vshrl.u32 %v2311, 16
    %v2401 = vrot.slane %v2399, 4
    %v2402 = vor.u32 %v2401, %v2397
    %v2403 = vrot.slane %v2402, 4
    %v2405 = vshll.u32 %v2312, 16
    %v2407 = vrot.slane %v2405, 5
    %v2408 = vsel %vm114, %v2403, %v2407
    %v2409 = vshrl.u32 %v2312, 16
    %v2411 = vrot.slane %v2409, 4
    %v2412 = vor.u32 %v2411, %v2407
    %v2413 = vrot.slane %v2412, 4
    %v2415 = vshll.u32 %v2313, 16
    %v2417 = vrot.slane %v2415, 5
    %v2418 = vsel %vm114, %v2413, %v2417
    %v2419 = vshrl.u32 %v2313, 16
    %v2421 = vrot.slane %v2419, 4
    %v2422 = vor.u32 %v2421, %v2417
    %v2423 = vrot.slane %v2422, 4
    %v2425 = vshll.u32 %v2314, 16
    %v2427 = vrot.slane %v2425, 5
    %v2428 = vsel %vm114, %v2423, %v2427
    %v2429 = vshrl.u32 %v2314, 16
    %v2431 = vrot.slane %v2429, 4
    %v2432 = vor.u32 %v2431, %v2427
    %v2433 = vrot.slane %v2432, 4
    %v2435 = vshll.u32 %v2315, 16
    %v2437 = vrot.slane %v2435, 5
    %v2438 = vsel %vm114, %v2433, %v2437
    %v2439 = vshrl.u32 %v2315, 16
    %v2441 = vrot.slane %v2439, 4
    %v2442 = vor.u32 %v2441, %v2437
    %v2443 = vrot.slane %v2442, 4
    %v2445 = vshll.u32 %v2316, 16
    %v2447 = vrot.slane %v2445, 5
    %v2448 = vsel %vm114, %v2443, %v2447
    %v2449 = vshrl.u32 %v2316, 16
    %v2451 = vrot.slane %v2449, 4
    %v2452 = vor.u32 %v2451, %v2447
    %v2453 = vrot.slane %v2452, 4
    %v2455 = vshll.u32 %v2317, 16
    %v2457 = vrot.slane %v2455, 5
    %v2458 = vsel %vm114, %v2453, %v2457
    %v2459 = vshrl.u32 %v2317, 16
    %v2461 = vrot.slane %v2459, 4
    %v2462 = vor.u32 %v2461, %v2457
    %v2463 = vrot.slane %v2462, 4
    %v2465 = vshll.u32 %v2318, 16
    %v2467 = vrot.slane %v2465, 5
    %v2468 = vsel %vm114, %v2463, %v2467
    %v2469 = vshrl.u32 %v2318, 16
    %v2471 = vrot.slane %v2469, 4
    %v2472 = vor.u32 %v2471, %v2467
    %v2473 = vrot.slane %v2472, 4
    %v2475 = vshll.u32 %v2319, 16
    %v2477 = vrot.slane %v2475, 5
    %v2478 = vsel %vm114, %v2473, %v2477
    %v2479 = vshrl.u32 %v2319, 16
    %v2481 = vrot.slane %v2479, 4
    %v2482 = vor.u32 %v2481, %v2477
    %v2483 = vrot.slane %v2482, 4
    %v2485 = vshll.u32 %v2320, 16
    %v2487 = vrot.slane %v2485, 5
    %v2488 = vsel %vm114, %v2483, %v2487
    %v2489 = vshrl.u32 %v2320, 16
    %v2491 = vrot.slane %v2489, 4
    %v2492 = vor.u32 %v2491, %v2487
    %v2493 = vrot.slane %v2492, 4
    %v2495 = vshll.u32 %v2321, 16
    %v2497 = vrot.slane %v2495, 5
    %v2498 = vsel %vm114, %v2493, %v2497
    %v2499 = vshrl.u32 %v2321, 16
    %v2501 = vrot.slane %v2499, 4
    %v2502 = vor.u32 %v2501, %v2497
    %v2503 = vrot.slane %v2502, 4
    %v2505 = vshll.u32 %v2322, 16
    %v2507 = vrot.slane %v2505, 5
    %v2508 = vsel %vm114, %v2503, %v2507
    %v2509 = vshrl.u32 %v2322, 16
    %v2511 = vrot.slane %v2509, 4
    %v2512 = vor.u32 %v2511, %v2507
    %v2513 = vrot.slane %v2512, 4
    %v2515 = vshll.u32 %v2323, 16
    %v2517 = vrot.slane %v2515, 5
    %v2518 = vsel %vm114, %v2513, %v2517
    %v2519 = vshrl.u32 %v2323, 16
    %v2521 = vrot.slane %v2519, 4
    %v2522 = vor.u32 %v2521, %v2517
    %v2523 = vrot.slane %v2522, 4
    %v2525 = vshll.u32 %v2324, 16
    %v2527 = vrot.slane %v2525, 5
    %v2528 = vsel %vm114, %v2523, %v2527
    %v2529 = vshrl.u32 %v2324, 16
    %v2531 = vrot.slane %v2529, 4
    %v2532 = vor.u32 %v2531, %v2527
    %v2533 = vrot.slane %v2532, 4
    %2534 = vrot.lane.b32.xlu0 %v2338, 1
    %v2535 = vpop.permute.xlu0 %2534
    %2536 = vrot.lane.b32.xlu0 %v2348, 1
    %v2537 = vpop.permute.xlu0 %2536
    %2538 = vrot.lane.b32.xlu0 %v2358, 1
    %v2539 = vpop.permute.xlu0 %2538
    %2540 = vrot.lane.b32.xlu0 %v2368, 1
    %v2541 = vpop.permute.xlu0 %2540
    %2542 = vrot.lane.b32.xlu0 %v2378, 1
    %v2543 = vpop.permute.xlu0 %2542
    %2544 = vrot.lane.b32.xlu0 %v2388, 1
    %v2545 = vpop.permute.xlu0 %2544
    %2546 = vrot.lane.b32.xlu0 %v2398, 1
    %v2547 = vpop.permute.xlu0 %2546
    %2548 = vrot.lane.b32.xlu0 %v2408, 1
    %v2549 = vpop.permute.xlu0 %2548
    %2550 = vrot.lane.b32.xlu0 %v2418, 1
    %v2551 = vpop.permute.xlu0 %2550
    %2552 = vrot.lane.b32.xlu0 %v2428, 1
    %v2553 = vpop.permute.xlu0 %2552
    %2554 = vrot.lane.b32.xlu0 %v2438, 1
    %v2555 = vpop.permute.xlu0 %2554
    %2556 = vrot.lane.b32.xlu0 %v2448, 1
    %v2557 = vpop.permute.xlu0 %2556
    %2558 = vrot.lane.b32.xlu0 %v2458, 1
    %v2559 = vpop.permute.xlu0 %2558
    %2560 = vrot.lane.b32.xlu0 %v2468, 1
    %v2561 = vpop.permute.xlu0 %2560
    %2562 = vrot.lane.b32.xlu0 %v2478, 1
    %v2563 = vpop.permute.xlu0 %2562
    %2564 = vrot.lane.b32.xlu0 %v2488, 1
    %v2565 = vpop.permute.xlu0 %2564
    %2566 = vrot.lane.b32.xlu0 %v2498, 1
    %v2567 = vpop.permute.xlu0 %2566
    %2568 = vrot.lane.b32.xlu0 %v2508, 1
    %v2569 = vpop.permute.xlu0 %2568
    %2570 = vrot.lane.b32.xlu0 %v2518, 1
    %v2571 = vpop.permute.xlu0 %2570
    %2572 = vrot.lane.b32.xlu0 %v2528, 1
    %v2573 = vpop.permute.xlu0 %2572
    %2574 = vrot.lane.b32.xlu0 %v2533, 1
    %v2575 = vpop.permute.xlu0 %2574
    %vm2597 = vcmask 11273
    %2598 = vst.msk [vmem:[#allocation2 + $0xa4] sm:$0xe] %vm2597, %v2535
    %2599 = vst.msk [vmem:[#allocation2 + $0xa8] sm:$0xf] %vm387, %v2537
    %2600 = vst.msk [vmem:[#allocation2 + $0xac] sm:$0xf] %vm387, %v2539
    %2601 = vst.msk [vmem:[#allocation2 + $0xb0] sm:$0xf] %vm387, %v2541
    %2602 = vst.msk [vmem:[#allocation2 + $0xb4] sm:$0xf] %vm387, %v2543
    %2603 = vst.msk [vmem:[#allocation2 + $0xb8] sm:$0xf] %vm387, %v2545
    %2604 = vst.msk [vmem:[#allocation2 + $0xbc] sm:$0xf] %vm387, %v2547
    %2605 = vst.msk [vmem:[#allocation2 + $0xc0] sm:$0xf] %vm387, %v2549
    %2606 = vst.msk [vmem:[#allocation2 + $0xc4] sm:$0xf] %vm387, %v2551
    %2607 = vst.msk [vmem:[#allocation2 + $0xc8] sm:$0xf] %vm387, %v2553
    %2608 = vst.msk [vmem:[#allocation2 + $0xcc] sm:$0xf] %vm387, %v2555
    %2609 = vst.msk [vmem:[#allocation2 + $0xd0] sm:$0xf] %vm387, %v2557
    %2610 = vst.msk [vmem:[#allocation2 + $0xd4] sm:$0xf] %vm387, %v2559
    %2611 = vst.msk [vmem:[#allocation2 + $0xd8] sm:$0xf] %vm387, %v2561
    %2612 = vst.msk [vmem:[#allocation2 + $0xdc] sm:$0xf] %vm387, %v2563
    %2613 = vst.msk [vmem:[#allocation2 + $0xe0] sm:$0xf] %vm387, %v2565
    %2614 = vst.msk [vmem:[#allocation2 + $0xe4] sm:$0xf] %vm387, %v2567
    %2615 = vst.msk [vmem:[#allocation2 + $0xe8] sm:$0xf] %vm387, %v2569
    %2616 = vst.msk [vmem:[#allocation2 + $0xec] sm:$0xf] %vm387, %v2571
    %2617 = vst.msk [vmem:[#allocation2 + $0xf0] sm:$0xf] %vm387, %v2573
    %vm2618 = vcmask 11272
    %vm2619 = vmand %vm2618, %vm112
    %v2620 = vld [vmem:[#allocation2 + $0xf4] sm:$0xf]
    %v2621 = vsel %vm2619, %v2575, %v2620
    %2622 = vst [vmem:[#allocation2 + $0xf4] sm:$0xf] %v2621
    %v2623 = vld [vmem:[%s0 + $0xa8] sm:$0xc]
    %v2624 = vld [vmem:[%s0 + $0xac] sm:$0xf]
    %v2625 = vld [vmem:[%s0 + $0xb0] sm:$0xf]
    %v2626 = vld [vmem:[%s0 + $0xb4] sm:$0xf]
    %v2627 = vld [vmem:[%s0 + $0xb8] sm:$0xf]
    %v2628 = vld [vmem:[%s0 + $0xbc] sm:$0xf]
    %v2629 = vld [vmem:[%s0 + $0xc0] sm:$0xf]
    %v2630 = vld [vmem:[%s0 + $0xc4] sm:$0xf]
    %v2631 = vld [vmem:[%s0 + $0xc8] sm:$0xf]
    %v2632 = vld [vmem:[%s0 + $0xcc] sm:$0xf]
    %v2633 = vld [vmem:[%s0 + $0xd0] sm:$0xf]
    %v2634 = vld [vmem:[%s0 + $0xd4] sm:$0xf]
    %v2635 = vld [vmem:[%s0 + $0xd8] sm:$0xf]
    %v2636 = vld [vmem:[%s0 + $0xdc] sm:$0xf]
    %v2637 = vld [vmem:[%s0 + $0xe0] sm:$0xf]
    %v2638 = vld [vmem:[%s0 + $0xe4] sm:$0xf]
    %v2639 = vld [vmem:[%s0 + $0xe8] sm:$0xf]
    %v2640 = vld [vmem:[%s0 + $0xec] sm:$0xf]
    %v2641 = vld [vmem:[%s0 + $0xf0] sm:$0xf]
    %v2642 = vld [vmem:[%s0 + $0xf4] sm:$0xf]
    %v2643 = vld [vmem:[%s0 + $0xf8] sm:$0xf]
    %v2644 = vld [vmem:[%s0 + $0xfc] sm:$0x1]
    %v2667 = vrot.slane %v2623, 5
    %v2668 = vrot.slane %v2667, 4
    %v2669 = vrot.slane %v2624, 5
    %v2670 = vsel %vm457, %v2668, %v2669
    %v2671 = vrot.slane %v2669, 4
    %v2672 = vrot.slane %v2625, 5
    %v2673 = vsel %vm457, %v2671, %v2672
    %v2674 = vrot.slane %v2672, 4
    %v2675 = vrot.slane %v2626, 5
    %v2676 = vsel %vm457, %v2674, %v2675
    %v2677 = vrot.slane %v2675, 4
    %v2678 = vrot.slane %v2627, 5
    %v2679 = vsel %vm457, %v2677, %v2678
    %v2680 = vrot.slane %v2678, 4
    %v2681 = vrot.slane %v2628, 5
    %v2682 = vsel %vm457, %v2680, %v2681
    %v2683 = vrot.slane %v2681, 4
    %v2684 = vrot.slane %v2629, 5
    %v2685 = vsel %vm457, %v2683, %v2684
    %v2686 = vrot.slane %v2684, 4
    %v2687 = vrot.slane %v2630, 5
    %v2688 = vsel %vm457, %v2686, %v2687
    %v2689 = vrot.slane %v2687, 4
    %v2690 = vrot.slane %v2631, 5
    %v2691 = vsel %vm457, %v2689, %v2690
    %v2692 = vrot.slane %v2690, 4
    %v2693 = vrot.slane %v2632, 5
    %v2694 = vsel %vm457, %v2692, %v2693
    %v2695 = vrot.slane %v2693, 4
    %v2696 = vrot.slane %v2633, 5
    %v2697 = vsel %vm457, %v2695, %v2696
    %v2698 = vrot.slane %v2696, 4
    %v2699 = vrot.slane %v2634, 5
    %v2700 = vsel %vm457, %v2698, %v2699
    %v2701 = vrot.slane %v2699, 4
    %v2702 = vrot.slane %v2635, 5
    %v2703 = vsel %vm457, %v2701, %v2702
    %v2704 = vrot.slane %v2702, 4
    %v2705 = vrot.slane %v2636, 5
    %v2706 = vsel %vm457, %v2704, %v2705
    %v2707 = vrot.slane %v2705, 4
    %v2708 = vrot.slane %v2637, 5
    %v2709 = vsel %vm457, %v2707, %v2708
    %v2710 = vrot.slane %v2708, 4
    %v2711 = vrot.slane %v2638, 5
    %v2712 = vsel %vm457, %v2710, %v2711
    %v2713 = vrot.slane %v2711, 4
    %v2714 = vrot.slane %v2639, 5
    %v2715 = vsel %vm457, %v2713, %v2714
    %v2716 = vrot.slane %v2714, 4
    %v2717 = vrot.slane %v2640, 5
    %v2718 = vsel %vm457, %v2716, %v2717
    %v2719 = vrot.slane %v2717, 4
    %v2720 = vrot.slane %v2641, 5
    %v2721 = vsel %vm457, %v2719, %v2720
    %v2722 = vrot.slane %v2720, 4
    %v2723 = vrot.slane %v2642, 5
    %v2724 = vsel %vm457, %v2722, %v2723
    %v2725 = vrot.slane %v2723, 4
    %v2726 = vrot.slane %v2643, 5
    %v2727 = vsel %vm457, %v2725, %v2726
    %v2728 = vrot.slane %v2726, 4
    %v2729 = vrot.slane %v2644, 5
    %v2730 = vsel %vm457, %v2728, %v2729
    %2731 = vrot.lane.b32.xlu0 %v2670, 2
    %v2732 = vpop.permute.xlu0 %2731
    %2733 = vrot.lane.b32.xlu0 %v2673, 2
    %v2734 = vpop.permute.xlu0 %2733
    %2735 = vrot.lane.b32.xlu0 %v2676, 2
    %v2736 = vpop.permute.xlu0 %2735
    %2737 = vrot.lane.b32.xlu0 %v2679, 2
    %v2738 = vpop.permute.xlu0 %2737
    %2739 = vrot.lane.b32.xlu0 %v2682, 2
    %v2740 = vpop.permute.xlu0 %2739
    %2741 = vrot.lane.b32.xlu0 %v2685, 2
    %v2742 = vpop.permute.xlu0 %2741
    %2743 = vrot.lane.b32.xlu0 %v2688, 2
    %v2744 = vpop.permute.xlu0 %2743
    %2745 = vrot.lane.b32.xlu0 %v2691, 2
    %v2746 = vpop.permute.xlu0 %2745
    %2747 = vrot.lane.b32.xlu0 %v2694, 2
    %v2748 = vpop.permute.xlu0 %2747
    %2749 = vrot.lane.b32.xlu0 %v2697, 2
    %v2750 = vpop.permute.xlu0 %2749
    %2751 = vrot.lane.b32.xlu0 %v2700, 2
    %v2752 = vpop.permute.xlu0 %2751
    %2753 = vrot.lane.b32.xlu0 %v2703, 2
    %v2754 = vpop.permute.xlu0 %2753
    %2755 = vrot.lane.b32.xlu0 %v2706, 2
    %v2756 = vpop.permute.xlu0 %2755
    %2757 = vrot.lane.b32.xlu0 %v2709, 2
    %v2758 = vpop.permute.xlu0 %2757
    %2759 = vrot.lane.b32.xlu0 %v2712, 2
    %v2760 = vpop.permute.xlu0 %2759
    %2761 = vrot.lane.b32.xlu0 %v2715, 2
    %v2762 = vpop.permute.xlu0 %2761
    %2763 = vrot.lane.b32.xlu0 %v2718, 2
    %v2764 = vpop.permute.xlu0 %2763
    %2765 = vrot.lane.b32.xlu0 %v2721, 2
    %v2766 = vpop.permute.xlu0 %2765
    %2767 = vrot.lane.b32.xlu0 %v2724, 2
    %v2768 = vpop.permute.xlu0 %2767
    %2769 = vrot.lane.b32.xlu0 %v2727, 2
    %v2770 = vpop.permute.xlu0 %2769
    %2771 = vrot.lane.b32.xlu0 %v2730, 2
    %v2772 = vpop.permute.xlu0 %2771
    %vm2794 = vcmask 19473
    %2795 = vst.msk [vmem:[#allocation2 + $0xa4] sm:$0xe] %vm2794, %v2732
    %2796 = vst.msk [vmem:[#allocation2 + $0xa8] sm:$0xf] %vm583, %v2734
    %2797 = vst.msk [vmem:[#allocation2 + $0xac] sm:$0xf] %vm583, %v2736
    %2798 = vst.msk [vmem:[#allocation2 + $0xb0] sm:$0xf] %vm583, %v2738
    %2799 = vst.msk [vmem:[#allocation2 + $0xb4] sm:$0xf] %vm583, %v2740
    %2800 = vst.msk [vmem:[#allocation2 + $0xb8] sm:$0xf] %vm583, %v2742
    %2801 = vst.msk [vmem:[#allocation2 + $0xbc] sm:$0xf] %vm583, %v2744
    %2802 = vst.msk [vmem:[#allocation2 + $0xc0] sm:$0xf] %vm583, %v2746
    %2803 = vst.msk [vmem:[#allocation2 + $0xc4] sm:$0xf] %vm583, %v2748
    %2804 = vst.msk [vmem:[#allocation2 + $0xc8] sm:$0xf] %vm583, %v2750
    %2805 = vst.msk [vmem:[#allocation2 + $0xcc] sm:$0xf] %vm583, %v2752
    %2806 = vst.msk [vmem:[#allocation2 + $0xd0] sm:$0xf] %vm583, %v2754
    %2807 = vst.msk [vmem:[#allocation2 + $0xd4] sm:$0xf] %vm583, %v2756
    %2808 = vst.msk [vmem:[#allocation2 + $0xd8] sm:$0xf] %vm583, %v2758
    %2809 = vst.msk [vmem:[#allocation2 + $0xdc] sm:$0xf] %vm583, %v2760
    %2810 = vst.msk [vmem:[#allocation2 + $0xe0] sm:$0xf] %vm583, %v2762
    %2811 = vst.msk [vmem:[#allocation2 + $0xe4] sm:$0xf] %vm583, %v2764
    %2812 = vst.msk [vmem:[#allocation2 + $0xe8] sm:$0xf] %vm583, %v2766
    %2813 = vst.msk [vmem:[#allocation2 + $0xec] sm:$0xf] %vm583, %v2768
    %2814 = vst.msk [vmem:[#allocation2 + $0xf0] sm:$0xf] %vm583, %v2770
    %vm2815 = vcmask 19472
    %vm2816 = vmand %vm2815, %vm112
    %v2817 = vld [vmem:[#allocation2 + $0xf4] sm:$0xf]
    %v2818 = vsel %vm2816, %v2772, %v2817
    %2819 = vst [vmem:[#allocation2 + $0xf4] sm:$0xf] %v2818
    %v2820 = vld [vmem:[%s0 + $0xa8] sm:$0xc]
    %v2821 = vld [vmem:[%s0 + $0xac] sm:$0xf]
    %v2822 = vld [vmem:[%s0 + $0xb0] sm:$0xf]
    %v2823 = vld [vmem:[%s0 + $0xb4] sm:$0xf]
    %v2824 = vld [vmem:[%s0 + $0xb8] sm:$0xf]
    %v2825 = vld [vmem:[%s0 + $0xbc] sm:$0xf]
    %v2826 = vld [vmem:[%s0 + $0xc0] sm:$0xf]
    %v2827 = vld [vmem:[%s0 + $0xc4] sm:$0xf]
    %v2828 = vld [vmem:[%s0 + $0xc8] sm:$0xf]
    %v2829 = vld [vmem:[%s0 + $0xcc] sm:$0xf]
    %v2830 = vld [vmem:[%s0 + $0xd0] sm:$0xf]
    %v2831 = vld [vmem:[%s0 + $0xd4] sm:$0xf]
    %v2832 = vld [vmem:[%s0 + $0xd8] sm:$0xf]
    %v2833 = vld [vmem:[%s0 + $0xdc] sm:$0xf]
    %v2834 = vld [vmem:[%s0 + $0xe0] sm:$0xf]
    %v2835 = vld [vmem:[%s0 + $0xe4] sm:$0xf]
    %v2836 = vld [vmem:[%s0 + $0xe8] sm:$0xf]
    %v2837 = vld [vmem:[%s0 + $0xec] sm:$0xf]
    %v2838 = vld [vmem:[%s0 + $0xf0] sm:$0xf]
    %v2839 = vld [vmem:[%s0 + $0xf4] sm:$0xf]
    %v2840 = vld [vmem:[%s0 + $0xf8] sm:$0xf]
    %v2841 = vld [vmem:[%s0 + $0xfc] sm:$0x1]
    %v2843 = vshrl.u32 %v2820, 16
    %v2845 = vrot.slane %v2843, 5
    %v2846 = vshll.u32 %v2820, 16
    %v2848 = vrot.slane %v2846, 6
    %v2849 = vor.u32 %v2845, %v2848
    %v2850 = vrot.slane %v2849, 4
    %v2852 = vshrl.u32 %v2821, 16
    %v2854 = vrot.slane %v2852, 5
    %v2855 = vshll.u32 %v2821, 16
    %v2857 = vrot.slane %v2855, 6
    %v2858 = vor.u32 %v2854, %v2857
    %v2859 = vsel %vm631, %v2850, %v2858
    %v2860 = vrot.slane %v2858, 4
    %v2862 = vshrl.u32 %v2822, 16
    %v2864 = vrot.slane %v2862, 5
    %v2865 = vshll.u32 %v2822, 16
    %v2867 = vrot.slane %v2865, 6
    %v2868 = vor.u32 %v2864, %v2867
    %v2869 = vsel %vm631, %v2860, %v2868
    %v2870 = vrot.slane %v2868, 4
    %v2872 = vshrl.u32 %v2823, 16
    %v2874 = vrot.slane %v2872, 5
    %v2875 = vshll.u32 %v2823, 16
    %v2877 = vrot.slane %v2875, 6
    %v2878 = vor.u32 %v2874, %v2877
    %v2879 = vsel %vm631, %v2870, %v2878
    %v2880 = vrot.slane %v2878, 4
    %v2882 = vshrl.u32 %v2824, 16
    %v2884 = vrot.slane %v2882, 5
    %v2885 = vshll.u32 %v2824, 16
    %v2887 = vrot.slane %v2885, 6
    %v2888 = vor.u32 %v2884, %v2887
    %v2889 = vsel %vm631, %v2880, %v2888
    %v2890 = vrot.slane %v2888, 4
    %v2892 = vshrl.u32 %v2825, 16
    %v2894 = vrot.slane %v2892, 5
    %v2895 = vshll.u32 %v2825, 16
    %v2897 = vrot.slane %v2895, 6
    %v2898 = vor.u32 %v2894, %v2897
    %v2899 = vsel %vm631, %v2890, %v2898
    %v2900 = vrot.slane %v2898, 4
    %v2902 = vshrl.u32 %v2826, 16
    %v2904 = vrot.slane %v2902, 5
    %v2905 = vshll.u32 %v2826, 16
    %v2907 = vrot.slane %v2905, 6
    %v2908 = vor.u32 %v2904, %v2907
    %v2909 = vsel %vm631, %v2900, %v2908
    %v2910 = vrot.slane %v2908, 4
    %v2912 = vshrl.u32 %v2827, 16
    %v2914 = vrot.slane %v2912, 5
    %v2915 = vshll.u32 %v2827, 16
    %v2917 = vrot.slane %v2915, 6
    %v2918 = vor.u32 %v2914, %v2917
    %v2919 = vsel %vm631, %v2910, %v2918
    %v2920 = vrot.slane %v2918, 4
    %v2922 = vshrl.u32 %v2828, 16
    %v2924 = vrot.slane %v2922, 5
    %v2925 = vshll.u32 %v2828, 16
    %v2927 = vrot.slane %v2925, 6
    %v2928 = vor.u32 %v2924, %v2927
    %v2929 = vsel %vm631, %v2920, %v2928
    %v2930 = vrot.slane %v2928, 4
    %v2932 = vshrl.u32 %v2829, 16
    %v2934 = vrot.slane %v2932, 5
    %v2935 = vshll.u32 %v2829, 16
    %v2937 = vrot.slane %v2935, 6
    %v2938 = vor.u32 %v2934, %v2937
    %v2939 = vsel %vm631, %v2930, %v2938
    %v2940 = vrot.slane %v2938, 4
    %v2942 = vshrl.u32 %v2830, 16
    %v2944 = vrot.slane %v2942, 5
    %v2945 = vshll.u32 %v2830, 16
    %v2947 = vrot.slane %v2945, 6
    %v2948 = vor.u32 %v2944, %v2947
    %v2949 = vsel %vm631, %v2940, %v2948
    %v2950 = vrot.slane %v2948, 4
    %v2952 = vshrl.u32 %v2831, 16
    %v2954 = vrot.slane %v2952, 5
    %v2955 = vshll.u32 %v2831, 16
    %v2957 = vrot.slane %v2955, 6
    %v2958 = vor.u32 %v2954, %v2957
    %v2959 = vsel %vm631, %v2950, %v2958
    %v2960 = vrot.slane %v2958, 4
    %v2962 = vshrl.u32 %v2832, 16
    %v2964 = vrot.slane %v2962, 5
    %v2965 = vshll.u32 %v2832, 16
    %v2967 = vrot.slane %v2965, 6
    %v2968 = vor.u32 %v2964, %v2967
    %v2969 = vsel %vm631, %v2960, %v2968
    %v2970 = vrot.slane %v2968, 4
    %v2972 = vshrl.u32 %v2833, 16
    %v2974 = vrot.slane %v2972, 5
    %v2975 = vshll.u32 %v2833, 16
    %v2977 = vrot.slane %v2975, 6
    %v2978 = vor.u32 %v2974, %v2977
    %v2979 = vsel %vm631, %v2970, %v2978
    %v2980 = vrot.slane %v2978, 4
    %v2982 = vshrl.u32 %v2834, 16
    %v2984 = vrot.slane %v2982, 5
    %v2985 = vshll.u32 %v2834, 16
    %v2987 = vrot.slane %v2985, 6
    %v2988 = vor.u32 %v2984, %v2987
    %v2989 = vsel %vm631, %v2980, %v2988
    %v2990 = vrot.slane %v2988, 4
    %v2992 = vshrl.u32 %v2835, 16
    %v2994 = vrot.slane %v2992, 5
    %v2995 = vshll.u32 %v2835, 16
    %v2997 = vrot.slane %v2995, 6
    %v2998 = vor.u32 %v2994, %v2997
    %v2999 = vsel %vm631, %v2990, %v2998
    %v3000 = vrot.slane %v2998, 4
    %v3002 = vshrl.u32 %v2836, 16
    %v3004 = vrot.slane %v3002, 5
    %v3005 = vshll.u32 %v2836, 16
    %v3007 = vrot.slane %v3005, 6
    %v3008 = vor.u32 %v3004, %v3007
    %v3009 = vsel %vm631, %v3000, %v3008
    %v3010 = vrot.slane %v3008, 4
    %v3012 = vshrl.u32 %v2837, 16
    %v3014 = vrot.slane %v3012, 5
    %v3015 = vshll.u32 %v2837, 16
    %v3017 = vrot.slane %v3015, 6
    %v3018 = vor.u32 %v3014, %v3017
    %v3019 = vsel %vm631, %v3010, %v3018
    %v3020 = vrot.slane %v3018, 4
    %v3022 = vshrl.u32 %v2838, 16
    %v3024 = vrot.slane %v3022, 5
    %v3025 = vshll.u32 %v2838, 16
    %v3027 = vrot.slane %v3025, 6
    %v3028 = vor.u32 %v3024, %v3027
    %v3029 = vsel %vm631, %v3020, %v3028
    %v3030 = vrot.slane %v3028, 4
    %v3032 = vshrl.u32 %v2839, 16
    %v3034 = vrot.slane %v3032, 5
    %v3035 = vshll.u32 %v2839, 16
    %v3037 = vrot.slane %v3035, 6
    %v3038 = vor.u32 %v3034, %v3037
    %v3039 = vsel %vm631, %v3030, %v3038
    %v3040 = vrot.slane %v3038, 4
    %v3042 = vshrl.u32 %v2840, 16
    %v3044 = vrot.slane %v3042, 5
    %v3045 = vshll.u32 %v2840, 16
    %v3047 = vrot.slane %v3045, 6
    %v3048 = vor.u32 %v3044, %v3047
    %v3049 = vsel %vm631, %v3040, %v3048
    %v3050 = vrot.slane %v3048, 4
    %v3052 = vshrl.u32 %v2841, 16
    %v3054 = vrot.slane %v3052, 5
    %v3055 = vshll.u32 %v2841, 16
    %v3057 = vrot.slane %v3055, 6
    %v3058 = vor.u32 %v3054, %v3057
    %v3059 = vsel %vm631, %v3050, %v3058
    %3060 = vrot.lane.b32.xlu0 %v2859, 3
    %v3061 = vpop.permute.xlu0 %3060
    %3062 = vrot.lane.b32.xlu0 %v2869, 3
    %v3063 = vpop.permute.xlu0 %3062
    %3064 = vrot.lane.b32.xlu0 %v2879, 3
    %v3065 = vpop.permute.xlu0 %3064
    %3066 = vrot.lane.b32.xlu0 %v2889, 3
    %v3067 = vpop.permute.xlu0 %3066
    %3068 = vrot.lane.b32.xlu0 %v2899, 3
    %v3069 = vpop.permute.xlu0 %3068
    %3070 = vrot.lane.b32.xlu0 %v2909, 3
    %v3071 = vpop.permute.xlu0 %3070
    %3072 = vrot.lane.b32.xlu0 %v2919, 3
    %v3073 = vpop.permute.xlu0 %3072
    %3074 = vrot.lane.b32.xlu0 %v2929, 3
    %v3075 = vpop.permute.xlu0 %3074
    %3076 = vrot.lane.b32.xlu0 %v2939, 3
    %v3077 = vpop.permute.xlu0 %3076
    %3078 = vrot.lane.b32.xlu0 %v2949, 3
    %v3079 = vpop.permute.xlu0 %3078
    %3080 = vrot.lane.b32.xlu0 %v2959, 3
    %v3081 = vpop.permute.xlu0 %3080
    %3082 = vrot.lane.b32.xlu0 %v2969, 3
    %v3083 = vpop.permute.xlu0 %3082
    %3084 = vrot.lane.b32.xlu0 %v2979, 3
    %v3085 = vpop.permute.xlu0 %3084
    %3086 = vrot.lane.b32.xlu0 %v2989, 3
    %v3087 = vpop.permute.xlu0 %3086
    %3088 = vrot.lane.b32.xlu0 %v2999, 3
    %v3089 = vpop.permute.xlu0 %3088
    %3090 = vrot.lane.b32.xlu0 %v3009, 3
    %v3091 = vpop.permute.xlu0 %3090
    %3092 = vrot.lane.b32.xlu0 %v3019, 3
    %v3093 = vpop.permute.xlu0 %3092
    %3094 = vrot.lane.b32.xlu0 %v3029, 3
    %v3095 = vpop.permute.xlu0 %3094
    %3096 = vrot.lane.b32.xlu0 %v3039, 3
    %v3097 = vpop.permute.xlu0 %3096
    %3098 = vrot.lane.b32.xlu0 %v3049, 3
    %v3099 = vpop.permute.xlu0 %3098
    %3100 = vrot.lane.b32.xlu0 %v3059, 3
    %v3101 = vpop.permute.xlu0 %3100
    %vm3123 = vcmask 27673
    %3124 = vst.msk [vmem:[#allocation2 + $0xa4] sm:$0xe] %vm3123, %v3061
    %3125 = vst.msk [vmem:[#allocation2 + $0xa8] sm:$0xf] %vm904, %v3063
    %3126 = vst.msk [vmem:[#allocation2 + $0xac] sm:$0xf] %vm904, %v3065
    %3127 = vst.msk [vmem:[#allocation2 + $0xb0] sm:$0xf] %vm904, %v3067
    %3128 = vst.msk [vmem:[#allocation2 + $0xb4] sm:$0xf] %vm904, %v3069
    %3129 = vst.msk [vmem:[#allocation2 + $0xb8] sm:$0xf] %vm904, %v3071
    %3130 = vst.msk [vmem:[#allocation2 + $0xbc] sm:$0xf] %vm904, %v3073
    %3131 = vst.msk [vmem:[#allocation2 + $0xc0] sm:$0xf] %vm904, %v3075
    %3132 = vst.msk [vmem:[#allocation2 + $0xc4] sm:$0xf] %vm904, %v3077
    %3133 = vst.msk [vmem:[#allocation2 + $0xc8] sm:$0xf] %vm904, %v3079
    %3134 = vst.msk [vmem:[#allocation2 + $0xcc] sm:$0xf] %vm904, %v3081
    %3135 = vst.msk [vmem:[#allocation2 + $0xd0] sm:$0xf] %vm904, %v3083
    %3136 = vst.msk [vmem:[#allocation2 + $0xd4] sm:$0xf] %vm904, %v3085
    %3137 = vst.msk [vmem:[#allocation2 + $0xd8] sm:$0xf] %vm904, %v3087
    %3138 = vst.msk [vmem:[#allocation2 + $0xdc] sm:$0xf] %vm904, %v3089
    %3139 = vst.msk [vmem:[#allocation2 + $0xe0] sm:$0xf] %vm904, %v3091
    %3140 = vst.msk [vmem:[#allocation2 + $0xe4] sm:$0xf] %vm904, %v3093
    %3141 = vst.msk [vmem:[#allocation2 + $0xe8] sm:$0xf] %vm904, %v3095
    %3142 = vst.msk [vmem:[#allocation2 + $0xec] sm:$0xf] %vm904, %v3097
    %3143 = vst.msk [vmem:[#allocation2 + $0xf0] sm:$0xf] %vm904, %v3099
    %vm3144 = vcmask 27672
    %vm3145 = vmand %vm3144, %vm112
    %v3146 = vld [vmem:[#allocation2 + $0xf4] sm:$0xf]
    %v3147 = vsel %vm3145, %v3101, %v3146
    %3148 = vst [vmem:[#allocation2 + $0xf4] sm:$0xf] %v3147
    %v3149 = vld [vmem:[%s0 + $0xa8] sm:$0x8]
    %v3150 = vld [vmem:[%s0 + $0xac] sm:$0xf]
    %v3151 = vld [vmem:[%s0 + $0xb0] sm:$0xf]
    %v3152 = vld [vmem:[%s0 + $0xb4] sm:$0xf]
    %v3153 = vld [vmem:[%s0 + $0xb8] sm:$0xf]
    %v3154 = vld [vmem:[%s0 + $0xbc] sm:$0xf]
    %v3155 = vld [vmem:[%s0 + $0xc0] sm:$0xf]
    %v3156 = vld [vmem:[%s0 + $0xc4] sm:$0xf]
    %v3157 = vld [vmem:[%s0 + $0xc8] sm:$0xf]
    %v3158 = vld [vmem:[%s0 + $0xcc] sm:$0xf]
    %v3159 = vld [vmem:[%s0 + $0xd0] sm:$0xf]
    %v3160 = vld [vmem:[%s0 + $0xd4] sm:$0xf]
    %v3161 = vld [vmem:[%s0 + $0xd8] sm:$0xf]
    %v3162 = vld [vmem:[%s0 + $0xdc] sm:$0xf]
    %v3163 = vld [vmem:[%s0 + $0xe0] sm:$0xf]
    %v3164 = vld [vmem:[%s0 + $0xe4] sm:$0xf]
    %v3165 = vld [vmem:[%s0 + $0xe8] sm:$0xf]
    %v3166 = vld [vmem:[%s0 + $0xec] sm:$0xf]
    %v3167 = vld [vmem:[%s0 + $0xf0] sm:$0xf]
    %v3168 = vld [vmem:[%s0 + $0xf4] sm:$0xf]
    %v3169 = vld [vmem:[%s0 + $0xf8] sm:$0xf]
    %v3170 = vld [vmem:[%s0 + $0xfc] sm:$0x3]
    %v3193 = vrot.slane %v3149, 6
    %v3194 = vrot.slane %v3193, 4
    %v3195 = vrot.slane %v3150, 6
    %v3196 = vsel %vm976, %v3194, %v3195
    %v3197 = vrot.slane %v3195, 4
    %v3198 = vrot.slane %v3151, 6
    %v3199 = vsel %vm976, %v3197, %v3198
    %v3200 = vrot.slane %v3198, 4
    %v3201 = vrot.slane %v3152, 6
    %v3202 = vsel %vm976, %v3200, %v3201
    %v3203 = vrot.slane %v3201, 4
    %v3204 = vrot.slane %v3153, 6
    %v3205 = vsel %vm976, %v3203, %v3204
    %v3206 = vrot.slane %v3204, 4
    %v3207 = vrot.slane %v3154, 6
    %v3208 = vsel %vm976, %v3206, %v3207
    %v3209 = vrot.slane %v3207, 4
    %v3210 = vrot.slane %v3155, 6
    %v3211 = vsel %vm976, %v3209, %v3210
    %v3212 = vrot.slane %v3210, 4
    %v3213 = vrot.slane %v3156, 6
    %v3214 = vsel %vm976, %v3212, %v3213
    %v3215 = vrot.slane %v3213, 4
    %v3216 = vrot.slane %v3157, 6
    %v3217 = vsel %vm976, %v3215, %v3216
    %v3218 = vrot.slane %v3216, 4
    %v3219 = vrot.slane %v3158, 6
    %v3220 = vsel %vm976, %v3218, %v3219
    %v3221 = vrot.slane %v3219, 4
    %v3222 = vrot.slane %v3159, 6
    %v3223 = vsel %vm976, %v3221, %v3222
    %v3224 = vrot.slane %v3222, 4
    %v3225 = vrot.slane %v3160, 6
    %v3226 = vsel %vm976, %v3224, %v3225
    %v3227 = vrot.slane %v3225, 4
    %v3228 = vrot.slane %v3161, 6
    %v3229 = vsel %vm976, %v3227, %v3228
    %v3230 = vrot.slane %v3228, 4
    %v3231 = vrot.slane %v3162, 6
    %v3232 = vsel %vm976, %v3230, %v3231
    %v3233 = vrot.slane %v3231, 4
    %v3234 = vrot.slane %v3163, 6
    %v3235 = vsel %vm976, %v3233, %v3234
    %v3236 = vrot.slane %v3234, 4
    %v3237 = vrot.slane %v3164, 6
    %v3238 = vsel %vm976, %v3236, %v3237
    %v3239 = vrot.slane %v3237, 4
    %v3240 = vrot.slane %v3165, 6
    %v3241 = vsel %vm976, %v3239, %v3240
    %v3242 = vrot.slane %v3240, 4
    %v3243 = vrot.slane %v3166, 6
    %v3244 = vsel %vm976, %v3242, %v3243
    %v3245 = vrot.slane %v3243, 4
    %v3246 = vrot.slane %v3167, 6
    %v3247 = vsel %vm976, %v3245, %v3246
    %v3248 = vrot.slane %v3246, 4
    %v3249 = vrot.slane %v3168, 6
    %v3250 = vsel %vm976, %v3248, %v3249
    %v3251 = vrot.slane %v3249, 4
    %v3252 = vrot.slane %v3169, 6
    %v3253 = vsel %vm976, %v3251, %v3252
    %v3254 = vrot.slane %v3252, 4
    %v3255 = vrot.slane %v3170, 6
    %v3256 = vsel %vm976, %v3254, %v3255
    %3257 = vrot.lane.b32.xlu0 %v3196, 4
    %v3258 = vpop.permute.xlu0 %3257
    %3259 = vrot.lane.b32.xlu0 %v3199, 4
    %v3260 = vpop.permute.xlu0 %3259
    %3261 = vrot.lane.b32.xlu0 %v3202, 4
    %v3262 = vpop.permute.xlu0 %3261
    %3263 = vrot.lane.b32.xlu0 %v3205, 4
    %v3264 = vpop.permute.xlu0 %3263
    %3265 = vrot.lane.b32.xlu0 %v3208, 4
    %v3266 = vpop.permute.xlu0 %3265
    %3267 = vrot.lane.b32.xlu0 %v3211, 4
    %v3268 = vpop.permute.xlu0 %3267
    %3269 = vrot.lane.b32.xlu0 %v3214, 4
    %v3270 = vpop.permute.xlu0 %3269
    %3271 = vrot.lane.b32.xlu0 %v3217, 4
    %v3272 = vpop.permute.xlu0 %3271
    %3273 = vrot.lane.b32.xlu0 %v3220, 4
    %v3274 = vpop.permute.xlu0 %3273
    %3275 = vrot.lane.b32.xlu0 %v3223, 4
    %v3276 = vpop.permute.xlu0 %3275
    %3277 = vrot.lane.b32.xlu0 %v3226, 4
    %v3278 = vpop.permute.xlu0 %3277
    %3279 = vrot.lane.b32.xlu0 %v3229, 4
    %v3280 = vpop.permute.xlu0 %3279
    %3281 = vrot.lane.b32.xlu0 %v3232, 4
    %v3282 = vpop.permute.xlu0 %3281
    %3283 = vrot.lane.b32.xlu0 %v3235, 4
    %v3284 = vpop.permute.xlu0 %3283
    %3285 = vrot.lane.b32.xlu0 %v3238, 4
    %v3286 = vpop.permute.xlu0 %3285
    %3287 = vrot.lane.b32.xlu0 %v3241, 4
    %v3288 = vpop.permute.xlu0 %3287
    %3289 = vrot.lane.b32.xlu0 %v3244, 4
    %v3290 = vpop.permute.xlu0 %3289
    %3291 = vrot.lane.b32.xlu0 %v3247, 4
    %v3292 = vpop.permute.xlu0 %3291
    %3293 = vrot.lane.b32.xlu0 %v3250, 4
    %v3294 = vpop.permute.xlu0 %3293
    %3295 = vrot.lane.b32.xlu0 %v3253, 4
    %v3296 = vpop.permute.xlu0 %3295
    %3297 = vrot.lane.b32.xlu0 %v3256, 4
    %v3298 = vpop.permute.xlu0 %3297
    %vm3320 = vcmask 35873
    %3321 = vst.msk [vmem:[#allocation2 + $0xa4] sm:$0xe] %vm3320, %v3258
    %3322 = vst.msk [vmem:[#allocation2 + $0xa8] sm:$0xf] %vm1104, %v3260
    %3323 = vst.msk [vmem:[#allocation2 + $0xac] sm:$0xf] %vm1104, %v3262
    %3324 = vst.msk [vmem:[#allocation2 + $0xb0] sm:$0xf] %vm1104, %v3264
    %3325 = vst.msk [vmem:[#allocation2 + $0xb4] sm:$0xf] %vm1104, %v3266
    %3326 = vst.msk [vmem:[#allocation2 + $0xb8] sm:$0xf] %vm1104, %v3268
    %3327 = vst.msk [vmem:[#allocation2 + $0xbc] sm:$0xf] %vm1104, %v3270
    %3328 = vst.msk [vmem:[#allocation2 + $0xc0] sm:$0xf] %vm1104, %v3272
    %3329 = vst.msk [vmem:[#allocation2 + $0xc4] sm:$0xf] %vm1104, %v3274
    %3330 = vst.msk [vmem:[#allocation2 + $0xc8] sm:$0xf] %vm1104, %v3276
    %3331 = vst.msk [vmem:[#allocation2 + $0xcc] sm:$0xf] %vm1104, %v3278
    %3332 = vst.msk [vmem:[#allocation2 + $0xd0] sm:$0xf] %vm1104, %v3280
    %3333 = vst.msk [vmem:[#allocation2 + $0xd4] sm:$0xf] %vm1104, %v3282
    %3334 = vst.msk [vmem:[#allocation2 + $0xd8] sm:$0xf] %vm1104, %v3284
    %3335 = vst.msk [vmem:[#allocation2 + $0xdc] sm:$0xf] %vm1104, %v3286
    %3336 = vst.msk [vmem:[#allocation2 + $0xe0] sm:$0xf] %vm1104, %v3288
    %3337 = vst.msk [vmem:[#allocation2 + $0xe4] sm:$0xf] %vm1104, %v3290
    %3338 = vst.msk [vmem:[#allocation2 + $0xe8] sm:$0xf] %vm1104, %v3292
    %3339 = vst.msk [vmem:[#allocation2 + $0xec] sm:$0xf] %vm1104, %v3294
    %3340 = vst.msk [vmem:[#allocation2 + $0xf0] sm:$0xf] %vm1104, %v3296
    %vm3341 = vcmask 35872
    %vm3342 = vmand %vm3341, %vm112
    %v3343 = vld [vmem:[#allocation2 + $0xf4] sm:$0xf]
    %v3344 = vsel %vm3342, %v3298, %v3343
    %3345 = vst [vmem:[#allocation2 + $0xf4] sm:$0xf] %v3344
    %v3346 = vld [vmem:[%s0 + $0xfc] sm:$0xe]
    %v3347 = vld [vmem:[%s0 + $0x100] sm:$0xf]
    %v3348 = vld [vmem:[%s0 + $0x104] sm:$0xf]
    %v3349 = vld [vmem:[%s0 + $0x108] sm:$0xf]
    %v3350 = vld [vmem:[%s0 + $0x10c] sm:$0xf]
    %v3351 = vld [vmem:[%s0 + $0x110] sm:$0xf]
    %v3352 = vld [vmem:[%s0 + $0x114] sm:$0xf]
    %v3353 = vld [vmem:[%s0 + $0x118] sm:$0xf]
    %v3354 = vld [vmem:[%s0 + $0x11c] sm:$0xf]
    %v3355 = vld [vmem:[%s0 + $0x120] sm:$0xf]
    %v3356 = vld [vmem:[%s0 + $0x124] sm:$0xf]
    %v3357 = vld [vmem:[%s0 + $0x128] sm:$0xf]
    %v3358 = vld [vmem:[%s0 + $0x12c] sm:$0xf]
    %v3359 = vld [vmem:[%s0 + $0x130] sm:$0xf]
    %v3360 = vld [vmem:[%s0 + $0x134] sm:$0xf]
    %v3361 = vld [vmem:[%s0 + $0x138] sm:$0xf]
    %v3362 = vld [vmem:[%s0 + $0x13c] sm:$0xf]
    %v3363 = vld [vmem:[%s0 + $0x140] sm:$0xf]
    %v3364 = vld [vmem:[%s0 + $0x144] sm:$0xf]
    %v3365 = vld [vmem:[%s0 + $0x148] sm:$0xf]
    %v3366 = vld [vmem:[%s0 + $0x14c] sm:$0xf]
    %v3388 = vrot.slane %v3346, 6
    %v3389 = vrot.slane %v3388, 4
    %v3390 = vrot.slane %v3347, 6
    %v3391 = vsel %vm976, %v3389, %v3390
    %v3392 = vrot.slane %v3390, 4
    %v3393 = vrot.slane %v3348, 6
    %v3394 = vsel %vm976, %v3392, %v3393
    %v3395 = vrot.slane %v3393, 4
    %v3396 = vrot.slane %v3349, 6
    %v3397 = vsel %vm976, %v3395, %v3396
    %v3398 = vrot.slane %v3396, 4
    %v3399 = vrot.slane %v3350, 6
    %v3400 = vsel %vm976, %v3398, %v3399
    %v3401 = vrot.slane %v3399, 4
    %v3402 = vrot.slane %v3351, 6
    %v3403 = vsel %vm976, %v3401, %v3402
    %v3404 = vrot.slane %v3402, 4
    %v3405 = vrot.slane %v3352, 6
    %v3406 = vsel %vm976, %v3404, %v3405
    %v3407 = vrot.slane %v3405, 4
    %v3408 = vrot.slane %v3353, 6
    %v3409 = vsel %vm976, %v3407, %v3408
    %v3410 = vrot.slane %v3408, 4
    %v3411 = vrot.slane %v3354, 6
    %v3412 = vsel %vm976, %v3410, %v3411
    %v3413 = vrot.slane %v3411, 4
    %v3414 = vrot.slane %v3355, 6
    %v3415 = vsel %vm976, %v3413, %v3414
    %v3416 = vrot.slane %v3414, 4
    %v3417 = vrot.slane %v3356, 6
    %v3418 = vsel %vm976, %v3416, %v3417
    %v3419 = vrot.slane %v3417, 4
    %v3420 = vrot.slane %v3357, 6
    %v3421 = vsel %vm976, %v3419, %v3420
    %v3422 = vrot.slane %v3420, 4
    %v3423 = vrot.slane %v3358, 6
    %v3424 = vsel %vm976, %v3422, %v3423
    %v3425 = vrot.slane %v3423, 4
    %v3426 = vrot.slane %v3359, 6
    %v3427 = vsel %vm976, %v3425, %v3426
    %v3428 = vrot.slane %v3426, 4
    %v3429 = vrot.slane %v3360, 6
    %v3430 = vsel %vm976, %v3428, %v3429
    %v3431 = vrot.slane %v3429, 4
    %v3432 = vrot.slane %v3361, 6
    %v3433 = vsel %vm976, %v3431, %v3432
    %v3434 = vrot.slane %v3432, 4
    %v3435 = vrot.slane %v3362, 6
    %v3436 = vsel %vm976, %v3434, %v3435
    %v3437 = vrot.slane %v3435, 4
    %v3438 = vrot.slane %v3363, 6
    %v3439 = vsel %vm976, %v3437, %v3438
    %v3440 = vrot.slane %v3438, 4
    %v3441 = vrot.slane %v3364, 6
    %v3442 = vsel %vm976, %v3440, %v3441
    %v3443 = vrot.slane %v3441, 4
    %v3444 = vrot.slane %v3365, 6
    %v3445 = vsel %vm976, %v3443, %v3444
    %v3446 = vrot.slane %v3444, 4
    %v3447 = vrot.slane %v3366, 6
    %v3448 = vsel %vm976, %v3446, %v3447
    %v3449 = vrot.slane %v3447, 4
    %vm3472 = vcmask 3075
    %vm3473 = vsmask.f32 7950
    %vm3474 = vmand %vm3472, %vm3473
    %v3475 = vld [vmem:[#allocation2 + $0xf4] sm:$0x8]
    %v3476 = vsel %vm3474, %v3388, %v3475
    %3477 = vst [vmem:[#allocation2 + $0xf4] sm:$0x8] %v3476
    %3478 = vst.msk [vmem:[#allocation2 + $0xf8] sm:$0xf] %vm64, %v3391
    %3479 = vst.msk [vmem:[#allocation2 + $0xfc] sm:$0xf] %vm64, %v3394
    %3480 = vst.msk [vmem:[#allocation2 + $0x100] sm:$0xf] %vm64, %v3397
    %3481 = vst.msk [vmem:[#allocation2 + $0x104] sm:$0xf] %vm64, %v3400
    %3482 = vst.msk [vmem:[#allocation2 + $0x108] sm:$0xf] %vm64, %v3403
    %3483 = vst.msk [vmem:[#allocation2 + $0x10c] sm:$0xf] %vm64, %v3406
    %3484 = vst.msk [vmem:[#allocation2 + $0x110] sm:$0xf] %vm64, %v3409
    %3485 = vst.msk [vmem:[#allocation2 + $0x114] sm:$0xf] %vm64, %v3412
    %3486 = vst.msk [vmem:[#allocation2 + $0x118] sm:$0xf] %vm64, %v3415
    %3487 = vst.msk [vmem:[#allocation2 + $0x11c] sm:$0xf] %vm64, %v3418
    %3488 = vst.msk [vmem:[#allocation2 + $0x120] sm:$0xf] %vm64, %v3421
    %3489 = vst.msk [vmem:[#allocation2 + $0x124] sm:$0xf] %vm64, %v3424
    %3490 = vst.msk [vmem:[#allocation2 + $0x128] sm:$0xf] %vm64, %v3427
    %3491 = vst.msk [vmem:[#allocation2 + $0x12c] sm:$0xf] %vm64, %v3430
    %3492 = vst.msk [vmem:[#allocation2 + $0x130] sm:$0xf] %vm64, %v3433
    %3493 = vst.msk [vmem:[#allocation2 + $0x134] sm:$0xf] %vm64, %v3436
    %3494 = vst.msk [vmem:[#allocation2 + $0x138] sm:$0xf] %vm64, %v3439
    %3495 = vst.msk [vmem:[#allocation2 + $0x13c] sm:$0xf] %vm64, %v3442
    %3496 = vst.msk [vmem:[#allocation2 + $0x140] sm:$0xf] %vm64, %v3445
    %3497 = vst.msk [vmem:[#allocation2 + $0x144] sm:$0xf] %vm64, %v3448
    %vm3498 = vcmask 1024
    %3499 = vst.msk [vmem:[#allocation2 + $0x148] sm:$0x3] %vm3498, %v3449
    %v3500 = vld [vmem:[%s0 + $0xfc] sm:$0xc]
    %v3501 = vld [vmem:[%s0 + $0x100] sm:$0xf]
    %v3502 = vld [vmem:[%s0 + $0x104] sm:$0xf]
    %v3503 = vld [vmem:[%s0 + $0x108] sm:$0xf]
    %v3504 = vld [vmem:[%s0 + $0x10c] sm:$0xf]
    %v3505 = vld [vmem:[%s0 + $0x110] sm:$0xf]
    %v3506 = vld [vmem:[%s0 + $0x114] sm:$0xf]
    %v3507 = vld [vmem:[%s0 + $0x118] sm:$0xf]
    %v3508 = vld [vmem:[%s0 + $0x11c] sm:$0xf]
    %v3509 = vld [vmem:[%s0 + $0x120] sm:$0xf]
    %v3510 = vld [vmem:[%s0 + $0x124] sm:$0xf]
    %v3511 = vld [vmem:[%s0 + $0x128] sm:$0xf]
    %v3512 = vld [vmem:[%s0 + $0x12c] sm:$0xf]
    %v3513 = vld [vmem:[%s0 + $0x130] sm:$0xf]
    %v3514 = vld [vmem:[%s0 + $0x134] sm:$0xf]
    %v3515 = vld [vmem:[%s0 + $0x138] sm:$0xf]
    %v3516 = vld [vmem:[%s0 + $0x13c] sm:$0xf]
    %v3517 = vld [vmem:[%s0 + $0x140] sm:$0xf]
    %v3518 = vld [vmem:[%s0 + $0x144] sm:$0xf]
    %v3519 = vld [vmem:[%s0 + $0x148] sm:$0xf]
    %v3520 = vld [vmem:[%s0 + $0x14c] sm:$0xf]
    %v3521 = vld [vmem:[%s0 + $0x150] sm:$0x1]
    %v3523 = vshll.u32 %v3500, 16
    %v3525 = vrot.slane %v3523, 7
    %v3526 = vshrl.u32 %v3500, 16
    %v3528 = vrot.slane %v3526, 6
    %v3529 = vor.u32 %v3528, %v3525
    %v3530 = vrot.slane %v3529, 4
    %v3532 = vshrl.u32 %v3501, 16
    %v3534 = vrot.slane %v3532, 6
    %v3535 = vshll.u32 %v3501, 16
    %v3537 = vrot.slane %v3535, 7
    %v3538 = vor.u32 %v3534, %v3537
    %v3539 = vsel %vm1307, %v3530, %v3538
    %v3540 = vrot.slane %v3538, 4
    %v3542 = vshrl.u32 %v3502, 16
    %v3544 = vrot.slane %v3542, 6
    %v3545 = vshll.u32 %v3502, 16
    %v3547 = vrot.slane %v3545, 7
    %v3548 = vor.u32 %v3544, %v3547
    %v3549 = vsel %vm1307, %v3540, %v3548
    %v3550 = vrot.slane %v3548, 4
    %v3552 = vshrl.u32 %v3503, 16
    %v3554 = vrot.slane %v3552, 6
    %v3555 = vshll.u32 %v3503, 16
    %v3557 = vrot.slane %v3555, 7
    %v3558 = vor.u32 %v3554, %v3557
    %v3559 = vsel %vm1307, %v3550, %v3558
    %v3560 = vrot.slane %v3558, 4
    %v3562 = vshrl.u32 %v3504, 16
    %v3564 = vrot.slane %v3562, 6
    %v3565 = vshll.u32 %v3504, 16
    %v3567 = vrot.slane %v3565, 7
    %v3568 = vor.u32 %v3564, %v3567
    %v3569 = vsel %vm1307, %v3560, %v3568
    %v3570 = vrot.slane %v3568, 4
    %v3572 = vshrl.u32 %v3505, 16
    %v3574 = vrot.slane %v3572, 6
    %v3575 = vshll.u32 %v3505, 16
    %v3577 = vrot.slane %v3575, 7
    %v3578 = vor.u32 %v3574, %v3577
    %v3579 = vsel %vm1307, %v3570, %v3578
    %v3580 = vrot.slane %v3578, 4
    %v3582 = vshrl.u32 %v3506, 16
    %v3584 = vrot.slane %v3582, 6
    %v3585 = vshll.u32 %v3506, 16
    %v3587 = vrot.slane %v3585, 7
    %v3588 = vor.u32 %v3584, %v3587
    %v3589 = vsel %vm1307, %v3580, %v3588
    %v3590 = vrot.slane %v3588, 4
    %v3592 = vshrl.u32 %v3507, 16
    %v3594 = vrot.slane %v3592, 6
    %v3595 = vshll.u32 %v3507, 16
    %v3597 = vrot.slane %v3595, 7
    %v3598 = vor.u32 %v3594, %v3597
    %v3599 = vsel %vm1307, %v3590, %v3598
    %v3600 = vrot.slane %v3598, 4
    %v3602 = vshrl.u32 %v3508, 16
    %v3604 = vrot.slane %v3602, 6
    %v3605 = vshll.u32 %v3508, 16
    %v3607 = vrot.slane %v3605, 7
    %v3608 = vor.u32 %v3604, %v3607
    %v3609 = vsel %vm1307, %v3600, %v3608
    %v3610 = vrot.slane %v3608, 4
    %v3612 = vshrl.u32 %v3509, 16
    %v3614 = vrot.slane %v3612, 6
    %v3615 = vshll.u32 %v3509, 16
    %v3617 = vrot.slane %v3615, 7
    %v3618 = vor.u32 %v3614, %v3617
    %v3619 = vsel %vm1307, %v3610, %v3618
    %v3620 = vrot.slane %v3618, 4
    %v3622 = vshrl.u32 %v3510, 16
    %v3624 = vrot.slane %v3622, 6
    %v3625 = vshll.u32 %v3510, 16
    %v3627 = vrot.slane %v3625, 7
    %v3628 = vor.u32 %v3624, %v3627
    %v3629 = vsel %vm1307, %v3620, %v3628
    %v3630 = vrot.slane %v3628, 4
    %v3632 = vshrl.u32 %v3511, 16
    %v3634 = vrot.slane %v3632, 6
    %v3635 = vshll.u32 %v3511, 16
    %v3637 = vrot.slane %v3635, 7
    %v3638 = vor.u32 %v3634, %v3637
    %v3639 = vsel %vm1307, %v3630, %v3638
    %v3640 = vrot.slane %v3638, 4
    %v3642 = vshrl.u32 %v3512, 16
    %v3644 = vrot.slane %v3642, 6
    %v3645 = vshll.u32 %v3512, 16
    %v3647 = vrot.slane %v3645, 7
    %v3648 = vor.u32 %v3644, %v3647
    %v3649 = vsel %vm1307, %v3640, %v3648
    %v3650 = vrot.slane %v3648, 4
    %v3652 = vshrl.u32 %v3513, 16
    %v3654 = vrot.slane %v3652, 6
    %v3655 = vshll.u32 %v3513, 16
    %v3657 = vrot.slane %v3655, 7
    %v3658 = vor.u32 %v3654, %v3657
    %v3659 = vsel %vm1307, %v3650, %v3658
    %v3660 = vrot.slane %v3658, 4
    %v3662 = vshrl.u32 %v3514, 16
    %v3664 = vrot.slane %v3662, 6
    %v3665 = vshll.u32 %v3514, 16
    %v3667 = vrot.slane %v3665, 7
    %v3668 = vor.u32 %v3664, %v3667
    %v3669 = vsel %vm1307, %v3660, %v3668
    %v3670 = vrot.slane %v3668, 4
    %v3672 = vshrl.u32 %v3515, 16
    %v3674 = vrot.slane %v3672, 6
    %v3675 = vshll.u32 %v3515, 16
    %v3677 = vrot.slane %v3675, 7
    %v3678 = vor.u32 %v3674, %v3677
    %v3679 = vsel %vm1307, %v3670, %v3678
    %v3680 = vrot.slane %v3678, 4
    %v3682 = vshrl.u32 %v3516, 16
    %v3684 = vrot.slane %v3682, 6
    %v3685 = vshll.u32 %v3516, 16
    %v3687 = vrot.slane %v3685, 7
    %v3688 = vor.u32 %v3684, %v3687
    %v3689 = vsel %vm1307, %v3680, %v3688
    %v3690 = vrot.slane %v3688, 4
    %v3692 = vshrl.u32 %v3517, 16
    %v3694 = vrot.slane %v3692, 6
    %v3695 = vshll.u32 %v3517, 16
    %v3697 = vrot.slane %v3695, 7
    %v3698 = vor.u32 %v3694, %v3697
    %v3699 = vsel %vm1307, %v3690, %v3698
    %v3700 = vrot.slane %v3698, 4
    %v3702 = vshrl.u32 %v3518, 16
    %v3704 = vrot.slane %v3702, 6
    %v3705 = vshll.u32 %v3518, 16
    %v3707 = vrot.slane %v3705, 7
    %v3708 = vor.u32 %v3704, %v3707
    %v3709 = vsel %vm1307, %v3700, %v3708
    %v3710 = vrot.slane %v3708, 4
    %v3712 = vshrl.u32 %v3519, 16
    %v3714 = vrot.slane %v3712, 6
    %v3715 = vshll.u32 %v3519, 16
    %v3717 = vrot.slane %v3715, 7
    %v3718 = vor.u32 %v3714, %v3717
    %v3719 = vsel %vm1307, %v3710, %v3718
    %v3720 = vrot.slane %v3718, 4
    %v3722 = vshrl.u32 %v3520, 16
    %v3724 = vrot.slane %v3722, 6
    %v3725 = vshll.u32 %v3520, 16
    %v3727 = vrot.slane %v3725, 7
    %v3728 = vor.u32 %v3724, %v3727
    %v3729 = vsel %vm1307, %v3720, %v3728
    %v3730 = vrot.slane %v3728, 4
    %v3732 = vshll.u32 %v3521, 16
    %v3734 = vrot.slane %v3732, 7
    %v3735 = vsel %vm1307, %v3730, %v3734
    %3736 = vrot.lane.b32.xlu0 %v3525, 1
    %v3737 = vpop.permute.xlu0 %3736
    %3738 = vrot.lane.b32.xlu0 %v3539, 1
    %v3739 = vpop.permute.xlu0 %3738
    %3740 = vrot.lane.b32.xlu0 %v3549, 1
    %v3741 = vpop.permute.xlu0 %3740
    %3742 = vrot.lane.b32.xlu0 %v3559, 1
    %v3743 = vpop.permute.xlu0 %3742
    %3744 = vrot.lane.b32.xlu0 %v3569, 1
    %v3745 = vpop.permute.xlu0 %3744
    %3746 = vrot.lane.b32.xlu0 %v3579, 1
    %v3747 = vpop.permute.xlu0 %3746
    %3748 = vrot.lane.b32.xlu0 %v3589, 1
    %v3749 = vpop.permute.xlu0 %3748
    %3750 = vrot.lane.b32.xlu0 %v3599, 1
    %v3751 = vpop.permute.xlu0 %3750
    %3752 = vrot.lane.b32.xlu0 %v3609, 1
    %v3753 = vpop.permute.xlu0 %3752
    %3754 = vrot.lane.b32.xlu0 %v3619, 1
    %v3755 = vpop.permute.xlu0 %3754
    %3756 = vrot.lane.b32.xlu0 %v3629, 1
    %v3757 = vpop.permute.xlu0 %3756
    %3758 = vrot.lane.b32.xlu0 %v3639, 1
    %v3759 = vpop.permute.xlu0 %3758
    %3760 = vrot.lane.b32.xlu0 %v3649, 1
    %v3761 = vpop.permute.xlu0 %3760
    %3762 = vrot.lane.b32.xlu0 %v3659, 1
    %v3763 = vpop.permute.xlu0 %3762
    %3764 = vrot.lane.b32.xlu0 %v3669, 1
    %v3765 = vpop.permute.xlu0 %3764
    %3766 = vrot.lane.b32.xlu0 %v3679, 1
    %v3767 = vpop.permute.xlu0 %3766
    %3768 = vrot.lane.b32.xlu0 %v3689, 1
    %v3769 = vpop.permute.xlu0 %3768
    %3770 = vrot.lane.b32.xlu0 %v3699, 1
    %v3771 = vpop.permute.xlu0 %3770
    %3772 = vrot.lane.b32.xlu0 %v3709, 1
    %v3773 = vpop.permute.xlu0 %3772
    %3774 = vrot.lane.b32.xlu0 %v3719, 1
    %v3775 = vpop.permute.xlu0 %3774
    %3776 = vrot.lane.b32.xlu0 %v3729, 1
    %v3777 = vpop.permute.xlu0 %3776
    %3778 = vrot.lane.b32.xlu0 %v3735, 1
    %v3779 = vpop.permute.xlu0 %3778
    %vm3802 = vcmask 11275
    %vm3803 = vmand %vm3802, %vm3473
    %v3804 = vld [vmem:[#allocation2 + $0xf4] sm:$0x8]
    %v3805 = vsel %vm3803, %v3737, %v3804
    %3806 = vst [vmem:[#allocation2 + $0xf4] sm:$0x8] %v3805
    %3807 = vst.msk [vmem:[#allocation2 + $0xf8] sm:$0xf] %vm387, %v3739
    %3808 = vst.msk [vmem:[#allocation2 + $0xfc] sm:$0xf] %vm387, %v3741
    %3809 = vst.msk [vmem:[#allocation2 + $0x100] sm:$0xf] %vm387, %v3743
    %3810 = vst.msk [vmem:[#allocation2 + $0x104] sm:$0xf] %vm387, %v3745
    %3811 = vst.msk [vmem:[#allocation2 + $0x108] sm:$0xf] %vm387, %v3747
    %3812 = vst.msk [vmem:[#allocation2 + $0x10c] sm:$0xf] %vm387, %v3749
    %3813 = vst.msk [vmem:[#allocation2 + $0x110] sm:$0xf] %vm387, %v3751
    %3814 = vst.msk [vmem:[#allocation2 + $0x114] sm:$0xf] %vm387, %v3753
    %3815 = vst.msk [vmem:[#allocation2 + $0x118] sm:$0xf] %vm387, %v3755
    %3816 = vst.msk [vmem:[#allocation2 + $0x11c] sm:$0xf] %vm387, %v3757
    %3817 = vst.msk [vmem:[#allocation2 + $0x120] sm:$0xf] %vm387, %v3759
    %3818 = vst.msk [vmem:[#allocation2 + $0x124] sm:$0xf] %vm387, %v3761
    %3819 = vst.msk [vmem:[#allocation2 + $0x128] sm:$0xf] %vm387, %v3763
    %3820 = vst.msk [vmem:[#allocation2 + $0x12c] sm:$0xf] %vm387, %v3765
    %3821 = vst.msk [vmem:[#allocation2 + $0x130] sm:$0xf] %vm387, %v3767
    %3822 = vst.msk [vmem:[#allocation2 + $0x134] sm:$0xf] %vm387, %v3769
    %3823 = vst.msk [vmem:[#allocation2 + $0x138] sm:$0xf] %vm387, %v3771
    %3824 = vst.msk [vmem:[#allocation2 + $0x13c] sm:$0xf] %vm387, %v3773
    %3825 = vst.msk [vmem:[#allocation2 + $0x140] sm:$0xf] %vm387, %v3775
    %3826 = vst.msk [vmem:[#allocation2 + $0x144] sm:$0xf] %vm387, %v3777
    %vm3827 = vcmask 9224
    %3828 = vst.msk [vmem:[#allocation2 + $0x148] sm:$0x3] %vm3827, %v3779
    %v3829 = vld [vmem:[%s0 + $0xfc] sm:$0xc]
    %v3830 = vld [vmem:[%s0 + $0x100] sm:$0xf]
    %v3831 = vld [vmem:[%s0 + $0x104] sm:$0xf]
    %v3832 = vld [vmem:[%s0 + $0x108] sm:$0xf]
    %v3833 = vld [vmem:[%s0 + $0x10c] sm:$0xf]
    %v3834 = vld [vmem:[%s0 + $0x110] sm:$0xf]
    %v3835 = vld [vmem:[%s0 + $0x114] sm:$0xf]
    %v3836 = vld [vmem:[%s0 + $0x118] sm:$0xf]
    %v3837 = vld [vmem:[%s0 + $0x11c] sm:$0xf]
    %v3838 = vld [vmem:[%s0 + $0x120] sm:$0xf]
    %v3839 = vld [vmem:[%s0 + $0x124] sm:$0xf]
    %v3840 = vld [vmem:[%s0 + $0x128] sm:$0xf]
    %v3841 = vld [vmem:[%s0 + $0x12c] sm:$0xf]
    %v3842 = vld [vmem:[%s0 + $0x130] sm:$0xf]
    %v3843 = vld [vmem:[%s0 + $0x134] sm:$0xf]
    %v3844 = vld [vmem:[%s0 + $0x138] sm:$0xf]
    %v3845 = vld [vmem:[%s0 + $0x13c] sm:$0xf]
    %v3846 = vld [vmem:[%s0 + $0x140] sm:$0xf]
    %v3847 = vld [vmem:[%s0 + $0x144] sm:$0xf]
    %v3848 = vld [vmem:[%s0 + $0x148] sm:$0xf]
    %v3849 = vld [vmem:[%s0 + $0x14c] sm:$0xf]
    %v3850 = vld [vmem:[%s0 + $0x150] sm:$0x1]
    %v3873 = vrot.slane %v3829, 7
    %v3874 = vrot.slane %v3873, 4
    %v3875 = vrot.slane %v3830, 7
    %v3876 = vsel %vm1654, %v3874, %v3875
    %v3877 = vrot.slane %v3875, 4
    %v3878 = vrot.slane %v3831, 7
    %v3879 = vsel %vm1654, %v3877, %v3878
    %v3880 = vrot.slane %v3878, 4
    %v3881 = vrot.slane %v3832, 7
    %v3882 = vsel %vm1654, %v3880, %v3881
    %v3883 = vrot.slane %v3881, 4
    %v3884 = vrot.slane %v3833, 7
    %v3885 = vsel %vm1654, %v3883, %v3884
    %v3886 = vrot.slane %v3884, 4
    %v3887 = vrot.slane %v3834, 7
    %v3888 = vsel %vm1654, %v3886, %v3887
    %v3889 = vrot.slane %v3887, 4
    %v3890 = vrot.slane %v3835, 7
    %v3891 = vsel %vm1654, %v3889, %v3890
    %v3892 = vrot.slane %v3890, 4
    %v3893 = vrot.slane %v3836, 7
    %v3894 = vsel %vm1654, %v3892, %v3893
    %v3895 = vrot.slane %v3893, 4
    %v3896 = vrot.slane %v3837, 7
    %v3897 = vsel %vm1654, %v3895, %v3896
    %v3898 = vrot.slane %v3896, 4
    %v3899 = vrot.slane %v3838, 7
    %v3900 = vsel %vm1654, %v3898, %v3899
    %v3901 = vrot.slane %v3899, 4
    %v3902 = vrot.slane %v3839, 7
    %v3903 = vsel %vm1654, %v3901, %v3902
    %v3904 = vrot.slane %v3902, 4
    %v3905 = vrot.slane %v3840, 7
    %v3906 = vsel %vm1654, %v3904, %v3905
    %v3907 = vrot.slane %v3905, 4
    %v3908 = vrot.slane %v3841, 7
    %v3909 = vsel %vm1654, %v3907, %v3908
    %v3910 = vrot.slane %v3908, 4
    %v3911 = vrot.slane %v3842, 7
    %v3912 = vsel %vm1654, %v3910, %v3911
    %v3913 = vrot.slane %v3911, 4
    %v3914 = vrot.slane %v3843, 7
    %v3915 = vsel %vm1654, %v3913, %v3914
    %v3916 = vrot.slane %v3914, 4
    %v3917 = vrot.slane %v3844, 7
    %v3918 = vsel %vm1654, %v3916, %v3917
    %v3919 = vrot.slane %v3917, 4
    %v3920 = vrot.slane %v3845, 7
    %v3921 = vsel %vm1654, %v3919, %v3920
    %v3922 = vrot.slane %v3920, 4
    %v3923 = vrot.slane %v3846, 7
    %v3924 = vsel %vm1654, %v3922, %v3923
    %v3925 = vrot.slane %v3923, 4
    %v3926 = vrot.slane %v3847, 7
    %v3927 = vsel %vm1654, %v3925, %v3926
    %v3928 = vrot.slane %v3926, 4
    %v3929 = vrot.slane %v3848, 7
    %v3930 = vsel %vm1654, %v3928, %v3929
    %v3931 = vrot.slane %v3929, 4
    %v3932 = vrot.slane %v3849, 7
    %v3933 = vsel %vm1654, %v3931, %v3932
    %v3934 = vrot.slane %v3932, 4
    %v3935 = vrot.slane %v3850, 7
    %v3936 = vsel %vm1654, %v3934, %v3935
    %3937 = vrot.lane.b32.xlu0 %v3873, 2
    %v3938 = vpop.permute.xlu0 %3937
    %3939 = vrot.lane.b32.xlu0 %v3876, 2
    %v3940 = vpop.permute.xlu0 %3939
    %3941 = vrot.lane.b32.xlu0 %v3879, 2
    %v3942 = vpop.permute.xlu0 %3941
    %3943 = vrot.lane.b32.xlu0 %v3882, 2
    %v3944 = vpop.permute.xlu0 %3943
    %3945 = vrot.lane.b32.xlu0 %v3885, 2
    %v3946 = vpop.permute.xlu0 %3945
    %3947 = vrot.lane.b32.xlu0 %v3888, 2
    %v3948 = vpop.permute.xlu0 %3947
    %3949 = vrot.lane.b32.xlu0 %v3891, 2
    %v3950 = vpop.permute.xlu0 %3949
    %3951 = vrot.lane.b32.xlu0 %v3894, 2
    %v3952 = vpop.permute.xlu0 %3951
    %3953 = vrot.lane.b32.xlu0 %v3897, 2
    %v3954 = vpop.permute.xlu0 %3953
    %3955 = vrot.lane.b32.xlu0 %v3900, 2
    %v3956 = vpop.permute.xlu0 %3955
    %3957 = vrot.lane.b32.xlu0 %v3903, 2
    %v3958 = vpop.permute.xlu0 %3957
    %3959 = vrot.lane.b32.xlu0 %v3906, 2
    %v3960 = vpop.permute.xlu0 %3959
    %3961 = vrot.lane.b32.xlu0 %v3909, 2
    %v3962 = vpop.permute.xlu0 %3961
    %3963 = vrot.lane.b32.xlu0 %v3912, 2
    %v3964 = vpop.permute.xlu0 %3963
    %3965 = vrot.lane.b32.xlu0 %v3915, 2
    %v3966 = vpop.permute.xlu0 %3965
    %3967 = vrot.lane.b32.xlu0 %v3918, 2
    %v3968 = vpop.permute.xlu0 %3967
    %3969 = vrot.lane.b32.xlu0 %v3921, 2
    %v3970 = vpop.permute.xlu0 %3969
    %3971 = vrot.lane.b32.xlu0 %v3924, 2
    %v3972 = vpop.permute.xlu0 %3971
    %3973 = vrot.lane.b32.xlu0 %v3927, 2
    %v3974 = vpop.permute.xlu0 %3973
    %3975 = vrot.lane.b32.xlu0 %v3930, 2
    %v3976 = vpop.permute.xlu0 %3975
    %3977 = vrot.lane.b32.xlu0 %v3933, 2
    %v3978 = vpop.permute.xlu0 %3977
    %3979 = vrot.lane.b32.xlu0 %v3936, 2
    %v3980 = vpop.permute.xlu0 %3979
    %vm4003 = vcmask 19475
    %vm4004 = vmand %vm4003, %vm3473
    %v4005 = vld [vmem:[#allocation2 + $0xf4] sm:$0x8]
    %v4006 = vsel %vm4004, %v3938, %v4005
    %4007 = vst [vmem:[#allocation2 + $0xf4] sm:$0x8] %v4006
    %4008 = vst.msk [vmem:[#allocation2 + $0xf8] sm:$0xf] %vm583, %v3940
    %4009 = vst.msk [vmem:[#allocation2 + $0xfc] sm:$0xf] %vm583, %v3942
    %4010 = vst.msk [vmem:[#allocation2 + $0x100] sm:$0xf] %vm583, %v3944
    %4011 = vst.msk [vmem:[#allocation2 + $0x104] sm:$0xf] %vm583, %v3946
    %4012 = vst.msk [vmem:[#allocation2 + $0x108] sm:$0xf] %vm583, %v3948
    %4013 = vst.msk [vmem:[#allocation2 + $0x10c] sm:$0xf] %vm583, %v3950
    %4014 = vst.msk [vmem:[#allocation2 + $0x110] sm:$0xf] %vm583, %v3952
    %4015 = vst.msk [vmem:[#allocation2 + $0x114] sm:$0xf] %vm583, %v3954
    %4016 = vst.msk [vmem:[#allocation2 + $0x118] sm:$0xf] %vm583, %v3956
    %4017 = vst.msk [vmem:[#allocation2 + $0x11c] sm:$0xf] %vm583, %v3958
    %4018 = vst.msk [vmem:[#allocation2 + $0x120] sm:$0xf] %vm583, %v3960
    %4019 = vst.msk [vmem:[#allocation2 + $0x124] sm:$0xf] %vm583, %v3962
    %4020 = vst.msk [vmem:[#allocation2 + $0x128] sm:$0xf] %vm583, %v3964
    %4021 = vst.msk [vmem:[#allocation2 + $0x12c] sm:$0xf] %vm583, %v3966
    %4022 = vst.msk [vmem:[#allocation2 + $0x130] sm:$0xf] %vm583, %v3968
    %4023 = vst.msk [vmem:[#allocation2 + $0x134] sm:$0xf] %vm583, %v3970
    %4024 = vst.msk [vmem:[#allocation2 + $0x138] sm:$0xf] %vm583, %v3972
    %4025 = vst.msk [vmem:[#allocation2 + $0x13c] sm:$0xf] %vm583, %v3974
    %4026 = vst.msk [vmem:[#allocation2 + $0x140] sm:$0xf] %vm583, %v3976
    %4027 = vst.msk [vmem:[#allocation2 + $0x144] sm:$0xf] %vm583, %v3978
    %vm4028 = vcmask 17424
    %4029 = vst.msk [vmem:[#allocation2 + $0x148] sm:$0x3] %vm4028, %v3980
    %v4030 = vld [vmem:[%s0 + $0xfc] sm:$0x8]
    %v4031 = vld [vmem:[%s0 + $0x100] sm:$0xf]
    %v4032 = vld [vmem:[%s0 + $0x104] sm:$0xf]
    %v4033 = vld [vmem:[%s0 + $0x108] sm:$0xf]
    %v4034 = vld [vmem:[%s0 + $0x10c] sm:$0xf]
    %v4035 = vld [vmem:[%s0 + $0x110] sm:$0xf]
    %v4036 = vld [vmem:[%s0 + $0x114] sm:$0xf]
    %v4037 = vld [vmem:[%s0 + $0x118] sm:$0xf]
    %v4038 = vld [vmem:[%s0 + $0x11c] sm:$0xf]
    %v4039 = vld [vmem:[%s0 + $0x120] sm:$0xf]
    %v4040 = vld [vmem:[%s0 + $0x124] sm:$0xf]
    %v4041 = vld [vmem:[%s0 + $0x128] sm:$0xf]
    %v4042 = vld [vmem:[%s0 + $0x12c] sm:$0xf]
    %v4043 = vld [vmem:[%s0 + $0x130] sm:$0xf]
    %v4044 = vld [vmem:[%s0 + $0x134] sm:$0xf]
    %v4045 = vld [vmem:[%s0 + $0x138] sm:$0xf]
    %v4046 = vld [vmem:[%s0 + $0x13c] sm:$0xf]
    %v4047 = vld [vmem:[%s0 + $0x140] sm:$0xf]
    %v4048 = vld [vmem:[%s0 + $0x144] sm:$0xf]
    %v4049 = vld [vmem:[%s0 + $0x148] sm:$0xf]
    %v4050 = vld [vmem:[%s0 + $0x14c] sm:$0xf]
    %v4051 = vld [vmem:[%s0 + $0x150] sm:$0x3]
    %v4053 = vshll.u32 %v4030, 16
    %v4055 = vshrl.u32 %v4030, 16
    %v4057 = vrot.slane %v4055, 7
    %v4058 = vrot.slane %v4057, 4
    %v4060 = vshrl.u32 %v4031, 16
    %v4062 = vrot.slane %v4060, 7
    %v4063 = vshll.u32 %v4031, 16
    %v4065 = vor.u32 %v4062, %v4063
    %v4066 = vsel %vm1834, %v4058, %v4065
    %v4067 = vrot.slane %v4062, 4
    %v4069 = vshrl.u32 %v4032, 16
    %v4071 = vrot.slane %v4069, 7
    %v4072 = vshll.u32 %v4032, 16
    %v4074 = vor.u32 %v4071, %v4072
    %v4075 = vsel %vm1834, %v4067, %v4074
    %v4076 = vrot.slane %v4071, 4
    %v4078 = vshrl.u32 %v4033, 16
    %v4080 = vrot.slane %v4078, 7
    %v4081 = vshll.u32 %v4033, 16
    %v4083 = vor.u32 %v4080, %v4081
    %v4084 = vsel %vm1834, %v4076, %v4083
    %v4085 = vrot.slane %v4080, 4
    %v4087 = vshrl.u32 %v4034, 16
    %v4089 = vrot.slane %v4087, 7
    %v4090 = vshll.u32 %v4034, 16
    %v4092 = vor.u32 %v4089, %v4090
    %v4093 = vsel %vm1834, %v4085, %v4092
    %v4094 = vrot.slane %v4089, 4
    %v4096 = vshrl.u32 %v4035, 16
    %v4098 = vrot.slane %v4096, 7
    %v4099 = vshll.u32 %v4035, 16
    %v4101 = vor.u32 %v4098, %v4099
    %v4102 = vsel %vm1834, %v4094, %v4101
    %v4103 = vrot.slane %v4098, 4
    %v4105 = vshrl.u32 %v4036, 16
    %v4107 = vrot.slane %v4105, 7
    %v4108 = vshll.u32 %v4036, 16
    %v4110 = vor.u32 %v4107, %v4108
    %v4111 = vsel %vm1834, %v4103, %v4110
    %v4112 = vrot.slane %v4107, 4
    %v4114 = vshrl.u32 %v4037, 16
    %v4116 = vrot.slane %v4114, 7
    %v4117 = vshll.u32 %v4037, 16
    %v4119 = vor.u32 %v4116, %v4117
    %v4120 = vsel %vm1834, %v4112, %v4119
    %v4121 = vrot.slane %v4116, 4
    %v4123 = vshrl.u32 %v4038, 16
    %v4125 = vrot.slane %v4123, 7
    %v4126 = vshll.u32 %v4038, 16
    %v4128 = vor.u32 %v4125, %v4126
    %v4129 = vsel %vm1834, %v4121, %v4128
    %v4130 = vrot.slane %v4125, 4
    %v4132 = vshrl.u32 %v4039, 16
    %v4134 = vrot.slane %v4132, 7
    %v4135 = vshll.u32 %v4039, 16
    %v4137 = vor.u32 %v4134, %v4135
    %v4138 = vsel %vm1834, %v4130, %v4137
    %v4139 = vrot.slane %v4134, 4
    %v4141 = vshrl.u32 %v4040, 16
    %v4143 = vrot.slane %v4141, 7
    %v4144 = vshll.u32 %v4040, 16
    %v4146 = vor.u32 %v4143, %v4144
    %v4147 = vsel %vm1834, %v4139, %v4146
    %v4148 = vrot.slane %v4143, 4
    %v4150 = vshrl.u32 %v4041, 16
    %v4152 = vrot.slane %v4150, 7
    %v4153 = vshll.u32 %v4041, 16
    %v4155 = vor.u32 %v4152, %v4153
    %v4156 = vsel %vm1834, %v4148, %v4155
    %v4157 = vrot.slane %v4152, 4
    %v4159 = vshrl.u32 %v4042, 16
    %v4161 = vrot.slane %v4159, 7
    %v4162 = vshll.u32 %v4042, 16
    %v4164 = vor.u32 %v4161, %v4162
    %v4165 = vsel %vm1834, %v4157, %v4164
    %v4166 = vrot.slane %v4161, 4
    %v4168 = vshrl.u32 %v4043, 16
    %v4170 = vrot.slane %v4168, 7
    %v4171 = vshll.u32 %v4043, 16
    %v4173 = vor.u32 %v4170, %v4171
    %v4174 = vsel %vm1834, %v4166, %v4173
    %v4175 = vrot.slane %v4170, 4
    %v4177 = vshrl.u32 %v4044, 16
    %v4179 = vrot.slane %v4177, 7
    %v4180 = vshll.u32 %v4044, 16
    %v4182 = vor.u32 %v4179, %v4180
    %v4183 = vsel %vm1834, %v4175, %v4182
    %v4184 = vrot.slane %v4179, 4
    %v4186 = vshrl.u32 %v4045, 16
    %v4188 = vrot.slane %v4186, 7
    %v4189 = vshll.u32 %v4045, 16
    %v4191 = vor.u32 %v4188, %v4189
    %v4192 = vsel %vm1834, %v4184, %v4191
    %v4193 = vrot.slane %v4188, 4
    %v4195 = vshrl.u32 %v4046, 16
    %v4197 = vrot.slane %v4195, 7
    %v4198 = vshll.u32 %v4046, 16
    %v4200 = vor.u32 %v4197, %v4198
    %v4201 = vsel %vm1834, %v4193, %v4200
    %v4202 = vrot.slane %v4197, 4
    %v4204 = vshrl.u32 %v4047, 16
    %v4206 = vrot.slane %v4204, 7
    %v4207 = vshll.u32 %v4047, 16
    %v4209 = vor.u32 %v4206, %v4207
    %v4210 = vsel %vm1834, %v4202, %v4209
    %v4211 = vrot.slane %v4206, 4
    %v4213 = vshrl.u32 %v4048, 16
    %v4215 = vrot.slane %v4213, 7
    %v4216 = vshll.u32 %v4048, 16
    %v4218 = vor.u32 %v4215, %v4216
    %v4219 = vsel %vm1834, %v4211, %v4218
    %v4220 = vrot.slane %v4215, 4
    %v4222 = vshrl.u32 %v4049, 16
    %v4224 = vrot.slane %v4222, 7
    %v4225 = vshll.u32 %v4049, 16
    %v4227 = vor.u32 %v4224, %v4225
    %v4228 = vsel %vm1834, %v4220, %v4227
    %v4229 = vrot.slane %v4224, 4
    %v4231 = vshrl.u32 %v4050, 16
    %v4233 = vrot.slane %v4231, 7
    %v4234 = vshll.u32 %v4050, 16
    %v4236 = vor.u32 %v4233, %v4234
    %v4237 = vsel %vm1834, %v4229, %v4236
    %v4238 = vrot.slane %v4233, 4
    %v4240 = vshrl.u32 %v4051, 16
    %v4242 = vrot.slane %v4240, 7
    %v4243 = vshll.u32 %v4051, 16
    %v4245 = vor.u32 %v4242, %v4243
    %v4246 = vsel %vm1834, %v4238, %v4245
    %4247 = vrot.lane.b32.xlu0 %v4053, 3
    %v4248 = vpop.permute.xlu0 %4247
    %4249 = vrot.lane.b32.xlu0 %v4066, 3
    %v4250 = vpop.permute.xlu0 %4249
    %4251 = vrot.lane.b32.xlu0 %v4075, 3
    %v4252 = vpop.permute.xlu0 %4251
    %4253 = vrot.lane.b32.xlu0 %v4084, 3
    %v4254 = vpop.permute.xlu0 %4253
    %4255 = vrot.lane.b32.xlu0 %v4093, 3
    %v4256 = vpop.permute.xlu0 %4255
    %4257 = vrot.lane.b32.xlu0 %v4102, 3
    %v4258 = vpop.permute.xlu0 %4257
    %4259 = vrot.lane.b32.xlu0 %v4111, 3
    %v4260 = vpop.permute.xlu0 %4259
    %4261 = vrot.lane.b32.xlu0 %v4120, 3
    %v4262 = vpop.permute.xlu0 %4261
    %4263 = vrot.lane.b32.xlu0 %v4129, 3
    %v4264 = vpop.permute.xlu0 %4263
    %4265 = vrot.lane.b32.xlu0 %v4138, 3
    %v4266 = vpop.permute.xlu0 %4265
    %4267 = vrot.lane.b32.xlu0 %v4147, 3
    %v4268 = vpop.permute.xlu0 %4267
    %4269 = vrot.lane.b32.xlu0 %v4156, 3
    %v4270 = vpop.permute.xlu0 %4269
    %4271 = vrot.lane.b32.xlu0 %v4165, 3
    %v4272 = vpop.permute.xlu0 %4271
    %4273 = vrot.lane.b32.xlu0 %v4174, 3
    %v4274 = vpop.permute.xlu0 %4273
    %4275 = vrot.lane.b32.xlu0 %v4183, 3
    %v4276 = vpop.permute.xlu0 %4275
    %4277 = vrot.lane.b32.xlu0 %v4192, 3
    %v4278 = vpop.permute.xlu0 %4277
    %4279 = vrot.lane.b32.xlu0 %v4201, 3
    %v4280 = vpop.permute.xlu0 %4279
    %4281 = vrot.lane.b32.xlu0 %v4210, 3
    %v4282 = vpop.permute.xlu0 %4281
    %4283 = vrot.lane.b32.xlu0 %v4219, 3
    %v4284 = vpop.permute.xlu0 %4283
    %4285 = vrot.lane.b32.xlu0 %v4228, 3
    %v4286 = vpop.permute.xlu0 %4285
    %4287 = vrot.lane.b32.xlu0 %v4237, 3
    %v4288 = vpop.permute.xlu0 %4287
    %4289 = vrot.lane.b32.xlu0 %v4246, 3
    %v4290 = vpop.permute.xlu0 %4289
    %vm4313 = vcmask 27675
    %vm4314 = vmand %vm4313, %vm3473
    %v4315 = vld [vmem:[#allocation2 + $0xf4] sm:$0x8]
    %v4316 = vsel %vm4314, %v4248, %v4315
    %4317 = vst [vmem:[#allocation2 + $0xf4] sm:$0x8] %v4316
    %4318 = vst.msk [vmem:[#allocation2 + $0xf8] sm:$0xf] %vm904, %v4250
    %4319 = vst.msk [vmem:[#allocation2 + $0xfc] sm:$0xf] %vm904, %v4252
    %4320 = vst.msk [vmem:[#allocation2 + $0x100] sm:$0xf] %vm904, %v4254
    %4321 = vst.msk [vmem:[#allocation2 + $0x104] sm:$0xf] %vm904, %v4256
    %4322 = vst.msk [vmem:[#allocation2 + $0x108] sm:$0xf] %vm904, %v4258
    %4323 = vst.msk [vmem:[#allocation2 + $0x10c] sm:$0xf] %vm904, %v4260
    %4324 = vst.msk [vmem:[#allocation2 + $0x110] sm:$0xf] %vm904, %v4262
    %4325 = vst.msk [vmem:[#allocation2 + $0x114] sm:$0xf] %vm904, %v4264
    %4326 = vst.msk [vmem:[#allocation2 + $0x118] sm:$0xf] %vm904, %v4266
    %4327 = vst.msk [vmem:[#allocation2 + $0x11c] sm:$0xf] %vm904, %v4268
    %4328 = vst.msk [vmem:[#allocation2 + $0x120] sm:$0xf] %vm904, %v4270
    %4329 = vst.msk [vmem:[#allocation2 + $0x124] sm:$0xf] %vm904, %v4272
    %4330 = vst.msk [vmem:[#allocation2 + $0x128] sm:$0xf] %vm904, %v4274
    %4331 = vst.msk [vmem:[#allocation2 + $0x12c] sm:$0xf] %vm904, %v4276
    %4332 = vst.msk [vmem:[#allocation2 + $0x130] sm:$0xf] %vm904, %v4278
    %4333 = vst.msk [vmem:[#allocation2 + $0x134] sm:$0xf] %vm904, %v4280
    %4334 = vst.msk [vmem:[#allocation2 + $0x138] sm:$0xf] %vm904, %v4282
    %4335 = vst.msk [vmem:[#allocation2 + $0x13c] sm:$0xf] %vm904, %v4284
    %4336 = vst.msk [vmem:[#allocation2 + $0x140] sm:$0xf] %vm904, %v4286
    %4337 = vst.msk [vmem:[#allocation2 + $0x144] sm:$0xf] %vm904, %v4288
    %vm4338 = vcmask 25624
    %4339 = vst.msk [vmem:[#allocation2 + $0x148] sm:$0x3] %vm4338, %v4290
    %v4340 = vld [vmem:[%s0 + $0xfc] sm:$0x8]
    %v4341 = vld [vmem:[%s0 + $0x100] sm:$0xf]
    %v4342 = vld [vmem:[%s0 + $0x104] sm:$0xf]
    %v4343 = vld [vmem:[%s0 + $0x108] sm:$0xf]
    %v4344 = vld [vmem:[%s0 + $0x10c] sm:$0xf]
    %v4345 = vld [vmem:[%s0 + $0x110] sm:$0xf]
    %v4346 = vld [vmem:[%s0 + $0x114] sm:$0xf]
    %v4347 = vld [vmem:[%s0 + $0x118] sm:$0xf]
    %v4348 = vld [vmem:[%s0 + $0x11c] sm:$0xf]
    %v4349 = vld [vmem:[%s0 + $0x120] sm:$0xf]
    %v4350 = vld [vmem:[%s0 + $0x124] sm:$0xf]
    %v4351 = vld [vmem:[%s0 + $0x128] sm:$0xf]
    %v4352 = vld [vmem:[%s0 + $0x12c] sm:$0xf]
    %v4353 = vld [vmem:[%s0 + $0x130] sm:$0xf]
    %v4354 = vld [vmem:[%s0 + $0x134] sm:$0xf]
    %v4355 = vld [vmem:[%s0 + $0x138] sm:$0xf]
    %v4356 = vld [vmem:[%s0 + $0x13c] sm:$0xf]
    %v4357 = vld [vmem:[%s0 + $0x140] sm:$0xf]
    %v4358 = vld [vmem:[%s0 + $0x144] sm:$0xf]
    %v4359 = vld [vmem:[%s0 + $0x148] sm:$0xf]
    %v4360 = vld [vmem:[%s0 + $0x14c] sm:$0xf]
    %v4361 = vld [vmem:[%s0 + $0x150] sm:$0x3]
    %4384 = vrot.lane.b32.xlu0 %v4340, 4
    %v4385 = vpop.permute.xlu0 %4384
    %4386 = vrot.lane.b32.xlu0 %v4341, 4
    %v4387 = vpop.permute.xlu0 %4386
    %4388 = vrot.lane.b32.xlu0 %v4342, 4
    %v4389 = vpop.permute.xlu0 %4388
    %4390 = vrot.lane.b32.xlu0 %v4343, 4
    %v4391 = vpop.permute.xlu0 %4390
    %4392 = vrot.lane.b32.xlu0 %v4344, 4
    %v4393 = vpop.permute.xlu0 %4392
    %4394 = vrot.lane.b32.xlu0 %v4345, 4
    %v4395 = vpop.permute.xlu0 %4394
    %4396 = vrot.lane.b32.xlu0 %v4346, 4
    %v4397 = vpop.permute.xlu0 %4396
    %4398 = vrot.lane.b32.xlu0 %v4347, 4
    %v4399 = vpop.permute.xlu0 %4398
    %4400 = vrot.lane.b32.xlu0 %v4348, 4
    %v4401 = vpop.permute.xlu0 %4400
    %4402 = vrot.lane.b32.xlu0 %v4349, 4
    %v4403 = vpop.permute.xlu0 %4402
    %4404 = vrot.lane.b32.xlu0 %v4350, 4
    %v4405 = vpop.permute.xlu0 %4404
    %4406 = vrot.lane.b32.xlu0 %v4351, 4
    %v4407 = vpop.permute.xlu0 %4406
    %4408 = vrot.lane.b32.xlu0 %v4352, 4
    %v4409 = vpop.permute.xlu0 %4408
    %4410 = vrot.lane.b32.xlu0 %v4353, 4
    %v4411 = vpop.permute.xlu0 %4410
    %4412 = vrot.lane.b32.xlu0 %v4354, 4
    %v4413 = vpop.permute.xlu0 %4412
    %4414 = vrot.lane.b32.xlu0 %v4355, 4
    %v4415 = vpop.permute.xlu0 %4414
    %4416 = vrot.lane.b32.xlu0 %v4356, 4
    %v4417 = vpop.permute.xlu0 %4416
    %4418 = vrot.lane.b32.xlu0 %v4357, 4
    %v4419 = vpop.permute.xlu0 %4418
    %4420 = vrot.lane.b32.xlu0 %v4358, 4
    %v4421 = vpop.permute.xlu0 %4420
    %4422 = vrot.lane.b32.xlu0 %v4359, 4
    %v4423 = vpop.permute.xlu0 %4422
    %4424 = vrot.lane.b32.xlu0 %v4360, 4
    %v4425 = vpop.permute.xlu0 %4424
    %4426 = vrot.lane.b32.xlu0 %v4361, 4
    %v4427 = vpop.permute.xlu0 %4426
    %vm4450 = vcmask 35875
    %vm4451 = vmand %vm4450, %vm3473
    %v4452 = vld [vmem:[#allocation2 + $0xf4] sm:$0x8]
    %v4453 = vsel %vm4451, %v4385, %v4452
    %4454 = vst [vmem:[#allocation2 + $0xf4] sm:$0x8] %v4453
    %4455 = vst.msk [vmem:[#allocation2 + $0xf8] sm:$0xf] %vm1104, %v4387
    %4456 = vst.msk [vmem:[#allocation2 + $0xfc] sm:$0xf] %vm1104, %v4389
    %4457 = vst.msk [vmem:[#allocation2 + $0x100] sm:$0xf] %vm1104, %v4391
    %4458 = vst.msk [vmem:[#allocation2 + $0x104] sm:$0xf] %vm1104, %v4393
    %4459 = vst.msk [vmem:[#allocation2 + $0x108] sm:$0xf] %vm1104, %v4395
    %4460 = vst.msk [vmem:[#allocation2 + $0x10c] sm:$0xf] %vm1104, %v4397
    %4461 = vst.msk [vmem:[#allocation2 + $0x110] sm:$0xf] %vm1104, %v4399
    %4462 = vst.msk [vmem:[#allocation2 + $0x114] sm:$0xf] %vm1104, %v4401
    %4463 = vst.msk [vmem:[#allocation2 + $0x118] sm:$0xf] %vm1104, %v4403
    %4464 = vst.msk [vmem:[#allocation2 + $0x11c] sm:$0xf] %vm1104, %v4405
    %4465 = vst.msk [vmem:[#allocation2 + $0x120] sm:$0xf] %vm1104, %v4407
    %4466 = vst.msk [vmem:[#allocation2 + $0x124] sm:$0xf] %vm1104, %v4409
    %4467 = vst.msk [vmem:[#allocation2 + $0x128] sm:$0xf] %vm1104, %v4411
    %4468 = vst.msk [vmem:[#allocation2 + $0x12c] sm:$0xf] %vm1104, %v4413
    %4469 = vst.msk [vmem:[#allocation2 + $0x130] sm:$0xf] %vm1104, %v4415
    %4470 = vst.msk [vmem:[#allocation2 + $0x134] sm:$0xf] %vm1104, %v4417
    %4471 = vst.msk [vmem:[#allocation2 + $0x138] sm:$0xf] %vm1104, %v4419
    %4472 = vst.msk [vmem:[#allocation2 + $0x13c] sm:$0xf] %vm1104, %v4421
    %4473 = vst.msk [vmem:[#allocation2 + $0x140] sm:$0xf] %vm1104, %v4423
    %4474 = vst.msk [vmem:[#allocation2 + $0x144] sm:$0xf] %vm1104, %v4425
    %vm4475 = vcmask 33824
    %4476 = vst.msk [vmem:[#allocation2 + $0x148] sm:$0x3] %vm4475, %v4427
    %v4477 = vld [vmem:[#allocation2] sm:$0xf]
    %v4478 = vld [vmem:[#allocation2 + $0x4] sm:$0xf]
    %v4479 = vld [vmem:[#allocation2 + $0x8] sm:$0xf]
    %v4480 = vld [vmem:[#allocation2 + $0xc] sm:$0xf]
    %v4481 = vld [vmem:[#allocation2 + $0x10] sm:$0xf]
    %v4482 = vld [vmem:[#allocation2 + $0x14] sm:$0xf]
    %v4483 = vld [vmem:[#allocation2 + $0x18] sm:$0xf]
    %v4484 = vld [vmem:[#allocation2 + $0x1c] sm:$0xf]
    %v4485 = vld [vmem:[#allocation2 + $0x20] sm:$0xf]
    %v4486 = vld [vmem:[#allocation2 + $0x24] sm:$0xf]
    %v4487 = vld [vmem:[#allocation2 + $0x28] sm:$0xf]
    %v4488 = vld [vmem:[#allocation2 + $0x2c] sm:$0xf]
    %v4489 = vld [vmem:[#allocation2 + $0x30] sm:$0xf]
    %v4490 = vld [vmem:[#allocation2 + $0x34] sm:$0xf]
    %v4491 = vld [vmem:[#allocation2 + $0x38] sm:$0xf]
    %v4492 = vld [vmem:[#allocation2 + $0x3c] sm:$0xf]
    %v4493 = vld [vmem:[#allocation2 + $0x40] sm:$0xf]
    %v4494 = vld [vmem:[#allocation2 + $0x44] sm:$0xf]
    %v4495 = vld [vmem:[#allocation2 + $0x48] sm:$0xf]
    %v4496 = vld [vmem:[#allocation2 + $0x4c] sm:$0xf]
    %v4497 = vld [vmem:[#allocation2 + $0x50] sm:$0xf]
    %v4498 = vld [vmem:[#allocation2 + $0x54] sm:$0xf]
    %v4499 = vld [vmem:[#allocation2 + $0x58] sm:$0xf]
    %v4500 = vld [vmem:[#allocation2 + $0x5c] sm:$0xf]
    %v4501 = vld [vmem:[#allocation2 + $0x60] sm:$0xf]
    %v4502 = vld [vmem:[#allocation2 + $0x64] sm:$0xf]
    %v4503 = vld [vmem:[#allocation2 + $0x68] sm:$0xf]
    %v4504 = vld [vmem:[#allocation2 + $0x6c] sm:$0xf]
    %v4505 = vld [vmem:[#allocation2 + $0x70] sm:$0xf]
    %v4506 = vld [vmem:[#allocation2 + $0x74] sm:$0xf]
    %v4507 = vld [vmem:[#allocation2 + $0x78] sm:$0xf]
    %v4508 = vld [vmem:[#allocation2 + $0x7c] sm:$0xf]
    %v4509 = vld [vmem:[#allocation2 + $0x80] sm:$0xf]
    %v4510 = vld [vmem:[#allocation2 + $0x84] sm:$0xf]
    %v4511 = vld [vmem:[#allocation2 + $0x88] sm:$0xf]
    %v4512 = vld [vmem:[#allocation2 + $0x8c] sm:$0xf]
    %v4513 = vld [vmem:[#allocation2 + $0x90] sm:$0xf]
    %v4514 = vld [vmem:[#allocation2 + $0x94] sm:$0xf]
    %v4515 = vld [vmem:[#allocation2 + $0x98] sm:$0xf]
    %v4516 = vld [vmem:[#allocation2 + $0x9c] sm:$0xf]
    %v4517 = vld [vmem:[#allocation2 + $0xa0] sm:$0xf]
    %v4518 = vld [vmem:[#allocation2 + $0xa4] sm:$0xf]
    %v4519 = vld [vmem:[#allocation2 + $0xa8] sm:$0xf]
    %v4520 = vld [vmem:[#allocation2 + $0xac] sm:$0xf]
    %v4521 = vld [vmem:[#allocation2 + $0xb0] sm:$0xf]
    %v4522 = vld [vmem:[#allocation2 + $0xb4] sm:$0xf]
    %v4523 = vld [vmem:[#allocation2 + $0xb8] sm:$0xf]
    %v4524 = vld [vmem:[#allocation2 + $0xbc] sm:$0xf]
    %v4525 = vld [vmem:[#allocation2 + $0xc0] sm:$0xf]
    %v4526 = vld [vmem:[#allocation2 + $0xc4] sm:$0xf]
    %v4527 = vld [vmem:[#allocation2 + $0xc8] sm:$0xf]
    %v4528 = vld [vmem:[#allocation2 + $0xcc] sm:$0xf]
    %v4529 = vld [vmem:[#allocation2 + $0xd0] sm:$0xf]
    %v4530 = vld [vmem:[#allocation2 + $0xd4] sm:$0xf]
    %v4531 = vld [vmem:[#allocation2 + $0xd8] sm:$0xf]
    %v4532 = vld [vmem:[#allocation2 + $0xdc] sm:$0xf]
    %v4533 = vld [vmem:[#allocation2 + $0xe0] sm:$0xf]
    %v4534 = vld [vmem:[#allocation2 + $0xe4] sm:$0xf]
    %v4535 = vld [vmem:[#allocation2 + $0xe8] sm:$0xf]
    %v4536 = vld [vmem:[#allocation2 + $0xec] sm:$0xf]
    %v4537 = vld [vmem:[#allocation2 + $0xf0] sm:$0xf]
    %v4538 = vld [vmem:[#allocation2 + $0xf4] sm:$0xf]
    %v4539 = vld [vmem:[#allocation2 + $0xf8] sm:$0xf]
    %v4540 = vld [vmem:[#allocation2 + $0xfc] sm:$0xf]
    %v4541 = vld [vmem:[#allocation2 + $0x100] sm:$0xf]
    %v4542 = vld [vmem:[#allocation2 + $0x104] sm:$0xf]
    %v4543 = vld [vmem:[#allocation2 + $0x108] sm:$0xf]
    %v4544 = vld [vmem:[#allocation2 + $0x10c] sm:$0xf]
    %v4545 = vld [vmem:[#allocation2 + $0x110] sm:$0xf]
    %v4546 = vld [vmem:[#allocation2 + $0x114] sm:$0xf]
    %v4547 = vld [vmem:[#allocation2 + $0x118] sm:$0xf]
    %v4548 = vld [vmem:[#allocation2 + $0x11c] sm:$0xf]
    %v4549 = vld [vmem:[#allocation2 + $0x120] sm:$0xf]
    %v4550 = vld [vmem:[#allocation2 + $0x124] sm:$0xf]
    %v4551 = vld [vmem:[#allocation2 + $0x128] sm:$0xf]
    %v4552 = vld [vmem:[#allocation2 + $0x12c] sm:$0xf]
    %v4553 = vld [vmem:[#allocation2 + $0x130] sm:$0xf]
    %v4554 = vld [vmem:[#allocation2 + $0x134] sm:$0xf]
    %v4555 = vld [vmem:[#allocation2 + $0x138] sm:$0xf]
    %v4556 = vld [vmem:[#allocation2 + $0x13c] sm:$0xf]
    %v4557 = vld [vmem:[#allocation2 + $0x140] sm:$0xf]
    %v4558 = vld [vmem:[#allocation2 + $0x144] sm:$0xf]
    %v4559 = vld [vmem:[#allocation2 + $0x148] sm:$0x3]
    %v4560 = vld [vmem:[%s1] sm:$0x7]
    %v4644 = vunpack.c.l.b16 %v4477
    %v4645 = vunpack.c.l.b16 %v4478
    %v4646 = vunpack.c.l.b16 %v4479
    %v4647 = vunpack.c.l.b16 %v4480
    %v4648 = vunpack.c.l.b16 %v4481
    %v4649 = vunpack.c.l.b16 %v4482
    %v4650 = vunpack.c.l.b16 %v4483
    %v4651 = vunpack.c.l.b16 %v4484
    %v4652 = vunpack.c.l.b16 %v4485
    %v4653 = vunpack.c.l.b16 %v4486
    %v4654 = vunpack.c.l.b16 %v4487
    %v4655 = vunpack.c.l.b16 %v4488
    %v4656 = vunpack.c.l.b16 %v4489
    %v4657 = vunpack.c.l.b16 %v4490
    %v4658 = vunpack.c.l.b16 %v4491
    %v4659 = vunpack.c.l.b16 %v4492
    %v4660 = vunpack.c.l.b16 %v4493
    %v4661 = vunpack.c.l.b16 %v4494
    %v4662 = vunpack.c.l.b16 %v4495
    %v4663 = vunpack.c.l.b16 %v4496
    %v4664 = vunpack.c.l.b16 %v4497
    %v4665 = vunpack.c.l.b16 %v4498
    %v4666 = vunpack.c.l.b16 %v4499
    %v4667 = vunpack.c.l.b16 %v4500
    %v4668 = vunpack.c.l.b16 %v4501
    %v4669 = vunpack.c.l.b16 %v4502
    %v4670 = vunpack.c.l.b16 %v4503
    %v4671 = vunpack.c.l.b16 %v4504
    %v4672 = vunpack.c.l.b16 %v4505
    %v4673 = vunpack.c.l.b16 %v4506
    %v4674 = vunpack.c.l.b16 %v4507
    %v4675 = vunpack.c.l.b16 %v4508
    %v4676 = vunpack.c.l.b16 %v4509
    %v4677 = vunpack.c.l.b16 %v4510
    %v4678 = vunpack.c.l.b16 %v4511
    %v4679 = vunpack.c.l.b16 %v4512
    %v4680 = vunpack.c.l.b16 %v4513
    %v4681 = vunpack.c.l.b16 %v4514
    %v4682 = vunpack.c.l.b16 %v4515
    %v4683 = vunpack.c.l.b16 %v4516
    %v4684 = vunpack.c.l.b16 %v4517
    %v4685 = vunpack.c.l.b16 %v4518
    %v4686 = vunpack.c.l.b16 %v4519
    %v4687 = vunpack.c.l.b16 %v4520
    %v4688 = vunpack.c.l.b16 %v4521
    %v4689 = vunpack.c.l.b16 %v4522
    %v4690 = vunpack.c.l.b16 %v4523
    %v4691 = vunpack.c.l.b16 %v4524
    %v4692 = vunpack.c.l.b16 %v4525
    %v4693 = vunpack.c.l.b16 %v4526
    %v4694 = vunpack.c.l.b16 %v4527
    %v4695 = vunpack.c.l.b16 %v4528
    %v4696 = vunpack.c.l.b16 %v4529
    %v4697 = vunpack.c.l.b16 %v4530
    %v4698 = vunpack.c.l.b16 %v4531
    %v4699 = vunpack.c.l.b16 %v4532
    %v4700 = vunpack.c.l.b16 %v4533
    %v4701 = vunpack.c.l.b16 %v4534
    %v4702 = vunpack.c.l.b16 %v4535
    %v4703 = vunpack.c.l.b16 %v4536
    %v4704 = vunpack.c.l.b16 %v4537
    %v4705 = vunpack.c.l.b16 %v4538
    %v4706 = vunpack.c.l.b16 %v4539
    %v4707 = vunpack.c.l.b16 %v4540
    %v4708 = vunpack.c.l.b16 %v4541
    %v4709 = vunpack.c.l.b16 %v4542
    %v4710 = vunpack.c.l.b16 %v4543
    %v4711 = vunpack.c.l.b16 %v4544
    %v4712 = vunpack.c.l.b16 %v4545
    %v4713 = vunpack.c.l.b16 %v4546
    %v4714 = vunpack.c.l.b16 %v4547
    %v4715 = vunpack.c.l.b16 %v4548
    %v4716 = vunpack.c.l.b16 %v4549
    %v4717 = vunpack.c.l.b16 %v4550
    %v4718 = vunpack.c.l.b16 %v4551
    %v4719 = vunpack.c.l.b16 %v4552
    %v4720 = vunpack.c.l.b16 %v4553
    %v4721 = vunpack.c.l.b16 %v4554
    %v4722 = vunpack.c.l.b16 %v4555
    %v4723 = vunpack.c.l.b16 %v4556
    %v4724 = vunpack.c.l.b16 %v4557
    %v4725 = vunpack.c.l.b16 %v4558
    %v4726 = vunpack.c.l.b16 %v4559
    %v4727 = vpack.c.b16 %v4645, %v4644
    %v4728 = vpack.c.b16 %v4647, %v4646
    %v4729 = vpack.c.b16 %v4649, %v4648
    %v4730 = vpack.c.b16 %v4651, %v4650
    %v4731 = vpack.c.b16 %v4653, %v4652
    %v4732 = vpack.c.b16 %v4655, %v4654
    %v4733 = vpack.c.b16 %v4657, %v4656
    %v4734 = vpack.c.b16 %v4659, %v4658
    %v4735 = vpack.c.b16 %v4661, %v4660
    %v4736 = vpack.c.b16 %v4663, %v4662
    %v4737 = vpack.c.b16 %v4665, %v4664
    %v4738 = vpack.c.b16 %v4667, %v4666
    %v4739 = vpack.c.b16 %v4669, %v4668
    %v4740 = vpack.c.b16 %v4671, %v4670
    %v4741 = vpack.c.b16 %v4673, %v4672
    %v4742 = vpack.c.b16 %v4675, %v4674
    %v4743 = vpack.c.b16 %v4677, %v4676
    %v4744 = vpack.c.b16 %v4679, %v4678
    %v4745 = vpack.c.b16 %v4681, %v4680
    %v4746 = vpack.c.b16 %v4683, %v4682
    %v4747 = vpack.c.b16 %v4685, %v4684
    %v4748 = vpack.c.b16 %v4687, %v4686
    %v4749 = vpack.c.b16 %v4689, %v4688
    %v4750 = vpack.c.b16 %v4691, %v4690
    %v4751 = vpack.c.b16 %v4693, %v4692
    %v4752 = vpack.c.b16 %v4695, %v4694
    %v4753 = vpack.c.b16 %v4697, %v4696
    %v4754 = vpack.c.b16 %v4699, %v4698
    %v4755 = vpack.c.b16 %v4701, %v4700
    %v4756 = vpack.c.b16 %v4703, %v4702
    %v4757 = vpack.c.b16 %v4705, %v4704
    %v4758 = vpack.c.b16 %v4707, %v4706
    %v4759 = vpack.c.b16 %v4709, %v4708
    %v4760 = vpack.c.b16 %v4711, %v4710
    %v4761 = vpack.c.b16 %v4713, %v4712
    %v4762 = vpack.c.b16 %v4715, %v4714
    %v4763 = vpack.c.b16 %v4717, %v4716
    %v4764 = vpack.c.b16 %v4719, %v4718
    %v4765 = vpack.c.b16 %v4721, %v4720
    %v4766 = vpack.c.b16 %v4723, %v4722
    %v4767 = vpack.c.b16 %v4725, %v4724
    %v4768 = vpack.c.b16 %v4726, %v4726
    %vm4769 = vcmask 39936
    %v4771 = vsel %vm4769, %v4727, 0
    %v4774 = vsel %vm4769, %v4728, 0
    %v4777 = vsel %vm4769, %v4729, 0
    %v4780 = vsel %vm4769, %v4730, 0
    %v4783 = vsel %vm4769, %v4731, 0
    %v4786 = vsel %vm4769, %v4732, 0
    %v4789 = vsel %vm4769, %v4733, 0
    %v4792 = vsel %vm4769, %v4734, 0
    %v4795 = vsel %vm4769, %v4735, 0
    %v4798 = vsel %vm4769, %v4736, 0
    %v4801 = vsel %vm4769, %v4737, 0
    %v4804 = vsel %vm4769, %v4738, 0
    %v4807 = vsel %vm4769, %v4739, 0
    %v4810 = vsel %vm4769, %v4740, 0
    %v4813 = vsel %vm4769, %v4741, 0
    %v4816 = vsel %vm4769, %v4742, 0
    %v4819 = vsel %vm4769, %v4743, 0
    %v4822 = vsel %vm4769, %v4744, 0
    %v4825 = vsel %vm4769, %v4745, 0
    %v4828 = vsel %vm4769, %v4746, 0
    %v4831 = vsel %vm4769, %v4747, 0
    %v4834 = vsel %vm4769, %v4748, 0
    %v4837 = vsel %vm4769, %v4749, 0
    %v4840 = vsel %vm4769, %v4750, 0
    %v4843 = vsel %vm4769, %v4751, 0
    %v4846 = vsel %vm4769, %v4752, 0
    %v4849 = vsel %vm4769, %v4753, 0
    %v4852 = vsel %vm4769, %v4754, 0
    %v4855 = vsel %vm4769, %v4755, 0
    %v4858 = vsel %vm4769, %v4756, 0
    %v4861 = vsel %vm4769, %v4757, 0
    %v4864 = vsel %vm4769, %v4758, 0
    %v4867 = vsel %vm4769, %v4759, 0
    %v4870 = vsel %vm4769, %v4760, 0
    %v4873 = vsel %vm4769, %v4761, 0
    %v4876 = vsel %vm4769, %v4762, 0
    %v4879 = vsel %vm4769, %v4763, 0
    %v4882 = vsel %vm4769, %v4764, 0
    %v4885 = vsel %vm4769, %v4765, 0
    %v4888 = vsel %vm4769, %v4766, 0
    %v4891 = vsel %vm4769, %v4767, 0
    %v4894 = vsel %vm4769, %v4768, 0
    %vm4896 = vcmask 1041408
    %vm4897 = vcmask 1042432
    %v4898 = vsel %vm4896, 4294967295, 65535
    %v4899 = vsel %vm4897, %v4898, 0
    %v4901 = vand.u32 %v4560, %v4899
    %4903 = vmatpush.bf16.msra.mxu0 0
    %4904 = vmatpush.bf16.msra.mxu0 0
    %4905 = vmatpush.bf16.msra.mxu0 0
    %4906 = vmatpush.bf16.msra.mxu0 0
    %4907 = vmatpush.bf16.msra.mxu0 0
    %4908 = vmatpush.bf16.msra.mxu0 0
    %4909 = vmatpush.bf16.msra.mxu0 0
    %4910 = vmatpush.bf16.msra.mxu0 %v4901
    %4911 = vmatmul.bf16.gmra.mxu0 %v4771
    %v4912 = vpop.f32.mrf.mxu0
    %v4913 = vadd.f32 0.0, %v4912
    %v4914 = vpop.f32.mrf.mxu0
    %v4915 = vadd.f32 0.0, %v4914
    %4916 = vmatmul.bf16.gmra.mxu0 %v4774
    %v4917 = vpop.f32.mrf.mxu0
    %v4918 = vadd.f32 0.0, %v4917
    %v4919 = vpop.f32.mrf.mxu0
    %v4920 = vadd.f32 0.0, %v4919
    %4921 = vmatmul.bf16.gmra.mxu0 %v4777
    %v4922 = vpop.f32.mrf.mxu0
    %v4923 = vadd.f32 0.0, %v4922
    %v4924 = vpop.f32.mrf.mxu0
    %v4925 = vadd.f32 0.0, %v4924
    %4926 = vmatmul.bf16.gmra.mxu0 %v4780
    %v4927 = vpop.f32.mrf.mxu0
    %v4928 = vadd.f32 0.0, %v4927
    %v4929 = vpop.f32.mrf.mxu0
    %v4930 = vadd.f32 0.0, %v4929
    %4931 = vmatmul.bf16.gmra.mxu0 %v4783
    %v4932 = vpop.f32.mrf.mxu0
    %v4933 = vadd.f32 0.0, %v4932
    %v4934 = vpop.f32.mrf.mxu0
    %v4935 = vadd.f32 0.0, %v4934
    %4936 = vmatmul.bf16.gmra.mxu0 %v4786
    %v4937 = vpop.f32.mrf.mxu0
    %v4938 = vadd.f32 0.0, %v4937
    %v4939 = vpop.f32.mrf.mxu0
    %v4940 = vadd.f32 0.0, %v4939
    %4941 = vmatmul.bf16.gmra.mxu0 %v4789
    %v4942 = vpop.f32.mrf.mxu0
    %v4943 = vadd.f32 0.0, %v4942
    %v4944 = vpop.f32.mrf.mxu0
    %v4945 = vadd.f32 0.0, %v4944
    %4946 = vmatmul.bf16.gmra.mxu0 %v4792
    %v4947 = vpop.f32.mrf.mxu0
    %v4948 = vadd.f32 0.0, %v4947
    %v4949 = vpop.f32.mrf.mxu0
    %v4950 = vadd.f32 0.0, %v4949
    %4951 = vmatmul.bf16.gmra.mxu0 %v4795
    %v4952 = vpop.f32.mrf.mxu0
    %v4953 = vadd.f32 0.0, %v4952
    %v4954 = vpop.f32.mrf.mxu0
    %v4955 = vadd.f32 0.0, %v4954
    %4956 = vmatmul.bf16.gmra.mxu0 %v4798
    %v4957 = vpop.f32.mrf.mxu0
    %v4958 = vadd.f32 0.0, %v4957
    %v4959 = vpop.f32.mrf.mxu0
    %v4960 = vadd.f32 0.0, %v4959
    %4961 = vmatmul.bf16.gmra.mxu0 %v4801
    %v4962 = vpop.f32.mrf.mxu0
    %v4963 = vadd.f32 0.0, %v4962
    %v4964 = vpop.f32.mrf.mxu0
    %v4965 = vadd.f32 0.0, %v4964
    %4966 = vmatmul.bf16.gmra.mxu0 %v4804
    %v4967 = vpop.f32.mrf.mxu0
    %v4968 = vadd.f32 0.0, %v4967
    %v4969 = vpop.f32.mrf.mxu0
    %v4970 = vadd.f32 0.0, %v4969
    %4971 = vmatmul.bf16.gmra.mxu0 %v4807
    %v4972 = vpop.f32.mrf.mxu0
    %v4973 = vadd.f32 0.0, %v4972
    %v4974 = vpop.f32.mrf.mxu0
    %v4975 = vadd.f32 0.0, %v4974
    %4976 = vmatmul.bf16.gmra.mxu0 %v4810
    %v4977 = vpop.f32.mrf.mxu0
    %v4978 = vadd.f32 0.0, %v4977
    %v4979 = vpop.f32.mrf.mxu0
    %v4980 = vadd.f32 0.0, %v4979
    %4981 = vmatmul.bf16.gmra.mxu0 %v4813
    %v4982 = vpop.f32.mrf.mxu0
    %v4983 = vadd.f32 0.0, %v4982
    %v4984 = vpop.f32.mrf.mxu0
    %v4985 = vadd.f32 0.0, %v4984
    %4986 = vmatmul.bf16.gmra.mxu0 %v4816
    %v4987 = vpop.f32.mrf.mxu0
    %v4988 = vadd.f32 0.0, %v4987
    %v4989 = vpop.f32.mrf.mxu0
    %v4990 = vadd.f32 0.0, %v4989
    %4991 = vmatmul.bf16.gmra.mxu0 %v4819
    %v4992 = vpop.f32.mrf.mxu0
    %v4993 = vadd.f32 0.0, %v4992
    %v4994 = vpop.f32.mrf.mxu0
    %v4995 = vadd.f32 0.0, %v4994
    %4996 = vmatmul.bf16.gmra.mxu0 %v4822
    %v4997 = vpop.f32.mrf.mxu0
    %v4998 = vadd.f32 0.0, %v4997
    %v4999 = vpop.f32.mrf.mxu0
    %v5000 = vadd.f32 0.0, %v4999
    %5001 = vmatmul.bf16.gmra.mxu0 %v4825
    %v5002 = vpop.f32.mrf.mxu0
    %v5003 = vadd.f32 0.0, %v5002
    %v5004 = vpop.f32.mrf.mxu0
    %v5005 = vadd.f32 0.0, %v5004
    %5006 = vmatmul.bf16.gmra.mxu0 %v4828
    %v5007 = vpop.f32.mrf.mxu0
    %v5008 = vadd.f32 0.0, %v5007
    %v5009 = vpop.f32.mrf.mxu0
    %v5010 = vadd.f32 0.0, %v5009
    %5011 = vmatmul.bf16.gmra.mxu0 %v4831
    %v5012 = vpop.f32.mrf.mxu0
    %v5013 = vadd.f32 0.0, %v5012
    %v5014 = vpop.f32.mrf.mxu0
    %v5015 = vadd.f32 0.0, %v5014
    %5016 = vmatmul.bf16.gmra.mxu0 %v4834
    %v5017 = vpop.f32.mrf.mxu0
    %v5018 = vadd.f32 0.0, %v5017
    %v5019 = vpop.f32.mrf.mxu0
    %v5020 = vadd.f32 0.0, %v5019
    %5021 = vmatmul.bf16.gmra.mxu0 %v4837
    %v5022 = vpop.f32.mrf.mxu0
    %v5023 = vadd.f32 0.0, %v5022
    %v5024 = vpop.f32.mrf.mxu0
    %v5025 = vadd.f32 0.0, %v5024
    %5026 = vmatmul.bf16.gmra.mxu0 %v4840
    %v5027 = vpop.f32.mrf.mxu0
    %v5028 = vadd.f32 0.0, %v5027
    %v5029 = vpop.f32.mrf.mxu0
    %v5030 = vadd.f32 0.0, %v5029
    %5031 = vmatmul.bf16.gmra.mxu0 %v4843
    %v5032 = vpop.f32.mrf.mxu0
    %v5033 = vadd.f32 0.0, %v5032
    %v5034 = vpop.f32.mrf.mxu0
    %v5035 = vadd.f32 0.0, %v5034
    %5036 = vmatmul.bf16.gmra.mxu0 %v4846
    %v5037 = vpop.f32.mrf.mxu0
    %v5038 = vadd.f32 0.0, %v5037
    %v5039 = vpop.f32.mrf.mxu0
    %v5040 = vadd.f32 0.0, %v5039
    %5041 = vmatmul.bf16.gmra.mxu0 %v4849
    %v5042 = vpop.f32.mrf.mxu0
    %v5043 = vadd.f32 0.0, %v5042
    %v5044 = vpop.f32.mrf.mxu0
    %v5045 = vadd.f32 0.0, %v5044
    %5046 = vmatmul.bf16.gmra.mxu0 %v4852
    %v5047 = vpop.f32.mrf.mxu0
    %v5048 = vadd.f32 0.0, %v5047
    %v5049 = vpop.f32.mrf.mxu0
    %v5050 = vadd.f32 0.0, %v5049
    %5051 = vmatmul.bf16.gmra.mxu0 %v4855
    %v5052 = vpop.f32.mrf.mxu0
    %v5053 = vadd.f32 0.0, %v5052
    %v5054 = vpop.f32.mrf.mxu0
    %v5055 = vadd.f32 0.0, %v5054
    %5056 = vmatmul.bf16.gmra.mxu0 %v4858
    %v5057 = vpop.f32.mrf.mxu0
    %v5058 = vadd.f32 0.0, %v5057
    %v5059 = vpop.f32.mrf.mxu0
    %v5060 = vadd.f32 0.0, %v5059
    %5061 = vmatmul.bf16.gmra.mxu0 %v4861
    %v5062 = vpop.f32.mrf.mxu0
    %v5063 = vadd.f32 0.0, %v5062
    %v5064 = vpop.f32.mrf.mxu0
    %v5065 = vadd.f32 0.0, %v5064
    %5066 = vmatmul.bf16.gmra.mxu0 %v4864
    %v5067 = vpop.f32.mrf.mxu0
    %v5068 = vadd.f32 0.0, %v5067
    %v5069 = vpop.f32.mrf.mxu0
    %v5070 = vadd.f32 0.0, %v5069
    %5071 = vmatmul.bf16.gmra.mxu0 %v4867
    %v5072 = vpop.f32.mrf.mxu0
    %v5073 = vadd.f32 0.0, %v5072
    %v5074 = vpop.f32.mrf.mxu0
    %v5075 = vadd.f32 0.0, %v5074
    %5076 = vmatmul.bf16.gmra.mxu0 %v4870
    %v5077 = vpop.f32.mrf.mxu0
    %v5078 = vadd.f32 0.0, %v5077
    %v5079 = vpop.f32.mrf.mxu0
    %v5080 = vadd.f32 0.0, %v5079
    %5081 = vmatmul.bf16.gmra.mxu0 %v4873
    %v5082 = vpop.f32.mrf.mxu0
    %v5083 = vadd.f32 0.0, %v5082
    %v5084 = vpop.f32.mrf.mxu0
    %v5085 = vadd.f32 0.0, %v5084
    %5086 = vmatmul.bf16.gmra.mxu0 %v4876
    %v5087 = vpop.f32.mrf.mxu0
    %v5088 = vadd.f32 0.0, %v5087
    %v5089 = vpop.f32.mrf.mxu0
    %v5090 = vadd.f32 0.0, %v5089
    %5091 = vmatmul.bf16.gmra.mxu0 %v4879
    %v5092 = vpop.f32.mrf.mxu0
    %v5093 = vadd.f32 0.0, %v5092
    %v5094 = vpop.f32.mrf.mxu0
    %v5095 = vadd.f32 0.0, %v5094
    %5096 = vmatmul.bf16.gmra.mxu0 %v4882
    %v5097 = vpop.f32.mrf.mxu0
    %v5098 = vadd.f32 0.0, %v5097
    %v5099 = vpop.f32.mrf.mxu0
    %v5100 = vadd.f32 0.0, %v5099
    %5101 = vmatmul.bf16.gmra.mxu0 %v4885
    %v5102 = vpop.f32.mrf.mxu0
    %v5103 = vadd.f32 0.0, %v5102
    %v5104 = vpop.f32.mrf.mxu0
    %v5105 = vadd.f32 0.0, %v5104
    %5106 = vmatmul.bf16.gmra.mxu0 %v4888
    %v5107 = vpop.f32.mrf.mxu0
    %v5108 = vadd.f32 0.0, %v5107
    %v5109 = vpop.f32.mrf.mxu0
    %v5110 = vadd.f32 0.0, %v5109
    %5111 = vmatmul.bf16.gmra.mxu0 %v4891
    %v5112 = vpop.f32.mrf.mxu0
    %v5113 = vadd.f32 0.0, %v5112
    %v5114 = vpop.f32.mrf.mxu0
    %v5115 = vadd.f32 0.0, %v5114
    %5116 = vmatmul.bf16.gmra.mxu0 %v4894
    %v5117 = vpop.f32.mrf.mxu0
    %v5118 = vadd.f32 0.0, %v5117
    %v5119 = vpop.f32.mrf.mxu0
    %5120 = vdwg.mxu0
    %v5121 = vld [vmem:[%s2] sm:$0x1]
    %v5123 = vperm.slane %v5121, 0
    %v5125 = vmul.f32 %v4913, %v5123
    %v5126 = vmul.f32 %v4915, %v5123
    %v5127 = vmul.f32 %v4918, %v5123
    %v5128 = vmul.f32 %v4920, %v5123
    %v5129 = vmul.f32 %v4923, %v5123
    %v5130 = vmul.f32 %v4925, %v5123
    %v5131 = vmul.f32 %v4928, %v5123
    %v5132 = vmul.f32 %v4930, %v5123
    %v5133 = vmul.f32 %v4933, %v5123
    %v5134 = vmul.f32 %v4935, %v5123
    %v5135 = vmul.f32 %v4938, %v5123
    %v5136 = vmul.f32 %v4940, %v5123
    %v5137 = vmul.f32 %v4943, %v5123
    %v5138 = vmul.f32 %v4945, %v5123
    %v5139 = vmul.f32 %v4948, %v5123
    %v5140 = vmul.f32 %v4950, %v5123
    %v5141 = vmul.f32 %v4953, %v5123
    %v5142 = vmul.f32 %v4955, %v5123
    %v5143 = vmul.f32 %v4958, %v5123
    %v5144 = vmul.f32 %v4960, %v5123
    %v5145 = vmul.f32 %v4963, %v5123
    %v5146 = vmul.f32 %v4965, %v5123
    %v5147 = vmul.f32 %v4968, %v5123
    %v5148 = vmul.f32 %v4970, %v5123
    %v5149 = vmul.f32 %v4973, %v5123
    %v5150 = vmul.f32 %v4975, %v5123
    %v5151 = vmul.f32 %v4978, %v5123
    %v5152 = vmul.f32 %v4980, %v5123
    %v5153 = vmul.f32 %v4983, %v5123
    %v5154 = vmul.f32 %v4985, %v5123
    %v5155 = vmul.f32 %v4988, %v5123
    %v5156 = vmul.f32 %v4990, %v5123
    %v5157 = vmul.f32 %v4993, %v5123
    %v5158 = vmul.f32 %v4995, %v5123
    %v5159 = vmul.f32 %v4998, %v5123
    %v5160 = vmul.f32 %v5000, %v5123
    %v5161 = vmul.f32 %v5003, %v5123
    %v5162 = vmul.f32 %v5005, %v5123
    %v5163 = vmul.f32 %v5008, %v5123
    %v5164 = vmul.f32 %v5010, %v5123
    %v5165 = vmul.f32 %v5013, %v5123
    %v5166 = vmul.f32 %v5015, %v5123
    %v5167 = vmul.f32 %v5018, %v5123
    %v5168 = vmul.f32 %v5020, %v5123
    %v5169 = vmul.f32 %v5023, %v5123
    %v5170 = vmul.f32 %v5025, %v5123
    %v5171 = vmul.f32 %v5028, %v5123
    %v5172 = vmul.f32 %v5030, %v5123
    %v5173 = vmul.f32 %v5033, %v5123
    %v5174 = vmul.f32 %v5035, %v5123
    %v5175 = vmul.f32 %v5038, %v5123
    %v5176 = vmul.f32 %v5040, %v5123
    %v5177 = vmul.f32 %v5043, %v5123
    %v5178 = vmul.f32 %v5045, %v5123
    %v5179 = vmul.f32 %v5048, %v5123
    %v5180 = vmul.f32 %v5050, %v5123
    %v5181 = vmul.f32 %v5053, %v5123
    %v5182 = vmul.f32 %v5055, %v5123
    %v5183 = vmul.f32 %v5058, %v5123
    %v5184 = vmul.f32 %v5060, %v5123
    %v5185 = vmul.f32 %v5063, %v5123
    %v5186 = vmul.f32 %v5065, %v5123
    %v5187 = vmul.f32 %v5068, %v5123
    %v5188 = vmul.f32 %v5070, %v5123
    %v5189 = vmul.f32 %v5073, %v5123
    %v5190 = vmul.f32 %v5075, %v5123
    %v5191 = vmul.f32 %v5078, %v5123
    %v5192 = vmul.f32 %v5080, %v5123
    %v5193 = vmul.f32 %v5083, %v5123
    %v5194 = vmul.f32 %v5085, %v5123
    %v5195 = vmul.f32 %v5088, %v5123
    %v5196 = vmul.f32 %v5090, %v5123
    %v5197 = vmul.f32 %v5093, %v5123
    %v5198 = vmul.f32 %v5095, %v5123
    %v5199 = vmul.f32 %v5098, %v5123
    %v5200 = vmul.f32 %v5100, %v5123
    %v5201 = vmul.f32 %v5103, %v5123
    %v5202 = vmul.f32 %v5105, %v5123
    %v5203 = vmul.f32 %v5108, %v5123
    %v5204 = vmul.f32 %v5110, %v5123
    %v5205 = vmul.f32 %v5113, %v5123
    %v5206 = vmul.f32 %v5115, %v5123
    %v5207 = vmul.f32 %v5118, %v5123
    %v5208 = vld [vmem:[%s3] sm:$0x1]
    %v5210 = vperm.slane %v5208, 0
    %v5212 = vadd.f32 %v5125, %v5210
    %v5213 = vadd.f32 %v5126, %v5210
    %v5214 = vadd.f32 %v5127, %v5210
    %v5215 = vadd.f32 %v5128, %v5210
    %v5216 = vadd.f32 %v5129, %v5210
    %v5217 = vadd.f32 %v5130, %v5210
    %v5218 = vadd.f32 %v5131, %v5210
    %v5219 = vadd.f32 %v5132, %v5210
    %v5220 = vadd.f32 %v5133, %v5210
    %v5221 = vadd.f32 %v5134, %v5210
    %v5222 = vadd.f32 %v5135, %v5210
    %v5223 = vadd.f32 %v5136, %v5210
    %v5224 = vadd.f32 %v5137, %v5210
    %v5225 = vadd.f32 %v5138, %v5210
    %v5226 = vadd.f32 %v5139, %v5210
    %v5227 = vadd.f32 %v5140, %v5210
    %v5228 = vadd.f32 %v5141, %v5210
    %v5229 = vadd.f32 %v5142, %v5210
    %v5230 = vadd.f32 %v5143, %v5210
    %v5231 = vadd.f32 %v5144, %v5210
    %v5232 = vadd.f32 %v5145, %v5210
    %v5233 = vadd.f32 %v5146, %v5210
    %v5234 = vadd.f32 %v5147, %v5210
    %v5235 = vadd.f32 %v5148, %v5210
    %v5236 = vadd.f32 %v5149, %v5210
    %v5237 = vadd.f32 %v5150, %v5210
    %v5238 = vadd.f32 %v5151, %v5210
    %v5239 = vadd.f32 %v5152, %v5210
    %v5240 = vadd.f32 %v5153, %v5210
    %v5241 = vadd.f32 %v5154, %v5210
    %v5242 = vadd.f32 %v5155, %v5210
    %v5243 = vadd.f32 %v5156, %v5210
    %v5244 = vadd.f32 %v5157, %v5210
    %v5245 = vadd.f32 %v5158, %v5210
    %v5246 = vadd.f32 %v5159, %v5210
    %v5247 = vadd.f32 %v5160, %v5210
    %v5248 = vadd.f32 %v5161, %v5210
    %v5249 = vadd.f32 %v5162, %v5210
    %v5250 = vadd.f32 %v5163, %v5210
    %v5251 = vadd.f32 %v5164, %v5210
    %v5252 = vadd.f32 %v5165, %v5210
    %v5253 = vadd.f32 %v5166, %v5210
    %v5254 = vadd.f32 %v5167, %v5210
    %v5255 = vadd.f32 %v5168, %v5210
    %v5256 = vadd.f32 %v5169, %v5210
    %v5257 = vadd.f32 %v5170, %v5210
    %v5258 = vadd.f32 %v5171, %v5210
    %v5259 = vadd.f32 %v5172, %v5210
    %v5260 = vadd.f32 %v5173, %v5210
    %v5261 = vadd.f32 %v5174, %v5210
    %v5262 = vadd.f32 %v5175, %v5210
    %v5263 = vadd.f32 %v5176, %v5210
    %v5264 = vadd.f32 %v5177, %v5210
    %v5265 = vadd.f32 %v5178, %v5210
    %v5266 = vadd.f32 %v5179, %v5210
    %v5267 = vadd.f32 %v5180, %v5210
    %v5268 = vadd.f32 %v5181, %v5210
    %v5269 = vadd.f32 %v5182, %v5210
    %v5270 = vadd.f32 %v5183, %v5210
    %v5271 = vadd.f32 %v5184, %v5210
    %v5272 = vadd.f32 %v5185, %v5210
    %v5273 = vadd.f32 %v5186, %v5210
    %v5274 = vadd.f32 %v5187, %v5210
    %v5275 = vadd.f32 %v5188, %v5210
    %v5276 = vadd.f32 %v5189, %v5210
    %v5277 = vadd.f32 %v5190, %v5210
    %v5278 = vadd.f32 %v5191, %v5210
    %v5279 = vadd.f32 %v5192, %v5210
    %v5280 = vadd.f32 %v5193, %v5210
    %v5281 = vadd.f32 %v5194, %v5210
    %v5282 = vadd.f32 %v5195, %v5210
    %v5283 = vadd.f32 %v5196, %v5210
    %v5284 = vadd.f32 %v5197, %v5210
    %v5285 = vadd.f32 %v5198, %v5210
    %v5286 = vadd.f32 %v5199, %v5210
    %v5287 = vadd.f32 %v5200, %v5210
    %v5288 = vadd.f32 %v5201, %v5210
    %v5289 = vadd.f32 %v5202, %v5210
    %v5290 = vadd.f32 %v5203, %v5210
    %v5291 = vadd.f32 %v5204, %v5210
    %v5292 = vadd.f32 %v5205, %v5210
    %v5293 = vadd.f32 %v5206, %v5210
    %v5294 = vadd.f32 %v5207, %v5210
    %v5295 = vmax.f32 %v5212, 0.0
    %v5296 = vmax.f32 %v5213, 0.0
    %v5297 = vmax.f32 %v5214, 0.0
    %v5298 = vmax.f32 %v5215, 0.0
    %v5299 = vmax.f32 %v5216, 0.0
    %v5300 = vmax.f32 %v5217, 0.0
    %v5301 = vmax.f32 %v5218, 0.0
    %v5302 = vmax.f32 %v5219, 0.0
    %v5303 = vmax.f32 %v5220, 0.0
    %v5304 = vmax.f32 %v5221, 0.0
    %v5305 = vmax.f32 %v5222, 0.0
    %v5306 = vmax.f32 %v5223, 0.0
    %v5307 = vmax.f32 %v5224, 0.0
    %v5308 = vmax.f32 %v5225, 0.0
    %v5309 = vmax.f32 %v5226, 0.0
    %v5310 = vmax.f32 %v5227, 0.0
    %v5311 = vmax.f32 %v5228, 0.0
    %v5312 = vmax.f32 %v5229, 0.0
    %v5313 = vmax.f32 %v5230, 0.0
    %v5314 = vmax.f32 %v5231, 0.0
    %v5315 = vmax.f32 %v5232, 0.0
    %v5316 = vmax.f32 %v5233, 0.0
    %v5317 = vmax.f32 %v5234, 0.0
    %v5318 = vmax.f32 %v5235, 0.0
    %v5319 = vmax.f32 %v5236, 0.0
    %v5320 = vmax.f32 %v5237, 0.0
    %v5321 = vmax.f32 %v5238, 0.0
    %v5322 = vmax.f32 %v5239, 0.0
    %v5323 = vmax.f32 %v5240, 0.0
    %v5324 = vmax.f32 %v5241, 0.0
    %v5325 = vmax.f32 %v5242, 0.0
    %v5326 = vmax.f32 %v5243, 0.0
    %v5327 = vmax.f32 %v5244, 0.0
    %v5328 = vmax.f32 %v5245, 0.0
    %v5329 = vmax.f32 %v5246, 0.0
    %v5330 = vmax.f32 %v5247, 0.0
    %v5331 = vmax.f32 %v5248, 0.0
    %v5332 = vmax.f32 %v5249, 0.0
    %v5333 = vmax.f32 %v5250, 0.0
    %v5334 = vmax.f32 %v5251, 0.0
    %v5335 = vmax.f32 %v5252, 0.0
    %v5336 = vmax.f32 %v5253, 0.0
    %v5337 = vmax.f32 %v5254, 0.0
    %v5338 = vmax.f32 %v5255, 0.0
    %v5339 = vmax.f32 %v5256, 0.0
    %v5340 = vmax.f32 %v5257, 0.0
    %v5341 = vmax.f32 %v5258, 0.0
    %v5342 = vmax.f32 %v5259, 0.0
    %v5343 = vmax.f32 %v5260, 0.0
    %v5344 = vmax.f32 %v5261, 0.0
    %v5345 = vmax.f32 %v5262, 0.0
    %v5346 = vmax.f32 %v5263, 0.0
    %v5347 = vmax.f32 %v5264, 0.0
    %v5348 = vmax.f32 %v5265, 0.0
    %v5349 = vmax.f32 %v5266, 0.0
    %v5350 = vmax.f32 %v5267, 0.0
    %v5351 = vmax.f32 %v5268, 0.0
    %v5352 = vmax.f32 %v5269, 0.0
    %v5353 = vmax.f32 %v5270, 0.0
    %v5354 = vmax.f32 %v5271, 0.0
    %v5355 = vmax.f32 %v5272, 0.0
    %v5356 = vmax.f32 %v5273, 0.0
    %v5357 = vmax.f32 %v5274, 0.0
    %v5358 = vmax.f32 %v5275, 0.0
    %v5359 = vmax.f32 %v5276, 0.0
    %v5360 = vmax.f32 %v5277, 0.0
    %v5361 = vmax.f32 %v5278, 0.0
    %v5362 = vmax.f32 %v5279, 0.0
    %v5363 = vmax.f32 %v5280, 0.0
    %v5364 = vmax.f32 %v5281, 0.0
    %v5365 = vmax.f32 %v5282, 0.0
    %v5366 = vmax.f32 %v5283, 0.0
    %v5367 = vmax.f32 %v5284, 0.0
    %v5368 = vmax.f32 %v5285, 0.0
    %v5369 = vmax.f32 %v5286, 0.0
    %v5370 = vmax.f32 %v5287, 0.0
    %v5371 = vmax.f32 %v5288, 0.0
    %v5372 = vmax.f32 %v5289, 0.0
    %v5373 = vmax.f32 %v5290, 0.0
    %v5374 = vmax.f32 %v5291, 0.0
    %v5375 = vmax.f32 %v5292, 0.0
    %v5376 = vmax.f32 %v5293, 0.0
    %v5377 = vmax.f32 %v5294, 0.0
    %vm5378 = vcmask 261120
    %5379 = vst.msk [vmem:[#allocation3] sm:$0xff] %vm5378, %v5295
    %5380 = vst.msk [vmem:[#allocation3 + $0x8] sm:$0xff] %vm5378, %v5296
    %5381 = vst.msk [vmem:[#allocation3 + $0x10] sm:$0xff] %vm5378, %v5297
    %5382 = vst.msk [vmem:[#allocation3 + $0x18] sm:$0xff] %vm5378, %v5298
    %5383 = vst.msk [vmem:[#allocation3 + $0x20] sm:$0xff] %vm5378, %v5299
    %5384 = vst.msk [vmem:[#allocation3 + $0x28] sm:$0xff] %vm5378, %v5300
    %5385 = vst.msk [vmem:[#allocation3 + $0x30] sm:$0xff] %vm5378, %v5301
    %5386 = vst.msk [vmem:[#allocation3 + $0x38] sm:$0xff] %vm5378, %v5302
    %5387 = vst.msk [vmem:[#allocation3 + $0x40] sm:$0xff] %vm5378, %v5303
    %5388 = vst.msk [vmem:[#allocation3 + $0x48] sm:$0xff] %vm5378, %v5304
    %5389 = vst.msk [vmem:[#allocation3 + $0x50] sm:$0xff] %vm5378, %v5305
    %5390 = vst.msk [vmem:[#allocation3 + $0x58] sm:$0xff] %vm5378, %v5306
    %5391 = vst.msk [vmem:[#allocation3 + $0x60] sm:$0xff] %vm5378, %v5307
    %5392 = vst.msk [vmem:[#allocation3 + $0x68] sm:$0xff] %vm5378, %v5308
    %5393 = vst.msk [vmem:[#allocation3 + $0x70] sm:$0xff] %vm5378, %v5309
    %5394 = vst.msk [vmem:[#allocation3 + $0x78] sm:$0xff] %vm5378, %v5310
    %5395 = vst.msk [vmem:[#allocation3 + $0x80] sm:$0xff] %vm5378, %v5311
    %5396 = vst.msk [vmem:[#allocation3 + $0x88] sm:$0xff] %vm5378, %v5312
    %5397 = vst.msk [vmem:[#allocation3 + $0x90] sm:$0xff] %vm5378, %v5313
    %5398 = vst.msk [vmem:[#allocation3 + $0x98] sm:$0xff] %vm5378, %v5314
    %5399 = vst.msk [vmem:[#allocation3 + $0xa0] sm:$0xff] %vm5378, %v5315
    %5400 = vst.msk [vmem:[#allocation3 + $0xa8] sm:$0xff] %vm5378, %v5316
    %5401 = vst.msk [vmem:[#allocation3 + $0xb0] sm:$0xff] %vm5378, %v5317
    %5402 = vst.msk [vmem:[#allocation3 + $0xb8] sm:$0xff] %vm5378, %v5318
    %5403 = vst.msk [vmem:[#allocation3 + $0xc0] sm:$0xff] %vm5378, %v5319
    %5404 = vst.msk [vmem:[#allocation3 + $0xc8] sm:$0xff] %vm5378, %v5320
    %5405 = vst.msk [vmem:[#allocation3 + $0xd0] sm:$0xff] %vm5378, %v5321
    %5406 = vst.msk [vmem:[#allocation3 + $0xd8] sm:$0xff] %vm5378, %v5322
    %5407 = vst.msk [vmem:[#allocation3 + $0xe0] sm:$0xff] %vm5378, %v5323
    %5408 = vst.msk [vmem:[#allocation3 + $0xe8] sm:$0xff] %vm5378, %v5324
    %5409 = vst.msk [vmem:[#allocation3 + $0xf0] sm:$0xff] %vm5378, %v5325
    %5410 = vst.msk [vmem:[#allocation3 + $0xf8] sm:$0xff] %vm5378, %v5326
    %5411 = vst.msk [vmem:[#allocation3 + $0x100] sm:$0xff] %vm5378, %v5327
    %5412 = vst.msk [vmem:[#allocation3 + $0x108] sm:$0xff] %vm5378, %v5328
    %5413 = vst.msk [vmem:[#allocation3 + $0x110] sm:$0xff] %vm5378, %v5329
    %5414 = vst.msk [vmem:[#allocation3 + $0x118] sm:$0xff] %vm5378, %v5330
    %5415 = vst.msk [vmem:[#allocation3 + $0x120] sm:$0xff] %vm5378, %v5331
    %5416 = vst.msk [vmem:[#allocation3 + $0x128] sm:$0xff] %vm5378, %v5332
    %5417 = vst.msk [vmem:[#allocation3 + $0x130] sm:$0xff] %vm5378, %v5333
    %5418 = vst.msk [vmem:[#allocation3 + $0x138] sm:$0xff] %vm5378, %v5334
    %5419 = vst.msk [vmem:[#allocation3 + $0x140] sm:$0xff] %vm5378, %v5335
    %5420 = vst.msk [vmem:[#allocation3 + $0x148] sm:$0xff] %vm5378, %v5336
    %5421 = vst.msk [vmem:[#allocation3 + $0x150] sm:$0xff] %vm5378, %v5337
    %5422 = vst.msk [vmem:[#allocation3 + $0x158] sm:$0xff] %vm5378, %v5338
    %5423 = vst.msk [vmem:[#allocation3 + $0x160] sm:$0xff] %vm5378, %v5339
    %5424 = vst.msk [vmem:[#allocation3 + $0x168] sm:$0xff] %vm5378, %v5340
    %5425 = vst.msk [vmem:[#allocation3 + $0x170] sm:$0xff] %vm5378, %v5341
    %5426 = vst.msk [vmem:[#allocation3 + $0x178] sm:$0xff] %vm5378, %v5342
    %5427 = vst.msk [vmem:[#allocation3 + $0x180] sm:$0xff] %vm5378, %v5343
    %5428 = vst.msk [vmem:[#allocation3 + $0x188] sm:$0xff] %vm5378, %v5344
    %5429 = vst.msk [vmem:[#allocation3 + $0x190] sm:$0xff] %vm5378, %v5345
    %5430 = vst.msk [vmem:[#allocation3 + $0x198] sm:$0xff] %vm5378, %v5346
    %5431 = vst.msk [vmem:[#allocation3 + $0x1a0] sm:$0xff] %vm5378, %v5347
    %5432 = vst.msk [vmem:[#allocation3 + $0x1a8] sm:$0xff] %vm5378, %v5348
    %5433 = vst.msk [vmem:[#allocation3 + $0x1b0] sm:$0xff] %vm5378, %v5349
    %5434 = vst.msk [vmem:[#allocation3 + $0x1b8] sm:$0xff] %vm5378, %v5350
    %5435 = vst.msk [vmem:[#allocation3 + $0x1c0] sm:$0xff] %vm5378, %v5351
    %5436 = vst.msk [vmem:[#allocation3 + $0x1c8] sm:$0xff] %vm5378, %v5352
    %5437 = vst.msk [vmem:[#allocation3 + $0x1d0] sm:$0xff] %vm5378, %v5353
    %5438 = vst.msk [vmem:[#allocation3 + $0x1d8] sm:$0xff] %vm5378, %v5354
    %5439 = vst.msk [vmem:[#allocation3 + $0x1e0] sm:$0xff] %vm5378, %v5355
    %5440 = vst.msk [vmem:[#allocation3 + $0x1e8] sm:$0xff] %vm5378, %v5356
    %5441 = vst.msk [vmem:[#allocation3 + $0x1f0] sm:$0xff] %vm5378, %v5357
    %5442 = vst.msk [vmem:[#allocation3 + $0x1f8] sm:$0xff] %vm5378, %v5358
    %5443 = vst.msk [vmem:[#allocation3 + $0x200] sm:$0xff] %vm5378, %v5359
    %5444 = vst.msk [vmem:[#allocation3 + $0x208] sm:$0xff] %vm5378, %v5360
    %5445 = vst.msk [vmem:[#allocation3 + $0x210] sm:$0xff] %vm5378, %v5361
    %5446 = vst.msk [vmem:[#allocation3 + $0x218] sm:$0xff] %vm5378, %v5362
    %5447 = vst.msk [vmem:[#allocation3 + $0x220] sm:$0xff] %vm5378, %v5363
    %5448 = vst.msk [vmem:[#allocation3 + $0x228] sm:$0xff] %vm5378, %v5364
    %5449 = vst.msk [vmem:[#allocation3 + $0x230] sm:$0xff] %vm5378, %v5365
    %5450 = vst.msk [vmem:[#allocation3 + $0x238] sm:$0xff] %vm5378, %v5366
    %5451 = vst.msk [vmem:[#allocation3 + $0x240] sm:$0xff] %vm5378, %v5367
    %5452 = vst.msk [vmem:[#allocation3 + $0x248] sm:$0xff] %vm5378, %v5368
    %5453 = vst.msk [vmem:[#allocation3 + $0x250] sm:$0xff] %vm5378, %v5369
    %5454 = vst.msk [vmem:[#allocation3 + $0x258] sm:$0xff] %vm5378, %v5370
    %5455 = vst.msk [vmem:[#allocation3 + $0x260] sm:$0xff] %vm5378, %v5371
    %5456 = vst.msk [vmem:[#allocation3 + $0x268] sm:$0xff] %vm5378, %v5372
    %5457 = vst.msk [vmem:[#allocation3 + $0x270] sm:$0xff] %vm5378, %v5373
    %5458 = vst.msk [vmem:[#allocation3 + $0x278] sm:$0xff] %vm5378, %v5374
    %5459 = vst.msk [vmem:[#allocation3 + $0x280] sm:$0xff] %vm5378, %v5375
    %5460 = vst.msk [vmem:[#allocation3 + $0x288] sm:$0xff] %vm5378, %v5376
    %vm5461 = vcmask 257024
    %5462 = vst.msk [vmem:[#allocation3 + $0x290] sm:$0xf] %vm5461, %v5377
    %v5463 = vld [vmem:[#allocation3] ss:$4 sm:$0xff]
    %s5464 = scalar_lea.vmem [#allocation3], 32
    %v5465 = vld [vmem:[%s5464] ss:$4 sm:$0xff]
    %s5466 = scalar_lea.vmem [#allocation3], 64
    %v5467 = vld [vmem:[%s5466] ss:$4 sm:$0xff]
    %s5468 = scalar_lea.vmem [#allocation3], 96
    %v5469 = vld [vmem:[%s5468] ss:$4 sm:$0xff]
    %s5470 = scalar_lea.vmem [#allocation3], 128
    %v5471 = vld [vmem:[%s5470] ss:$4 sm:$0xff]
    %s5472 = scalar_lea.vmem [#allocation3], 160
    %v5473 = vld [vmem:[%s5472] ss:$4 sm:$0x1]
    %s5474 = scalar_lea.vmem [#allocation3], 1
    %v5475 = vld [vmem:[%s5474] ss:$4 sm:$0xff]
    %s5476 = scalar_lea.vmem [#allocation3], 33
    %v5477 = vld [vmem:[%s5476] ss:$4 sm:$0xff]
    %s5478 = scalar_lea.vmem [#allocation3], 65
    %v5479 = vld [vmem:[%s5478] ss:$4 sm:$0xff]
    %s5480 = scalar_lea.vmem [#allocation3], 97
    %v5481 = vld [vmem:[%s5480] ss:$4 sm:$0xff]
    %s5482 = scalar_lea.vmem [#allocation3], 129
    %v5483 = vld [vmem:[%s5482] ss:$4 sm:$0xff]
    %s5484 = scalar_lea.vmem [#allocation3], 161
    %v5485 = vld [vmem:[%s5484] ss:$4 sm:$0x1]
    %v5486 = vmax.f32 %v5463, %v5475
    %v5487 = vmax.f32 %v5465, %v5477
    %v5488 = vmax.f32 %v5467, %v5479
    %v5489 = vmax.f32 %v5469, %v5481
    %v5490 = vmax.f32 %v5471, %v5483
    %v5491 = vmax.f32 %v5473, %v5485
    %s5492 = scalar_lea.vmem [#allocation3], 2
    %v5493 = vld [vmem:[%s5492] ss:$4 sm:$0xff]
    %s5494 = scalar_lea.vmem [#allocation3], 34
    %v5495 = vld [vmem:[%s5494] ss:$4 sm:$0xff]
    %s5496 = scalar_lea.vmem [#allocation3], 66
    %v5497 = vld [vmem:[%s5496] ss:$4 sm:$0xff]
    %s5498 = scalar_lea.vmem [#allocation3], 98
    %v5499 = vld [vmem:[%s5498] ss:$4 sm:$0xff]
    %s5500 = scalar_lea.vmem [#allocation3], 130
    %v5501 = vld [vmem:[%s5500] ss:$4 sm:$0xff]
    %s5502 = scalar_lea.vmem [#allocation3], 162
    %v5503 = vld [vmem:[%s5502] ss:$4 sm:$0x1]
    %v5504 = vmax.f32 %v5486, %v5493
    %v5505 = vmax.f32 %v5487, %v5495
    %v5506 = vmax.f32 %v5488, %v5497
    %v5507 = vmax.f32 %v5489, %v5499
    %v5508 = vmax.f32 %v5490, %v5501
    %v5509 = vmax.f32 %v5491, %v5503
    %s5510 = scalar_lea.vmem [#allocation3], 3
    %v5511 = vld [vmem:[%s5510] ss:$4 sm:$0xff]
    %s5512 = scalar_lea.vmem [#allocation3], 35
    %v5513 = vld [vmem:[%s5512] ss:$4 sm:$0xff]
    %s5514 = scalar_lea.vmem [#allocation3], 67
    %v5515 = vld [vmem:[%s5514] ss:$4 sm:$0xff]
    %s5516 = scalar_lea.vmem [#allocation3], 99
    %v5517 = vld [vmem:[%s5516] ss:$4 sm:$0xff]
    %s5518 = scalar_lea.vmem [#allocation3], 131
    %v5519 = vld [vmem:[%s5518] ss:$4 sm:$0xff]
    %s5520 = scalar_lea.vmem [#allocation3], 163
    %v5521 = vld [vmem:[%s5520] ss:$4 sm:$0x1]
    %v5522 = vmax.f32 %v5504, %v5511
    %v5523 = vmax.f32 %v5505, %v5513
    %v5524 = vmax.f32 %v5506, %v5515
    %v5525 = vmax.f32 %v5507, %v5517
    %v5526 = vmax.f32 %v5508, %v5519
    %v5527 = vmax.f32 %v5509, %v5521
    %s5528 = scalar_lea.vmem [#allocation3], 4
    %v5529 = vld [vmem:[%s5528] ss:$4 sm:$0xff]
    %s5530 = scalar_lea.vmem [#allocation3], 36
    %v5531 = vld [vmem:[%s5530] ss:$4 sm:$0xff]
    %s5532 = scalar_lea.vmem [#allocation3], 68
    %v5533 = vld [vmem:[%s5532] ss:$4 sm:$0xff]
    %s5534 = scalar_lea.vmem [#allocation3], 100
    %v5535 = vld [vmem:[%s5534] ss:$4 sm:$0xff]
    %s5536 = scalar_lea.vmem [#allocation3], 132
    %v5537 = vld [vmem:[%s5536] ss:$4 sm:$0xff]
    %s5538 = scalar_lea.vmem [#allocation3], 164
    %v5539 = vld [vmem:[%s5538] ss:$4 sm:$0x1]
    %v5540 = vmax.f32 %v5522, %v5529
    %v5541 = vmax.f32 %v5523, %v5531
    %v5542 = vmax.f32 %v5524, %v5533
    %v5543 = vmax.f32 %v5525, %v5535
    %v5544 = vmax.f32 %v5526, %v5537
    %v5545 = vmax.f32 %v5527, %v5539
    %v5546 = vpack.c.bf16 %v5540, %v5540
    %v5547 = vpack.c.bf16 %v5541, %v5541
    %v5548 = vpack.c.bf16 %v5542, %v5542
    %v5549 = vpack.c.bf16 %v5543, %v5543
    %v5550 = vpack.c.bf16 %v5544, %v5544
    %v5551 = vpack.c.bf16 %v5545, %v5545
    %5552 = vst.msk [vmem:[#allocation4] sm:$0xf] %vm5461, %v5546
    %5553 = vst.msk [vmem:[#allocation4 + $0x4] sm:$0xf] %vm5461, %v5547
    %5554 = vst.msk [vmem:[#allocation4 + $0x8] sm:$0xf] %vm5461, %v5548
    %5555 = vst.msk [vmem:[#allocation4 + $0xc] sm:$0xf] %vm5461, %v5549
    %5556 = vst.msk [vmem:[#allocation4 + $0x10] sm:$0xf] %vm5461, %v5550
    %vm5557 = vcmask 253952
    %vm5558 = vmand %vm5557, %vm1832
    %v5559 = vld [vmem:[#allocation4 + $0x14] sm:$0x1]
    %v5560 = vsel %vm5558, %v5551, %v5559
    %5561 = vst [vmem:[#allocation4 + $0x14] sm:$0x1] %v5560
    %s5562 = scalar_lea.vmem [#allocation3], 165
    %v5563 = vld [vmem:[%s5562] ss:$4 sm:$0xff]
    %s5564 = scalar_lea.vmem [#allocation3], 197
    %v5565 = vld [vmem:[%s5564] ss:$4 sm:$0xff]
    %s5566 = scalar_lea.vmem [#allocation3], 229
    %v5567 = vld [vmem:[%s5566] ss:$4 sm:$0xff]
    %s5568 = scalar_lea.vmem [#allocation3], 261
    %v5569 = vld [vmem:[%s5568] ss:$4 sm:$0xff]
    %s5570 = scalar_lea.vmem [#allocation3], 293
    %v5571 = vld [vmem:[%s5570] ss:$4 sm:$0xff]
    %s5572 = scalar_lea.vmem [#allocation3], 325
    %v5573 = vld [vmem:[%s5572] ss:$4 sm:$0x1]
    %s5574 = scalar_lea.vmem [#allocation3], 166
    %v5575 = vld [vmem:[%s5574] ss:$4 sm:$0xff]
    %s5576 = scalar_lea.vmem [#allocation3], 198
    %v5577 = vld [vmem:[%s5576] ss:$4 sm:$0xff]
    %s5578 = scalar_lea.vmem [#allocation3], 230
    %v5579 = vld [vmem:[%s5578] ss:$4 sm:$0xff]
    %s5580 = scalar_lea.vmem [#allocation3], 262
    %v5581 = vld [vmem:[%s5580] ss:$4 sm:$0xff]
    %s5582 = scalar_lea.vmem [#allocation3], 294
    %v5583 = vld [vmem:[%s5582] ss:$4 sm:$0xff]
    %s5584 = scalar_lea.vmem [#allocation3], 326
    %v5585 = vld [vmem:[%s5584] ss:$4 sm:$0x1]
    %v5586 = vmax.f32 %v5563, %v5575
    %v5587 = vmax.f32 %v5565, %v5577
    %v5588 = vmax.f32 %v5567, %v5579
    %v5589 = vmax.f32 %v5569, %v5581
    %v5590 = vmax.f32 %v5571, %v5583
    %v5591 = vmax.f32 %v5573, %v5585
    %s5592 = scalar_lea.vmem [#allocation3], 167
    %v5593 = vld [vmem:[%s5592] ss:$4 sm:$0xff]
    %s5594 = scalar_lea.vmem [#allocation3], 199
    %v5595 = vld [vmem:[%s5594] ss:$4 sm:$0xff]
    %s5596 = scalar_lea.vmem [#allocation3], 231
    %v5597 = vld [vmem:[%s5596] ss:$4 sm:$0xff]
    %s5598 = scalar_lea.vmem [#allocation3], 263
    %v5599 = vld [vmem:[%s5598] ss:$4 sm:$0xff]
    %s5600 = scalar_lea.vmem [#allocation3], 295
    %v5601 = vld [vmem:[%s5600] ss:$4 sm:$0xff]
    %s5602 = scalar_lea.vmem [#allocation3], 327
    %v5603 = vld [vmem:[%s5602] ss:$4 sm:$0x1]
    %v5604 = vmax.f32 %v5586, %v5593
    %v5605 = vmax.f32 %v5587, %v5595
    %v5606 = vmax.f32 %v5588, %v5597
    %v5607 = vmax.f32 %v5589, %v5599
    %v5608 = vmax.f32 %v5590, %v5601
    %v5609 = vmax.f32 %v5591, %v5603
    %s5610 = scalar_lea.vmem [#allocation3], 168
    %v5611 = vld [vmem:[%s5610] ss:$4 sm:$0xff]
    %s5612 = scalar_lea.vmem [#allocation3], 200
    %v5613 = vld [vmem:[%s5612] ss:$4 sm:$0xff]
    %s5614 = scalar_lea.vmem [#allocation3], 232
    %v5615 = vld [vmem:[%s5614] ss:$4 sm:$0xff]
    %s5616 = scalar_lea.vmem [#allocation3], 264
    %v5617 = vld [vmem:[%s5616] ss:$4 sm:$0xff]
    %s5618 = scalar_lea.vmem [#allocation3], 296
    %v5619 = vld [vmem:[%s5618] ss:$4 sm:$0xff]
    %s5620 = scalar_lea.vmem [#allocation3], 328
    %v5621 = vld [vmem:[%s5620] ss:$4 sm:$0x1]
    %v5622 = vmax.f32 %v5604, %v5611
    %v5623 = vmax.f32 %v5605, %v5613
    %v5624 = vmax.f32 %v5606, %v5615
    %v5625 = vmax.f32 %v5607, %v5617
    %v5626 = vmax.f32 %v5608, %v5619
    %v5627 = vmax.f32 %v5609, %v5621
    %s5628 = scalar_lea.vmem [#allocation3], 169
    %v5629 = vld [vmem:[%s5628] ss:$4 sm:$0xff]
    %s5630 = scalar_lea.vmem [#allocation3], 201
    %v5631 = vld [vmem:[%s5630] ss:$4 sm:$0xff]
    %s5632 = scalar_lea.vmem [#allocation3], 233
    %v5633 = vld [vmem:[%s5632] ss:$4 sm:$0xff]
    %s5634 = scalar_lea.vmem [#allocation3], 265
    %v5635 = vld [vmem:[%s5634] ss:$4 sm:$0xff]
    %s5636 = scalar_lea.vmem [#allocation3], 297
    %v5637 = vld [vmem:[%s5636] ss:$4 sm:$0xff]
    %s5638 = scalar_lea.vmem [#allocation3], 329
    %v5639 = vld [vmem:[%s5638] ss:$4 sm:$0x1]
    %v5640 = vmax.f32 %v5622, %v5629
    %v5641 = vmax.f32 %v5623, %v5631
    %v5642 = vmax.f32 %v5624, %v5633
    %v5643 = vmax.f32 %v5625, %v5635
    %v5644 = vmax.f32 %v5626, %v5637
    %v5645 = vmax.f32 %v5627, %v5639
    %v5646 = vpack.c.bf16 %v5640, %v5640
    %v5647 = vpack.c.bf16 %v5641, %v5641
    %v5648 = vpack.c.bf16 %v5642, %v5642
    %v5649 = vpack.c.bf16 %v5643, %v5643
    %v5650 = vpack.c.bf16 %v5644, %v5644
    %v5651 = vpack.c.bf16 %v5645, %v5645
    %v5653 = vshrl.u32 %v5646, 16
    %v5655 = vrot.slane %v5653, 7
    %v5656 = vshll.u32 %v5646, 16
    %v5658 = vor.u32 %v5655, %v5656
    %v5659 = vrot.slane %v5655, 4
    %v5661 = vshrl.u32 %v5647, 16
    %v5663 = vrot.slane %v5661, 7
    %v5664 = vshll.u32 %v5647, 16
    %v5666 = vor.u32 %v5663, %v5664
    %v5667 = vsel %vm1834, %v5659, %v5666
    %v5668 = vrot.slane %v5663, 4
    %v5670 = vshrl.u32 %v5648, 16
    %v5672 = vrot.slane %v5670, 7
    %v5673 = vshll.u32 %v5648, 16
    %v5675 = vor.u32 %v5672, %v5673
    %v5676 = vsel %vm1834, %v5668, %v5675
    %v5677 = vrot.slane %v5672, 4
    %v5679 = vshrl.u32 %v5649, 16
    %v5681 = vrot.slane %v5679, 7
    %v5682 = vshll.u32 %v5649, 16
    %v5684 = vor.u32 %v5681, %v5682
    %v5685 = vsel %vm1834, %v5677, %v5684
    %v5686 = vrot.slane %v5681, 4
    %v5688 = vshrl.u32 %v5650, 16
    %v5690 = vrot.slane %v5688, 7
    %v5691 = vshll.u32 %v5650, 16
    %v5693 = vor.u32 %v5690, %v5691
    %v5694 = vsel %vm1834, %v5686, %v5693
    %v5695 = vrot.slane %v5690, 4
    %v5697 = vshll.u32 %v5651, 16
    %v5699 = vsel %vm1834, %v5695, %v5697
    %vm5706 = vcmask 257024
    %vm5707 = vsmask.f32 7938
    %vm5708 = vmand %vm5706, %vm5707
    %v5709 = vld [vmem:[#allocation4 + $0x14] sm:$0xf]
    %v5710 = vsel %vm5708, %v5658, %v5709
    %5711 = vst [vmem:[#allocation4 + $0x14] sm:$0xf] %v5710
    %5712 = vst.msk [vmem:[#allocation4 + $0x18] sm:$0xf] %vm5461, %v5667
    %5713 = vst.msk [vmem:[#allocation4 + $0x1c] sm:$0xf] %vm5461, %v5676
    %5714 = vst.msk [vmem:[#allocation4 + $0x20] sm:$0xf] %vm5461, %v5685
    %5715 = vst.msk [vmem:[#allocation4 + $0x24] sm:$0xf] %vm5461, %v5694
    %vm5716 = vcmask 253952
    %5717 = vst.msk [vmem:[#allocation4 + $0x28] sm:$0x1] %vm5716, %v5699
    %s5718 = scalar_lea.vmem [#allocation3], 330
    %v5719 = vld [vmem:[%s5718] ss:$4 sm:$0xff]
    %s5720 = scalar_lea.vmem [#allocation3], 362
    %v5721 = vld [vmem:[%s5720] ss:$4 sm:$0xff]
    %s5722 = scalar_lea.vmem [#allocation3], 394
    %v5723 = vld [vmem:[%s5722] ss:$4 sm:$0xff]
    %s5724 = scalar_lea.vmem [#allocation3], 426
    %v5725 = vld [vmem:[%s5724] ss:$4 sm:$0xff]
    %s5726 = scalar_lea.vmem [#allocation3], 458
    %v5727 = vld [vmem:[%s5726] ss:$4 sm:$0xff]
    %s5728 = scalar_lea.vmem [#allocation3], 490
    %v5729 = vld [vmem:[%s5728] ss:$4 sm:$0x1]
    %s5730 = scalar_lea.vmem [#allocation3], 331
    %v5731 = vld [vmem:[%s5730] ss:$4 sm:$0xff]
    %s5732 = scalar_lea.vmem [#allocation3], 363
    %v5733 = vld [vmem:[%s5732] ss:$4 sm:$0xff]
    %s5734 = scalar_lea.vmem [#allocation3], 395
    %v5735 = vld [vmem:[%s5734] ss:$4 sm:$0xff]
    %s5736 = scalar_lea.vmem [#allocation3], 427
    %v5737 = vld [vmem:[%s5736] ss:$4 sm:$0xff]
    %s5738 = scalar_lea.vmem [#allocation3], 459
    %v5739 = vld [vmem:[%s5738] ss:$4 sm:$0xff]
    %s5740 = scalar_lea.vmem [#allocation3], 491
    %v5741 = vld [vmem:[%s5740] ss:$4 sm:$0x1]
    %v5742 = vmax.f32 %v5719, %v5731
    %v5743 = vmax.f32 %v5721, %v5733
    %v5744 = vmax.f32 %v5723, %v5735
    %v5745 = vmax.f32 %v5725, %v5737
    %v5746 = vmax.f32 %v5727, %v5739
    %v5747 = vmax.f32 %v5729, %v5741
    %s5748 = scalar_lea.vmem [#allocation3], 332
    %v5749 = vld [vmem:[%s5748] ss:$4 sm:$0xff]
    %s5750 = scalar_lea.vmem [#allocation3], 364
    %v5751 = vld [vmem:[%s5750] ss:$4 sm:$0xff]
    %s5752 = scalar_lea.vmem [#allocation3], 396
    %v5753 = vld [vmem:[%s5752] ss:$4 sm:$0xff]
    %s5754 = scalar_lea.vmem [#allocation3], 428
    %v5755 = vld [vmem:[%s5754] ss:$4 sm:$0xff]
    %s5756 = scalar_lea.vmem [#allocation3], 460
    %v5757 = vld [vmem:[%s5756] ss:$4 sm:$0xff]
    %s5758 = scalar_lea.vmem [#allocation3], 492
    %v5759 = vld [vmem:[%s5758] ss:$4 sm:$0x1]
    %v5760 = vmax.f32 %v5742, %v5749
    %v5761 = vmax.f32 %v5743, %v5751
    %v5762 = vmax.f32 %v5744, %v5753
    %v5763 = vmax.f32 %v5745, %v5755
    %v5764 = vmax.f32 %v5746, %v5757
    %v5765 = vmax.f32 %v5747, %v5759
    %s5766 = scalar_lea.vmem [#allocation3], 333
    %v5767 = vld [vmem:[%s5766] ss:$4 sm:$0xff]
    %s5768 = scalar_lea.vmem [#allocation3], 365
    %v5769 = vld [vmem:[%s5768] ss:$4 sm:$0xff]
    %s5770 = scalar_lea.vmem [#allocation3], 397
    %v5771 = vld [vmem:[%s5770] ss:$4 sm:$0xff]
    %s5772 = scalar_lea.vmem [#allocation3], 429
    %v5773 = vld [vmem:[%s5772] ss:$4 sm:$0xff]
    %s5774 = scalar_lea.vmem [#allocation3], 461
    %v5775 = vld [vmem:[%s5774] ss:$4 sm:$0xff]
    %s5776 = scalar_lea.vmem [#allocation3], 493
    %v5777 = vld [vmem:[%s5776] ss:$4 sm:$0x1]
    %v5778 = vmax.f32 %v5760, %v5767
    %v5779 = vmax.f32 %v5761, %v5769
    %v5780 = vmax.f32 %v5762, %v5771
    %v5781 = vmax.f32 %v5763, %v5773
    %v5782 = vmax.f32 %v5764, %v5775
    %v5783 = vmax.f32 %v5765, %v5777
    %s5784 = scalar_lea.vmem [#allocation3], 334
    %v5785 = vld [vmem:[%s5784] ss:$4 sm:$0xff]
    %s5786 = scalar_lea.vmem [#allocation3], 366
    %v5787 = vld [vmem:[%s5786] ss:$4 sm:$0xff]
    %s5788 = scalar_lea.vmem [#allocation3], 398
    %v5789 = vld [vmem:[%s5788] ss:$4 sm:$0xff]
    %s5790 = scalar_lea.vmem [#allocation3], 430
    %v5791 = vld [vmem:[%s5790] ss:$4 sm:$0xff]
    %s5792 = scalar_lea.vmem [#allocation3], 462
    %v5793 = vld [vmem:[%s5792] ss:$4 sm:$0xff]
    %s5794 = scalar_lea.vmem [#allocation3], 494
    %v5795 = vld [vmem:[%s5794] ss:$4 sm:$0x1]
    %v5796 = vmax.f32 %v5778, %v5785
    %v5797 = vmax.f32 %v5779, %v5787
    %v5798 = vmax.f32 %v5780, %v5789
    %v5799 = vmax.f32 %v5781, %v5791
    %v5800 = vmax.f32 %v5782, %v5793
    %v5801 = vmax.f32 %v5783, %v5795
    %v5802 = vpack.c.bf16 %v5796, %v5796
    %v5803 = vpack.c.bf16 %v5797, %v5797
    %v5804 = vpack.c.bf16 %v5798, %v5798
    %v5805 = vpack.c.bf16 %v5799, %v5799
    %v5806 = vpack.c.bf16 %v5800, %v5800
    %v5807 = vpack.c.bf16 %v5801, %v5801
    %v5814 = vrot.slane %v5802, 7
    %v5815 = vrot.slane %v5814, 4
    %v5816 = vrot.slane %v5803, 7
    %v5817 = vsel %vm1654, %v5815, %v5816
    %v5818 = vrot.slane %v5816, 4
    %v5819 = vrot.slane %v5804, 7
    %v5820 = vsel %vm1654, %v5818, %v5819
    %v5821 = vrot.slane %v5819, 4
    %v5822 = vrot.slane %v5805, 7
    %v5823 = vsel %vm1654, %v5821, %v5822
    %v5824 = vrot.slane %v5822, 4
    %v5825 = vrot.slane %v5806, 7
    %v5826 = vsel %vm1654, %v5824, %v5825
    %v5827 = vrot.slane %v5825, 4
    %v5828 = vrot.slane %v5807, 7
    %v5829 = vsel %vm1654, %v5827, %v5828
    %vm5836 = vcmask 257025
    %5837 = vst.msk [vmem:[#allocation4 + $0x28] sm:$0xe] %vm5836, %v5814
    %5838 = vst.msk [vmem:[#allocation4 + $0x2c] sm:$0xf] %vm5461, %v5817
    %5839 = vst.msk [vmem:[#allocation4 + $0x30] sm:$0xf] %vm5461, %v5820
    %5840 = vst.msk [vmem:[#allocation4 + $0x34] sm:$0xf] %vm5461, %v5823
    %5841 = vst.msk [vmem:[#allocation4 + $0x38] sm:$0xf] %vm5461, %v5826
    %vm5842 = vcmask 254976
    %vm5843 = vmand %vm5842, %vm1305
    %v5844 = vld [vmem:[#allocation4 + $0x3c] sm:$0x3]
    %v5845 = vsel %vm5843, %v5829, %v5844
    %5846 = vst [vmem:[#allocation4 + $0x3c] sm:$0x3] %v5845
    %s5847 = scalar_lea.vmem [#allocation3], 495
    %v5848 = vld [vmem:[%s5847] ss:$4 sm:$0xff]
    %s5849 = scalar_lea.vmem [#allocation3], 527
    %v5850 = vld [vmem:[%s5849] ss:$4 sm:$0xff]
    %s5851 = scalar_lea.vmem [#allocation3], 559
    %v5852 = vld [vmem:[%s5851] ss:$4 sm:$0xff]
    %s5853 = scalar_lea.vmem [#allocation3], 591
    %v5854 = vld [vmem:[%s5853] ss:$4 sm:$0xff]
    %s5855 = scalar_lea.vmem [#allocation3], 623
    %v5856 = vld [vmem:[%s5855] ss:$4 sm:$0xff]
    %s5857 = scalar_lea.vmem [#allocation3], 655
    %v5858 = vld [vmem:[%s5857] ss:$4 sm:$0x1]
    %s5859 = scalar_lea.vmem [#allocation3], 496
    %v5860 = vld [vmem:[%s5859] ss:$4 sm:$0xff]
    %s5861 = scalar_lea.vmem [#allocation3], 528
    %v5862 = vld [vmem:[%s5861] ss:$4 sm:$0xff]
    %s5863 = scalar_lea.vmem [#allocation3], 560
    %v5864 = vld [vmem:[%s5863] ss:$4 sm:$0xff]
    %s5865 = scalar_lea.vmem [#allocation3], 592
    %v5866 = vld [vmem:[%s5865] ss:$4 sm:$0xff]
    %s5867 = scalar_lea.vmem [#allocation3], 624
    %v5868 = vld [vmem:[%s5867] ss:$4 sm:$0xff]
    %s5869 = scalar_lea.vmem [#allocation3], 656
    %v5870 = vld [vmem:[%s5869] ss:$4 sm:$0x1]
    %v5871 = vmax.f32 %v5848, %v5860
    %v5872 = vmax.f32 %v5850, %v5862
    %v5873 = vmax.f32 %v5852, %v5864
    %v5874 = vmax.f32 %v5854, %v5866
    %v5875 = vmax.f32 %v5856, %v5868
    %v5876 = vmax.f32 %v5858, %v5870
    %s5877 = scalar_lea.vmem [#allocation3], 497
    %v5878 = vld [vmem:[%s5877] ss:$4 sm:$0xff]
    %s5879 = scalar_lea.vmem [#allocation3], 529
    %v5880 = vld [vmem:[%s5879] ss:$4 sm:$0xff]
    %s5881 = scalar_lea.vmem [#allocation3], 561
    %v5882 = vld [vmem:[%s5881] ss:$4 sm:$0xff]
    %s5883 = scalar_lea.vmem [#allocation3], 593
    %v5884 = vld [vmem:[%s5883] ss:$4 sm:$0xff]
    %s5885 = scalar_lea.vmem [#allocation3], 625
    %v5886 = vld [vmem:[%s5885] ss:$4 sm:$0xff]
    %s5887 = scalar_lea.vmem [#allocation3], 657
    %v5888 = vld [vmem:[%s5887] ss:$4 sm:$0x1]
    %v5889 = vmax.f32 %v5871, %v5878
    %v5890 = vmax.f32 %v5872, %v5880
    %v5891 = vmax.f32 %v5873, %v5882
    %v5892 = vmax.f32 %v5874, %v5884
    %v5893 = vmax.f32 %v5875, %v5886
    %v5894 = vmax.f32 %v5876, %v5888
    %s5895 = scalar_lea.vmem [#allocation3], 498
    %v5896 = vld [vmem:[%s5895] ss:$4 sm:$0xff]
    %s5897 = scalar_lea.vmem [#allocation3], 530
    %v5898 = vld [vmem:[%s5897] ss:$4 sm:$0xff]
    %s5899 = scalar_lea.vmem [#allocation3], 562
    %v5900 = vld [vmem:[%s5899] ss:$4 sm:$0xff]
    %s5901 = scalar_lea.vmem [#allocation3], 594
    %v5902 = vld [vmem:[%s5901] ss:$4 sm:$0xff]
    %s5903 = scalar_lea.vmem [#allocation3], 626
    %v5904 = vld [vmem:[%s5903] ss:$4 sm:$0xff]
    %s5905 = scalar_lea.vmem [#allocation3], 658
    %v5906 = vld [vmem:[%s5905] ss:$4 sm:$0x1]
    %v5907 = vmax.f32 %v5889, %v5896
    %v5908 = vmax.f32 %v5890, %v5898
    %v5909 = vmax.f32 %v5891, %v5900
    %v5910 = vmax.f32 %v5892, %v5902
    %v5911 = vmax.f32 %v5893, %v5904
    %v5912 = vmax.f32 %v5894, %v5906
    %s5913 = scalar_lea.vmem [#allocation3], 499
    %v5914 = vld [vmem:[%s5913] ss:$4 sm:$0xff]
    %s5915 = scalar_lea.vmem [#allocation3], 531
    %v5916 = vld [vmem:[%s5915] ss:$4 sm:$0xff]
    %s5917 = scalar_lea.vmem [#allocation3], 563
    %v5918 = vld [vmem:[%s5917] ss:$4 sm:$0xff]
    %s5919 = scalar_lea.vmem [#allocation3], 595
    %v5920 = vld [vmem:[%s5919] ss:$4 sm:$0xff]
    %s5921 = scalar_lea.vmem [#allocation3], 627
    %v5922 = vld [vmem:[%s5921] ss:$4 sm:$0xff]
    %s5923 = scalar_lea.vmem [#allocation3], 659
    %v5924 = vld [vmem:[%s5923] ss:$4 sm:$0x1]
    %v5925 = vmax.f32 %v5907, %v5914
    %v5926 = vmax.f32 %v5908, %v5916
    %v5927 = vmax.f32 %v5909, %v5918
    %v5928 = vmax.f32 %v5910, %v5920
    %v5929 = vmax.f32 %v5911, %v5922
    %v5930 = vmax.f32 %v5912, %v5924
    %v5931 = vpack.c.bf16 %v5925, %v5925
    %v5932 = vpack.c.bf16 %v5926, %v5926
    %v5933 = vpack.c.bf16 %v5927, %v5927
    %v5934 = vpack.c.bf16 %v5928, %v5928
    %v5935 = vpack.c.bf16 %v5929, %v5929
    %v5936 = vpack.c.bf16 %v5930, %v5930
    %v5938 = vshrl.u32 %v5931, 16
    %v5940 = vrot.slane %v5938, 6
    %v5941 = vshll.u32 %v5931, 16
    %v5943 = vrot.slane %v5941, 7
    %v5944 = vor.u32 %v5940, %v5943
    %v5945 = vrot.slane %v5944, 4
    %v5947 = vshrl.u32 %v5932, 16
    %v5949 = vrot.slane %v5947, 6
    %v5950 = vshll.u32 %v5932, 16
    %v5952 = vrot.slane %v5950, 7
    %v5953 = vor.u32 %v5949, %v5952
    %v5954 = vsel %vm1307, %v5945, %v5953
    %v5955 = vrot.slane %v5953, 4
    %v5957 = vshrl.u32 %v5933, 16
    %v5959 = vrot.slane %v5957, 6
    %v5960 = vshll.u32 %v5933, 16
    %v5962 = vrot.slane %v5960, 7
    %v5963 = vor.u32 %v5959, %v5962
    %v5964 = vsel %vm1307, %v5955, %v5963
    %v5965 = vrot.slane %v5963, 4
    %v5967 = vshrl.u32 %v5934, 16
    %v5969 = vrot.slane %v5967, 6
    %v5970 = vshll.u32 %v5934, 16
    %v5972 = vrot.slane %v5970, 7
    %v5973 = vor.u32 %v5969, %v5972
    %v5974 = vsel %vm1307, %v5965, %v5973
    %v5975 = vrot.slane %v5973, 4
    %v5977 = vshrl.u32 %v5935, 16
    %v5979 = vrot.slane %v5977, 6
    %v5980 = vshll.u32 %v5935, 16
    %v5982 = vrot.slane %v5980, 7
    %v5983 = vor.u32 %v5979, %v5982
    %v5984 = vsel %vm1307, %v5975, %v5983
    %v5985 = vrot.slane %v5983, 4
    %v5987 = vshll.u32 %v5936, 16
    %v5989 = vrot.slane %v5987, 7
    %v5990 = vsel %vm1307, %v5985, %v5989
    %vm5997 = vcmask 257025
    %vm5998 = vsmask.f32 7942
    %vm5999 = vmand %vm5997, %vm5998
    %v6000 = vld [vmem:[#allocation4 + $0x3c] sm:$0xe]
    %v6001 = vsel %vm5999, %v5944, %v6000
    %6002 = vst [vmem:[#allocation4 + $0x3c] sm:$0xe] %v6001
    %6003 = vst.msk [vmem:[#allocation4 + $0x40] sm:$0xf] %vm5461, %v5954
    %6004 = vst.msk [vmem:[#allocation4 + $0x44] sm:$0xf] %vm5461, %v5964
    %6005 = vst.msk [vmem:[#allocation4 + $0x48] sm:$0xf] %vm5461, %v5974
    %6006 = vst.msk [vmem:[#allocation4 + $0x4c] sm:$0xf] %vm5461, %v5984
    %vm6007 = vcmask 254976
    %6008 = vst.msk [vmem:[#allocation4 + $0x50] sm:$0x3] %vm6007, %v5990
    %v6009 = vld [vmem:[#allocation4] sm:$0xf]
    %v6010 = vld [vmem:[#allocation4 + $0x4] sm:$0xf]
    %v6011 = vld [vmem:[#allocation4 + $0x8] sm:$0xf]
    %v6012 = vld [vmem:[#allocation4 + $0xc] sm:$0xf]
    %v6013 = vld [vmem:[#allocation4 + $0x10] sm:$0x7]
    %6014 = vst.msk [vmem:[#allocation5] sm:$0xf] %vm5461, %v6009
    %6015 = vst.msk [vmem:[#allocation5 + $0x8] sm:$0xf] %vm5461, %v6010
    %6016 = vst.msk [vmem:[#allocation5 + $0x10] sm:$0xf] %vm5461, %v6011
    %6017 = vst.msk [vmem:[#allocation5 + $0x18] sm:$0xf] %vm5461, %v6012
    %vm6018 = vcmask 256000
    %vm6019 = vmand %vm6018, %vm86
    %v6020 = vld [vmem:[#allocation5 + $0x20] sm:$0x7]
    %v6021 = vsel %vm6019, %v6013, %v6020
    %6022 = vst [vmem:[#allocation5 + $0x20] sm:$0x7] %v6021
    %v6023 = vld [vmem:[#allocation4] sm:$0xf]
    %v6024 = vld [vmem:[#allocation4 + $0x4] sm:$0xf]
    %v6025 = vld [vmem:[#allocation4 + $0x8] sm:$0xf]
    %v6026 = vld [vmem:[#allocation4 + $0xc] sm:$0xf]
    %v6027 = vld [vmem:[#allocation4 + $0x10] sm:$0x7]
    %v6029 = vshrl.u32 %v6023, 16
    %v6031 = vrot.slane %v6029, 4
    %v6032 = vshll.u32 %v6023, 16
    %v6034 = vrot.slane %v6032, 5
    %v6035 = vor.u32 %v6031, %v6034
    %v6036 = vrot.slane %v6035, 4
    %v6038 = vshll.u32 %v6024, 16
    %v6040 = vrot.slane %v6038, 5
    %v6041 = vsel %vm114, %v6036, %v6040
    %v6042 = vshrl.u32 %v6024, 16
    %v6044 = vrot.slane %v6042, 4
    %v6045 = vor.u32 %v6044, %v6040
    %v6046 = vrot.slane %v6045, 4
    %v6048 = vshll.u32 %v6025, 16
    %v6050 = vrot.slane %v6048, 5
    %v6051 = vsel %vm114, %v6046, %v6050
    %v6052 = vshrl.u32 %v6025, 16
    %v6054 = vrot.slane %v6052, 4
    %v6055 = vor.u32 %v6054, %v6050
    %v6056 = vrot.slane %v6055, 4
    %v6058 = vshll.u32 %v6026, 16
    %v6060 = vrot.slane %v6058, 5
    %v6061 = vsel %vm114, %v6056, %v6060
    %v6062 = vshrl.u32 %v6026, 16
    %v6064 = vrot.slane %v6062, 4
    %v6065 = vor.u32 %v6064, %v6060
    %v6066 = vrot.slane %v6065, 4
    %v6068 = vshll.u32 %v6027, 16
    %v6070 = vrot.slane %v6068, 5
    %v6071 = vsel %vm114, %v6066, %v6070
    %v6072 = vshrl.u32 %v6027, 16
    %v6074 = vrot.slane %v6072, 4
    %v6075 = vor.u32 %v6074, %v6070
    %v6076 = vrot.slane %v6075, 4
    %6077 = vrot.lane.b32.xlu0 %v6041, 32
    %v6078 = vpop.permute.xlu0 %6077
    %6079 = vrot.lane.b32.xlu0 %v6051, 32
    %v6080 = vpop.permute.xlu0 %6079
    %6081 = vrot.lane.b32.xlu0 %v6061, 32
    %v6082 = vpop.permute.xlu0 %6081
    %6083 = vrot.lane.b32.xlu0 %v6071, 32
    %v6084 = vpop.permute.xlu0 %6083
    %6085 = vrot.lane.b32.xlu0 %v6076, 32
    %v6086 = vpop.permute.xlu0 %6085
    %vm6092 = vcmask 519424
    %6093 = vst.msk [vmem:[#allocation5] sm:$0xf] %vm6092, %v6078
    %6094 = vst.msk [vmem:[#allocation5 + $0x8] sm:$0xf] %vm6092, %v6080
    %6095 = vst.msk [vmem:[#allocation5 + $0x10] sm:$0xf] %vm6092, %v6082
    %6096 = vst.msk [vmem:[#allocation5 + $0x18] sm:$0xf] %vm6092, %v6084
    %vm6097 = vcmask 518400
    %vm6098 = vmand %vm6097, %vm86
    %v6099 = vld [vmem:[#allocation5 + $0x20] sm:$0x7]
    %v6100 = vsel %vm6098, %v6086, %v6099
    %6101 = vst [vmem:[#allocation5 + $0x20] sm:$0x7] %v6100
    %v6102 = vld [vmem:[#allocation4] sm:$0xe]
    %v6103 = vld [vmem:[#allocation4 + $0x4] sm:$0xf]
    %v6104 = vld [vmem:[#allocation4 + $0x8] sm:$0xf]
    %v6105 = vld [vmem:[#allocation4 + $0xc] sm:$0xf]
    %v6106 = vld [vmem:[#allocation4 + $0x10] sm:$0xf]
    %v6112 = vrot.slane %v6102, 5
    %v6113 = vrot.slane %v6112, 4
    %v6114 = vrot.slane %v6103, 5
    %v6115 = vsel %vm457, %v6113, %v6114
    %v6116 = vrot.slane %v6114, 4
    %v6117 = vrot.slane %v6104, 5
    %v6118 = vsel %vm457, %v6116, %v6117
    %v6119 = vrot.slane %v6117, 4
    %v6120 = vrot.slane %v6105, 5
    %v6121 = vsel %vm457, %v6119, %v6120
    %v6122 = vrot.slane %v6120, 4
    %v6123 = vrot.slane %v6106, 5
    %v6124 = vsel %vm457, %v6122, %v6123
    %v6125 = vrot.slane %v6123, 4
    %6126 = vrot.lane.b32.xlu0 %v6115, 64
    %v6127 = vpop.permute.xlu0 %6126
    %6128 = vrot.lane.b32.xlu0 %v6118, 64
    %v6129 = vpop.permute.xlu0 %6128
    %6130 = vrot.lane.b32.xlu0 %v6121, 64
    %v6131 = vpop.permute.xlu0 %6130
    %6132 = vrot.lane.b32.xlu0 %v6124, 64
    %v6133 = vpop.permute.xlu0 %6132
    %6134 = vrot.lane.b32.xlu0 %v6125, 64
    %v6135 = vpop.permute.xlu0 %6134
    %vm6141 = vcmask 781824
    %6142 = vst.msk [vmem:[#allocation5] sm:$0xf] %vm6141, %v6127
    %6143 = vst.msk [vmem:[#allocation5 + $0x8] sm:$0xf] %vm6141, %v6129
    %6144 = vst.msk [vmem:[#allocation5 + $0x10] sm:$0xf] %vm6141, %v6131
    %6145 = vst.msk [vmem:[#allocation5 + $0x18] sm:$0xf] %vm6141, %v6133
    %vm6146 = vcmask 780800
    %vm6147 = vmand %vm6146, %vm86
    %v6148 = vld [vmem:[#allocation5 + $0x20] sm:$0x7]
    %v6149 = vsel %vm6147, %v6135, %v6148
    %6150 = vst [vmem:[#allocation5 + $0x20] sm:$0x7] %v6149
    %v6151 = vld [vmem:[#allocation4] sm:$0xe]
    %v6152 = vld [vmem:[#allocation4 + $0x4] sm:$0xf]
    %v6153 = vld [vmem:[#allocation4 + $0x8] sm:$0xf]
    %v6154 = vld [vmem:[#allocation4 + $0xc] sm:$0xf]
    %v6155 = vld [vmem:[#allocation4 + $0x10] sm:$0xf]
    %v6157 = vshrl.u32 %v6151, 16
    %v6159 = vrot.slane %v6157, 5
    %v6160 = vshll.u32 %v6151, 16
    %v6162 = vrot.slane %v6160, 6
    %v6163 = vor.u32 %v6159, %v6162
    %v6164 = vrot.slane %v6163, 4
    %v6166 = vshrl.u32 %v6152, 16
    %v6168 = vrot.slane %v6166, 5
    %v6169 = vshll.u32 %v6152, 16
    %v6171 = vrot.slane %v6169, 6
    %v6172 = vor.u32 %v6168, %v6171
    %v6173 = vsel %vm631, %v6164, %v6172
    %v6174 = vrot.slane %v6172, 4
    %v6176 = vshrl.u32 %v6153, 16
    %v6178 = vrot.slane %v6176, 5
    %v6179 = vshll.u32 %v6153, 16
    %v6181 = vrot.slane %v6179, 6
    %v6182 = vor.u32 %v6178, %v6181
    %v6183 = vsel %vm631, %v6174, %v6182
    %v6184 = vrot.slane %v6182, 4
    %v6186 = vshrl.u32 %v6154, 16
    %v6188 = vrot.slane %v6186, 5
    %v6189 = vshll.u32 %v6154, 16
    %v6191 = vrot.slane %v6189, 6
    %v6192 = vor.u32 %v6188, %v6191
    %v6193 = vsel %vm631, %v6184, %v6192
    %v6194 = vrot.slane %v6192, 4
    %v6196 = vshrl.u32 %v6155, 16
    %v6198 = vrot.slane %v6196, 5
    %v6199 = vshll.u32 %v6155, 16
    %v6201 = vrot.slane %v6199, 6
    %v6202 = vor.u32 %v6198, %v6201
    %v6203 = vsel %vm631, %v6194, %v6202
    %v6204 = vrot.slane %v6202, 4
    %6205 = vrot.lane.b32.xlu0 %v6173, 96
    %v6206 = vpop.permute.xlu0 %6205
    %6207 = vrot.lane.b32.xlu0 %v6183, 96
    %v6208 = vpop.permute.xlu0 %6207
    %6209 = vrot.lane.b32.xlu0 %v6193, 96
    %v6210 = vpop.permute.xlu0 %6209
    %6211 = vrot.lane.b32.xlu0 %v6203, 96
    %v6212 = vpop.permute.xlu0 %6211
    %6213 = vrot.lane.b32.xlu0 %v6204, 96
    %v6214 = vpop.permute.xlu0 %6213
    %vm6220 = vcmask 1044224
    %6221 = vst.msk [vmem:[#allocation5] sm:$0xf] %vm6220, %v6206
    %6222 = vst.msk [vmem:[#allocation5 + $0x8] sm:$0xf] %vm6220, %v6208
    %6223 = vst.msk [vmem:[#allocation5 + $0x10] sm:$0xf] %vm6220, %v6210
    %6224 = vst.msk [vmem:[#allocation5 + $0x18] sm:$0xf] %vm6220, %v6212
    %vm6225 = vcmask 1043200
    %vm6226 = vmand %vm6225, %vm86
    %v6227 = vld [vmem:[#allocation5 + $0x20] sm:$0x7]
    %v6228 = vsel %vm6226, %v6214, %v6227
    %6229 = vst [vmem:[#allocation5 + $0x20] sm:$0x7] %v6228
    %v6230 = vld [vmem:[#allocation4] sm:$0xc]
    %v6231 = vld [vmem:[#allocation4 + $0x4] sm:$0xf]
    %v6232 = vld [vmem:[#allocation4 + $0x8] sm:$0xf]
    %v6233 = vld [vmem:[#allocation4 + $0xc] sm:$0xf]
    %v6234 = vld [vmem:[#allocation4 + $0x10] sm:$0xf]
    %v6235 = vld [vmem:[#allocation4 + $0x14] sm:$0x1]
    %v6242 = vrot.slane %v6230, 6
    %v6243 = vrot.slane %v6242, 4
    %v6244 = vrot.slane %v6231, 6
    %v6245 = vsel %vm976, %v6243, %v6244
    %v6246 = vrot.slane %v6244, 4
    %v6247 = vrot.slane %v6232, 6
    %v6248 = vsel %vm976, %v6246, %v6247
    %v6249 = vrot.slane %v6247, 4
    %v6250 = vrot.slane %v6233, 6
    %v6251 = vsel %vm976, %v6249, %v6250
    %v6252 = vrot.slane %v6250, 4
    %v6253 = vrot.slane %v6234, 6
    %v6254 = vsel %vm976, %v6252, %v6253
    %v6255 = vrot.slane %v6253, 4
    %v6256 = vrot.slane %v6235, 6
    %v6257 = vsel %vm976, %v6255, %v6256
    %6263 = vst.msk [vmem:[#allocation5 + $0x4] sm:$0xf] %vm5461, %v6245
    %6264 = vst.msk [vmem:[#allocation5 + $0xc] sm:$0xf] %vm5461, %v6248
    %6265 = vst.msk [vmem:[#allocation5 + $0x14] sm:$0xf] %vm5461, %v6251
    %6266 = vst.msk [vmem:[#allocation5 + $0x1c] sm:$0xf] %vm5461, %v6254
    %v6267 = vld [vmem:[#allocation5 + $0x24] sm:$0x7]
    %v6268 = vsel %vm6019, %v6257, %v6267
    %6269 = vst [vmem:[#allocation5 + $0x24] sm:$0x7] %v6268
    %v6270 = vld [vmem:[#allocation4 + $0x14] sm:$0xf]
    %v6271 = vld [vmem:[#allocation4 + $0x18] sm:$0xf]
    %v6272 = vld [vmem:[#allocation4 + $0x1c] sm:$0xf]
    %v6273 = vld [vmem:[#allocation4 + $0x20] sm:$0xf]
    %v6274 = vld [vmem:[#allocation4 + $0x24] sm:$0x7]
    %v6280 = vrot.slane %v6270, 6
    %v6281 = vrot.slane %v6280, 4
    %v6282 = vrot.slane %v6271, 6
    %v6283 = vsel %vm976, %v6281, %v6282
    %v6284 = vrot.slane %v6282, 4
    %v6285 = vrot.slane %v6272, 6
    %v6286 = vsel %vm976, %v6284, %v6285
    %v6287 = vrot.slane %v6285, 4
    %v6288 = vrot.slane %v6273, 6
    %v6289 = vsel %vm976, %v6287, %v6288
    %v6290 = vrot.slane %v6288, 4
    %v6291 = vrot.slane %v6274, 6
    %v6292 = vsel %vm976, %v6290, %v6291
    %v6293 = vrot.slane %v6291, 4
    %vm6300 = vcmask 257026
    %vm6301 = vmand %vm6300, %vm1257
    %v6302 = vld [vmem:[#allocation5 + $0x20] sm:$0xc]
    %v6303 = vsel %vm6301, %v6280, %v6302
    %6304 = vst [vmem:[#allocation5 + $0x20] sm:$0xc] %v6303
    %6305 = vst.msk [vmem:[#allocation5 + $0x28] sm:$0xf] %vm5461, %v6283
    %6306 = vst.msk [vmem:[#allocation5 + $0x30] sm:$0xf] %vm5461, %v6286
    %6307 = vst.msk [vmem:[#allocation5 + $0x38] sm:$0xf] %vm5461, %v6289
    %6308 = vst.msk [vmem:[#allocation5 + $0x40] sm:$0xf] %vm5461, %v6292
    %6309 = vst.msk [vmem:[#allocation5 + $0x48] sm:$0x1] %vm5716, %v6293
    %v6310 = vld [vmem:[#allocation4 + $0x14] sm:$0xe]
    %v6311 = vld [vmem:[#allocation4 + $0x18] sm:$0xf]
    %v6312 = vld [vmem:[#allocation4 + $0x1c] sm:$0xf]
    %v6313 = vld [vmem:[#allocation4 + $0x20] sm:$0xf]
    %v6314 = vld [vmem:[#allocation4 + $0x24] sm:$0xf]
    %v6316 = vshrl.u32 %v6310, 16
    %v6318 = vrot.slane %v6316, 6
    %v6319 = vshll.u32 %v6310, 16
    %v6321 = vrot.slane %v6319, 7
    %v6322 = vor.u32 %v6318, %v6321
    %v6323 = vrot.slane %v6322, 4
    %v6325 = vshrl.u32 %v6311, 16
    %v6327 = vrot.slane %v6325, 6
    %v6328 = vshll.u32 %v6311, 16
    %v6330 = vrot.slane %v6328, 7
    %v6331 = vor.u32 %v6327, %v6330
    %v6332 = vsel %vm1307, %v6323, %v6331
    %v6333 = vrot.slane %v6331, 4
    %v6335 = vshrl.u32 %v6312, 16
    %v6337 = vrot.slane %v6335, 6
    %v6338 = vshll.u32 %v6312, 16
    %v6340 = vrot.slane %v6338, 7
    %v6341 = vor.u32 %v6337, %v6340
    %v6342 = vsel %vm1307, %v6333, %v6341
    %v6343 = vrot.slane %v6341, 4
    %v6345 = vshrl.u32 %v6313, 16
    %v6347 = vrot.slane %v6345, 6
    %v6348 = vshll.u32 %v6313, 16
    %v6350 = vrot.slane %v6348, 7
    %v6351 = vor.u32 %v6347, %v6350
    %v6352 = vsel %vm1307, %v6343, %v6351
    %v6353 = vrot.slane %v6351, 4
    %v6355 = vshrl.u32 %v6314, 16
    %v6357 = vrot.slane %v6355, 6
    %v6358 = vshll.u32 %v6314, 16
    %v6360 = vrot.slane %v6358, 7
    %v6361 = vor.u32 %v6357, %v6360
    %v6362 = vsel %vm1307, %v6353, %v6361
    %v6363 = vrot.slane %v6361, 4
    %6364 = vrot.lane.b32.xlu0 %v6322, 32
    %v6365 = vpop.permute.xlu0 %6364
    %6366 = vrot.lane.b32.xlu0 %v6332, 32
    %v6367 = vpop.permute.xlu0 %6366
    %6368 = vrot.lane.b32.xlu0 %v6342, 32
    %v6369 = vpop.permute.xlu0 %6368
    %6370 = vrot.lane.b32.xlu0 %v6352, 32
    %v6371 = vpop.permute.xlu0 %6370
    %6372 = vrot.lane.b32.xlu0 %v6362, 32
    %v6373 = vpop.permute.xlu0 %6372
    %6374 = vrot.lane.b32.xlu0 %v6363, 32
    %v6375 = vpop.permute.xlu0 %6374
    %vm6382 = vcmask 519426
    %vm6383 = vmand %vm6382, %vm1257
    %v6384 = vld [vmem:[#allocation5 + $0x20] sm:$0xc]
    %v6385 = vsel %vm6383, %v6365, %v6384
    %6386 = vst [vmem:[#allocation5 + $0x20] sm:$0xc] %v6385
    %6387 = vst.msk [vmem:[#allocation5 + $0x28] sm:$0xf] %vm6092, %v6367
    %6388 = vst.msk [vmem:[#allocation5 + $0x30] sm:$0xf] %vm6092, %v6369
    %6389 = vst.msk [vmem:[#allocation5 + $0x38] sm:$0xf] %vm6092, %v6371
    %6390 = vst.msk [vmem:[#allocation5 + $0x40] sm:$0xf] %vm6092, %v6373
    %vm6391 = vcmask 516352
    %6392 = vst.msk [vmem:[#allocation5 + $0x48] sm:$0x1] %vm6391, %v6375
    %v6393 = vld [vmem:[#allocation4 + $0x14] sm:$0xe]
    %v6394 = vld [vmem:[#allocation4 + $0x18] sm:$0xf]
    %v6395 = vld [vmem:[#allocation4 + $0x1c] sm:$0xf]
    %v6396 = vld [vmem:[#allocation4 + $0x20] sm:$0xf]
    %v6397 = vld [vmem:[#allocation4 + $0x24] sm:$0xf]
    %v6403 = vrot.slane %v6393, 7
    %v6404 = vrot.slane %v6403, 4
    %v6405 = vrot.slane %v6394, 7
    %v6406 = vsel %vm1654, %v6404, %v6405
    %v6407 = vrot.slane %v6405, 4
    %v6408 = vrot.slane %v6395, 7
    %v6409 = vsel %vm1654, %v6407, %v6408
    %v6410 = vrot.slane %v6408, 4
    %v6411 = vrot.slane %v6396, 7
    %v6412 = vsel %vm1654, %v6410, %v6411
    %v6413 = vrot.slane %v6411, 4
    %v6414 = vrot.slane %v6397, 7
    %v6415 = vsel %vm1654, %v6413, %v6414
    %v6416 = vrot.slane %v6414, 4
    %6417 = vrot.lane.b32.xlu0 %v6403, 64
    %v6418 = vpop.permute.xlu0 %6417
    %6419 = vrot.lane.b32.xlu0 %v6406, 64
    %v6420 = vpop.permute.xlu0 %6419
    %6421 = vrot.lane.b32.xlu0 %v6409, 64
    %v6422 = vpop.permute.xlu0 %6421
    %6423 = vrot.lane.b32.xlu0 %v6412, 64
    %v6424 = vpop.permute.xlu0 %6423
    %6425 = vrot.lane.b32.xlu0 %v6415, 64
    %v6426 = vpop.permute.xlu0 %6425
    %6427 = vrot.lane.b32.xlu0 %v6416, 64
    %v6428 = vpop.permute.xlu0 %6427
    %vm6435 = vcmask 781826
    %vm6436 = vmand %vm6435, %vm1257
    %v6437 = vld [vmem:[#allocation5 + $0x20] sm:$0xc]
    %v6438 = vsel %vm6436, %v6418, %v6437
    %6439 = vst [vmem:[#allocation5 + $0x20] sm:$0xc] %v6438
    %6440 = vst.msk [vmem:[#allocation5 + $0x28] sm:$0xf] %vm6141, %v6420
    %6441 = vst.msk [vmem:[#allocation5 + $0x30] sm:$0xf] %vm6141, %v6422
    %6442 = vst.msk [vmem:[#allocation5 + $0x38] sm:$0xf] %vm6141, %v6424
    %6443 = vst.msk [vmem:[#allocation5 + $0x40] sm:$0xf] %vm6141, %v6426
    %vm6444 = vcmask 778752
    %6445 = vst.msk [vmem:[#allocation5 + $0x48] sm:$0x1] %vm6444, %v6428
    %v6446 = vld [vmem:[#allocation4 + $0x14] sm:$0xc]
    %v6447 = vld [vmem:[#allocation4 + $0x18] sm:$0xf]
    %v6448 = vld [vmem:[#allocation4 + $0x1c] sm:$0xf]
    %v6449 = vld [vmem:[#allocation4 + $0x20] sm:$0xf]
    %v6450 = vld [vmem:[#allocation4 + $0x24] sm:$0xf]
    %v6451 = vld [vmem:[#allocation4 + $0x28] sm:$0x1]
    %v6453 = vshrl.u32 %v6446, 16
    %v6455 = vrot.slane %v6453, 7
    %v6456 = vshll.u32 %v6446, 16
    %v6458 = vor.u32 %v6455, %v6456
    %v6459 = vrot.slane %v6455, 4
    %v6461 = vshrl.u32 %v6447, 16
    %v6463 = vrot.slane %v6461, 7
    %v6464 = vshll.u32 %v6447, 16
    %v6466 = vor.u32 %v6463, %v6464
    %v6467 = vsel %vm1834, %v6459, %v6466
    %v6468 = vrot.slane %v6463, 4
    %v6470 = vshrl.u32 %v6448, 16
    %v6472 = vrot.slane %v6470, 7
    %v6473 = vshll.u32 %v6448, 16
    %v6475 = vor.u32 %v6472, %v6473
    %v6476 = vsel %vm1834, %v6468, %v6475
    %v6477 = vrot.slane %v6472, 4
    %v6479 = vshrl.u32 %v6449, 16
    %v6481 = vrot.slane %v6479, 7
    %v6482 = vshll.u32 %v6449, 16
    %v6484 = vor.u32 %v6481, %v6482
    %v6485 = vsel %vm1834, %v6477, %v6484
    %v6486 = vrot.slane %v6481, 4
    %v6488 = vshrl.u32 %v6450, 16
    %v6490 = vrot.slane %v6488, 7
    %v6491 = vshll.u32 %v6450, 16
    %v6493 = vor.u32 %v6490, %v6491
    %v6494 = vsel %vm1834, %v6486, %v6493
    %v6495 = vrot.slane %v6490, 4
    %v6497 = vshll.u32 %v6451, 16
    %v6499 = vsel %vm1834, %v6495, %v6497
    %6500 = vrot.lane.b32.xlu0 %v6458, 96
    %v6501 = vpop.permute.xlu0 %6500
    %6502 = vrot.lane.b32.xlu0 %v6467, 96
    %v6503 = vpop.permute.xlu0 %6502
    %6504 = vrot.lane.b32.xlu0 %v6476, 96
    %v6505 = vpop.permute.xlu0 %6504
    %6506 = vrot.lane.b32.xlu0 %v6485, 96
    %v6507 = vpop.permute.xlu0 %6506
    %6508 = vrot.lane.b32.xlu0 %v6494, 96
    %v6509 = vpop.permute.xlu0 %6508
    %6510 = vrot.lane.b32.xlu0 %v6499, 96
    %v6511 = vpop.permute.xlu0 %6510
    %vm6518 = vcmask 1044226
    %vm6519 = vmand %vm6518, %vm1257
    %v6520 = vld [vmem:[#allocation5 + $0x20] sm:$0xc]
    %v6521 = vsel %vm6519, %v6501, %v6520
    %6522 = vst [vmem:[#allocation5 + $0x20] sm:$0xc] %v6521
    %6523 = vst.msk [vmem:[#allocation5 + $0x28] sm:$0xf] %vm6220, %v6503
    %6524 = vst.msk [vmem:[#allocation5 + $0x30] sm:$0xf] %vm6220, %v6505
    %6525 = vst.msk [vmem:[#allocation5 + $0x38] sm:$0xf] %vm6220, %v6507
    %6526 = vst.msk [vmem:[#allocation5 + $0x40] sm:$0xf] %vm6220, %v6509
    %vm6527 = vcmask 1041152
    %6528 = vst.msk [vmem:[#allocation5 + $0x48] sm:$0x1] %vm6527, %v6511
    %v6529 = vld [vmem:[#allocation4 + $0x14] sm:$0xc]
    %v6530 = vld [vmem:[#allocation4 + $0x18] sm:$0xf]
    %v6531 = vld [vmem:[#allocation4 + $0x1c] sm:$0xf]
    %v6532 = vld [vmem:[#allocation4 + $0x20] sm:$0xf]
    %v6533 = vld [vmem:[#allocation4 + $0x24] sm:$0xf]
    %v6534 = vld [vmem:[#allocation4 + $0x28] sm:$0x1]
    %v6535 = vld [vmem:[#allocation5 + $0x24] sm:$0xc]
    %v6536 = vsel %vm6301, %v6529, %v6535
    %6537 = vst [vmem:[#allocation5 + $0x24] sm:$0xc] %v6536
    %6538 = vst.msk [vmem:[#allocation5 + $0x2c] sm:$0xf] %vm5461, %v6530
    %6539 = vst.msk [vmem:[#allocation5 + $0x34] sm:$0xf] %vm5461, %v6531
    %6540 = vst.msk [vmem:[#allocation5 + $0x3c] sm:$0xf] %vm5461, %v6532
    %6541 = vst.msk [vmem:[#allocation5 + $0x44] sm:$0xf] %vm5461, %v6533
    %6542 = vst.msk [vmem:[#allocation5 + $0x4c] sm:$0x1] %vm5716, %v6534
    %v6543 = vld [vmem:[#allocation4 + $0x28] sm:$0xe]
    %v6544 = vld [vmem:[#allocation4 + $0x2c] sm:$0xf]
    %v6545 = vld [vmem:[#allocation4 + $0x30] sm:$0xf]
    %v6546 = vld [vmem:[#allocation4 + $0x34] sm:$0xf]
    %v6547 = vld [vmem:[#allocation4 + $0x38] sm:$0xf]
    %6548 = vst.msk [vmem:[#allocation5 + $0x48] sm:$0xe] %vm5836, %v6543
    %6549 = vst.msk [vmem:[#allocation5 + $0x50] sm:$0xf] %vm5461, %v6544
    %6550 = vst.msk [vmem:[#allocation5 + $0x58] sm:$0xf] %vm5461, %v6545
    %6551 = vst.msk [vmem:[#allocation5 + $0x60] sm:$0xf] %vm5461, %v6546
    %vm6552 = vmand %vm5706, %vm112
    %v6553 = vld [vmem:[#allocation5 + $0x68] sm:$0xf]
    %v6554 = vsel %vm6552, %v6547, %v6553
    %6555 = vst [vmem:[#allocation5 + $0x68] sm:$0xf] %v6554
    %v6556 = vld [vmem:[#allocation4 + $0x28] sm:$0xe]
    %v6557 = vld [vmem:[#allocation4 + $0x2c] sm:$0xf]
    %v6558 = vld [vmem:[#allocation4 + $0x30] sm:$0xf]
    %v6559 = vld [vmem:[#allocation4 + $0x34] sm:$0xf]
    %v6560 = vld [vmem:[#allocation4 + $0x38] sm:$0xf]
    %v6562 = vshrl.u32 %v6556, 16
    %v6564 = vrot.slane %v6562, 4
    %v6565 = vshll.u32 %v6556, 16
    %v6567 = vrot.slane %v6565, 5
    %v6568 = vor.u32 %v6564, %v6567
    %v6569 = vrot.slane %v6568, 4
    %v6571 = vshll.u32 %v6557, 16
    %v6573 = vrot.slane %v6571, 5
    %v6574 = vsel %vm114, %v6569, %v6573
    %v6575 = vshrl.u32 %v6557, 16
    %v6577 = vrot.slane %v6575, 4
    %v6578 = vor.u32 %v6577, %v6573
    %v6579 = vrot.slane %v6578, 4
    %v6581 = vshll.u32 %v6558, 16
    %v6583 = vrot.slane %v6581, 5
    %v6584 = vsel %vm114, %v6579, %v6583
    %v6585 = vshrl.u32 %v6558, 16
    %v6587 = vrot.slane %v6585, 4
    %v6588 = vor.u32 %v6587, %v6583
    %v6589 = vrot.slane %v6588, 4
    %v6591 = vshll.u32 %v6559, 16
    %v6593 = vrot.slane %v6591, 5
    %v6594 = vsel %vm114, %v6589, %v6593
    %v6595 = vshrl.u32 %v6559, 16
    %v6597 = vrot.slane %v6595, 4
    %v6598 = vor.u32 %v6597, %v6593
    %v6599 = vrot.slane %v6598, 4
    %v6601 = vshll.u32 %v6560, 16
    %v6603 = vrot.slane %v6601, 5
    %v6604 = vsel %vm114, %v6599, %v6603
    %v6605 = vshrl.u32 %v6560, 16
    %v6607 = vrot.slane %v6605, 4
    %v6608 = vor.u32 %v6607, %v6603
    %v6609 = vrot.slane %v6608, 4
    %6610 = vrot.lane.b32.xlu0 %v6574, 32
    %v6611 = vpop.permute.xlu0 %6610
    %6612 = vrot.lane.b32.xlu0 %v6584, 32
    %v6613 = vpop.permute.xlu0 %6612
    %6614 = vrot.lane.b32.xlu0 %v6594, 32
    %v6615 = vpop.permute.xlu0 %6614
    %6616 = vrot.lane.b32.xlu0 %v6604, 32
    %v6617 = vpop.permute.xlu0 %6616
    %6618 = vrot.lane.b32.xlu0 %v6609, 32
    %v6619 = vpop.permute.xlu0 %6618
    %vm6625 = vcmask 519425
    %6626 = vst.msk [vmem:[#allocation5 + $0x48] sm:$0xe] %vm6625, %v6611
    %6627 = vst.msk [vmem:[#allocation5 + $0x50] sm:$0xf] %vm6092, %v6613
    %6628 = vst.msk [vmem:[#allocation5 + $0x58] sm:$0xf] %vm6092, %v6615
    %6629 = vst.msk [vmem:[#allocation5 + $0x60] sm:$0xf] %vm6092, %v6617
    %vm6630 = vcmask 519424
    %vm6631 = vmand %vm6630, %vm112
    %v6632 = vld [vmem:[#allocation5 + $0x68] sm:$0xf]
    %v6633 = vsel %vm6631, %v6619, %v6632
    %6634 = vst [vmem:[#allocation5 + $0x68] sm:$0xf] %v6633
    %v6635 = vld [vmem:[#allocation4 + $0x28] sm:$0xc]
    %v6636 = vld [vmem:[#allocation4 + $0x2c] sm:$0xf]
    %v6637 = vld [vmem:[#allocation4 + $0x30] sm:$0xf]
    %v6638 = vld [vmem:[#allocation4 + $0x34] sm:$0xf]
    %v6639 = vld [vmem:[#allocation4 + $0x38] sm:$0xf]
    %v6640 = vld [vmem:[#allocation4 + $0x3c] sm:$0x1]
    %v6647 = vrot.slane %v6635, 5
    %v6648 = vrot.slane %v6647, 4
    %v6649 = vrot.slane %v6636, 5
    %v6650 = vsel %vm457, %v6648, %v6649
    %v6651 = vrot.slane %v6649, 4
    %v6652 = vrot.slane %v6637, 5
    %v6653 = vsel %vm457, %v6651, %v6652
    %v6654 = vrot.slane %v6652, 4
    %v6655 = vrot.slane %v6638, 5
    %v6656 = vsel %vm457, %v6654, %v6655
    %v6657 = vrot.slane %v6655, 4
    %v6658 = vrot.slane %v6639, 5
    %v6659 = vsel %vm457, %v6657, %v6658
    %v6660 = vrot.slane %v6658, 4
    %v6661 = vrot.slane %v6640, 5
    %v6662 = vsel %vm457, %v6660, %v6661
    %6663 = vrot.lane.b32.xlu0 %v6650, 64
    %v6664 = vpop.permute.xlu0 %6663
    %6665 = vrot.lane.b32.xlu0 %v6653, 64
    %v6666 = vpop.permute.xlu0 %6665
    %6667 = vrot.lane.b32.xlu0 %v6656, 64
    %v6668 = vpop.permute.xlu0 %6667
    %6669 = vrot.lane.b32.xlu0 %v6659, 64
    %v6670 = vpop.permute.xlu0 %6669
    %6671 = vrot.lane.b32.xlu0 %v6662, 64
    %v6672 = vpop.permute.xlu0 %6671
    %vm6678 = vcmask 781825
    %6679 = vst.msk [vmem:[#allocation5 + $0x48] sm:$0xe] %vm6678, %v6664
    %6680 = vst.msk [vmem:[#allocation5 + $0x50] sm:$0xf] %vm6141, %v6666
    %6681 = vst.msk [vmem:[#allocation5 + $0x58] sm:$0xf] %vm6141, %v6668
    %6682 = vst.msk [vmem:[#allocation5 + $0x60] sm:$0xf] %vm6141, %v6670
    %vm6683 = vcmask 781824
    %vm6684 = vmand %vm6683, %vm112
    %v6685 = vld [vmem:[#allocation5 + $0x68] sm:$0xf]
    %v6686 = vsel %vm6684, %v6672, %v6685
    %6687 = vst [vmem:[#allocation5 + $0x68] sm:$0xf] %v6686
    %v6688 = vld [vmem:[#allocation4 + $0x28] sm:$0xc]
    %v6689 = vld [vmem:[#allocation4 + $0x2c] sm:$0xf]
    %v6690 = vld [vmem:[#allocation4 + $0x30] sm:$0xf]
    %v6691 = vld [vmem:[#allocation4 + $0x34] sm:$0xf]
    %v6692 = vld [vmem:[#allocation4 + $0x38] sm:$0xf]
    %v6693 = vld [vmem:[#allocation4 + $0x3c] sm:$0x1]
    %v6695 = vshrl.u32 %v6688, 16
    %v6697 = vrot.slane %v6695, 5
    %v6698 = vshll.u32 %v6688, 16
    %v6700 = vrot.slane %v6698, 6
    %v6701 = vor.u32 %v6697, %v6700
    %v6702 = vrot.slane %v6701, 4
    %v6704 = vshrl.u32 %v6689, 16
    %v6706 = vrot.slane %v6704, 5
    %v6707 = vshll.u32 %v6689, 16
    %v6709 = vrot.slane %v6707, 6
    %v6710 = vor.u32 %v6706, %v6709
    %v6711 = vsel %vm631, %v6702, %v6710
    %v6712 = vrot.slane %v6710, 4
    %v6714 = vshrl.u32 %v6690, 16
    %v6716 = vrot.slane %v6714, 5
    %v6717 = vshll.u32 %v6690, 16
    %v6719 = vrot.slane %v6717, 6
    %v6720 = vor.u32 %v6716, %v6719
    %v6721 = vsel %vm631, %v6712, %v6720
    %v6722 = vrot.slane %v6720, 4
    %v6724 = vshrl.u32 %v6691, 16
    %v6726 = vrot.slane %v6724, 5
    %v6727 = vshll.u32 %v6691, 16
    %v6729 = vrot.slane %v6727, 6
    %v6730 = vor.u32 %v6726, %v6729
    %v6731 = vsel %vm631, %v6722, %v6730
    %v6732 = vrot.slane %v6730, 4
    %v6734 = vshrl.u32 %v6692, 16
    %v6736 = vrot.slane %v6734, 5
    %v6737 = vshll.u32 %v6692, 16
    %v6739 = vrot.slane %v6737, 6
    %v6740 = vor.u32 %v6736, %v6739
    %v6741 = vsel %vm631, %v6732, %v6740
    %v6742 = vrot.slane %v6740, 4
    %v6744 = vshrl.u32 %v6693, 16
    %v6746 = vrot.slane %v6744, 5
    %v6747 = vshll.u32 %v6693, 16
    %v6749 = vrot.slane %v6747, 6
    %v6750 = vor.u32 %v6746, %v6749
    %v6751 = vsel %vm631, %v6742, %v6750
    %6752 = vrot.lane.b32.xlu0 %v6711, 96
    %v6753 = vpop.permute.xlu0 %6752
    %6754 = vrot.lane.b32.xlu0 %v6721, 96
    %v6755 = vpop.permute.xlu0 %6754
    %6756 = vrot.lane.b32.xlu0 %v6731, 96
    %v6757 = vpop.permute.xlu0 %6756
    %6758 = vrot.lane.b32.xlu0 %v6741, 96
    %v6759 = vpop.permute.xlu0 %6758
    %6760 = vrot.lane.b32.xlu0 %v6751, 96
    %v6761 = vpop.permute.xlu0 %6760
    %vm6767 = vcmask 1044225
    %6768 = vst.msk [vmem:[#allocation5 + $0x48] sm:$0xe] %vm6767, %v6753
    %6769 = vst.msk [vmem:[#allocation5 + $0x50] sm:$0xf] %vm6220, %v6755
    %6770 = vst.msk [vmem:[#allocation5 + $0x58] sm:$0xf] %vm6220, %v6757
    %6771 = vst.msk [vmem:[#allocation5 + $0x60] sm:$0xf] %vm6220, %v6759
    %vm6772 = vcmask 1044224
    %vm6773 = vmand %vm6772, %vm112
    %v6774 = vld [vmem:[#allocation5 + $0x68] sm:$0xf]
    %v6775 = vsel %vm6773, %v6761, %v6774
    %6776 = vst [vmem:[#allocation5 + $0x68] sm:$0xf] %v6775
    %v6777 = vld [vmem:[#allocation4 + $0x28] sm:$0x8]
    %v6778 = vld [vmem:[#allocation4 + $0x2c] sm:$0xf]
    %v6779 = vld [vmem:[#allocation4 + $0x30] sm:$0xf]
    %v6780 = vld [vmem:[#allocation4 + $0x34] sm:$0xf]
    %v6781 = vld [vmem:[#allocation4 + $0x38] sm:$0xf]
    %v6782 = vld [vmem:[#allocation4 + $0x3c] sm:$0x3]
    %v6789 = vrot.slane %v6777, 6
    %v6790 = vrot.slane %v6789, 4
    %v6791 = vrot.slane %v6778, 6
    %v6792 = vsel %vm976, %v6790, %v6791
    %v6793 = vrot.slane %v6791, 4
    %v6794 = vrot.slane %v6779, 6
    %v6795 = vsel %vm976, %v6793, %v6794
    %v6796 = vrot.slane %v6794, 4
    %v6797 = vrot.slane %v6780, 6
    %v6798 = vsel %vm976, %v6796, %v6797
    %v6799 = vrot.slane %v6797, 4
    %v6800 = vrot.slane %v6781, 6
    %v6801 = vsel %vm976, %v6799, %v6800
    %v6802 = vrot.slane %v6800, 4
    %v6803 = vrot.slane %v6782, 6
    %v6804 = vsel %vm976, %v6802, %v6803
    %6810 = vst.msk [vmem:[#allocation5 + $0x4c] sm:$0xe] %vm5836, %v6792
    %6811 = vst.msk [vmem:[#allocation5 + $0x54] sm:$0xf] %vm5461, %v6795
    %6812 = vst.msk [vmem:[#allocation5 + $0x5c] sm:$0xf] %vm5461, %v6798
    %6813 = vst.msk [vmem:[#allocation5 + $0x64] sm:$0xf] %vm5461, %v6801
    %v6814 = vld [vmem:[#allocation5 + $0x6c] sm:$0xf]
    %v6815 = vsel %vm6552, %v6804, %v6814
    %6816 = vst [vmem:[#allocation5 + $0x6c] sm:$0xf] %v6815
    %v6817 = vld [vmem:[#allocation4 + $0x3c] sm:$0xe]
    %v6818 = vld [vmem:[#allocation4 + $0x40] sm:$0xf]
    %v6819 = vld [vmem:[#allocation4 + $0x44] sm:$0xf]
    %v6820 = vld [vmem:[#allocation4 + $0x48] sm:$0xf]
    %v6821 = vld [vmem:[#allocation4 + $0x4c] sm:$0xf]
    %v6827 = vrot.slane %v6817, 6
    %v6828 = vrot.slane %v6827, 4
    %v6829 = vrot.slane %v6818, 6
    %v6830 = vsel %vm976, %v6828, %v6829
    %v6831 = vrot.slane %v6829, 4
    %v6832 = vrot.slane %v6819, 6
    %v6833 = vsel %vm976, %v6831, %v6832
    %v6834 = vrot.slane %v6832, 4
    %v6835 = vrot.slane %v6820, 6
    %v6836 = vsel %vm976, %v6834, %v6835
    %v6837 = vrot.slane %v6835, 4
    %v6838 = vrot.slane %v6821, 6
    %v6839 = vsel %vm976, %v6837, %v6838
    %v6840 = vrot.slane %v6838, 4
    %vm6847 = vcmask 257027
    %vm6848 = vmand %vm6847, %vm3473
    %v6849 = vld [vmem:[#allocation5 + $0x68] sm:$0x8]
    %v6850 = vsel %vm6848, %v6827, %v6849
    %6851 = vst [vmem:[#allocation5 + $0x68] sm:$0x8] %v6850
    %6852 = vst.msk [vmem:[#allocation5 + $0x70] sm:$0xf] %vm5461, %v6830
    %6853 = vst.msk [vmem:[#allocation5 + $0x78] sm:$0xf] %vm5461, %v6833
    %6854 = vst.msk [vmem:[#allocation5 + $0x80] sm:$0xf] %vm5461, %v6836
    %6855 = vst.msk [vmem:[#allocation5 + $0x88] sm:$0xf] %vm5461, %v6839
    %6856 = vst.msk [vmem:[#allocation5 + $0x90] sm:$0x3] %vm6007, %v6840
    %v6857 = vld [vmem:[#allocation4 + $0x3c] sm:$0xc]
    %v6858 = vld [vmem:[#allocation4 + $0x40] sm:$0xf]
    %v6859 = vld [vmem:[#allocation4 + $0x44] sm:$0xf]
    %v6860 = vld [vmem:[#allocation4 + $0x48] sm:$0xf]
    %v6861 = vld [vmem:[#allocation4 + $0x4c] sm:$0xf]
    %v6862 = vld [vmem:[#allocation4 + $0x50] sm:$0x1]
    %v6864 = vshll.u32 %v6857, 16
    %v6866 = vrot.slane %v6864, 7
    %v6867 = vshrl.u32 %v6857, 16
    %v6869 = vrot.slane %v6867, 6
    %v6870 = vor.u32 %v6869, %v6866
    %v6871 = vrot.slane %v6870, 4
    %v6873 = vshrl.u32 %v6858, 16
    %v6875 = vrot.slane %v6873, 6
    %v6876 = vshll.u32 %v6858, 16
    %v6878 = vrot.slane %v6876, 7
    %v6879 = vor.u32 %v6875, %v6878
    %v6880 = vsel %vm1307, %v6871, %v6879
    %v6881 = vrot.slane %v6879, 4
    %v6883 = vshrl.u32 %v6859, 16
    %v6885 = vrot.slane %v6883, 6
    %v6886 = vshll.u32 %v6859, 16
    %v6888 = vrot.slane %v6886, 7
    %v6889 = vor.u32 %v6885, %v6888
    %v6890 = vsel %vm1307, %v6881, %v6889
    %v6891 = vrot.slane %v6889, 4
    %v6893 = vshrl.u32 %v6860, 16
    %v6895 = vrot.slane %v6893, 6
    %v6896 = vshll.u32 %v6860, 16
    %v6898 = vrot.slane %v6896, 7
    %v6899 = vor.u32 %v6895, %v6898
    %v6900 = vsel %vm1307, %v6891, %v6899
    %v6901 = vrot.slane %v6899, 4
    %v6903 = vshrl.u32 %v6861, 16
    %v6905 = vrot.slane %v6903, 6
    %v6906 = vshll.u32 %v6861, 16
    %v6908 = vrot.slane %v6906, 7
    %v6909 = vor.u32 %v6905, %v6908
    %v6910 = vsel %vm1307, %v6901, %v6909
    %v6911 = vrot.slane %v6909, 4
    %v6913 = vshll.u32 %v6862, 16
    %v6915 = vrot.slane %v6913, 7
    %v6916 = vsel %vm1307, %v6911, %v6915
    %6917 = vrot.lane.b32.xlu0 %v6866, 32
    %v6918 = vpop.permute.xlu0 %6917
    %6919 = vrot.lane.b32.xlu0 %v6880, 32
    %v6920 = vpop.permute.xlu0 %6919
    %6921 = vrot.lane.b32.xlu0 %v6890, 32
    %v6922 = vpop.permute.xlu0 %6921
    %6923 = vrot.lane.b32.xlu0 %v6900, 32
    %v6924 = vpop.permute.xlu0 %6923
    %6925 = vrot.lane.b32.xlu0 %v6910, 32
    %v6926 = vpop.permute.xlu0 %6925
    %6927 = vrot.lane.b32.xlu0 %v6916, 32
    %v6928 = vpop.permute.xlu0 %6927
    %vm6935 = vcmask 519427
    %vm6936 = vmand %vm6935, %vm3473
    %v6937 = vld [vmem:[#allocation5 + $0x68] sm:$0x8]
    %v6938 = vsel %vm6936, %v6918, %v6937
    %6939 = vst [vmem:[#allocation5 + $0x68] sm:$0x8] %v6938
    %6940 = vst.msk [vmem:[#allocation5 + $0x70] sm:$0xf] %vm6092, %v6920
    %6941 = vst.msk [vmem:[#allocation5 + $0x78] sm:$0xf] %vm6092, %v6922
    %6942 = vst.msk [vmem:[#allocation5 + $0x80] sm:$0xf] %vm6092, %v6924
    %6943 = vst.msk [vmem:[#allocation5 + $0x88] sm:$0xf] %vm6092, %v6926
    %vm6944 = vcmask 517376
    %6945 = vst.msk [vmem:[#allocation5 + $0x90] sm:$0x3] %vm6944, %v6928
    %v6946 = vld [vmem:[#allocation4 + $0x3c] sm:$0xc]
    %v6947 = vld [vmem:[#allocation4 + $0x40] sm:$0xf]
    %v6948 = vld [vmem:[#allocation4 + $0x44] sm:$0xf]
    %v6949 = vld [vmem:[#allocation4 + $0x48] sm:$0xf]
    %v6950 = vld [vmem:[#allocation4 + $0x4c] sm:$0xf]
    %v6951 = vld [vmem:[#allocation4 + $0x50] sm:$0x1]
    %v6958 = vrot.slane %v6946, 7
    %v6959 = vrot.slane %v6958, 4
    %v6960 = vrot.slane %v6947, 7
    %v6961 = vsel %vm1654, %v6959, %v6960
    %v6962 = vrot.slane %v6960, 4
    %v6963 = vrot.slane %v6948, 7
    %v6964 = vsel %vm1654, %v6962, %v6963
    %v6965 = vrot.slane %v6963, 4
    %v6966 = vrot.slane %v6949, 7
    %v6967 = vsel %vm1654, %v6965, %v6966
    %v6968 = vrot.slane %v6966, 4
    %v6969 = vrot.slane %v6950, 7
    %v6970 = vsel %vm1654, %v6968, %v6969
    %v6971 = vrot.slane %v6969, 4
    %v6972 = vrot.slane %v6951, 7
    %v6973 = vsel %vm1654, %v6971, %v6972
    %6974 = vrot.lane.b32.xlu0 %v6958, 64
    %v6975 = vpop.permute.xlu0 %6974
    %6976 = vrot.lane.b32.xlu0 %v6961, 64
    %v6977 = vpop.permute.xlu0 %6976
    %6978 = vrot.lane.b32.xlu0 %v6964, 64
    %v6979 = vpop.permute.xlu0 %6978
    %6980 = vrot.lane.b32.xlu0 %v6967, 64
    %v6981 = vpop.permute.xlu0 %6980
    %6982 = vrot.lane.b32.xlu0 %v6970, 64
    %v6983 = vpop.permute.xlu0 %6982
    %6984 = vrot.lane.b32.xlu0 %v6973, 64
    %v6985 = vpop.permute.xlu0 %6984
    %vm6992 = vcmask 781827
    %vm6993 = vmand %vm6992, %vm3473
    %v6994 = vld [vmem:[#allocation5 + $0x68] sm:$0x8]
    %v6995 = vsel %vm6993, %v6975, %v6994
    %6996 = vst [vmem:[#allocation5 + $0x68] sm:$0x8] %v6995
    %6997 = vst.msk [vmem:[#allocation5 + $0x70] sm:$0xf] %vm6141, %v6977
    %6998 = vst.msk [vmem:[#allocation5 + $0x78] sm:$0xf] %vm6141, %v6979
    %6999 = vst.msk [vmem:[#allocation5 + $0x80] sm:$0xf] %vm6141, %v6981
    %7000 = vst.msk [vmem:[#allocation5 + $0x88] sm:$0xf] %vm6141, %v6983
    %vm7001 = vcmask 779776
    %7002 = vst.msk [vmem:[#allocation5 + $0x90] sm:$0x3] %vm7001, %v6985
    %v7003 = vld [vmem:[#allocation4 + $0x3c] sm:$0x8]
    %v7004 = vld [vmem:[#allocation4 + $0x40] sm:$0xf]
    %v7005 = vld [vmem:[#allocation4 + $0x44] sm:$0xf]
    %v7006 = vld [vmem:[#allocation4 + $0x48] sm:$0xf]
    %v7007 = vld [vmem:[#allocation4 + $0x4c] sm:$0xf]
    %v7008 = vld [vmem:[#allocation4 + $0x50] sm:$0x3]
    %v7010 = vshll.u32 %v7003, 16
    %v7012 = vshrl.u32 %v7003, 16
    %v7014 = vrot.slane %v7012, 7
    %v7015 = vrot.slane %v7014, 4
    %v7017 = vshrl.u32 %v7004, 16
    %v7019 = vrot.slane %v7017, 7
    %v7020 = vshll.u32 %v7004, 16
    %v7022 = vor.u32 %v7019, %v7020
    %v7023 = vsel %vm1834, %v7015, %v7022
    %v7024 = vrot.slane %v7019, 4
    %v7026 = vshrl.u32 %v7005, 16
    %v7028 = vrot.slane %v7026, 7
    %v7029 = vshll.u32 %v7005, 16
    %v7031 = vor.u32 %v7028, %v7029
    %v7032 = vsel %vm1834, %v7024, %v7031
    %v7033 = vrot.slane %v7028, 4
    %v7035 = vshrl.u32 %v7006, 16
    %v7037 = vrot.slane %v7035, 7
    %v7038 = vshll.u32 %v7006, 16
    %v7040 = vor.u32 %v7037, %v7038
    %v7041 = vsel %vm1834, %v7033, %v7040
    %v7042 = vrot.slane %v7037, 4
    %v7044 = vshrl.u32 %v7007, 16
    %v7046 = vrot.slane %v7044, 7
    %v7047 = vshll.u32 %v7007, 16
    %v7049 = vor.u32 %v7046, %v7047
    %v7050 = vsel %vm1834, %v7042, %v7049
    %v7051 = vrot.slane %v7046, 4
    %v7053 = vshrl.u32 %v7008, 16
    %v7055 = vrot.slane %v7053, 7
    %v7056 = vshll.u32 %v7008, 16
    %v7058 = vor.u32 %v7055, %v7056
    %v7059 = vsel %vm1834, %v7051, %v7058
    %7060 = vrot.lane.b32.xlu0 %v7010, 96
    %v7061 = vpop.permute.xlu0 %7060
    %7062 = vrot.lane.b32.xlu0 %v7023, 96
    %v7063 = vpop.permute.xlu0 %7062
    %7064 = vrot.lane.b32.xlu0 %v7032, 96
    %v7065 = vpop.permute.xlu0 %7064
    %7066 = vrot.lane.b32.xlu0 %v7041, 96
    %v7067 = vpop.permute.xlu0 %7066
    %7068 = vrot.lane.b32.xlu0 %v7050, 96
    %v7069 = vpop.permute.xlu0 %7068
    %7070 = vrot.lane.b32.xlu0 %v7059, 96
    %v7071 = vpop.permute.xlu0 %7070
    %vm7078 = vcmask 1044227
    %vm7079 = vmand %vm7078, %vm3473
    %v7080 = vld [vmem:[#allocation5 + $0x68] sm:$0x8]
    %v7081 = vsel %vm7079, %v7061, %v7080
    %7082 = vst [vmem:[#allocation5 + $0x68] sm:$0x8] %v7081
    %7083 = vst.msk [vmem:[#allocation5 + $0x70] sm:$0xf] %vm6220, %v7063
    %7084 = vst.msk [vmem:[#allocation5 + $0x78] sm:$0xf] %vm6220, %v7065
    %7085 = vst.msk [vmem:[#allocation5 + $0x80] sm:$0xf] %vm6220, %v7067
    %7086 = vst.msk [vmem:[#allocation5 + $0x88] sm:$0xf] %vm6220, %v7069
    %vm7087 = vcmask 1042176
    %7088 = vst.msk [vmem:[#allocation5 + $0x90] sm:$0x3] %vm7087, %v7071
    %v7089 = vld [vmem:[#allocation4 + $0x3c] sm:$0x8]
    %v7090 = vld [vmem:[#allocation4 + $0x40] sm:$0xf]
    %v7091 = vld [vmem:[#allocation4 + $0x44] sm:$0xf]
    %v7092 = vld [vmem:[#allocation4 + $0x48] sm:$0xf]
    %v7093 = vld [vmem:[#allocation4 + $0x4c] sm:$0xf]
    %v7094 = vld [vmem:[#allocation4 + $0x50] sm:$0x3]
    %v7095 = vld [vmem:[#allocation5 + $0x6c] sm:$0x8]
    %v7096 = vsel %vm6848, %v7089, %v7095
    %7097 = vst [vmem:[#allocation5 + $0x6c] sm:$0x8] %v7096
    %7098 = vst.msk [vmem:[#allocation5 + $0x74] sm:$0xf] %vm5461, %v7090
    %7099 = vst.msk [vmem:[#allocation5 + $0x7c] sm:$0xf] %vm5461, %v7091
    %7100 = vst.msk [vmem:[#allocation5 + $0x84] sm:$0xf] %vm5461, %v7092
    %7101 = vst.msk [vmem:[#allocation5 + $0x8c] sm:$0xf] %vm5461, %v7093
    %7102 = vst.msk [vmem:[#allocation5 + $0x94] sm:$0x3] %vm6007, %v7094
    %v7103 = vld [vmem:[#allocation5] sm:$0xff]
    %v7104 = vld [vmem:[#allocation5 + $0x8] sm:$0xff]
    %v7105 = vld [vmem:[#allocation5 + $0x10] sm:$0xff]
    %v7106 = vld [vmem:[#allocation5 + $0x18] sm:$0xff]
    %v7107 = vld [vmem:[#allocation5 + $0x20] sm:$0xff]
    %v7108 = vld [vmem:[#allocation5 + $0x28] sm:$0xff]
    %v7109 = vld [vmem:[#allocation5 + $0x30] sm:$0xff]
    %v7110 = vld [vmem:[#allocation5 + $0x38] sm:$0xff]
    %v7111 = vld [vmem:[#allocation5 + $0x40] sm:$0xff]
    %v7112 = vld [vmem:[#allocation5 + $0x48] sm:$0xff]
    %v7113 = vld [vmem:[#allocation5 + $0x50] sm:$0xff]
    %v7114 = vld [vmem:[#allocation5 + $0x58] sm:$0xff]
    %v7115 = vld [vmem:[#allocation5 + $0x60] sm:$0xff]
    %v7116 = vld [vmem:[#allocation5 + $0x68] sm:$0xff]
    %v7117 = vld [vmem:[#allocation5 + $0x70] sm:$0xff]
    %v7118 = vld [vmem:[#allocation5 + $0x78] sm:$0xff]
    %v7119 = vld [vmem:[#allocation5 + $0x80] sm:$0xff]
    %v7120 = vld [vmem:[#allocation5 + $0x88] sm:$0xff]
    %v7121 = vld [vmem:[#allocation5 + $0x90] sm:$0x33]
    %v7122 = vld [vmem:[%s4] sm:$0xf]
    %v7123 = vld [vmem:[%s4 + $0x4] sm:$0xf]
    %v7124 = vld [vmem:[%s4 + $0x8] sm:$0xf]
    %v7125 = vld [vmem:[%s4 + $0xc] sm:$0xf]
    %v7126 = vld [vmem:[%s4 + $0x10] sm:$0xf]
    %v7127 = vld [vmem:[%s4 + $0x14] sm:$0xf]
    %v7128 = vld [vmem:[%s4 + $0x18] sm:$0xf]
    %v7129 = vld [vmem:[%s4 + $0x1c] sm:$0xf]
    %v7130 = vld [vmem:[%s4 + $0x20] sm:$0xf]
    %v7131 = vld [vmem:[%s4 + $0x24] sm:$0xf]
    %v7132 = vld [vmem:[%s4 + $0x28] sm:$0xf]
    %v7133 = vld [vmem:[%s4 + $0x2c] sm:$0xf]
    %v7134 = vld [vmem:[%s4 + $0x30] sm:$0xf]
    %v7135 = vld [vmem:[%s4 + $0x34] sm:$0xf]
    %v7136 = vld [vmem:[%s4 + $0x38] sm:$0xf]
    %v7137 = vld [vmem:[%s4 + $0x3c] sm:$0xf]
    %v7138 = vld [vmem:[%s4 + $0x40] sm:$0xf]
    %v7139 = vld [vmem:[%s4 + $0x44] sm:$0xf]
    %v7140 = vld [vmem:[%s4 + $0x48] sm:$0xf]
    %v7141 = vld [vmem:[%s4 + $0x4c] sm:$0xf]
    %v7161 = vunpack.c.l.b16 %v7103
    %v7162 = vunpack.c.h.b16 %v7103
    %v7163 = vunpack.c.l.b16 %v7104
    %v7164 = vunpack.c.h.b16 %v7104
    %v7165 = vunpack.c.l.b16 %v7105
    %v7166 = vunpack.c.h.b16 %v7105
    %v7167 = vunpack.c.l.b16 %v7106
    %v7168 = vunpack.c.h.b16 %v7106
    %v7169 = vunpack.c.l.b16 %v7107
    %v7170 = vunpack.c.h.b16 %v7107
    %v7171 = vunpack.c.l.b16 %v7108
    %v7172 = vunpack.c.h.b16 %v7108
    %v7173 = vunpack.c.l.b16 %v7109
    %v7174 = vunpack.c.h.b16 %v7109
    %v7175 = vunpack.c.l.b16 %v7110
    %v7176 = vunpack.c.h.b16 %v7110
    %v7177 = vunpack.c.l.b16 %v7111
    %v7178 = vunpack.c.h.b16 %v7111
    %v7179 = vunpack.c.l.b16 %v7112
    %v7180 = vunpack.c.h.b16 %v7112
    %v7181 = vunpack.c.l.b16 %v7113
    %v7182 = vunpack.c.h.b16 %v7113
    %v7183 = vunpack.c.l.b16 %v7114
    %v7184 = vunpack.c.h.b16 %v7114
    %v7185 = vunpack.c.l.b16 %v7115
    %v7186 = vunpack.c.h.b16 %v7115
    %v7187 = vunpack.c.l.b16 %v7116
    %v7188 = vunpack.c.h.b16 %v7116
    %v7189 = vunpack.c.l.b16 %v7117
    %v7190 = vunpack.c.h.b16 %v7117
    %v7191 = vunpack.c.l.b16 %v7118
    %v7192 = vunpack.c.h.b16 %v7118
    %v7193 = vunpack.c.l.b16 %v7119
    %v7194 = vunpack.c.h.b16 %v7119
    %v7195 = vunpack.c.l.b16 %v7120
    %v7196 = vunpack.c.h.b16 %v7120
    %v7197 = vunpack.c.l.b16 %v7121
    %v7198 = vunpack.c.h.b16 %v7121
    %v7199 = vpack.c.b16 %v7163, %v7161
    %v7200 = vpack.c.b16 %v7164, %v7162
    %v7201 = vpack.c.b16 %v7167, %v7165
    %v7202 = vpack.c.b16 %v7168, %v7166
    %v7203 = vpack.c.b16 %v7171, %v7169
    %v7204 = vpack.c.b16 %v7172, %v7170
    %v7205 = vpack.c.b16 %v7175, %v7173
    %v7206 = vpack.c.b16 %v7176, %v7174
    %v7207 = vpack.c.b16 %v7179, %v7177
    %v7208 = vpack.c.b16 %v7180, %v7178
    %v7209 = vpack.c.b16 %v7183, %v7181
    %v7210 = vpack.c.b16 %v7184, %v7182
    %v7211 = vpack.c.b16 %v7187, %v7185
    %v7212 = vpack.c.b16 %v7188, %v7186
    %v7213 = vpack.c.b16 %v7191, %v7189
    %v7214 = vpack.c.b16 %v7192, %v7190
    %v7215 = vpack.c.b16 %v7195, %v7193
    %v7216 = vpack.c.b16 %v7196, %v7194
    %v7217 = vpack.c.b16 %v7197, %v7197
    %v7218 = vpack.c.b16 %v7198, %v7198
    %v7249 = vunpack.c.l.b16 %v7122
    %v7250 = vunpack.c.l.b16 %v7123
    %v7251 = vunpack.c.l.b16 %v7124
    %v7252 = vunpack.c.l.b16 %v7125
    %v7253 = vunpack.c.l.b16 %v7126
    %v7254 = vunpack.c.l.b16 %v7127
    %v7255 = vunpack.c.l.b16 %v7128
    %v7256 = vunpack.c.l.b16 %v7129
    %v7257 = vunpack.c.l.b16 %v7130
    %v7258 = vunpack.c.l.b16 %v7131
    %v7259 = vunpack.c.l.b16 %v7132
    %v7260 = vunpack.c.l.b16 %v7133
    %v7261 = vunpack.c.l.b16 %v7134
    %v7262 = vunpack.c.l.b16 %v7135
    %v7263 = vunpack.c.l.b16 %v7136
    %v7264 = vunpack.c.l.b16 %v7137
    %v7265 = vunpack.c.l.b16 %v7138
    %v7266 = vunpack.c.l.b16 %v7139
    %v7267 = vunpack.c.l.b16 %v7140
    %v7268 = vunpack.c.l.b16 %v7141
    %v7269 = vpack.c.b16 %v7250, %v7249
    %v7270 = vpack.c.b16 %v7252, %v7251
    %v7271 = vpack.c.b16 %v7254, %v7253
    %v7272 = vpack.c.b16 %v7256, %v7255
    %v7273 = vpack.c.b16 %v7258, %v7257
    %v7274 = vpack.c.b16 %v7260, %v7259
    %v7275 = vpack.c.b16 %v7262, %v7261
    %v7276 = vpack.c.b16 %v7264, %v7263
    %v7277 = vpack.c.b16 %v7266, %v7265
    %v7278 = vpack.c.b16 %v7268, %v7267
    %v7290 = vsel %vm5378, %v7200, 0
    %v7293 = vsel %vm5378, %v7202, 0
    %v7296 = vsel %vm5378, %v7204, 0
    %v7299 = vsel %vm5378, %v7206, 0
    %v7302 = vsel %vm5378, %v7208, 0
    %v7305 = vsel %vm5378, %v7210, 0
    %v7308 = vsel %vm5378, %v7212, 0
    %v7311 = vsel %vm5378, %v7214, 0
    %v7314 = vsel %vm5378, %v7216, 0
    %v7317 = vsel %vm5378, %v7218, 0
    %7319 = vmatpush.bf16.msra.mxu0 %v7276
    %7320 = vmatpush.bf16.msra.mxu0 %v7275
    %7321 = vmatpush.bf16.msra.mxu0 %v7274
    %7322 = vmatpush.bf16.msra.mxu0 %v7273
    %7323 = vmatpush.bf16.msra.mxu0 %v7272
    %7324 = vmatpush.bf16.msra.mxu0 %v7271
    %7325 = vmatpush.bf16.msra.mxu0 %v7270
    %7326 = vmatpush.bf16.msra.mxu0 %v7269
    %7327 = vmatmul.bf16.gmra.mxu0 %v7199
    %v7328 = vpop.f32.mrf.mxu0
    %v7329 = vadd.f32 0.0, %v7328
    %v7330 = vpop.f32.mrf.mxu0
    %v7331 = vadd.f32 0.0, %v7330
    %7332 = vmatmul.bf16.gmra.mxu0 %v7201
    %v7333 = vpop.f32.mrf.mxu0
    %v7334 = vadd.f32 0.0, %v7333
    %v7335 = vpop.f32.mrf.mxu0
    %v7336 = vadd.f32 0.0, %v7335
    %7337 = vmatmul.bf16.gmra.mxu0 %v7203
    %v7338 = vpop.f32.mrf.mxu0
    %v7339 = vadd.f32 0.0, %v7338
    %v7340 = vpop.f32.mrf.mxu0
    %v7341 = vadd.f32 0.0, %v7340
    %7342 = vmatmul.bf16.gmra.mxu0 %v7205
    %v7343 = vpop.f32.mrf.mxu0
    %v7344 = vadd.f32 0.0, %v7343
    %v7345 = vpop.f32.mrf.mxu0
    %v7346 = vadd.f32 0.0, %v7345
    %7347 = vmatmul.bf16.gmra.mxu0 %v7207
    %v7348 = vpop.f32.mrf.mxu0
    %v7349 = vadd.f32 0.0, %v7348
    %v7350 = vpop.f32.mrf.mxu0
    %v7351 = vadd.f32 0.0, %v7350
    %7352 = vmatmul.bf16.gmra.mxu0 %v7209
    %v7353 = vpop.f32.mrf.mxu0
    %v7354 = vadd.f32 0.0, %v7353
    %v7355 = vpop.f32.mrf.mxu0
    %v7356 = vadd.f32 0.0, %v7355
    %7357 = vmatmul.bf16.gmra.mxu0 %v7211
    %v7358 = vpop.f32.mrf.mxu0
    %v7359 = vadd.f32 0.0, %v7358
    %v7360 = vpop.f32.mrf.mxu0
    %v7361 = vadd.f32 0.0, %v7360
    %7362 = vmatmul.bf16.gmra.mxu0 %v7213
    %v7363 = vpop.f32.mrf.mxu0
    %v7364 = vadd.f32 0.0, %v7363
    %v7365 = vpop.f32.mrf.mxu0
    %v7366 = vadd.f32 0.0, %v7365
    %7367 = vmatmul.bf16.gmra.mxu0 %v7215
    %v7368 = vpop.f32.mrf.mxu0
    %v7369 = vadd.f32 0.0, %v7368
    %v7370 = vpop.f32.mrf.mxu0
    %v7371 = vadd.f32 0.0, %v7370
    %7372 = vmatmul.bf16.gmra.mxu0 %v7217
    %v7373 = vpop.f32.mrf.mxu0
    %v7374 = vadd.f32 0.0, %v7373
    %v7375 = vpop.f32.mrf.mxu0
    %7376 = vdwg.mxu0
    %7377 = vmatpush.bf16.msra.mxu0 0
    %7378 = vmatpush.bf16.msra.mxu0 0
    %7379 = vmatpush.bf16.msra.mxu0 0
    %7380 = vmatpush.bf16.msra.mxu0 0
    %7381 = vmatpush.bf16.msra.mxu0 0
    %7382 = vmatpush.bf16.msra.mxu0 0
    %7383 = vmatpush.bf16.msra.mxu0 %v7278
    %7384 = vmatpush.bf16.msra.mxu0 %v7277
    %7385 = vmatmul.bf16.gmra.mxu0 %v7290
    %v7386 = vpop.f32.mrf.mxu0
    %v7387 = vadd.f32 %v7329, %v7386
    %v7388 = vpop.f32.mrf.mxu0
    %v7389 = vadd.f32 %v7331, %v7388
    %7390 = vmatmul.bf16.gmra.mxu0 %v7293
    %v7391 = vpop.f32.mrf.mxu0
    %v7392 = vadd.f32 %v7334, %v7391
    %v7393 = vpop.f32.mrf.mxu0
    %v7394 = vadd.f32 %v7336, %v7393
    %7395 = vmatmul.bf16.gmra.mxu0 %v7296
    %v7396 = vpop.f32.mrf.mxu0
    %v7397 = vadd.f32 %v7339, %v7396
    %v7398 = vpop.f32.mrf.mxu0
    %v7399 = vadd.f32 %v7341, %v7398
    %7400 = vmatmul.bf16.gmra.mxu0 %v7299
    %v7401 = vpop.f32.mrf.mxu0
    %v7402 = vadd.f32 %v7344, %v7401
    %v7403 = vpop.f32.mrf.mxu0
    %v7404 = vadd.f32 %v7346, %v7403
    %7405 = vmatmul.bf16.gmra.mxu0 %v7302
    %v7406 = vpop.f32.mrf.mxu0
    %v7407 = vadd.f32 %v7349, %v7406
    %v7408 = vpop.f32.mrf.mxu0
    %v7409 = vadd.f32 %v7351, %v7408
    %7410 = vmatmul.bf16.gmra.mxu0 %v7305
    %v7411 = vpop.f32.mrf.mxu0
    %v7412 = vadd.f32 %v7354, %v7411
    %v7413 = vpop.f32.mrf.mxu0
    %v7414 = vadd.f32 %v7356, %v7413
    %7415 = vmatmul.bf16.gmra.mxu0 %v7308
    %v7416 = vpop.f32.mrf.mxu0
    %v7417 = vadd.f32 %v7359, %v7416
    %v7418 = vpop.f32.mrf.mxu0
    %v7419 = vadd.f32 %v7361, %v7418
    %7420 = vmatmul.bf16.gmra.mxu0 %v7311
    %v7421 = vpop.f32.mrf.mxu0
    %v7422 = vadd.f32 %v7364, %v7421
    %v7423 = vpop.f32.mrf.mxu0
    %v7424 = vadd.f32 %v7366, %v7423
    %7425 = vmatmul.bf16.gmra.mxu0 %v7314
    %v7426 = vpop.f32.mrf.mxu0
    %v7427 = vadd.f32 %v7369, %v7426
    %v7428 = vpop.f32.mrf.mxu0
    %v7429 = vadd.f32 %v7371, %v7428
    %7430 = vmatmul.bf16.gmra.mxu0 %v7317
    %v7431 = vpop.f32.mrf.mxu0
    %v7432 = vadd.f32 %v7374, %v7431
    %v7433 = vpop.f32.mrf.mxu0
    %7434 = vdwg.mxu0
    %v7435 = vld [vmem:[%s5] sm:$0x1]
    %v7437 = vperm.slane %v7435, 0
    %v7439 = vmul.f32 %v7387, %v7437
    %v7440 = vmul.f32 %v7389, %v7437
    %v7441 = vmul.f32 %v7392, %v7437
    %v7442 = vmul.f32 %v7394, %v7437
    %v7443 = vmul.f32 %v7397, %v7437
    %v7444 = vmul.f32 %v7399, %v7437
    %v7445 = vmul.f32 %v7402, %v7437
    %v7446 = vmul.f32 %v7404, %v7437
    %v7447 = vmul.f32 %v7407, %v7437
    %v7448 = vmul.f32 %v7409, %v7437
    %v7449 = vmul.f32 %v7412, %v7437
    %v7450 = vmul.f32 %v7414, %v7437
    %v7451 = vmul.f32 %v7417, %v7437
    %v7452 = vmul.f32 %v7419, %v7437
    %v7453 = vmul.f32 %v7422, %v7437
    %v7454 = vmul.f32 %v7424, %v7437
    %v7455 = vmul.f32 %v7427, %v7437
    %v7456 = vmul.f32 %v7429, %v7437
    %v7457 = vmul.f32 %v7432, %v7437
    %v7458 = vld [vmem:[%s6] sm:$0x1]
    %v7460 = vperm.slane %v7458, 0
    %v7462 = vadd.f32 %v7439, %v7460
    %v7463 = vadd.f32 %v7440, %v7460
    %v7464 = vadd.f32 %v7441, %v7460
    %v7465 = vadd.f32 %v7442, %v7460
    %v7466 = vadd.f32 %v7443, %v7460
    %v7467 = vadd.f32 %v7444, %v7460
    %v7468 = vadd.f32 %v7445, %v7460
    %v7469 = vadd.f32 %v7446, %v7460
    %v7470 = vadd.f32 %v7447, %v7460
    %v7471 = vadd.f32 %v7448, %v7460
    %v7472 = vadd.f32 %v7449, %v7460
    %v7473 = vadd.f32 %v7450, %v7460
    %v7474 = vadd.f32 %v7451, %v7460
    %v7475 = vadd.f32 %v7452, %v7460
    %v7476 = vadd.f32 %v7453, %v7460
    %v7477 = vadd.f32 %v7454, %v7460
    %v7478 = vadd.f32 %v7455, %v7460
    %v7479 = vadd.f32 %v7456, %v7460
    %v7480 = vadd.f32 %v7457, %v7460
    %v7481 = vmax.f32 %v7462, 0.0
    %v7482 = vmax.f32 %v7463, 0.0
    %v7483 = vmax.f32 %v7464, 0.0
    %v7484 = vmax.f32 %v7465, 0.0
    %v7485 = vmax.f32 %v7466, 0.0
    %v7486 = vmax.f32 %v7467, 0.0
    %v7487 = vmax.f32 %v7468, 0.0
    %v7488 = vmax.f32 %v7469, 0.0
    %v7489 = vmax.f32 %v7470, 0.0
    %v7490 = vmax.f32 %v7471, 0.0
    %v7491 = vmax.f32 %v7472, 0.0
    %v7492 = vmax.f32 %v7473, 0.0
    %v7493 = vmax.f32 %v7474, 0.0
    %v7494 = vmax.f32 %v7475, 0.0
    %v7495 = vmax.f32 %v7476, 0.0
    %v7496 = vmax.f32 %v7477, 0.0
    %v7497 = vmax.f32 %v7478, 0.0
    %v7498 = vmax.f32 %v7479, 0.0
    %v7499 = vmax.f32 %v7480, 0.0
    %vm7500 = vcmask 523264
    %7501 = vst.msk [vmem:[#allocation6] sm:$0xff] %vm7500, %v7481
    %7502 = vst.msk [vmem:[#allocation6 + $0x8] sm:$0xff] %vm7500, %v7482
    %7503 = vst.msk [vmem:[#allocation6 + $0x10] sm:$0xff] %vm7500, %v7483
    %7504 = vst.msk [vmem:[#allocation6 + $0x18] sm:$0xff] %vm7500, %v7484
    %7505 = vst.msk [vmem:[#allocation6 + $0x20] sm:$0xff] %vm7500, %v7485
    %7506 = vst.msk [vmem:[#allocation6 + $0x28] sm:$0xff] %vm7500, %v7486
    %7507 = vst.msk [vmem:[#allocation6 + $0x30] sm:$0xff] %vm7500, %v7487
    %7508 = vst.msk [vmem:[#allocation6 + $0x38] sm:$0xff] %vm7500, %v7488
    %7509 = vst.msk [vmem:[#allocation6 + $0x40] sm:$0xff] %vm7500, %v7489
    %7510 = vst.msk [vmem:[#allocation6 + $0x48] sm:$0xff] %vm7500, %v7490
    %7511 = vst.msk [vmem:[#allocation6 + $0x50] sm:$0xff] %vm7500, %v7491
    %7512 = vst.msk [vmem:[#allocation6 + $0x58] sm:$0xff] %vm7500, %v7492
    %7513 = vst.msk [vmem:[#allocation6 + $0x60] sm:$0xff] %vm7500, %v7493
    %7514 = vst.msk [vmem:[#allocation6 + $0x68] sm:$0xff] %vm7500, %v7494
    %7515 = vst.msk [vmem:[#allocation6 + $0x70] sm:$0xff] %vm7500, %v7495
    %7516 = vst.msk [vmem:[#allocation6 + $0x78] sm:$0xff] %vm7500, %v7496
    %7517 = vst.msk [vmem:[#allocation6 + $0x80] sm:$0xff] %vm7500, %v7497
    %7518 = vst.msk [vmem:[#allocation6 + $0x88] sm:$0xff] %vm7500, %v7498
    %vm7519 = vcmask 519168
    %7520 = vst.msk [vmem:[#allocation6 + $0x90] sm:$0xf] %vm7519, %v7499
    %v7521 = vld [vmem:[#allocation6] ss:$4 sm:$0xff]
    %s7522 = scalar_lea.vmem [#allocation6], 32
    %v7523 = vld [vmem:[%s7522] ss:$4 sm:$0x1]
    %s7524 = scalar_lea.vmem [#allocation6], 1
    %v7525 = vld [vmem:[%s7524] ss:$4 sm:$0xff]
    %s7526 = scalar_lea.vmem [#allocation6], 33
    %v7527 = vld [vmem:[%s7526] ss:$4 sm:$0x1]
    %v7528 = vmax.f32 %v7521, %v7525
    %v7529 = vmax.f32 %v7523, %v7527
    %s7530 = scalar_lea.vmem [#allocation6], 2
    %v7531 = vld [vmem:[%s7530] ss:$4 sm:$0xff]
    %s7532 = scalar_lea.vmem [#allocation6], 34
    %v7533 = vld [vmem:[%s7532] ss:$4 sm:$0x1]
    %v7534 = vmax.f32 %v7528, %v7531
    %v7535 = vmax.f32 %v7529, %v7533
    %s7536 = scalar_lea.vmem [#allocation6], 3
    %v7537 = vld [vmem:[%s7536] ss:$4 sm:$0xff]
    %s7538 = scalar_lea.vmem [#allocation6], 35
    %v7539 = vld [vmem:[%s7538] ss:$4 sm:$0x1]
    %v7540 = vmax.f32 %v7534, %v7537
    %v7541 = vmax.f32 %v7535, %v7539
    %s7542 = scalar_lea.vmem [#allocation6], 4
    %v7543 = vld [vmem:[%s7542] ss:$4 sm:$0xff]
    %s7544 = scalar_lea.vmem [#allocation6], 36
    %v7545 = vld [vmem:[%s7544] ss:$4 sm:$0x1]
    %v7546 = vmax.f32 %v7540, %v7543
    %v7547 = vmax.f32 %v7541, %v7545
    %v7548 = vpack.c.bf16 %v7546, %v7546
    %v7549 = vpack.c.bf16 %v7547, %v7547
    %7550 = vst.msk [vmem:[#allocation7] sm:$0xf] %vm7519, %v7548
    %vm7551 = vcmask 516096
    %vm7552 = vmand %vm7551, %vm1832
    %v7553 = vld [vmem:[#allocation7 + $0x4] sm:$0x1]
    %v7554 = vsel %vm7552, %v7549, %v7553
    %7555 = vst [vmem:[#allocation7 + $0x4] sm:$0x1] %v7554
    %s7556 = scalar_lea.vmem [#allocation6], 37
    %v7557 = vld [vmem:[%s7556] ss:$4 sm:$0xff]
    %s7558 = scalar_lea.vmem [#allocation6], 69
    %v7559 = vld [vmem:[%s7558] ss:$4 sm:$0x1]
    %s7560 = scalar_lea.vmem [#allocation6], 38
    %v7561 = vld [vmem:[%s7560] ss:$4 sm:$0xff]
    %s7562 = scalar_lea.vmem [#allocation6], 70
    %v7563 = vld [vmem:[%s7562] ss:$4 sm:$0x1]
    %v7564 = vmax.f32 %v7557, %v7561
    %v7565 = vmax.f32 %v7559, %v7563
    %s7566 = scalar_lea.vmem [#allocation6], 39
    %v7567 = vld [vmem:[%s7566] ss:$4 sm:$0xff]
    %s7568 = scalar_lea.vmem [#allocation6], 71
    %v7569 = vld [vmem:[%s7568] ss:$4 sm:$0x1]
    %v7570 = vmax.f32 %v7564, %v7567
    %v7571 = vmax.f32 %v7565, %v7569
    %s7572 = scalar_lea.vmem [#allocation6], 40
    %v7573 = vld [vmem:[%s7572] ss:$4 sm:$0xff]
    %s7574 = scalar_lea.vmem [#allocation6], 72
    %v7575 = vld [vmem:[%s7574] ss:$4 sm:$0x1]
    %v7576 = vmax.f32 %v7570, %v7573
    %v7577 = vmax.f32 %v7571, %v7575
    %s7578 = scalar_lea.vmem [#allocation6], 41
    %v7579 = vld [vmem:[%s7578] ss:$4 sm:$0xff]
    %s7580 = scalar_lea.vmem [#allocation6], 73
    %v7581 = vld [vmem:[%s7580] ss:$4 sm:$0x1]
    %v7582 = vmax.f32 %v7576, %v7579
    %v7583 = vmax.f32 %v7577, %v7581
    %v7584 = vpack.c.bf16 %v7582, %v7582
    %v7585 = vpack.c.bf16 %v7583, %v7583
    %v7587 = vshrl.u32 %v7584, 16
    %v7589 = vrot.slane %v7587, 7
    %v7590 = vshll.u32 %v7584, 16
    %v7592 = vor.u32 %v7589, %v7590
    %v7593 = vrot.slane %v7589, 4
    %v7595 = vshll.u32 %v7585, 16
    %v7597 = vsel %vm1834, %v7593, %v7595
    %vm7600 = vcmask 519168
    %vm7601 = vmand %vm7600, %vm5707
    %v7602 = vld [vmem:[#allocation7 + $0x4] sm:$0xf]
    %v7603 = vsel %vm7601, %v7592, %v7602
    %7604 = vst [vmem:[#allocation7 + $0x4] sm:$0xf] %v7603
    %vm7605 = vcmask 516096
    %7606 = vst.msk [vmem:[#allocation7 + $0x8] sm:$0x1] %vm7605, %v7597
    %s7607 = scalar_lea.vmem [#allocation6], 74
    %v7608 = vld [vmem:[%s7607] ss:$4 sm:$0xff]
    %s7609 = scalar_lea.vmem [#allocation6], 106
    %v7610 = vld [vmem:[%s7609] ss:$4 sm:$0x1]
    %s7611 = scalar_lea.vmem [#allocation6], 75
    %v7612 = vld [vmem:[%s7611] ss:$4 sm:$0xff]
    %s7613 = scalar_lea.vmem [#allocation6], 107
    %v7614 = vld [vmem:[%s7613] ss:$4 sm:$0x1]
    %v7615 = vmax.f32 %v7608, %v7612
    %v7616 = vmax.f32 %v7610, %v7614
    %s7617 = scalar_lea.vmem [#allocation6], 76
    %v7618 = vld [vmem:[%s7617] ss:$4 sm:$0xff]
    %s7619 = scalar_lea.vmem [#allocation6], 108
    %v7620 = vld [vmem:[%s7619] ss:$4 sm:$0x1]
    %v7621 = vmax.f32 %v7615, %v7618
    %v7622 = vmax.f32 %v7616, %v7620
    %s7623 = scalar_lea.vmem [#allocation6], 77
    %v7624 = vld [vmem:[%s7623] ss:$4 sm:$0xff]
    %s7625 = scalar_lea.vmem [#allocation6], 109
    %v7626 = vld [vmem:[%s7625] ss:$4 sm:$0x1]
    %v7627 = vmax.f32 %v7621, %v7624
    %v7628 = vmax.f32 %v7622, %v7626
    %s7629 = scalar_lea.vmem [#allocation6], 78
    %v7630 = vld [vmem:[%s7629] ss:$4 sm:$0xff]
    %s7631 = scalar_lea.vmem [#allocation6], 110
    %v7632 = vld [vmem:[%s7631] ss:$4 sm:$0x1]
    %v7633 = vmax.f32 %v7627, %v7630
    %v7634 = vmax.f32 %v7628, %v7632
    %v7635 = vpack.c.bf16 %v7633, %v7633
    %v7636 = vpack.c.bf16 %v7634, %v7634
    %v7639 = vrot.slane %v7635, 7
    %v7640 = vrot.slane %v7639, 4
    %v7641 = vrot.slane %v7636, 7
    %v7642 = vsel %vm1654, %v7640, %v7641
    %vm7645 = vcmask 519169
    %7646 = vst.msk [vmem:[#allocation7 + $0x8] sm:$0xe] %vm7645, %v7639
    %vm7647 = vcmask 517120
    %vm7648 = vmand %vm7647, %vm1305
    %v7649 = vld [vmem:[#allocation7 + $0xc] sm:$0x3]
    %v7650 = vsel %vm7648, %v7642, %v7649
    %7651 = vst [vmem:[#allocation7 + $0xc] sm:$0x3] %v7650
    %s7652 = scalar_lea.vmem [#allocation6], 111
    %v7653 = vld [vmem:[%s7652] ss:$4 sm:$0xff]
    %s7654 = scalar_lea.vmem [#allocation6], 143
    %v7655 = vld [vmem:[%s7654] ss:$4 sm:$0x1]
    %s7656 = scalar_lea.vmem [#allocation6], 112
    %v7657 = vld [vmem:[%s7656] ss:$4 sm:$0xff]
    %s7658 = scalar_lea.vmem [#allocation6], 144
    %v7659 = vld [vmem:[%s7658] ss:$4 sm:$0x1]
    %v7660 = vmax.f32 %v7653, %v7657
    %v7661 = vmax.f32 %v7655, %v7659
    %s7662 = scalar_lea.vmem [#allocation6], 113
    %v7663 = vld [vmem:[%s7662] ss:$4 sm:$0xff]
    %s7664 = scalar_lea.vmem [#allocation6], 145
    %v7665 = vld [vmem:[%s7664] ss:$4 sm:$0x1]
    %v7666 = vmax.f32 %v7660, %v7663
    %v7667 = vmax.f32 %v7661, %v7665
    %s7668 = scalar_lea.vmem [#allocation6], 114
    %v7669 = vld [vmem:[%s7668] ss:$4 sm:$0xff]
    %s7670 = scalar_lea.vmem [#allocation6], 146
    %v7671 = vld [vmem:[%s7670] ss:$4 sm:$0x1]
    %v7672 = vmax.f32 %v7666, %v7669
    %v7673 = vmax.f32 %v7667, %v7671
    %s7674 = scalar_lea.vmem [#allocation6], 115
    %v7675 = vld [vmem:[%s7674] ss:$4 sm:$0xff]
    %s7676 = scalar_lea.vmem [#allocation6], 147
    %v7677 = vld [vmem:[%s7676] ss:$4 sm:$0x1]
    %v7678 = vmax.f32 %v7672, %v7675
    %v7679 = vmax.f32 %v7673, %v7677
    %v7680 = vpack.c.bf16 %v7678, %v7678
    %v7681 = vpack.c.bf16 %v7679, %v7679
    %v7683 = vshrl.u32 %v7680, 16
    %v7685 = vrot.slane %v7683, 6
    %v7686 = vshll.u32 %v7680, 16
    %v7688 = vrot.slane %v7686, 7
    %v7689 = vor.u32 %v7685, %v7688
    %v7690 = vrot.slane %v7689, 4
    %v7692 = vshll.u32 %v7681, 16
    %v7694 = vrot.slane %v7692, 7
    %v7695 = vsel %vm1307, %v7690, %v7694
    %vm7698 = vcmask 519169
    %vm7699 = vmand %vm7698, %vm5998
    %v7700 = vld [vmem:[#allocation7 + $0xc] sm:$0xe]
    %v7701 = vsel %vm7699, %v7689, %v7700
    %7702 = vst [vmem:[#allocation7 + $0xc] sm:$0xe] %v7701
    %vm7703 = vcmask 517120
    %7704 = vst.msk [vmem:[#allocation7 + $0x10] sm:$0x3] %vm7703, %v7695
    %v7705 = vld [vmem:[#allocation7] sm:$0x7]
    %vm7706 = vcmask 518144
    %vm7707 = vmand %vm7706, %vm86
    %v7708 = vld [vmem:[#allocation8] sm:$0x7]
    %v7709 = vsel %vm7707, %v7705, %v7708
    %7710 = vst [vmem:[#allocation8] sm:$0x7] %v7709
    %v7711 = vld [vmem:[#allocation7] sm:$0x7]
    %v7713 = vshrl.u32 %v7711, 16
    %v7715 = vrot.slane %v7713, 4
    %v7716 = vshll.u32 %v7711, 16
    %v7718 = vrot.slane %v7716, 5
    %v7719 = vor.u32 %v7715, %v7718
    %v7720 = vrot.slane %v7719, 4
    %7721 = vrot.lane.b32.xlu0 %v7720, 64
    %v7722 = vpop.permute.xlu0 %7721
    %vm7724 = vcmask 1042944
    %vm7725 = vmand %vm7724, %vm86
    %v7726 = vld [vmem:[#allocation8] sm:$0x7]
    %v7727 = vsel %vm7725, %v7722, %v7726
    %7728 = vst [vmem:[#allocation8] sm:$0x7] %v7727
    %v7729 = vld [vmem:[#allocation7] sm:$0xe]
    %v7731 = vrot.slane %v7729, 5
    %v7732 = vrot.slane %v7731, 4
    %v7734 = vld [vmem:[#allocation8 + $0x4] sm:$0x7]
    %v7735 = vsel %vm7707, %v7732, %v7734
    %7736 = vst [vmem:[#allocation8 + $0x4] sm:$0x7] %v7735
    %v7737 = vld [vmem:[#allocation7] sm:$0xe]
    %v7739 = vshrl.u32 %v7737, 16
    %v7741 = vrot.slane %v7739, 5
    %v7742 = vshll.u32 %v7737, 16
    %v7744 = vrot.slane %v7742, 6
    %v7745 = vor.u32 %v7741, %v7744
    %v7746 = vrot.slane %v7745, 4
    %7747 = vrot.lane.b32.xlu0 %v7746, 64
    %v7748 = vpop.permute.xlu0 %7747
    %v7750 = vld [vmem:[#allocation8 + $0x4] sm:$0x7]
    %v7751 = vsel %vm7725, %v7748, %v7750
    %7752 = vst [vmem:[#allocation8 + $0x4] sm:$0x7] %v7751
    %v7753 = vld [vmem:[#allocation7] sm:$0xc]
    %v7754 = vld [vmem:[#allocation7 + $0x4] sm:$0x1]
    %v7757 = vrot.slane %v7753, 6
    %v7758 = vrot.slane %v7757, 4
    %v7759 = vrot.slane %v7754, 6
    %v7760 = vsel %vm976, %v7758, %v7759
    %v7762 = vld [vmem:[#allocation8 + $0x8] sm:$0x7]
    %v7763 = vsel %vm7707, %v7760, %v7762
    %7764 = vst [vmem:[#allocation8 + $0x8] sm:$0x7] %v7763
    %v7765 = vld [vmem:[#allocation7 + $0x4] sm:$0x7]
    %v7767 = vrot.slane %v7765, 6
    %v7768 = vrot.slane %v7767, 4
    %vm7771 = vcmask 519170
    %vm7772 = vmand %vm7771, %vm1257
    %v7773 = vld [vmem:[#allocation8] sm:$0xc]
    %v7774 = vsel %vm7772, %v7767, %v7773
    %7775 = vst [vmem:[#allocation8] sm:$0xc] %v7774
    %7776 = vst.msk [vmem:[#allocation8 + $0xc] sm:$0x1] %vm7605, %v7768
    %v7777 = vld [vmem:[#allocation7 + $0x4] sm:$0xe]
    %v7779 = vshrl.u32 %v7777, 16
    %v7781 = vrot.slane %v7779, 6
    %v7782 = vshll.u32 %v7777, 16
    %v7784 = vrot.slane %v7782, 7
    %v7785 = vor.u32 %v7781, %v7784
    %v7786 = vrot.slane %v7785, 4
    %7787 = vrot.lane.b32.xlu0 %v7785, 64
    %v7788 = vpop.permute.xlu0 %7787
    %7789 = vrot.lane.b32.xlu0 %v7786, 64
    %v7790 = vpop.permute.xlu0 %7789
    %vm7793 = vcmask 1043970
    %vm7794 = vmand %vm7793, %vm1257
    %v7795 = vld [vmem:[#allocation8] sm:$0xc]
    %v7796 = vsel %vm7794, %v7788, %v7795
    %7797 = vst [vmem:[#allocation8] sm:$0xc] %v7796
    %vm7798 = vcmask 1040896
    %7799 = vst.msk [vmem:[#allocation8 + $0xc] sm:$0x1] %vm7798, %v7790
    %v7800 = vld [vmem:[#allocation7 + $0x4] sm:$0xe]
    %v7802 = vrot.slane %v7800, 7
    %v7803 = vrot.slane %v7802, 4
    %v7806 = vld [vmem:[#allocation8 + $0x4] sm:$0xc]
    %v7807 = vsel %vm7772, %v7802, %v7806
    %7808 = vst [vmem:[#allocation8 + $0x4] sm:$0xc] %v7807
    %7809 = vst.msk [vmem:[#allocation8 + $0x10] sm:$0x1] %vm7605, %v7803
    %v7810 = vld [vmem:[#allocation7 + $0x4] sm:$0xc]
    %v7811 = vld [vmem:[#allocation7 + $0x8] sm:$0x1]
    %v7813 = vshrl.u32 %v7810, 16
    %v7815 = vrot.slane %v7813, 7
    %v7816 = vshll.u32 %v7810, 16
    %v7818 = vor.u32 %v7815, %v7816
    %v7819 = vrot.slane %v7815, 4
    %v7821 = vshll.u32 %v7811, 16
    %v7823 = vsel %vm1834, %v7819, %v7821
    %7824 = vrot.lane.b32.xlu0 %v7818, 64
    %v7825 = vpop.permute.xlu0 %7824
    %7826 = vrot.lane.b32.xlu0 %v7823, 64
    %v7827 = vpop.permute.xlu0 %7826
    %v7830 = vld [vmem:[#allocation8 + $0x4] sm:$0xc]
    %v7831 = vsel %vm7794, %v7825, %v7830
    %7832 = vst [vmem:[#allocation8 + $0x4] sm:$0xc] %v7831
    %7833 = vst.msk [vmem:[#allocation8 + $0x10] sm:$0x1] %vm7798, %v7827
    %v7834 = vld [vmem:[#allocation7 + $0x4] sm:$0xc]
    %v7835 = vld [vmem:[#allocation7 + $0x8] sm:$0x1]
    %v7836 = vld [vmem:[#allocation8 + $0x8] sm:$0xc]
    %v7837 = vsel %vm7772, %v7834, %v7836
    %7838 = vst [vmem:[#allocation8 + $0x8] sm:$0xc] %v7837
    %7839 = vst.msk [vmem:[#allocation8 + $0x14] sm:$0x1] %vm7605, %v7835
    %v7840 = vld [vmem:[#allocation7 + $0x8] sm:$0xe]
    %vm7841 = vmand %vm7698, %vm112
    %v7842 = vld [vmem:[#allocation8 + $0xc] sm:$0xe]
    %v7843 = vsel %vm7841, %v7840, %v7842
    %7844 = vst [vmem:[#allocation8 + $0xc] sm:$0xe] %v7843
    %v7845 = vld [vmem:[#allocation7 + $0x8] sm:$0xe]
    %v7847 = vshrl.u32 %v7845, 16
    %v7849 = vrot.slane %v7847, 4
    %v7850 = vshll.u32 %v7845, 16
    %v7852 = vrot.slane %v7850, 5
    %v7853 = vor.u32 %v7849, %v7852
    %v7854 = vrot.slane %v7853, 4
    %7855 = vrot.lane.b32.xlu0 %v7854, 64
    %v7856 = vpop.permute.xlu0 %7855
    %vm7858 = vcmask 1043969
    %vm7859 = vmand %vm7858, %vm112
    %v7860 = vld [vmem:[#allocation8 + $0xc] sm:$0xe]
    %v7861 = vsel %vm7859, %v7856, %v7860
    %7862 = vst [vmem:[#allocation8 + $0xc] sm:$0xe] %v7861
    %v7863 = vld [vmem:[#allocation7 + $0x8] sm:$0xc]
    %v7864 = vld [vmem:[#allocation7 + $0xc] sm:$0x1]
    %v7867 = vrot.slane %v7863, 5
    %v7868 = vrot.slane %v7867, 4
    %v7869 = vrot.slane %v7864, 5
    %v7870 = vsel %vm457, %v7868, %v7869
    %v7872 = vld [vmem:[#allocation8 + $0x10] sm:$0xe]
    %v7873 = vsel %vm7841, %v7870, %v7872
    %7874 = vst [vmem:[#allocation8 + $0x10] sm:$0xe] %v7873
    %v7875 = vld [vmem:[#allocation7 + $0x8] sm:$0xc]
    %v7876 = vld [vmem:[#allocation7 + $0xc] sm:$0x1]
    %v7878 = vshrl.u32 %v7875, 16
    %v7880 = vrot.slane %v7878, 5
    %v7881 = vshll.u32 %v7875, 16
    %v7883 = vrot.slane %v7881, 6
    %v7884 = vor.u32 %v7880, %v7883
    %v7885 = vrot.slane %v7884, 4
    %v7887 = vshrl.u32 %v7876, 16
    %v7889 = vrot.slane %v7887, 5
    %v7890 = vshll.u32 %v7876, 16
    %v7892 = vrot.slane %v7890, 6
    %v7893 = vor.u32 %v7889, %v7892
    %v7894 = vsel %vm631, %v7885, %v7893
    %7895 = vrot.lane.b32.xlu0 %v7894, 64
    %v7896 = vpop.permute.xlu0 %7895
    %v7898 = vld [vmem:[#allocation8 + $0x10] sm:$0xe]
    %v7899 = vsel %vm7859, %v7896, %v7898
    %7900 = vst [vmem:[#allocation8 + $0x10] sm:$0xe] %v7899
    %v7901 = vld [vmem:[#allocation7 + $0x8] sm:$0x8]
    %v7902 = vld [vmem:[#allocation7 + $0xc] sm:$0x3]
    %v7905 = vrot.slane %v7901, 6
    %v7906 = vrot.slane %v7905, 4
    %v7907 = vrot.slane %v7902, 6
    %v7908 = vsel %vm976, %v7906, %v7907
    %v7910 = vld [vmem:[#allocation8 + $0x14] sm:$0xe]
    %v7911 = vsel %vm7841, %v7908, %v7910
    %7912 = vst [vmem:[#allocation8 + $0x14] sm:$0xe] %v7911
    %v7913 = vld [vmem:[#allocation7 + $0xc] sm:$0xe]
    %v7915 = vrot.slane %v7913, 6
    %v7916 = vrot.slane %v7915, 4
    %vm7919 = vcmask 519171
    %vm7920 = vmand %vm7919, %vm3473
    %v7921 = vld [vmem:[#allocation8 + $0xc] sm:$0x8]
    %v7922 = vsel %vm7920, %v7915, %v7921
    %7923 = vst [vmem:[#allocation8 + $0xc] sm:$0x8] %v7922
    %7924 = vst.msk [vmem:[#allocation8 + $0x18] sm:$0x3] %vm7703, %v7916
    %v7925 = vld [vmem:[#allocation7 + $0xc] sm:$0xc]
    %v7926 = vld [vmem:[#allocation7 + $0x10] sm:$0x1]
    %v7928 = vshll.u32 %v7925, 16
    %v7930 = vrot.slane %v7928, 7
    %v7931 = vshrl.u32 %v7925, 16
    %v7933 = vrot.slane %v7931, 6
    %v7934 = vor.u32 %v7933, %v7930
    %v7935 = vrot.slane %v7934, 4
    %v7937 = vshll.u32 %v7926, 16
    %v7939 = vrot.slane %v7937, 7
    %v7940 = vsel %vm1307, %v7935, %v7939
    %7941 = vrot.lane.b32.xlu0 %v7930, 64
    %v7942 = vpop.permute.xlu0 %7941
    %7943 = vrot.lane.b32.xlu0 %v7940, 64
    %v7944 = vpop.permute.xlu0 %7943
    %vm7947 = vcmask 1043971
    %vm7948 = vmand %vm7947, %vm3473
    %v7949 = vld [vmem:[#allocation8 + $0xc] sm:$0x8]
    %v7950 = vsel %vm7948, %v7942, %v7949
    %7951 = vst [vmem:[#allocation8 + $0xc] sm:$0x8] %v7950
    %vm7952 = vcmask 1041920
    %7953 = vst.msk [vmem:[#allocation8 + $0x18] sm:$0x3] %vm7952, %v7944
    %v7954 = vld [vmem:[#allocation7 + $0xc] sm:$0xc]
    %v7955 = vld [vmem:[#allocation7 + $0x10] sm:$0x1]
    %v7958 = vrot.slane %v7954, 7
    %v7959 = vrot.slane %v7958, 4
    %v7960 = vrot.slane %v7955, 7
    %v7961 = vsel %vm1654, %v7959, %v7960
    %v7964 = vld [vmem:[#allocation8 + $0x10] sm:$0x8]
    %v7965 = vsel %vm7920, %v7958, %v7964
    %7966 = vst [vmem:[#allocation8 + $0x10] sm:$0x8] %v7965
    %7967 = vst.msk [vmem:[#allocation8 + $0x1c] sm:$0x3] %vm7703, %v7961
    %v7968 = vld [vmem:[#allocation7 + $0xc] sm:$0x8]
    %v7969 = vld [vmem:[#allocation7 + $0x10] sm:$0x3]
    %v7971 = vshll.u32 %v7968, 16
    %v7973 = vshrl.u32 %v7968, 16
    %v7975 = vrot.slane %v7973, 7
    %v7976 = vrot.slane %v7975, 4
    %v7978 = vshrl.u32 %v7969, 16
    %v7980 = vrot.slane %v7978, 7
    %v7981 = vshll.u32 %v7969, 16
    %v7983 = vor.u32 %v7980, %v7981
    %v7984 = vsel %vm1834, %v7976, %v7983
    %7985 = vrot.lane.b32.xlu0 %v7971, 64
    %v7986 = vpop.permute.xlu0 %7985
    %7987 = vrot.lane.b32.xlu0 %v7984, 64
    %v7988 = vpop.permute.xlu0 %7987
    %v7991 = vld [vmem:[#allocation8 + $0x10] sm:$0x8]
    %v7992 = vsel %vm7948, %v7986, %v7991
    %7993 = vst [vmem:[#allocation8 + $0x10] sm:$0x8] %v7992
    %7994 = vst.msk [vmem:[#allocation8 + $0x1c] sm:$0x3] %vm7952, %v7988
    %v7995 = vld [vmem:[#allocation7 + $0xc] sm:$0x8]
    %v7996 = vld [vmem:[#allocation7 + $0x10] sm:$0x3]
    %v7997 = vld [vmem:[#allocation8 + $0x14] sm:$0x8]
    %v7998 = vsel %vm7920, %v7995, %v7997
    %7999 = vst [vmem:[#allocation8 + $0x14] sm:$0x8] %v7998
    %8000 = vst.msk [vmem:[#allocation8 + $0x20] sm:$0x3] %vm7703, %v7996
    %v8001 = vld [vmem:[#allocation8] sm:$0xff]
    %v8002 = vld [vmem:[#allocation8 + $0x8] sm:$0xf]
    %v8003 = vld [vmem:[#allocation8 + $0xc] sm:$0xff]
    %v8004 = vld [vmem:[#allocation8 + $0x14] sm:$0xf]
    %v8005 = vld [vmem:[#allocation8 + $0x18] sm:$0x33]
    %v8006 = vld [vmem:[#allocation8 + $0x20] sm:$0x3]
    %v8007 = vld [vmem:[%s7] sm:$0xf]
    %v8008 = vld [vmem:[%s7 + $0x4] sm:$0xf]
    %v8009 = vld [vmem:[%s7 + $0x8] sm:$0xf]
    %v8010 = vld [vmem:[%s7 + $0xc] sm:$0xf]
    %v8011 = vld [vmem:[%s7 + $0x10] sm:$0xf]
    %v8012 = vld [vmem:[%s7 + $0x14] sm:$0xf]
    %v8013 = vld [vmem:[%s7 + $0x18] sm:$0xf]
    %v8014 = vld [vmem:[%s7 + $0x1c] sm:$0xf]
    %v8015 = vld [vmem:[%s7 + $0x20] sm:$0xf]
    %v8016 = vld [vmem:[%s7 + $0x24] sm:$0xf]
    %v8017 = vld [vmem:[%s7 + $0x28] sm:$0xf]
    %v8018 = vld [vmem:[%s7 + $0x2c] sm:$0xf]
    %v8019 = vld [vmem:[%s7 + $0x30] sm:$0xf]
    %v8020 = vld [vmem:[%s7 + $0x34] sm:$0xf]
    %v8021 = vld [vmem:[%s7 + $0x38] sm:$0xf]
    %v8022 = vld [vmem:[%s7 + $0x3c] sm:$0xf]
    %v8023 = vld [vmem:[%s7 + $0x40] sm:$0xf]
    %v8024 = vld [vmem:[%s7 + $0x44] sm:$0xf]
    %v8025 = vld [vmem:[%s7 + $0x48] sm:$0xf]
    %v8026 = vld [vmem:[%s7 + $0x4c] sm:$0xf]
    %v8027 = vld [vmem:[%s7 + $0x50] sm:$0xf]
    %v8028 = vld [vmem:[%s7 + $0x54] sm:$0xf]
    %v8029 = vld [vmem:[%s7 + $0x58] sm:$0xf]
    %v8030 = vld [vmem:[%s7 + $0x5c] sm:$0xf]
    %v8031 = vld [vmem:[%s7 + $0x60] sm:$0xf]
    %v8032 = vld [vmem:[%s7 + $0x64] sm:$0xf]
    %v8033 = vld [vmem:[%s7 + $0x68] sm:$0xf]
    %v8034 = vld [vmem:[%s7 + $0x6c] sm:$0xf]
    %v8035 = vld [vmem:[%s7 + $0x70] sm:$0xf]
    %v8036 = vld [vmem:[%s7 + $0x74] sm:$0xf]
    %v8037 = vld [vmem:[%s7 + $0x78] sm:$0xf]
    %v8038 = vld [vmem:[%s7 + $0x7c] sm:$0xf]
    %v8039 = vld [vmem:[%s7 + $0x80] sm:$0xf]
    %v8040 = vld [vmem:[%s7 + $0x84] sm:$0xf]
    %v8041 = vld [vmem:[%s7 + $0x88] sm:$0xf]
    %v8042 = vld [vmem:[%s7 + $0x8c] sm:$0xf]
    %v8043 = vld [vmem:[%s7 + $0x90] sm:$0xf]
    %v8044 = vld [vmem:[%s7 + $0x94] sm:$0xf]
    %v8045 = vld [vmem:[%s7 + $0x98] sm:$0xf]
    %v8046 = vld [vmem:[%s7 + $0x9c] sm:$0xf]
    %v8053 = vunpack.c.l.b16 %v8001
    %v8054 = vunpack.c.h.b16 %v8001
    %v8055 = vunpack.c.l.b16 %v8002
    %v8056 = vunpack.c.l.b16 %v8003
    %v8057 = vunpack.c.h.b16 %v8003
    %v8058 = vunpack.c.l.b16 %v8004
    %v8059 = vunpack.c.l.b16 %v8005
    %v8060 = vunpack.c.h.b16 %v8005
    %v8061 = vunpack.c.l.b16 %v8006
    %v8062 = vpack.c.b16 %v8056, %v8053
    %v8063 = vpack.c.b16 %v8057, %v8054
    %v8064 = vpack.c.b16 %v8058, %v8055
    %v8065 = vpack.c.b16 %v8059, %v8059
    %v8066 = vpack.c.b16 %v8060, %v8060
    %v8067 = vpack.c.b16 %v8061, %v8061
    %v8112 = vunpack.c.l.b16 %v8007
    %v8113 = vunpack.c.l.b16 %v8008
    %v8114 = vunpack.c.l.b16 %v8009
    %v8115 = vunpack.c.l.b16 %v8010
    %v8116 = vunpack.c.l.b16 %v8011
    %v8117 = vunpack.c.l.b16 %v8012
    %v8118 = vunpack.c.l.b16 %v8013
    %v8119 = vunpack.c.l.b16 %v8014
    %v8120 = vunpack.c.l.b16 %v8015
    %v8121 = vunpack.c.l.b16 %v8016
    %v8122 = vunpack.c.l.b16 %v8017
    %v8123 = vunpack.c.l.b16 %v8018
    %v8124 = vunpack.c.l.b16 %v8019
    %v8125 = vunpack.c.l.b16 %v8020
    %v8126 = vunpack.c.l.b16 %v8021
    %v8127 = vunpack.c.l.b16 %v8022
    %v8128 = vunpack.c.l.b16 %v8023
    %v8129 = vunpack.c.l.b16 %v8024
    %v8130 = vunpack.c.l.b16 %v8025
    %v8131 = vunpack.c.l.b16 %v8026
    %v8132 = vunpack.c.l.b16 %v8027
    %v8133 = vunpack.c.l.b16 %v8028
    %v8134 = vunpack.c.l.b16 %v8029
    %v8135 = vunpack.c.l.b16 %v8030
    %v8136 = vunpack.c.l.b16 %v8031
    %v8137 = vunpack.c.l.b16 %v8032
    %v8138 = vunpack.c.l.b16 %v8033
    %v8139 = vunpack.c.l.b16 %v8034
    %v8140 = vunpack.c.l.b16 %v8035
    %v8141 = vunpack.c.l.b16 %v8036
    %v8142 = vunpack.c.l.b16 %v8037
    %v8143 = vunpack.c.l.b16 %v8038
    %v8144 = vunpack.c.l.b16 %v8039
    %v8145 = vunpack.c.l.b16 %v8040
    %v8146 = vunpack.c.l.b16 %v8041
    %v8147 = vunpack.c.l.b16 %v8042
    %v8148 = vunpack.c.l.b16 %v8043
    %v8149 = vunpack.c.l.b16 %v8044
    %v8150 = vunpack.c.l.b16 %v8045
    %v8151 = vunpack.c.l.b16 %v8046
    %v8152 = vpack.c.b16 %v8113, %v8112
    %v8153 = vpack.c.b16 %v8115, %v8114
    %v8154 = vpack.c.b16 %v8117, %v8116
    %v8155 = vpack.c.b16 %v8119, %v8118
    %v8156 = vpack.c.b16 %v8121, %v8120
    %v8157 = vpack.c.b16 %v8123, %v8122
    %v8158 = vpack.c.b16 %v8125, %v8124
    %v8159 = vpack.c.b16 %v8127, %v8126
    %v8160 = vpack.c.b16 %v8129, %v8128
    %v8161 = vpack.c.b16 %v8131, %v8130
    %v8162 = vpack.c.b16 %v8133, %v8132
    %v8163 = vpack.c.b16 %v8135, %v8134
    %v8164 = vpack.c.b16 %v8137, %v8136
    %v8165 = vpack.c.b16 %v8139, %v8138
    %v8166 = vpack.c.b16 %v8141, %v8140
    %v8167 = vpack.c.b16 %v8143, %v8142
    %v8168 = vpack.c.b16 %v8145, %v8144
    %v8169 = vpack.c.b16 %v8147, %v8146
    %v8170 = vpack.c.b16 %v8149, %v8148
    %v8171 = vpack.c.b16 %v8151, %v8150
    %v8193 = vsel %vm7500, %v8064, 0
    %v8196 = vsel %vm7500, %v8067, 0
    %8198 = vmatpush.bf16.msra.mxu0 %v8159
    %8199 = vmatpush.bf16.msra.mxu0 %v8158
    %8200 = vmatpush.bf16.msra.mxu0 %v8157
    %8201 = vmatpush.bf16.msra.mxu0 %v8156
    %8202 = vmatpush.bf16.msra.mxu0 %v8155
    %8203 = vmatpush.bf16.msra.mxu0 %v8154
    %8204 = vmatpush.bf16.msra.mxu0 %v8153
    %8205 = vmatpush.bf16.msra.mxu0 %v8152
    %8206 = vmatmul.bf16.gmra.mxu0 %v8062
    %v8207 = vpop.f32.mrf.mxu0
    %v8208 = vadd.f32 0.0, %v8207
    %v8209 = vpop.f32.mrf.mxu0
    %v8210 = vadd.f32 0.0, %v8209
    %8211 = vmatmul.bf16.gmra.mxu0 %v8065
    %v8212 = vpop.f32.mrf.mxu0
    %v8213 = vadd.f32 0.0, %v8212
    %v8214 = vpop.f32.mrf.mxu0
    %8215 = vdwg.mxu0
    %8216 = vmatpush.bf16.msra.mxu0 %v8167
    %8217 = vmatpush.bf16.msra.mxu0 %v8166
    %8218 = vmatpush.bf16.msra.mxu0 %v8165
    %8219 = vmatpush.bf16.msra.mxu0 %v8164
    %8220 = vmatpush.bf16.msra.mxu0 %v8163
    %8221 = vmatpush.bf16.msra.mxu0 %v8162
    %8222 = vmatpush.bf16.msra.mxu0 %v8161
    %8223 = vmatpush.bf16.msra.mxu0 %v8160
    %8224 = vmatmul.bf16.gmra.mxu0 %v8063
    %v8225 = vpop.f32.mrf.mxu0
    %v8226 = vadd.f32 %v8208, %v8225
    %v8227 = vpop.f32.mrf.mxu0
    %v8228 = vadd.f32 %v8210, %v8227
    %8229 = vmatmul.bf16.gmra.mxu0 %v8066
    %v8230 = vpop.f32.mrf.mxu0
    %v8231 = vadd.f32 %v8213, %v8230
    %v8232 = vpop.f32.mrf.mxu0
    %8233 = vdwg.mxu0
    %8234 = vmatpush.bf16.msra.mxu0 0
    %8235 = vmatpush.bf16.msra.mxu0 0
    %8236 = vmatpush.bf16.msra.mxu0 0
    %8237 = vmatpush.bf16.msra.mxu0 0
    %8238 = vmatpush.bf16.msra.mxu0 %v8171
    %8239 = vmatpush.bf16.msra.mxu0 %v8170
    %8240 = vmatpush.bf16.msra.mxu0 %v8169
    %8241 = vmatpush.bf16.msra.mxu0 %v8168
    %8242 = vmatmul.bf16.gmra.mxu0 %v8193
    %v8243 = vpop.f32.mrf.mxu0
    %v8244 = vadd.f32 %v8226, %v8243
    %v8245 = vpop.f32.mrf.mxu0
    %v8246 = vadd.f32 %v8228, %v8245
    %8247 = vmatmul.bf16.gmra.mxu0 %v8196
    %v8248 = vpop.f32.mrf.mxu0
    %v8249 = vadd.f32 %v8231, %v8248
    %v8250 = vpop.f32.mrf.mxu0
    %8251 = vdwg.mxu0
    %v8252 = vld [vmem:[%s8] sm:$0x1]
    %v8254 = vperm.slane %v8252, 0
    %v8256 = vmul.f32 %v8244, %v8254
    %v8257 = vmul.f32 %v8246, %v8254
    %v8258 = vmul.f32 %v8249, %v8254
    %v8259 = vld [vmem:[%s9] sm:$0x1]
    %v8261 = vperm.slane %v8259, 0
    %v8263 = vadd.f32 %v8256, %v8261
    %v8264 = vadd.f32 %v8257, %v8261
    %v8265 = vadd.f32 %v8258, %v8261
    %v8266 = vmax.f32 %v8263, 0.0
    %v8267 = vmax.f32 %v8264, 0.0
    %v8268 = vmax.f32 %v8265, 0.0
    %8269 = vst [vmem:[#allocation9] sm:$0xff] %v8266
    %8270 = vst [vmem:[#allocation9 + $0x8] sm:$0xff] %v8267
    %8271 = vst [vmem:[#allocation9 + $0x10] sm:$0xf] %v8268
    %v8272 = vld [vmem:[#allocation9] sm:$0x1]
    %v8273 = vld [vmem:[#allocation9 + $0x1] sm:$0x1]
    %v8274 = vmax.f32 %v8272, %v8273
    %v8275 = vld [vmem:[#allocation9 + $0x2] sm:$0x1]
    %v8276 = vmax.f32 %v8274, %v8275
    %v8277 = vld [vmem:[#allocation9 + $0x3] sm:$0x1]
    %v8278 = vmax.f32 %v8276, %v8277
    %v8279 = vld [vmem:[#allocation9 + $0x4] sm:$0x1]
    %v8280 = vmax.f32 %v8278, %v8279
    %v8281 = vpack.c.bf16 %v8280, %v8280
    %vm8282 = vmand %vm1652, %vm1832
    %v8283 = vld [vmem:[#allocation10] sm:$0x1]
    %v8284 = vsel %vm8282, %v8281, %v8283
    %8285 = vst [vmem:[#allocation10] sm:$0x1] %v8284
    %v8286 = vld [vmem:[#allocation9 + $0x5] sm:$0x1]
    %v8287 = vld [vmem:[#allocation9 + $0x6] sm:$0x1]
    %v8288 = vmax.f32 %v8286, %v8287
    %v8289 = vld [vmem:[#allocation9 + $0x7] sm:$0x1]
    %v8290 = vmax.f32 %v8288, %v8289
    %v8291 = vld [vmem:[#allocation9 + $0x8] sm:$0x1]
    %v8292 = vmax.f32 %v8290, %v8291
    %v8293 = vld [vmem:[#allocation9 + $0x9] sm:$0x1]
    %v8294 = vmax.f32 %v8292, %v8293
    %v8295 = vpack.c.bf16 %v8294, %v8294
    %v8297 = vrot.slane %v8295, 2
    %v8300 = vsel %vm4896, %v8295, %v8297
    %v8301 = vshll.u32 %v8300, 16
    %vm8304 = vmand %vm1652, %vm5707
    %v8305 = vld [vmem:[#allocation10] sm:$0x1]
    %v8306 = vsel %vm8304, %v8301, %v8305
    %8307 = vst [vmem:[#allocation10] sm:$0x1] %v8306
    %v8308 = vld [vmem:[#allocation9 + $0xa] sm:$0x1]
    %v8309 = vld [vmem:[#allocation9 + $0xb] sm:$0x1]
    %v8310 = vmax.f32 %v8308, %v8309
    %v8311 = vld [vmem:[#allocation9 + $0xc] sm:$0x1]
    %v8312 = vmax.f32 %v8310, %v8311
    %v8313 = vld [vmem:[#allocation9 + $0xd] sm:$0x1]
    %v8314 = vmax.f32 %v8312, %v8313
    %v8315 = vld [vmem:[#allocation9 + $0xe] sm:$0x1]
    %v8316 = vmax.f32 %v8314, %v8315
    %v8317 = vpack.c.bf16 %v8316, %v8316
    %v8319 = vrot.slane %v8317, 2
    %v8322 = vsel %vm4896, %v8317, %v8319
    %v8324 = vrot.slane %v8322, 7
    %vm8326 = vcmask 1041409
    %vm8327 = vmand %vm8326, %vm1305
    %v8328 = vld [vmem:[#allocation10] sm:$0x2]
    %v8329 = vsel %vm8327, %v8324, %v8328
    %8330 = vst [vmem:[#allocation10] sm:$0x2] %v8329
    %v8331 = vld [vmem:[#allocation9 + $0xf] sm:$0x1]
    %v8332 = vld [vmem:[#allocation9 + $0x10] sm:$0x1]
    %v8333 = vmax.f32 %v8331, %v8332
    %v8334 = vld [vmem:[#allocation9 + $0x11] sm:$0x1]
    %v8335 = vmax.f32 %v8333, %v8334
    %v8336 = vld [vmem:[#allocation9 + $0x12] sm:$0x1]
    %v8337 = vmax.f32 %v8335, %v8336
    %v8338 = vld [vmem:[#allocation9 + $0x13] sm:$0x1]
    %v8339 = vmax.f32 %v8337, %v8338
    %v8340 = vpack.c.bf16 %v8339, %v8339
    %v8342 = vrot.slane %v8340, 2
    %v8345 = vsel %vm4896, %v8340, %v8342
    %v8346 = vshll.u32 %v8345, 16
    %v8348 = vrot.slane %v8346, 7
    %vm8350 = vmand %vm8326, %vm5998
    %v8351 = vld [vmem:[#allocation10] sm:$0x2]
    %v8352 = vsel %vm8350, %v8348, %v8351
    %8353 = vst [vmem:[#allocation10] sm:$0x2] %v8352
    %v8354 = vld [vmem:[#allocation10] sm:$0x1]
    %v8355 = vld [vmem:[%s10] sm:$0xf]
    %v8356 = vld [vmem:[%s10 + $0x4] sm:$0xf]
    %v8357 = vld [vmem:[%s10 + $0x8] sm:$0xf]
    %v8358 = vld [vmem:[%s10 + $0xc] sm:$0xf]
    %v8359 = vld [vmem:[%s10 + $0x10] sm:$0xf]
    %v8360 = vld [vmem:[%s10 + $0x14] sm:$0xf]
    %v8361 = vld [vmem:[%s10 + $0x18] sm:$0xf]
    %v8362 = vld [vmem:[%s10 + $0x1c] sm:$0xf]
    %v8363 = vld [vmem:[%s10 + $0x20] sm:$0xf]
    %v8364 = vld [vmem:[%s10 + $0x24] sm:$0xf]
    %v8365 = vld [vmem:[%s10 + $0x28] sm:$0xf]
    %v8366 = vld [vmem:[%s10 + $0x2c] sm:$0xf]
    %v8367 = vld [vmem:[%s10 + $0x30] sm:$0xf]
    %v8368 = vld [vmem:[%s10 + $0x34] sm:$0xf]
    %v8369 = vld [vmem:[%s10 + $0x38] sm:$0xf]
    %v8370 = vld [vmem:[%s10 + $0x3c] sm:$0xf]
    %v8371 = vld [vmem:[#allocation10] sm:$0x2]
    %s8372 = scalar_lea.vmem %s10, 64
    %v8373 = vld [vmem:[%s8372] sm:$0xf]
    %v8374 = vld [vmem:[%s8372 + $0x4] sm:$0xf]
    %v8375 = vld [vmem:[%s8372 + $0x8] sm:$0xf]
    %v8376 = vld [vmem:[%s8372 + $0xc] sm:$0xf]
    %v8377 = vld [vmem:[%s8372 + $0x10] sm:$0xf]
    %v8378 = vld [vmem:[%s8372 + $0x14] sm:$0xf]
    %v8379 = vld [vmem:[%s8372 + $0x18] sm:$0xf]
    %v8380 = vld [vmem:[%s8372 + $0x1c] sm:$0xf]
    %v8381 = vld [vmem:[%s8372 + $0x20] sm:$0xf]
    %v8382 = vld [vmem:[%s8372 + $0x24] sm:$0xf]
    %v8383 = vld [vmem:[%s8372 + $0x28] sm:$0xf]
    %v8384 = vld [vmem:[%s8372 + $0x2c] sm:$0xf]
    %v8385 = vld [vmem:[%s8372 + $0x30] sm:$0xf]
    %v8386 = vld [vmem:[%s8372 + $0x34] sm:$0xf]
    %v8387 = vld [vmem:[%s8372 + $0x38] sm:$0xf]
    %v8388 = vld [vmem:[%s8372 + $0x3c] sm:$0xf]
    %8390 = vst [vmem:[#allocation1] ss:$4 sm:$0xff] %v8371
    %v8391 = vld.sshfl [vmem:[#allocation1] sm:$0xff pattern:$0x73625140]
    %v8393 = vrot.slane %v8391, 1
    %v8411 = vunpack.c.l.b16 %v8373
    %v8412 = vunpack.c.l.b16 %v8374
    %v8413 = vunpack.c.l.b16 %v8375
    %v8414 = vunpack.c.l.b16 %v8376
    %v8415 = vunpack.c.l.b16 %v8377
    %v8416 = vunpack.c.l.b16 %v8378
    %v8417 = vunpack.c.l.b16 %v8379
    %v8418 = vunpack.c.l.b16 %v8380
    %v8419 = vunpack.c.l.b16 %v8381
    %v8420 = vunpack.c.l.b16 %v8382
    %v8421 = vunpack.c.l.b16 %v8383
    %v8422 = vunpack.c.l.b16 %v8384
    %v8423 = vunpack.c.l.b16 %v8385
    %v8424 = vunpack.c.l.b16 %v8386
    %v8425 = vunpack.c.l.b16 %v8387
    %v8426 = vunpack.c.l.b16 %v8388
    %v8427 = vpack.c.b16 %v8412, %v8411
    %v8428 = vpack.c.b16 %v8414, %v8413
    %v8429 = vpack.c.b16 %v8416, %v8415
    %v8430 = vpack.c.b16 %v8418, %v8417
    %v8431 = vpack.c.b16 %v8420, %v8419
    %v8432 = vpack.c.b16 %v8422, %v8421
    %v8433 = vpack.c.b16 %v8424, %v8423
    %v8434 = vpack.c.b16 %v8426, %v8425
    %8443 = vmatpush.bf16.msra.mxu0 %v8434
    %8444 = vmatpush.bf16.msra.mxu0 %v8433
    %8445 = vmatpush.bf16.msra.mxu0 %v8432
    %8446 = vmatpush.bf16.msra.mxu0 %v8431
    %8447 = vmatpush.bf16.msra.mxu0 %v8430
    %8448 = vmatpush.bf16.msra.mxu0 %v8429
    %8449 = vmatpush.bf16.msra.mxu0 %v8428
    %8450 = vmatpush.bf16.msra.mxu0 %v8427
    %8451 = vmatmul.bf16.gmra.mxu0 %v8393
    %v8452 = vpop.f32.mrf.mxu0
    %v8453 = vadd.f32 0.0, %v8452
    %v8454 = vpop.f32.mrf.mxu0
    %8455 = vdwg.mxu0
    %v8472 = vunpack.c.l.b16 %v8355
    %v8473 = vunpack.c.l.b16 %v8356
    %v8474 = vunpack.c.l.b16 %v8357
    %v8475 = vunpack.c.l.b16 %v8358
    %v8476 = vunpack.c.l.b16 %v8359
    %v8477 = vunpack.c.l.b16 %v8360
    %v8478 = vunpack.c.l.b16 %v8361
    %v8479 = vunpack.c.l.b16 %v8362
    %v8480 = vunpack.c.l.b16 %v8363
    %v8481 = vunpack.c.l.b16 %v8364
    %v8482 = vunpack.c.l.b16 %v8365
    %v8483 = vunpack.c.l.b16 %v8366
    %v8484 = vunpack.c.l.b16 %v8367
    %v8485 = vunpack.c.l.b16 %v8368
    %v8486 = vunpack.c.l.b16 %v8369
    %v8487 = vunpack.c.l.b16 %v8370
    %v8488 = vpack.c.b16 %v8473, %v8472
    %v8489 = vpack.c.b16 %v8475, %v8474
    %v8490 = vpack.c.b16 %v8477, %v8476
    %v8491 = vpack.c.b16 %v8479, %v8478
    %v8492 = vpack.c.b16 %v8481, %v8480
    %v8493 = vpack.c.b16 %v8483, %v8482
    %v8494 = vpack.c.b16 %v8485, %v8484
    %v8495 = vpack.c.b16 %v8487, %v8486
    %8504 = vmatpush.bf16.msra.mxu0 %v8495
    %8505 = vmatpush.bf16.msra.mxu0 %v8494
    %8506 = vmatpush.bf16.msra.mxu0 %v8493
    %8507 = vmatpush.bf16.msra.mxu0 %v8492
    %8508 = vmatpush.bf16.msra.mxu0 %v8491
    %8509 = vmatpush.bf16.msra.mxu0 %v8490
    %8510 = vmatpush.bf16.msra.mxu0 %v8489
    %8511 = vmatpush.bf16.msra.mxu0 %v8488
    %8512 = vmatmul.bf16.gmra.mxu0 %v8354
    %v8513 = vpop.f32.mrf.mxu0
    %v8514 = vadd.f32 %v8453, %v8513
    %v8515 = vpop.f32.mrf.mxu0
    %8516 = vdwg.mxu0
    %v8517 = vld [vmem:[%s11] sm:$0x1]
    %v8519 = vperm.slane %v8517, 0
    %v8521 = vadd.f32 %v8514, %v8519
    %vm8522 = vcmask 41984
    %8523 = vst.msk [vmem:[#allocation11] sm:$0x3] %vm8522, %v8521
    // Predicated region
    $region50: #{har_forward.1} parent=1 // pred_check
      _
    $region51: #{har_forward.1} parent=1 // pred_check_branch
      %8525 = sbr.rel (0) target = $region53
    $region52: #{har_forward.1} parent=1 // pred_region
      %8527 = vsyncadd [#allocation12], 0
      %s8529 = sshll.u32 [#allocation11], 4
      %s8530 = int_to_ptr.vmem [resolvable:$true] %s8529
      %s8531 = sshll.u32 %s12, 4
      %s8532 = int_to_ptr.hbm [resolvable:$true] %s8531
      %8534 = dma.vmem_to_hbm [thread:$0]  %s8530, 32, %s8532, [#allocation12]
    $region53: #{har_forward.1} parent=1 // pred_fallthru
      _
    // Predicated region
    $region54: #{har_forward.1} parent=1 // pred_check
      _
    $region55: #{har_forward.1} parent=1 // pred_check_branch
      %8536 = sbr.rel (0) target = $region57
    $region56: #{har_forward.1} parent=1 // pred_region
      %8538 = dma.done [#allocation12], 32
    $region57: #{har_forward.1} parent=1 // pred_fallthru
      _
    %8539 = vsyncpa [#allocation12], 1

</llo_original>
